<compile_context>
chip_gen: v6e
topology: v6e:2x2x1
jax: 0.10.0
libtpu: 0.0.40
codegen_flags: <defaults>
</compile_context>

<pallas_src>
import math

import jax
import jax.numpy as jnp
from jax import lax
from jax.experimental import pallas as pl
from jax.experimental.pallas import tpu as pltpu

# ----------------------------- config ------------------------------------
B, C_LAT, F_FRAMES, H, W = 2, 4, 2, 8, 8      # batch, latent channels, frames, spatial
POSE_CH = 3                                   # pose image channels
SEQ = 6                                       # reid sequence length (seq_len=6 in forward)
SEQ_PAD = 8                                   # feature tokens padded to a sublane multiple
REID_DIM = 32                                 # reid / ifr feature dim
HIDDEN = 32                                   # UNet inner channel / context dim
PG_HIDDEN = 16                                # PoseGuider hidden channels
CL_PAD = 8                                    # latent channels padded
PC_PAD = 8                                    # pose channels padded
OUT_PAD = 128                                 # out-conv channels padded -> lane-dense store


def _silu(x):
    # x * sigmoid(x); the divide goes to the EUP slot (approx reciprocal), not the VALU.
    return x * pl.reciprocal(1.0 + jnp.exp(-x), approx=True)


def timestep_embedding(t, dim):
    half = dim // 2
    freqs = jnp.exp(-math.log(10000.0) * jnp.arange(half, dtype=jnp.float32) / half)
    args = t.astype(jnp.float32)[:, None] * freqs[None, :]
    return jnp.concatenate([jnp.sin(args), jnp.cos(args)], axis=-1)


# --------------------------- fused network kernel ---------------------------
def _make_net_kernel(Ff, Hh, Ww, uncond):
    T = Ff * Hh * Ww          # denoiser tokens per batch (frames folded into M)
    HWr = Hh * Ww             # reference tokens
    scale = 1.0 / math.sqrt(HIDDEN)

    def im2col(read):
        # read(dy, dx) -> (rows, Cin); one lane concat -> (rows, 9*Cin) for a single MXU dot
        return jnp.concatenate([read(dy, dx) for dy in range(3) for dx in range(3)], axis=-1)

    def kernel(pose_ref, lat_ref, ref_ref, feats_ref, temb_ref,
               pg_w1, pg_b1, pg_w2, pg_b2,
               reid_w, reid_b, ifr_w, ifr_b,
               ref_w, ref_b, in_w, in_b,
               t_w1, t_b1, t_w2, t_b2,
               wq, w_kv, wo, out_w, out_b,
               o_ref, buf):
        f32, bf16 = jnp.float32, jnp.bfloat16

        def mm(a, w_ref):  # bf16 MXU dot, f32 accumulation
            return jnp.dot(a.astype(bf16), w_ref[...], preferred_element_type=f32)

        # zero the halo'd scratch once per grid step; interiors are fully rewritten per stage
        buf[...] = jnp.zeros_like(buf)

        # ---- PoseGuider conv1: 3x3 (PC_PAD -> PG_HIDDEN) + SiLU (input arrives pre-padded) ----
        pats = im2col(lambda dy, dx:
                      pose_ref[0, :, dy:dy + Hh, dx:dx + Ww, :].reshape(T, PC_PAD))
        pose_h = _silu(mm(pats, pg_w1) + pg_b1[...])                       # (T, 16)

        # ---- PoseGuider conv2: 3x3 (PG_HIDDEN -> CL_PAD) ----
        buf[:, 1:1 + Hh, 1:1 + Ww, :PG_HIDDEN] = pose_h.reshape(Ff, Hh, Ww, PG_HIDDEN)
        pats = im2col(lambda dy, dx:
                      buf[:, dy:dy + Hh, dx:dx + Ww, :PG_HIDDEN].reshape(T, PG_HIDDEN))
        pose_fea = mm(pats, pg_w2) + pg_b2[...]                            # (T, CL_PAD)

        # ---- timestep MLP (rows broadcast to 8 for clean MXU tiles; SiLU fused) ----
        t = jnp.broadcast_to(temb_ref[0], (SEQ_PAD, HIDDEN))
        t = _silu(mm(t, t_w1) + t_b1[...])
        t = mm(t, t_w2) + t_b2[...]
        temb_row = t[:1]                                                   # (1, HIDDEN)

        # ---- denoiser in-conv on x = latents + pose_fea (temb add + SiLU fused) ----
        buf[:, 1:1 + Hh, 1:1 + Ww, :CL_PAD] = (
            lat_ref[0].astype(f32) + pose_fea.reshape(Ff, Hh, Ww, CL_PAD))
        pats = im2col(lambda dy, dx:
                      buf[:, dy:dy + Hh, dx:dx + Ww, :CL_PAD].reshape(T, CL_PAD))
        h = _silu(mm(pats, in_w) + in_b[...] + temb_row)                   # (T, HIDDEN)

        # ---- reid_net (linear+ReLU) + ifr (linear) stand-ins on feature embeds ----
        fe = feats_ref[0]                                                  # (SEQ_PAD, REID_DIM)
        fe = jnp.maximum(mm(fe, reid_w) + reid_b[...], 0.0)
        fe = mm(fe, ifr_w) + ifr_b[...]                                    # (SEQ_PAD, HIDDEN)

        # ---- reference-unet stand-in (ref_timesteps = 0 => no time dependence) ----
        if not uncond:
            rpats = im2col(lambda dy, dx:
                           ref_ref[0, dy:dy + Hh, dx:dx + Ww, :].reshape(HWr, CL_PAD))
            ref_tok = _silu(mm(rpats, ref_w) + ref_b[...])                 # (HWr, HIDDEN)
            kv_src = jnp.concatenate([fe, ref_tok], axis=0)                # (SEQ_PAD+HWr, HIDDEN)
        else:
            kv_src = fe

        # ---- attention over all frames' tokens; Q/KV/WO + mask + residual + SiLU fused ----
        q = mm(h, wq)                                                      # (T, HIDDEN)
        kv = mm(kv_src, w_kv)                                              # (L, 2*HIDDEN)
        k = kv[:, :HIDDEN]
        v = kv[:, HIDDEN:]
        s = lax.dot_general(q.astype(bf16), k.astype(bf16),
                            (((1,), (1,)), ((), ())),
                            preferred_element_type=f32) * scale            # (T, L)
        col = lax.broadcasted_iota(jnp.int32, s.shape, 1)
        valid = (col < SEQ) if uncond else ((col < SEQ) | (col >= SEQ_PAD))
        s = jnp.where(valid, s, -1e30)                                     # key-padding mask
        m = jnp.max(s, axis=-1, keepdims=True)
        p = jnp.exp(s - m)
        inv_l = pl.reciprocal(jnp.sum(p, axis=-1, keepdims=True), approx=True)
        o = jnp.dot(p.astype(bf16), v.astype(bf16), preferred_element_type=f32) * inv_l
        o = mm(o, wo)
        attn = _silu(h + o)                                                # (T, HIDDEN)

        # ---- out-conv: 3x3 (HIDDEN -> OUT_PAD); single dot, lane-dense (128-wide) store ----
        buf[:, 1:1 + Hh, 1:1 + Ww, :HIDDEN] = attn.reshape(Ff, Hh, Ww, HIDDEN)
        pats = im2col(lambda dy, dx:
                      buf[:, dy:dy + Hh, dx:dx + Ww, :HIDDEN].reshape(T, HIDDEN))
        o_ref[0] = mm(pats, out_w) + out_b[...]                            # (T, OUT_PAD)

    return kernel


def _full_spec(shape):
    n = len(shape)
    return pl.BlockSpec(shape, lambda b, n=n: (0,) * n)


_WEIGHT_ORDER = ('pg_w1', 'pg_b1', 'pg_w2', 'pg_b2',
                 'reid_w', 'reid_b', 'ifr_w', 'ifr_b',
                 'ref_w', 'ref_b', 'in_w', 'in_b',
                 't_w1', 't_b1', 't_w2', 't_b2',
                 'wq', 'w_kv', 'wo', 'out_w', 'out_b')


# ------------------------- parameter init ----------------------------------
def init_params(key):
    def dense(k, fan_in, shape):
        return jax.random.normal(k, shape, jnp.float32) / math.sqrt(fan_in)

    def conv_w(k, cin, cout, cin_pad=None, cout_pad=None):
        # conv weight stored pre-reshaped to (9*Cin, Cout) bf16 (padded rows/cols are zero)
        w = dense(k, 9 * cin, (3, 3, cin, cout))
        ci = cin_pad or cin
        co = cout_pad or cout
        w = jnp.pad(w, ((0, 0), (0, 0), (0, ci - cin), (0, co - cout)))
        return w.reshape(9 * ci, co).astype(jnp.bfloat16)

    def lin_w(k, fan_in, shape):
        return dense(k, fan_in, shape).astype(jnp.bfloat16)

    def bias(n):
        return jnp.zeros((1, n), jnp.float32)

    keys = jax.random.split(key, 16)
    p = {}
    p['pg_w1'] = conv_w(keys[0], POSE_CH, PG_HIDDEN, cin_pad=PC_PAD)       # (72, 16)
    p['pg_b1'] = bias(PG_HIDDEN)
    p['pg_w2'] = conv_w(keys[1], PG_HIDDEN, C_LAT, cout_pad=CL_PAD)        # (144, 8)
    p['pg_b2'] = bias(CL_PAD)
    p['reid_w'] = lin_w(keys[2], REID_DIM, (REID_DIM, REID_DIM))
    p['reid_b'] = bias(REID_DIM)
    p['ifr_w'] = lin_w(keys[3], REID_DIM, (REID_DIM, HIDDEN))
    p['ifr_b'] = bias(HIDDEN)
    p['ref_w'] = conv_w(keys[4], C_LAT, HIDDEN, cin_pad=CL_PAD)            # (72, 32)
    p['ref_b'] = bias(HIDDEN)
    p['in_w'] = conv_w(keys[5], C_LAT, HIDDEN, cin_pad=CL_PAD)             # (72, 32)
    p['in_b'] = bias(HIDDEN)
    p['t_w1'] = lin_w(keys[6], HIDDEN, (HIDDEN, HIDDEN))
    p['t_b1'] = bias(HIDDEN)
    p['t_w2'] = lin_w(keys[7], HIDDEN, (HIDDEN, HIDDEN))
    p['t_b2'] = bias(HIDDEN)
    p['wq'] = lin_w(keys[8], HIDDEN, (HIDDEN, HIDDEN))
    wk = dense(keys[9], HIDDEN, (HIDDEN, HIDDEN))
    wv = dense(keys[10], HIDDEN, (HIDDEN, HIDDEN))
    p['w_kv'] = jnp.concatenate([wk, wv], axis=1).astype(jnp.bfloat16)     # fused K/V (32, 64)
    p['wo'] = lin_w(keys[11], HIDDEN, (HIDDEN, HIDDEN))
    p['out_w'] = conv_w(keys[12], HIDDEN, C_LAT, cout_pad=OUT_PAD)         # (288, 128)
    p['out_b'] = bias(OUT_PAD)
    return p


# ------------------------------- Net.forward --------------------------------
def net_forward(p, noisy_latents, timesteps, ref_image_latents, feature_embeds,
                pose_img, uncond_fwd=False):
    Bb, Cc, Ff, Hh, Ww = noisy_latents.shape
    T = Ff * Hh * Ww

    # one-time layout change at the model boundary (channels-last, channel pad, spatial halo)
    lat = jnp.transpose(noisy_latents, (0, 2, 3, 4, 1))
    lat = jnp.pad(lat, ((0, 0),) * 4 + ((0, CL_PAD - Cc),)).astype(jnp.bfloat16)
    pose = jnp.transpose(pose_img, (0, 2, 3, 4, 1))
    pose = jnp.pad(pose, ((0, 0), (0, 0), (1, 1), (1, 1),
                          (0, PC_PAD - pose.shape[-1]))).astype(jnp.float32)
    ref = jnp.transpose(ref_image_latents, (0, 2, 3, 1))
    ref = jnp.pad(ref, ((0, 0), (1, 1), (1, 1), (0, CL_PAD - Cc))).astype(jnp.float32)
    feats = jnp.pad(feature_embeds,
                    ((0, 0), (0, SEQ_PAD - feature_embeds.shape[1]), (0, 0))).astype(jnp.bfloat16)
    temb = timestep_embedding(timesteps, HIDDEN).reshape(Bb, 1, HIDDEN)

    data = [pose, lat, ref, feats, temb]
    data_specs = [
        pl.BlockSpec((1, Ff, Hh + 2, Ww + 2, PC_PAD), lambda b: (b, 0, 0, 0, 0)),
        pl.BlockSpec((1, Ff, Hh, Ww, CL_PAD), lambda b: (b, 0, 0, 0, 0)),
        pl.BlockSpec((1, Hh + 2, Ww + 2, CL_PAD), lambda b: (b, 0, 0, 0)),
        pl.BlockSpec((1, SEQ_PAD, REID_DIM), lambda b: (b, 0, 0)),
        pl.BlockSpec((1, 1, HIDDEN), lambda b: (b, 0, 0)),
    ]
    w_args = [p[n] for n in _WEIGHT_ORDER]
    w_specs = [_full_spec(p[n].shape) for n in _WEIGHT_ORDER]

    out = pl.pallas_call(
        _make_net_kernel(Ff, Hh, Ww, uncond_fwd),
        out_shape=jax.ShapeDtypeStruct((Bb, T, OUT_PAD), jnp.float32),
        grid=(Bb,),
        in_specs=data_specs + w_specs,
        out_specs=pl.BlockSpec((1, T, OUT_PAD), lambda b: (b, 0, 0)),
        scratch_shapes=[pltpu.VMEM((Ff, Hh + 2, Ww + 2, HIDDEN), jnp.float32)],
        compiler_params=pltpu.CompilerParams(
            dimension_semantics=("parallel",)),      # batch axis shards across TCs on v7x
    )(*data, *w_args)

    out = out[..., :Cc].reshape(Bb, Ff, Hh, Ww, Cc)  # un-pad once at the output
    return jnp.transpose(out, (0, 4, 1, 2, 3))       # (B, C, F, H, W)


# --------------------------------- main --------------------------------------
if __name__ == "__main__":
    key = jax.random.PRNGKey(0)
    k1, k2, k3, k4, kp = jax.random.split(key, 5)
    params = init_params(kp)

    noisy_latents = jax.random.normal(k1, (B, C_LAT, F_FRAMES, H, W), jnp.float32)
    timesteps = jnp.array([10, 500], dtype=jnp.int32)
    ref_image_latents = jax.random.normal(k2, (B, C_LAT, H, W), jnp.float32)
    feature_embeds = jax.random.normal(k3, (B, SEQ, REID_DIM), jnp.float32)
    pose_img = jax.random.normal(k4, (B, POSE_CH, F_FRAMES, H, W), jnp.float32)

    fwd = jax.jit(net_forward, static_argnames=("uncond_fwd",))
    out = fwd(params, noisy_latents, timesteps, ref_image_latents,
              feature_embeds, pose_img, uncond_fwd=False)
    jax.block_until_ready(out)
    assert out.shape == (B, C_LAT, F_FRAMES, H, W), out.shape
    assert out.dtype == jnp.float32
    print("KERNEL_OK")
</pallas_src>

<mosaic_0001>
module attributes {stable_mosaic.version = 11 : i64} {
  func.func @kernel(%arg0: i32, %arg1: memref<1x2x10x10x8xf32, #tpu.memory_space<vmem>>, %arg2: memref<1x2x8x8x8xbf16, #tpu.memory_space<vmem>>, %arg3: memref<1x10x10x8xf32, #tpu.memory_space<vmem>>, %arg4: memref<1x8x32xbf16, #tpu.memory_space<vmem>>, %arg5: memref<1x1x32xf32, #tpu.memory_space<vmem>>, %arg6: memref<72x16xbf16, #tpu.memory_space<vmem>>, %arg7: memref<1x16xf32, #tpu.memory_space<vmem>>, %arg8: memref<144x8xbf16, #tpu.memory_space<vmem>>, %arg9: memref<1x8xf32, #tpu.memory_space<vmem>>, %arg10: memref<32x32xbf16, #tpu.memory_space<vmem>>, %arg11: memref<1x32xf32, #tpu.memory_space<vmem>>, %arg12: memref<32x32xbf16, #tpu.memory_space<vmem>>, %arg13: memref<1x32xf32, #tpu.memory_space<vmem>>, %arg14: memref<72x32xbf16, #tpu.memory_space<vmem>>, %arg15: memref<1x32xf32, #tpu.memory_space<vmem>>, %arg16: memref<72x32xbf16, #tpu.memory_space<vmem>>, %arg17: memref<1x32xf32, #tpu.memory_space<vmem>>, %arg18: memref<32x32xbf16, #tpu.memory_space<vmem>>, %arg19: memref<1x32xf32, #tpu.memory_space<vmem>>, %arg20: memref<32x32xbf16, #tpu.memory_space<vmem>>, %arg21: memref<1x32xf32, #tpu.memory_space<vmem>>, %arg22: memref<32x32xbf16, #tpu.memory_space<vmem>>, %arg23: memref<32x64xbf16, #tpu.memory_space<vmem>>, %arg24: memref<32x32xbf16, #tpu.memory_space<vmem>>, %arg25: memref<288x128xbf16, #tpu.memory_space<vmem>>, %arg26: memref<1x128xf32, #tpu.memory_space<vmem>>, %arg27: memref<1x128x128xf32, #tpu.memory_space<vmem>>, %arg28: memref<2x10x10x32xf32, #tpu.memory_space<vmem>>) attributes {dimension_semantics = [#tpu.dimension_semantics<parallel>], iteration_bounds = array<i64: 2>, scalar_prefetch = 0 : i64, scratch_operands = 1 : i64, tpu.core_type = #tpu.core_type<tc>, window_params = [{transform_indices = @transform_0, window_bounds = array<i64: 1, 2, 10, 10, 8>}, {transform_indices = @transform_1, window_bounds = array<i64: 1, 2, 8, 8, 8>}, {transform_indices = @transform_2, window_bounds = array<i64: 1, 10, 10, 8>}, {transform_indices = @transform_3, window_bounds = array<i64: 1, 8, 32>}, {transform_indices = @transform_4, window_bounds = array<i64: 1, 1, 32>}, {pipeline_mode = #tpu.pipeline_mode<synchronous>, transform_indices = @transform_5, window_bounds = array<i64: 72, 16>}, {pipeline_mode = #tpu.pipeline_mode<synchronous>, transform_indices = @transform_6, window_bounds = array<i64: 1, 16>}, {pipeline_mode = #tpu.pipeline_mode<synchronous>, transform_indices = @transform_7, window_bounds = array<i64: 144, 8>}, {pipeline_mode = #tpu.pipeline_mode<synchronous>, transform_indices = @transform_8, window_bounds = array<i64: 1, 8>}, {pipeline_mode = #tpu.pipeline_mode<synchronous>, transform_indices = @transform_9, window_bounds = array<i64: 32, 32>}, {pipeline_mode = #tpu.pipeline_mode<synchronous>, transform_indices = @transform_10, window_bounds = array<i64: 1, 32>}, {pipeline_mode = #tpu.pipeline_mode<synchronous>, transform_indices = @transform_11, window_bounds = array<i64: 32, 32>}, {pipeline_mode = #tpu.pipeline_mode<synchronous>, transform_indices = @transform_12, window_bounds = array<i64: 1, 32>}, {pipeline_mode = #tpu.pipeline_mode<synchronous>, transform_indices = @transform_13, window_bounds = array<i64: 72, 32>}, {pipeline_mode = #tpu.pipeline_mode<synchronous>, transform_indices = @transform_14, window_bounds = array<i64: 1, 32>}, {pipeline_mode = #tpu.pipeline_mode<synchronous>, transform_indices = @transform_15, window_bounds = array<i64: 72, 32>}, {pipeline_mode = #tpu.pipeline_mode<synchronous>, transform_indices = @transform_16, window_bounds = array<i64: 1, 32>}, {pipeline_mode = #tpu.pipeline_mode<synchronous>, transform_indices = @transform_17, window_bounds = array<i64: 32, 32>}, {pipeline_mode = #tpu.pipeline_mode<synchronous>, transform_indices = @transform_18, window_bounds = array<i64: 1, 32>}, {pipeline_mode = #tpu.pipeline_mode<synchronous>, transform_indices = @transform_19, window_bounds = array<i64: 32, 32>}, {pipeline_mode = #tpu.pipeline_mode<synchronous>, transform_indices = @transform_20, window_bounds = array<i64: 1, 32>}, {pipeline_mode = #tpu.pipeline_mode<synchronous>, transform_indices = @transform_21, window_bounds = array<i64: 32, 32>}, {pipeline_mode = #tpu.pipeline_mode<synchronous>, transform_indices = @transform_22, window_bounds = array<i64: 32, 64>}, {pipeline_mode = #tpu.pipeline_mode<synchronous>, transform_indices = @transform_23, window_bounds = array<i64: 32, 32>}, {pipeline_mode = #tpu.pipeline_mode<synchronous>, transform_indices = @transform_24, window_bounds = array<i64: 288, 128>}, {pipeline_mode = #tpu.pipeline_mode<synchronous>, transform_indices = @transform_25, window_bounds = array<i64: 1, 128>}, {transform_indices = @transform_26, window_bounds = array<i64: 1, 128, 128>}]} {
    %cst = arith.constant 0.000000e+00 : f32
    %0 = vector.broadcast %cst : f32 to vector<2x10x10x32xf32>
    %c0 = arith.constant 0 : index
    %c0_0 = arith.constant 0 : index
    %c0_1 = arith.constant 0 : index
    %c0_2 = arith.constant 0 : index
    %1 = vector.load %arg28[%c0, %c0_0, %c0_1, %c0_2] : memref<2x10x10x32xf32, #tpu.memory_space<vmem>>, vector<2x10x10x32xf32>
    tpu.vector_store %arg28[%c0, %c0_0, %c0_1, %c0_2], %0 {strides = array<i32>} : memref<2x10x10x32xf32, #tpu.memory_space<vmem>>, vector<2x10x10x32xf32>,
    %c0_3 = arith.constant 0 : index
    %c0_4 = arith.constant 0 : index
    %c0_5 = arith.constant 0 : index
    %c0_6 = arith.constant 0 : index
    %c0_7 = arith.constant 0 : index
    %2 = vector.load %arg1[%c0_3, %c0_4, %c0_5, %c0_6, %c0_7] : memref<1x2x10x10x8xf32, #tpu.memory_space<vmem>>, vector<1x2x8x8x8xf32>
    %3 = vector.shape_cast %2 : vector<1x2x8x8x8xf32> to vector<2x8x8x8xf32>
    %4 = vector.shape_cast %3 : vector<2x8x8x8xf32> to vector<128x8xf32>
    %c0_8 = arith.constant 0 : index
    %c0_9 = arith.constant 0 : index
    %c0_10 = arith.constant 0 : index
    %c1 = arith.constant 1 : index
    %c0_11 = arith.constant 0 : index
    %5 = vector.load %arg1[%c0_8, %c0_9, %c0_10, %c1, %c0_11] : memref<1x2x10x10x8xf32, #tpu.memory_space<vmem>>, vector<1x2x8x8x8xf32>
    %6 = vector.shape_cast %5 : vector<1x2x8x8x8xf32> to vector<2x8x8x8xf32>
    %7 = vector.shape_cast %6 : vector<2x8x8x8xf32> to vector<128x8xf32>
    %c0_12 = arith.constant 0 : index
    %c0_13 = arith.constant 0 : index
    %c0_14 = arith.constant 0 : index
    %c2 = arith.constant 2 : index
    %c0_15 = arith.constant 0 : index
    %8 = vector.load %arg1[%c0_12, %c0_13, %c0_14, %c2, %c0_15] : memref<1x2x10x10x8xf32, #tpu.memory_space<vmem>>, vector<1x2x8x8x8xf32>
    %9 = vector.shape_cast %8 : vector<1x2x8x8x8xf32> to vector<2x8x8x8xf32>
    %10 = vector.shape_cast %9 : vector<2x8x8x8xf32> to vector<128x8xf32>
    %c0_16 = arith.constant 0 : index
    %c0_17 = arith.constant 0 : index
    %c1_18 = arith.constant 1 : index
    %c0_19 = arith.constant 0 : index
    %c0_20 = arith.constant 0 : index
    %11 = vector.load %arg1[%c0_16, %c0_17, %c1_18, %c0_19, %c0_20] : memref<1x2x10x10x8xf32, #tpu.memory_space<vmem>>, vector<1x2x8x8x8xf32>
    %12 = vector.shape_cast %11 : vector<1x2x8x8x8xf32> to vector<2x8x8x8xf32>
    %13 = vector.shape_cast %12 : vector<2x8x8x8xf32> to vector<128x8xf32>
    %c0_21 = arith.constant 0 : index
    %c0_22 = arith.constant 0 : index
    %c1_23 = arith.constant 1 : index
    %c1_24 = arith.constant 1 : index
    %c0_25 = arith.constant 0 : index
    %14 = vector.load %arg1[%c0_21, %c0_22, %c1_23, %c1_24, %c0_25] : memref<1x2x10x10x8xf32, #tpu.memory_space<vmem>>, vector<1x2x8x8x8xf32>
    %15 = vector.shape_cast %14 : vector<1x2x8x8x8xf32> to vector<2x8x8x8xf32>
    %16 = vector.shape_cast %15 : vector<2x8x8x8xf32> to vector<128x8xf32>
    %c0_26 = arith.constant 0 : index
    %c0_27 = arith.constant 0 : index
    %c1_28 = arith.constant 1 : index
    %c2_29 = arith.constant 2 : index
    %c0_30 = arith.constant 0 : index
    %17 = vector.load %arg1[%c0_26, %c0_27, %c1_28, %c2_29, %c0_30] : memref<1x2x10x10x8xf32, #tpu.memory_space<vmem>>, vector<1x2x8x8x8xf32>
    %18 = vector.shape_cast %17 : vector<1x2x8x8x8xf32> to vector<2x8x8x8xf32>
    %19 = vector.shape_cast %18 : vector<2x8x8x8xf32> to vector<128x8xf32>
    %c0_31 = arith.constant 0 : index
    %c0_32 = arith.constant 0 : index
    %c2_33 = arith.constant 2 : index
    %c0_34 = arith.constant 0 : index
    %c0_35 = arith.constant 0 : index
    %20 = vector.load %arg1[%c0_31, %c0_32, %c2_33, %c0_34, %c0_35] : memref<1x2x10x10x8xf32, #tpu.memory_space<vmem>>, vector<1x2x8x8x8xf32>
    %21 = vector.shape_cast %20 : vector<1x2x8x8x8xf32> to vector<2x8x8x8xf32>
    %22 = vector.shape_cast %21 : vector<2x8x8x8xf32> to vector<128x8xf32>
    %c0_36 = arith.constant 0 : index
    %c0_37 = arith.constant 0 : index
    %c2_38 = arith.constant 2 : index
    %c1_39 = arith.constant 1 : index
    %c0_40 = arith.constant 0 : index
    %23 = vector.load %arg1[%c0_36, %c0_37, %c2_38, %c1_39, %c0_40] : memref<1x2x10x10x8xf32, #tpu.memory_space<vmem>>, vector<1x2x8x8x8xf32>
    %24 = vector.shape_cast %23 : vector<1x2x8x8x8xf32> to vector<2x8x8x8xf32>
    %25 = vector.shape_cast %24 : vector<2x8x8x8xf32> to vector<128x8xf32>
    %c0_41 = arith.constant 0 : index
    %c0_42 = arith.constant 0 : index
    %c2_43 = arith.constant 2 : index
    %c2_44 = arith.constant 2 : index
    %c0_45 = arith.constant 0 : index
    %26 = vector.load %arg1[%c0_41, %c0_42, %c2_43, %c2_44, %c0_45] : memref<1x2x10x10x8xf32, #tpu.memory_space<vmem>>, vector<1x2x8x8x8xf32>
    %27 = vector.shape_cast %26 : vector<1x2x8x8x8xf32> to vector<2x8x8x8xf32>
    %28 = vector.shape_cast %27 : vector<2x8x8x8xf32> to vector<128x8xf32>
    %29 = tpu.concatenate %4, %7, %10, %13, %16, %19, %22, %25, %28 in 1 : vector<128x8xf32>, vector<128x8xf32>, vector<128x8xf32>, vector<128x8xf32>, vector<128x8xf32>, vector<128x8xf32>, vector<128x8xf32>, vector<128x8xf32>, vector<128x8xf32> -> vector<128x72xf32>
    %30 = arith.truncf %29 : vector<128x72xf32> to vector<128x72xbf16>
    %c0_46 = arith.constant 0 : index
    %c0_47 = arith.constant 0 : index
    %31 = vector.load %arg6[%c0_46, %c0_47] : memref<72x16xbf16, #tpu.memory_space<vmem>>, vector<72x16xbf16>
    %cst_48 = arith.constant dense<0.000000e+00> : vector<128x16xf32>
    %32 = tpu.matmul %30, %31, %cst_48 {dimension_numbers = #tpu.dot_dimension_numbers<[1], [0], [0], [1], [0, 0, 1, 1], [], []>} : vector<128x72xbf16>, vector<72x16xbf16>, vector<128x16xf32> -> vector<128x16xf32>
    %c0_49 = arith.constant 0 : index
    %c0_50 = arith.constant 0 : index
    %33 = vector.load %arg7[%c0_49, %c0_50] : memref<1x16xf32, #tpu.memory_space<vmem>>, vector<1x16xf32>
    %34 = vector.broadcast %33 : vector<1x16xf32> to vector<128x16xf32>
    %35 = arith.addf %32, %34 : vector<128x16xf32>
    %cst_51 = arith.constant 0.000000e+00 : f32
    %36 = vector.broadcast %cst_51 : f32 to vector<128x16xf32>
    %37 = arith.subf %36, %35 : vector<128x16xf32>
    %38 = math.exp %37 : vector<128x16xf32>
    %cst_52 = arith.constant 1.000000e+00 : f32
    %39 = vector.broadcast %cst_52 : f32 to vector<128x16xf32>
    %40 = arith.addf %39, %38 : vector<128x16xf32>
    %41 = tpu.reciprocal %40 {approx = true} : vector<128x16xf32> -> vector<128x16xf32>
    %42 = arith.mulf %35, %41 : vector<128x16xf32>
    %43 = vector.shape_cast %42 : vector<128x16xf32> to vector<2x8x8x16xf32>
    %c0_53 = arith.constant 0 : index
    %c1_54 = arith.constant 1 : index
    %c1_55 = arith.constant 1 : index
    %c0_56 = arith.constant 0 : index
    %44 = vector.load %arg28[%c0_53, %c1_54, %c1_55, %c0_56] : memref<2x10x10x32xf32, #tpu.memory_space<vmem>>, vector<2x8x8x16xf32>
    tpu.vector_store %arg28[%c0_53, %c1_54, %c1_55, %c0_56], %43 {strides = array<i32>} : memref<2x10x10x32xf32, #tpu.memory_space<vmem>>, vector<2x8x8x16xf32>,
    %c0_57 = arith.constant 0 : index
    %c0_58 = arith.constant 0 : index
    %c0_59 = arith.constant 0 : index
    %c0_60 = arith.constant 0 : index
    %45 = vector.load %arg28[%c0_57, %c0_58, %c0_59, %c0_60] : memref<2x10x10x32xf32, #tpu.memory_space<vmem>>, vector<2x8x8x16xf32>
    %46 = vector.shape_cast %45 : vector<2x8x8x16xf32> to vector<128x16xf32>
    %c0_61 = arith.constant 0 : index
    %c0_62 = arith.constant 0 : index
    %c1_63 = arith.constant 1 : index
    %c0_64 = arith.constant 0 : index
    %47 = vector.load %arg28[%c0_61, %c0_62, %c1_63, %c0_64] : memref<2x10x10x32xf32, #tpu.memory_space<vmem>>, vector<2x8x8x16xf32>
    %48 = vector.shape_cast %47 : vector<2x8x8x16xf32> to vector<128x16xf32>
    %c0_65 = arith.constant 0 : index
    %c0_66 = arith.constant 0 : index
    %c2_67 = arith.constant 2 : index
    %c0_68 = arith.constant 0 : index
    %49 = vector.load %arg28[%c0_65, %c0_66, %c2_67, %c0_68] : memref<2x10x10x32xf32, #tpu.memory_space<vmem>>, vector<2x8x8x16xf32>
    %50 = vector.shape_cast %49 : vector<2x8x8x16xf32> to vector<128x16xf32>
    %c0_69 = arith.constant 0 : index
    %c1_70 = arith.constant 1 : index
    %c0_71 = arith.constant 0 : index
    %c0_72 = arith.constant 0 : index
    %51 = vector.load %arg28[%c0_69, %c1_70, %c0_71, %c0_72] : memref<2x10x10x32xf32, #tpu.memory_space<vmem>>, vector<2x8x8x16xf32>
    %52 = vector.shape_cast %51 : vector<2x8x8x16xf32> to vector<128x16xf32>
    %c0_73 = arith.constant 0 : index
    %c1_74 = arith.constant 1 : index
    %c1_75 = arith.constant 1 : index
    %c0_76 = arith.constant 0 : index
    %53 = vector.load %arg28[%c0_73, %c1_74, %c1_75, %c0_76] : memref<2x10x10x32xf32, #tpu.memory_space<vmem>>, vector<2x8x8x16xf32>
    %54 = vector.shape_cast %53 : vector<2x8x8x16xf32> to vector<128x16xf32>
    %c0_77 = arith.constant 0 : index
    %c1_78 = arith.constant 1 : index
    %c2_79 = arith.constant 2 : index
    %c0_80 = arith.constant 0 : index
    %55 = vector.load %arg28[%c0_77, %c1_78, %c2_79, %c0_80] : memref<2x10x10x32xf32, #tpu.memory_space<vmem>>, vector<2x8x8x16xf32>
    %56 = vector.shape_cast %55 : vector<2x8x8x16xf32> to vector<128x16xf32>
    %c0_81 = arith.constant 0 : index
    %c2_82 = arith.constant 2 : index
    %c0_83 = arith.constant 0 : index
    %c0_84 = arith.constant 0 : index
    %57 = vector.load %arg28[%c0_81, %c2_82, %c0_83, %c0_84] : memref<2x10x10x32xf32, #tpu.memory_space<vmem>>, vector<2x8x8x16xf32>
    %58 = vector.shape_cast %57 : vector<2x8x8x16xf32> to vector<128x16xf32>
    %c0_85 = arith.constant 0 : index
    %c2_86 = arith.constant 2 : index
    %c1_87 = arith.constant 1 : index
    %c0_88 = arith.constant 0 : index
    %59 = vector.load %arg28[%c0_85, %c2_86, %c1_87, %c0_88] : memref<2x10x10x32xf32, #tpu.memory_space<vmem>>, vector<2x8x8x16xf32>
    %60 = vector.shape_cast %59 : vector<2x8x8x16xf32> to vector<128x16xf32>
    %c0_89 = arith.constant 0 : index
    %c2_90 = arith.constant 2 : index
    %c2_91 = arith.constant 2 : index
    %c0_92 = arith.constant 0 : index
    %61 = vector.load %arg28[%c0_89, %c2_90, %c2_91, %c0_92] : memref<2x10x10x32xf32, #tpu.memory_space<vmem>>, vector<2x8x8x16xf32>
    %62 = vector.shape_cast %61 : vector<2x8x8x16xf32> to vector<128x16xf32>
    %63 = tpu.concatenate %46, %48, %50, %52, %54, %56, %58, %60, %62 in 1 : vector<128x16xf32>, vector<128x16xf32>, vector<128x16xf32>, vector<128x16xf32>, vector<128x16xf32>, vector<128x16xf32>, vector<128x16xf32>, vector<128x16xf32>, vector<128x16xf32> -> vector<128x144xf32>
    %64 = arith.truncf %63 : vector<128x144xf32> to vector<128x144xbf16>
    %c0_93 = arith.constant 0 : index
    %c0_94 = arith.constant 0 : index
    %65 = vector.load %arg8[%c0_93, %c0_94] : memref<144x8xbf16, #tpu.memory_space<vmem>>, vector<144x8xbf16>
    %cst_95 = arith.constant dense<0.000000e+00> : vector<128x8xf32>
    %66 = tpu.matmul %64, %65, %cst_95 {dimension_numbers = #tpu.dot_dimension_numbers<[1], [0], [0], [1], [0, 0, 1, 1], [], []>} : vector<128x144xbf16>, vector<144x8xbf16>, vector<128x8xf32> -> vector<128x8xf32>
    %c0_96 = arith.constant 0 : index
    %c0_97 = arith.constant 0 : index
    %67 = vector.load %arg9[%c0_96, %c0_97] : memref<1x8xf32, #tpu.memory_space<vmem>>, vector<1x8xf32>
    %68 = vector.broadcast %67 : vector<1x8xf32> to vector<128x8xf32>
    %69 = arith.addf %66, %68 : vector<128x8xf32>
    %c0_98 = arith.constant 0 : index
    %c0_99 = arith.constant 0 : index
    %c0_100 = arith.constant 0 : index
    %70 = vector.load %arg5[%c0_98, %c0_99, %c0_100] : memref<1x1x32xf32, #tpu.memory_space<vmem>>, vector<1x1x32xf32>
    %71 = vector.shape_cast %70 : vector<1x1x32xf32> to vector<1x32xf32>
    %72 = vector.shape_cast %71 : vector<1x32xf32> to vector<1x32xf32>
    %73 = vector.broadcast %72 : vector<1x32xf32> to vector<8x32xf32>
    %74 = arith.truncf %73 : vector<8x32xf32> to vector<8x32xbf16>
    %c0_101 = arith.constant 0 : index
    %c0_102 = arith.constant 0 : index
    %75 = vector.load %arg18[%c0_101, %c0_102] : memref<32x32xbf16, #tpu.memory_space<vmem>>, vector<32x32xbf16>
    %cst_103 = arith.constant dense<0.000000e+00> : vector<8x32xf32>
    %76 = tpu.matmul %74, %75, %cst_103 {dimension_numbers = #tpu.dot_dimension_numbers<[1], [0], [0], [1], [0, 0, 1, 1], [], []>} : vector<8x32xbf16>, vector<32x32xbf16>, vector<8x32xf32> -> vector<8x32xf32>
    %c0_104 = arith.constant 0 : index
    %c0_105 = arith.constant 0 : index
    %77 = vector.load %arg19[%c0_104, %c0_105] : memref<1x32xf32, #tpu.memory_space<vmem>>, vector<1x32xf32>
    %78 = vector.broadcast %77 : vector<1x32xf32> to vector<8x32xf32>
    %79 = arith.addf %76, %78 : vector<8x32xf32>
    %cst_106 = arith.constant 0.000000e+00 : f32
    %80 = vector.broadcast %cst_106 : f32 to vector<8x32xf32>
    %81 = arith.subf %80, %79 : vector<8x32xf32>
    %82 = math.exp %81 : vector<8x32xf32>
    %cst_107 = arith.constant 1.000000e+00 : f32
    %83 = vector.broadcast %cst_107 : f32 to vector<8x32xf32>
    %84 = arith.addf %83, %82 : vector<8x32xf32>
    %85 = tpu.reciprocal %84 {approx = true} : vector<8x32xf32> -> vector<8x32xf32>
    %86 = arith.mulf %79, %85 : vector<8x32xf32>
    %87 = arith.truncf %86 : vector<8x32xf32> to vector<8x32xbf16>
    %c0_108 = arith.constant 0 : index
    %c0_109 = arith.constant 0 : index
    %88 = vector.load %arg20[%c0_108, %c0_109] : memref<32x32xbf16, #tpu.memory_space<vmem>>, vector<32x32xbf16>
    %cst_110 = arith.constant dense<0.000000e+00> : vector<8x32xf32>
    %89 = tpu.matmul %87, %88, %cst_110 {dimension_numbers = #tpu.dot_dimension_numbers<[1], [0], [0], [1], [0, 0, 1, 1], [], []>} : vector<8x32xbf16>, vector<32x32xbf16>, vector<8x32xf32> -> vector<8x32xf32>
    %c0_111 = arith.constant 0 : index
    %c0_112 = arith.constant 0 : index
    %90 = vector.load %arg21[%c0_111, %c0_112] : memref<1x32xf32, #tpu.memory_space<vmem>>, vector<1x32xf32>
    %91 = vector.broadcast %90 : vector<1x32xf32> to vector<8x32xf32>
    %92 = arith.addf %89, %91 : vector<8x32xf32>
    %93 = vector.extract_strided_slice %92 {offsets = [0, 0], sizes = [1, 32], strides = [1, 1]} : vector<8x32xf32> to vector<1x32xf32>
    %c0_113 = arith.constant 0 : index
    %c0_114 = arith.constant 0 : index
    %c0_115 = arith.constant 0 : index
    %c0_116 = arith.constant 0 : index
    %c0_117 = arith.constant 0 : index
    %94 = vector.load %arg2[%c0_113, %c0_114, %c0_115, %c0_116, %c0_117] : memref<1x2x8x8x8xbf16, #tpu.memory_space<vmem>>, vector<1x2x8x8x8xbf16>
    %95 = vector.shape_cast %94 : vector<1x2x8x8x8xbf16> to vector<2x8x8x8xbf16>
    %96 = arith.extf %95 : vector<2x8x8x8xbf16> to vector<2x8x8x8xf32>
    %97 = vector.shape_cast %69 : vector<128x8xf32> to vector<2x8x8x8xf32>
    %98 = arith.addf %96, %97 : vector<2x8x8x8xf32>
    %c0_118 = arith.constant 0 : index
    %c1_119 = arith.constant 1 : index
    %c1_120 = arith.constant 1 : index
    %c0_121 = arith.constant 0 : index
    %99 = vector.load %arg28[%c0_118, %c1_119, %c1_120, %c0_121] : memref<2x10x10x32xf32, #tpu.memory_space<vmem>>, vector<2x8x8x8xf32>
    tpu.vector_store %arg28[%c0_118, %c1_119, %c1_120, %c0_121], %98 {strides = array<i32>} : memref<2x10x10x32xf32, #tpu.memory_space<vmem>>, vector<2x8x8x8xf32>,
    %c0_122 = arith.constant 0 : index
    %c0_123 = arith.constant 0 : index
    %c0_124 = arith.constant 0 : index
    %c0_125 = arith.constant 0 : index
    %100 = vector.load %arg28[%c0_122, %c0_123, %c0_124, %c0_125] : memref<2x10x10x32xf32, #tpu.memory_space<vmem>>, vector<2x8x8x8xf32>
    %101 = vector.shape_cast %100 : vector<2x8x8x8xf32> to vector<128x8xf32>
    %c0_126 = arith.constant 0 : index
    %c0_127 = arith.constant 0 : index
    %c1_128 = arith.constant 1 : index
    %c0_129 = arith.constant 0 : index
    %102 = vector.load %arg28[%c0_126, %c0_127, %c1_128, %c0_129] : memref<2x10x10x32xf32, #tpu.memory_space<vmem>>, vector<2x8x8x8xf32>
    %103 = vector.shape_cast %102 : vector<2x8x8x8xf32> to vector<128x8xf32>
    %c0_130 = arith.constant 0 : index
    %c0_131 = arith.constant 0 : index
    %c2_132 = arith.constant 2 : index
    %c0_133 = arith.constant 0 : index
    %104 = vector.load %arg28[%c0_130, %c0_131, %c2_132, %c0_133] : memref<2x10x10x32xf32, #tpu.memory_space<vmem>>, vector<2x8x8x8xf32>
    %105 = vector.shape_cast %104 : vector<2x8x8x8xf32> to vector<128x8xf32>
    %c0_134 = arith.constant 0 : index
    %c1_135 = arith.constant 1 : index
    %c0_136 = arith.constant 0 : index
    %c0_137 = arith.constant 0 : index
    %106 = vector.load %arg28[%c0_134, %c1_135, %c0_136, %c0_137] : memref<2x10x10x32xf32, #tpu.memory_space<vmem>>, vector<2x8x8x8xf32>
    %107 = vector.shape_cast %106 : vector<2x8x8x8xf32> to vector<128x8xf32>
    %c0_138 = arith.constant 0 : index
    %c1_139 = arith.constant 1 : index
    %c1_140 = arith.constant 1 : index
    %c0_141 = arith.constant 0 : index
    %108 = vector.load %arg28[%c0_138, %c1_139, %c1_140, %c0_141] : memref<2x10x10x32xf32, #tpu.memory_space<vmem>>, vector<2x8x8x8xf32>
    %109 = vector.shape_cast %108 : vector<2x8x8x8xf32> to vector<128x8xf32>
    %c0_142 = arith.constant 0 : index
    %c1_143 = arith.constant 1 : index
    %c2_144 = arith.constant 2 : index
    %c0_145 = arith.constant 0 : index
    %110 = vector.load %arg28[%c0_142, %c1_143, %c2_144, %c0_145] : memref<2x10x10x32xf32, #tpu.memory_space<vmem>>, vector<2x8x8x8xf32>
    %111 = vector.shape_cast %110 : vector<2x8x8x8xf32> to vector<128x8xf32>
    %c0_146 = arith.constant 0 : index
    %c2_147 = arith.constant 2 : index
    %c0_148 = arith.constant 0 : index
    %c0_149 = arith.constant 0 : index
    %112 = vector.load %arg28[%c0_146, %c2_147, %c0_148, %c0_149] : memref<2x10x10x32xf32, #tpu.memory_space<vmem>>, vector<2x8x8x8xf32>
    %113 = vector.shape_cast %112 : vector<2x8x8x8xf32> to vector<128x8xf32>
    %c0_150 = arith.constant 0 : index
    %c2_151 = arith.constant 2 : index
    %c1_152 = arith.constant 1 : index
    %c0_153 = arith.constant 0 : index
    %114 = vector.load %arg28[%c0_150, %c2_151, %c1_152, %c0_153] : memref<2x10x10x32xf32, #tpu.memory_space<vmem>>, vector<2x8x8x8xf32>
    %115 = vector.shape_cast %114 : vector<2x8x8x8xf32> to vector<128x8xf32>
    %c0_154 = arith.constant 0 : index
    %c2_155 = arith.constant 2 : index
    %c2_156 = arith.constant 2 : index
    %c0_157 = arith.constant 0 : index
    %116 = vector.load %arg28[%c0_154, %c2_155, %c2_156, %c0_157] : memref<2x10x10x32xf32, #tpu.memory_space<vmem>>, vector<2x8x8x8xf32>
    %117 = vector.shape_cast %116 : vector<2x8x8x8xf32> to vector<128x8xf32>
    %118 = tpu.concatenate %101, %103, %105, %107, %109, %111, %113, %115, %117 in 1 : vector<128x8xf32>, vector<128x8xf32>, vector<128x8xf32>, vector<128x8xf32>, vector<128x8xf32>, vector<128x8xf32>, vector<128x8xf32>, vector<128x8xf32>, vector<128x8xf32> -> vector<128x72xf32>
    %119 = arith.truncf %118 : vector<128x72xf32> to vector<128x72xbf16>
    %c0_158 = arith.constant 0 : index
    %c0_159 = arith.constant 0 : index
    %120 = vector.load %arg16[%c0_158, %c0_159] : memref<72x32xbf16, #tpu.memory_space<vmem>>, vector<72x32xbf16>
    %cst_160 = arith.constant dense<0.000000e+00> : vector<128x32xf32>
    %121 = tpu.matmul %119, %120, %cst_160 {dimension_numbers = #tpu.dot_dimension_numbers<[1], [0], [0], [1], [0, 0, 1, 1], [], []>} : vector<128x72xbf16>, vector<72x32xbf16>, vector<128x32xf32> -> vector<128x32xf32>
    %c0_161 = arith.constant 0 : index
    %c0_162 = arith.constant 0 : index
    %122 = vector.load %arg17[%c0_161, %c0_162] : memref<1x32xf32, #tpu.memory_space<vmem>>, vector<1x32xf32>
    %123 = vector.broadcast %122 : vector<1x32xf32> to vector<128x32xf32>
    %124 = arith.addf %121, %123 : vector<128x32xf32>
    %125 = vector.broadcast %93 : vector<1x32xf32> to vector<128x32xf32>
    %126 = arith.addf %124, %125 : vector<128x32xf32>
    %cst_163 = arith.constant 0.000000e+00 : f32
    %127 = vector.broadcast %cst_163 : f32 to vector<128x32xf32>
    %128 = arith.subf %127, %126 : vector<128x32xf32>
    %129 = math.exp %128 : vector<128x32xf32>
    %cst_164 = arith.constant 1.000000e+00 : f32
    %130 = vector.broadcast %cst_164 : f32 to vector<128x32xf32>
    %131 = arith.addf %130, %129 : vector<128x32xf32>
    %132 = tpu.reciprocal %131 {approx = true} : vector<128x32xf32> -> vector<128x32xf32>
    %133 = arith.mulf %126, %132 : vector<128x32xf32>
    %c0_165 = arith.constant 0 : index
    %c0_166 = arith.constant 0 : index
    %c0_167 = arith.constant 0 : index
    %134 = vector.load %arg4[%c0_165, %c0_166, %c0_167] : memref<1x8x32xbf16, #tpu.memory_space<vmem>>, vector<1x8x32xbf16>
    %135 = vector.shape_cast %134 : vector<1x8x32xbf16> to vector<8x32xbf16>
    %c0_168 = arith.constant 0 : index
    %c0_169 = arith.constant 0 : index
    %136 = vector.load %arg10[%c0_168, %c0_169] : memref<32x32xbf16, #tpu.memory_space<vmem>>, vector<32x32xbf16>
    %cst_170 = arith.constant dense<0.000000e+00> : vector<8x32xf32>
    %137 = tpu.matmul %135, %136, %cst_170 {dimension_numbers = #tpu.dot_dimension_numbers<[1], [0], [0], [1], [0, 0, 1, 1], [], []>} : vector<8x32xbf16>, vector<32x32xbf16>, vector<8x32xf32> -> vector<8x32xf32>
    %c0_171 = arith.constant 0 : index
    %c0_172 = arith.constant 0 : index
    %138 = vector.load %arg11[%c0_171, %c0_172] : memref<1x32xf32, #tpu.memory_space<vmem>>, vector<1x32xf32>
    %139 = vector.broadcast %138 : vector<1x32xf32> to vector<8x32xf32>
    %140 = arith.addf %137, %139 : vector<8x32xf32>
    %cst_173 = arith.constant 0.000000e+00 : f32
    %141 = vector.broadcast %cst_173 : f32 to vector<8x32xf32>
    %142 = arith.maximumf %140, %141 : vector<8x32xf32>
    %143 = arith.truncf %142 : vector<8x32xf32> to vector<8x32xbf16>
    %c0_174 = arith.constant 0 : index
    %c0_175 = arith.constant 0 : index
    %144 = vector.load %arg12[%c0_174, %c0_175] : memref<32x32xbf16, #tpu.memory_space<vmem>>, vector<32x32xbf16>
    %cst_176 = arith.constant dense<0.000000e+00> : vector<8x32xf32>
    %145 = tpu.matmul %143, %144, %cst_176 {dimension_numbers = #tpu.dot_dimension_numbers<[1], [0], [0], [1], [0, 0, 1, 1], [], []>} : vector<8x32xbf16>, vector<32x32xbf16>, vector<8x32xf32> -> vector<8x32xf32>
    %c0_177 = arith.constant 0 : index
    %c0_178 = arith.constant 0 : index
    %146 = vector.load %arg13[%c0_177, %c0_178] : memref<1x32xf32, #tpu.memory_space<vmem>>, vector<1x32xf32>
    %147 = vector.broadcast %146 : vector<1x32xf32> to vector<8x32xf32>
    %148 = arith.addf %145, %147 : vector<8x32xf32>
    %c0_179 = arith.constant 0 : index
    %c0_180 = arith.constant 0 : index
    %c0_181 = arith.constant 0 : index
    %c0_182 = arith.constant 0 : index
    %149 = vector.load %arg3[%c0_179, %c0_180, %c0_181, %c0_182] : memref<1x10x10x8xf32, #tpu.memory_space<vmem>>, vector<1x8x8x8xf32>
    %150 = vector.shape_cast %149 : vector<1x8x8x8xf32> to vector<8x8x8xf32>
    %151 = vector.shape_cast %150 : vector<8x8x8xf32> to vector<64x8xf32>
    %c0_183 = arith.constant 0 : index
    %c0_184 = arith.constant 0 : index
    %c1_185 = arith.constant 1 : index
    %c0_186 = arith.constant 0 : index
    %152 = vector.load %arg3[%c0_183, %c0_184, %c1_185, %c0_186] : memref<1x10x10x8xf32, #tpu.memory_space<vmem>>, vector<1x8x8x8xf32>
    %153 = vector.shape_cast %152 : vector<1x8x8x8xf32> to vector<8x8x8xf32>
    %154 = vector.shape_cast %153 : vector<8x8x8xf32> to vector<64x8xf32>
    %c0_187 = arith.constant 0 : index
    %c0_188 = arith.constant 0 : index
    %c2_189 = arith.constant 2 : index
    %c0_190 = arith.constant 0 : index
    %155 = vector.load %arg3[%c0_187, %c0_188, %c2_189, %c0_190] : memref<1x10x10x8xf32, #tpu.memory_space<vmem>>, vector<1x8x8x8xf32>
    %156 = vector.shape_cast %155 : vector<1x8x8x8xf32> to vector<8x8x8xf32>
    %157 = vector.shape_cast %156 : vector<8x8x8xf32> to vector<64x8xf32>
    %c0_191 = arith.constant 0 : index
    %c1_192 = arith.constant 1 : index
    %c0_193 = arith.constant 0 : index
    %c0_194 = arith.constant 0 : index
    %158 = vector.load %arg3[%c0_191, %c1_192, %c0_193, %c0_194] : memref<1x10x10x8xf32, #tpu.memory_space<vmem>>, vector<1x8x8x8xf32>
    %159 = vector.shape_cast %158 : vector<1x8x8x8xf32> to vector<8x8x8xf32>
    %160 = vector.shape_cast %159 : vector<8x8x8xf32> to vector<64x8xf32>
    %c0_195 = arith.constant 0 : index
    %c1_196 = arith.constant 1 : index
    %c1_197 = arith.constant 1 : index
    %c0_198 = arith.constant 0 : index
    %161 = vector.load %arg3[%c0_195, %c1_196, %c1_197, %c0_198] : memref<1x10x10x8xf32, #tpu.memory_space<vmem>>, vector<1x8x8x8xf32>
    %162 = vector.shape_cast %161 : vector<1x8x8x8xf32> to vector<8x8x8xf32>
    %163 = vector.shape_cast %162 : vector<8x8x8xf32> to vector<64x8xf32>
    %c0_199 = arith.constant 0 : index
    %c1_200 = arith.constant 1 : index
    %c2_201 = arith.constant 2 : index
    %c0_202 = arith.constant 0 : index
    %164 = vector.load %arg3[%c0_199, %c1_200, %c2_201, %c0_202] : memref<1x10x10x8xf32, #tpu.memory_space<vmem>>, vector<1x8x8x8xf32>
    %165 = vector.shape_cast %164 : vector<1x8x8x8xf32> to vector<8x8x8xf32>
    %166 = vector.shape_cast %165 : vector<8x8x8xf32> to vector<64x8xf32>
    %c0_203 = arith.constant 0 : index
    %c2_204 = arith.constant 2 : index
    %c0_205 = arith.constant 0 : index
    %c0_206 = arith.constant 0 : index
    %167 = vector.load %arg3[%c0_203, %c2_204, %c0_205, %c0_206] : memref<1x10x10x8xf32, #tpu.memory_space<vmem>>, vector<1x8x8x8xf32>
    %168 = vector.shape_cast %167 : vector<1x8x8x8xf32> to vector<8x8x8xf32>
    %169 = vector.shape_cast %168 : vector<8x8x8xf32> to vector<64x8xf32>
    %c0_207 = arith.constant 0 : index
    %c2_208 = arith.constant 2 : index
    %c1_209 = arith.constant 1 : index
    %c0_210 = arith.constant 0 : index
    %170 = vector.load %arg3[%c0_207, %c2_208, %c1_209, %c0_210] : memref<1x10x10x8xf32, #tpu.memory_space<vmem>>, vector<1x8x8x8xf32>
    %171 = vector.shape_cast %170 : vector<1x8x8x8xf32> to vector<8x8x8xf32>
    %172 = vector.shape_cast %171 : vector<8x8x8xf32> to vector<64x8xf32>
    %c0_211 = arith.constant 0 : index
    %c2_212 = arith.constant 2 : index
    %c2_213 = arith.constant 2 : index
    %c0_214 = arith.constant 0 : index
    %173 = vector.load %arg3[%c0_211, %c2_212, %c2_213, %c0_214] : memref<1x10x10x8xf32, #tpu.memory_space<vmem>>, vector<1x8x8x8xf32>
    %174 = vector.shape_cast %173 : vector<1x8x8x8xf32> to vector<8x8x8xf32>
    %175 = vector.shape_cast %174 : vector<8x8x8xf32> to vector<64x8xf32>
    %176 = tpu.concatenate %151, %154, %157, %160, %163, %166, %169, %172, %175 in 1 : vector<64x8xf32>, vector<64x8xf32>, vector<64x8xf32>, vector<64x8xf32>, vector<64x8xf32>, vector<64x8xf32>, vector<64x8xf32>, vector<64x8xf32>, vector<64x8xf32> -> vector<64x72xf32>
    %177 = arith.truncf %176 : vector<64x72xf32> to vector<64x72xbf16>
    %c0_215 = arith.constant 0 : index
    %c0_216 = arith.constant 0 : index
    %178 = vector.load %arg14[%c0_215, %c0_216] : memref<72x32xbf16, #tpu.memory_space<vmem>>, vector<72x32xbf16>
    %cst_217 = arith.constant dense<0.000000e+00> : vector<64x32xf32>
    %179 = tpu.matmul %177, %178, %cst_217 {dimension_numbers = #tpu.dot_dimension_numbers<[1], [0], [0], [1], [0, 0, 1, 1], [], []>} : vector<64x72xbf16>, vector<72x32xbf16>, vector<64x32xf32> -> vector<64x32xf32>
    %c0_218 = arith.constant 0 : index
    %c0_219 = arith.constant 0 : index
    %180 = vector.load %arg15[%c0_218, %c0_219] : memref<1x32xf32, #tpu.memory_space<vmem>>, vector<1x32xf32>
    %181 = vector.broadcast %180 : vector<1x32xf32> to vector<64x32xf32>
    %182 = arith.addf %179, %181 : vector<64x32xf32>
    %cst_220 = arith.constant 0.000000e+00 : f32
    %183 = vector.broadcast %cst_220 : f32 to vector<64x32xf32>
    %184 = arith.subf %183, %182 : vector<64x32xf32>
    %185 = math.exp %184 : vector<64x32xf32>
    %cst_221 = arith.constant 1.000000e+00 : f32
    %186 = vector.broadcast %cst_221 : f32 to vector<64x32xf32>
    %187 = arith.addf %186, %185 : vector<64x32xf32>
    %188 = tpu.reciprocal %187 {approx = true} : vector<64x32xf32> -> vector<64x32xf32>
    %189 = arith.mulf %182, %188 : vector<64x32xf32>
    %190 = tpu.concatenate %148, %189 in 0 : vector<8x32xf32>, vector<64x32xf32> -> vector<72x32xf32>
    %191 = arith.truncf %133 : vector<128x32xf32> to vector<128x32xbf16>
    %c0_222 = arith.constant 0 : index
    %c0_223 = arith.constant 0 : index
    %192 = vector.load %arg22[%c0_222, %c0_223] : memref<32x32xbf16, #tpu.memory_space<vmem>>, vector<32x32xbf16>
    %cst_224 = arith.constant dense<0.000000e+00> : vector<128x32xf32>
    %193 = tpu.matmul %191, %192, %cst_224 {dimension_numbers = #tpu.dot_dimension_numbers<[1], [0], [0], [1], [0, 0, 1, 1], [], []>} : vector<128x32xbf16>, vector<32x32xbf16>, vector<128x32xf32> -> vector<128x32xf32>
    %194 = arith.truncf %190 : vector<72x32xf32> to vector<72x32xbf16>
    %c0_225 = arith.constant 0 : index
    %c0_226 = arith.constant 0 : index
    %195 = vector.load %arg23[%c0_225, %c0_226] : memref<32x64xbf16, #tpu.memory_space<vmem>>, vector<32x64xbf16>
    %cst_227 = arith.constant dense<0.000000e+00> : vector<72x64xf32>
    %196 = tpu.matmul %194, %195, %cst_227 {dimension_numbers = #tpu.dot_dimension_numbers<[1], [0], [0], [1], [0, 0, 1, 1], [], []>} : vector<72x32xbf16>, vector<32x64xbf16>, vector<72x64xf32> -> vector<72x64xf32>
    %197 = vector.extract_strided_slice %196 {offsets = [0, 0], sizes = [72, 32], strides = [1, 1]} : vector<72x64xf32> to vector<72x32xf32>
    %198 = vector.extract_strided_slice %196 {offsets = [0, 32], sizes = [72, 32], strides = [1, 1]} : vector<72x64xf32> to vector<72x32xf32>
    %199 = arith.truncf %193 : vector<128x32xf32> to vector<128x32xbf16>
    %200 = arith.truncf %197 : vector<72x32xf32> to vector<72x32xbf16>
    %cst_228 = arith.constant dense<0.000000e+00> : vector<128x72xf32>
    %201 = tpu.matmul %199, %200, %cst_228 {dimension_numbers = #tpu.dot_dimension_numbers<[1], [1], [0], [0], [0, 0, 1, 0], [], []>} : vector<128x32xbf16>, vector<72x32xbf16>, vector<128x72xf32> -> vector<128x72xf32>
    %cst_229 = arith.constant 0.176776692 : f32
    %202 = vector.broadcast %cst_229 : f32 to vector<128x72xf32>
    %203 = arith.mulf %201, %202 : vector<128x72xf32>
    %204 = tpu.iota {dimensions = array<i32: 1>} : vector<128x72xi32>
    %c6_i32 = arith.constant 6 : i32
    %205 = vector.broadcast %c6_i32 : i32 to vector<128x72xi32>
    %206 = arith.cmpi slt, %204, %205 : vector<128x72xi32>
    %c8_i32 = arith.constant 8 : i32
    %207 = vector.broadcast %c8_i32 : i32 to vector<128x72xi32>
    %208 = arith.cmpi sge, %204, %207 : vector<128x72xi32>
    %209 = arith.ori %206, %208 : vector<128x72xi1>
    %cst_230 = arith.constant -1.000000e+30 : f32
    %210 = vector.broadcast %cst_230 : f32 to vector<128x72xf32>
    %211 = arith.select %209, %203, %210 : vector<128x72xi1>, vector<128x72xf32>
    %cst_231 = arith.constant dense<0xFF800000> : vector<128xf32>
    %212 = vector.multi_reduction <maximumf>, %211, %cst_231 [1] : vector<128x72xf32> to vector<128xf32>
    %213 = vector.shape_cast %212 : vector<128xf32> to vector<128x1xf32>
    %214 = vector.broadcast %213 : vector<128x1xf32> to vector<128x72xf32>
    %215 = arith.subf %211, %214 : vector<128x72xf32>
    %216 = math.exp %215 : vector<128x72xf32>
    %cst_232 = arith.constant dense<0.000000e+00> : vector<128xf32>
    %217 = vector.multi_reduction <add>, %216, %cst_232 [1] : vector<128x72xf32> to vector<128xf32>
    %218 = vector.shape_cast %217 : vector<128xf32> to vector<128x1xf32>
    %219 = tpu.reciprocal %218 {approx = true} : vector<128x1xf32> -> vector<128x1xf32>
    %220 = arith.truncf %216 : vector<128x72xf32> to vector<128x72xbf16>
    %221 = arith.truncf %198 : vector<72x32xf32> to vector<72x32xbf16>
    %cst_233 = arith.constant dense<0.000000e+00> : vector<128x32xf32>
    %222 = tpu.matmul %220, %221, %cst_233 {dimension_numbers = #tpu.dot_dimension_numbers<[1], [0], [0], [1], [0, 0, 1, 1], [], []>} : vector<128x72xbf16>, vector<72x32xbf16>, vector<128x32xf32> -> vector<128x32xf32>
    %223 = vector.broadcast %219 : vector<128x1xf32> to vector<128x32xf32>
    %224 = arith.mulf %222, %223 : vector<128x32xf32>
    %225 = arith.truncf %224 : vector<128x32xf32> to vector<128x32xbf16>
    %c0_234 = arith.constant 0 : index
    %c0_235 = arith.constant 0 : index
    %226 = vector.load %arg24[%c0_234, %c0_235] : memref<32x32xbf16, #tpu.memory_space<vmem>>, vector<32x32xbf16>
    %cst_236 = arith.constant dense<0.000000e+00> : vector<128x32xf32>
    %227 = tpu.matmul %225, %226, %cst_236 {dimension_numbers = #tpu.dot_dimension_numbers<[1], [0], [0], [1], [0, 0, 1, 1], [], []>} : vector<128x32xbf16>, vector<32x32xbf16>, vector<128x32xf32> -> vector<128x32xf32>
    %228 = arith.addf %133, %227 : vector<128x32xf32>
    %cst_237 = arith.constant 0.000000e+00 : f32
    %229 = vector.broadcast %cst_237 : f32 to vector<128x32xf32>
    %230 = arith.subf %229, %228 : vector<128x32xf32>
    %231 = math.exp %230 : vector<128x32xf32>
    %cst_238 = arith.constant 1.000000e+00 : f32
    %232 = vector.broadcast %cst_238 : f32 to vector<128x32xf32>
    %233 = arith.addf %232, %231 : vector<128x32xf32>
    %234 = tpu.reciprocal %233 {approx = true} : vector<128x32xf32> -> vector<128x32xf32>
    %235 = arith.mulf %228, %234 : vector<128x32xf32>
    %236 = vector.shape_cast %235 : vector<128x32xf32> to vector<2x8x8x32xf32>
    %c0_239 = arith.constant 0 : index
    %c1_240 = arith.constant 1 : index
    %c1_241 = arith.constant 1 : index
    %c0_242 = arith.constant 0 : index
    %237 = vector.load %arg28[%c0_239, %c1_240, %c1_241, %c0_242] : memref<2x10x10x32xf32, #tpu.memory_space<vmem>>, vector<2x8x8x32xf32>
    tpu.vector_store %arg28[%c0_239, %c1_240, %c1_241, %c0_242], %236 {strides = array<i32>} : memref<2x10x10x32xf32, #tpu.memory_space<vmem>>, vector<2x8x8x32xf32>,
    %c0_243 = arith.constant 0 : index
    %c0_244 = arith.constant 0 : index
    %c0_245 = arith.constant 0 : index
    %c0_246 = arith.constant 0 : index
    %238 = vector.load %arg28[%c0_243, %c0_244, %c0_245, %c0_246] : memref<2x10x10x32xf32, #tpu.memory_space<vmem>>, vector<2x8x8x32xf32>
    %239 = vector.shape_cast %238 : vector<2x8x8x32xf32> to vector<128x32xf32>
    %c0_247 = arith.constant 0 : index
    %c0_248 = arith.constant 0 : index
    %c1_249 = arith.constant 1 : index
    %c0_250 = arith.constant 0 : index
    %240 = vector.load %arg28[%c0_247, %c0_248, %c1_249, %c0_250] : memref<2x10x10x32xf32, #tpu.memory_space<vmem>>, vector<2x8x8x32xf32>
    %241 = vector.shape_cast %240 : vector<2x8x8x32xf32> to vector<128x32xf32>
    %c0_251 = arith.constant 0 : index
    %c0_252 = arith.constant 0 : index
    %c2_253 = arith.constant 2 : index
    %c0_254 = arith.constant 0 : index
    %242 = vector.load %arg28[%c0_251, %c0_252, %c2_253, %c0_254] : memref<2x10x10x32xf32, #tpu.memory_space<vmem>>, vector<2x8x8x32xf32>
    %243 = vector.shape_cast %242 : vector<2x8x8x32xf32> to vector<128x32xf32>
    %c0_255 = arith.constant 0 : index
    %c1_256 = arith.constant 1 : index
    %c0_257 = arith.constant 0 : index
    %c0_258 = arith.constant 0 : index
    %244 = vector.load %arg28[%c0_255, %c1_256, %c0_257, %c0_258] : memref<2x10x10x32xf32, #tpu.memory_space<vmem>>, vector<2x8x8x32xf32>
    %245 = vector.shape_cast %244 : vector<2x8x8x32xf32> to vector<128x32xf32>
    %c0_259 = arith.constant 0 : index
    %c1_260 = arith.constant 1 : index
    %c1_261 = arith.constant 1 : index
    %c0_262 = arith.constant 0 : index
    %246 = vector.load %arg28[%c0_259, %c1_260, %c1_261, %c0_262] : memref<2x10x10x32xf32, #tpu.memory_space<vmem>>, vector<2x8x8x32xf32>
    %247 = vector.shape_cast %246 : vector<2x8x8x32xf32> to vector<128x32xf32>
    %c0_263 = arith.constant 0 : index
    %c1_264 = arith.constant 1 : index
    %c2_265 = arith.constant 2 : index
    %c0_266 = arith.constant 0 : index
    %248 = vector.load %arg28[%c0_263, %c1_264, %c2_265, %c0_266] : memref<2x10x10x32xf32, #tpu.memory_space<vmem>>, vector<2x8x8x32xf32>
    %249 = vector.shape_cast %248 : vector<2x8x8x32xf32> to vector<128x32xf32>
    %c0_267 = arith.constant 0 : index
    %c2_268 = arith.constant 2 : index
    %c0_269 = arith.constant 0 : index
    %c0_270 = arith.constant 0 : index
    %250 = vector.load %arg28[%c0_267, %c2_268, %c0_269, %c0_270] : memref<2x10x10x32xf32, #tpu.memory_space<vmem>>, vector<2x8x8x32xf32>
    %251 = vector.shape_cast %250 : vector<2x8x8x32xf32> to vector<128x32xf32>
    %c0_271 = arith.constant 0 : index
    %c2_272 = arith.constant 2 : index
    %c1_273 = arith.constant 1 : index
    %c0_274 = arith.constant 0 : index
    %252 = vector.load %arg28[%c0_271, %c2_272, %c1_273, %c0_274] : memref<2x10x10x32xf32, #tpu.memory_space<vmem>>, vector<2x8x8x32xf32>
    %253 = vector.shape_cast %252 : vector<2x8x8x32xf32> to vector<128x32xf32>
    %c0_275 = arith.constant 0 : index
    %c2_276 = arith.constant 2 : index
    %c2_277 = arith.constant 2 : index
    %c0_278 = arith.constant 0 : index
    %254 = vector.load %arg28[%c0_275, %c2_276, %c2_277, %c0_278] : memref<2x10x10x32xf32, #tpu.memory_space<vmem>>, vector<2x8x8x32xf32>
    %255 = vector.shape_cast %254 : vector<2x8x8x32xf32> to vector<128x32xf32>
    %256 = tpu.concatenate %239, %241, %243, %245, %247, %249, %251, %253, %255 in 1 : vector<128x32xf32>, vector<128x32xf32>, vector<128x32xf32>, vector<128x32xf32>, vector<128x32xf32>, vector<128x32xf32>, vector<128x32xf32>, vector<128x32xf32>, vector<128x32xf32> -> vector<128x288xf32>
    %257 = arith.truncf %256 : vector<128x288xf32> to vector<128x288xbf16>
    %c0_279 = arith.constant 0 : index
    %c0_280 = arith.constant 0 : index
    %258 = vector.load %arg25[%c0_279, %c0_280] : memref<288x128xbf16, #tpu.memory_space<vmem>>, vector<288x128xbf16>
    %cst_281 = arith.constant dense<0.000000e+00> : vector<128x128xf32>
    %259 = tpu.matmul %257, %258, %cst_281 {dimension_numbers = #tpu.dot_dimension_numbers<[1], [0], [0], [1], [0, 0, 1, 1], [], []>} : vector<128x288xbf16>, vector<288x128xbf16>, vector<128x128xf32> -> vector<128x128xf32>
    %c0_282 = arith.constant 0 : index
    %c0_283 = arith.constant 0 : index
    %260 = vector.load %arg26[%c0_282, %c0_283] : memref<1x128xf32, #tpu.memory_space<vmem>>, vector<1x128xf32>
    %261 = vector.broadcast %260 : vector<1x128xf32> to vector<128x128xf32>
    %262 = arith.addf %259, %261 : vector<128x128xf32>
    %c0_284 = arith.constant 0 : index
    %c0_285 = arith.constant 0 : index
    %c0_286 = arith.constant 0 : index
    %263 = vector.load %arg27[%c0_284, %c0_285, %c0_286] : memref<1x128x128xf32, #tpu.memory_space<vmem>>, vector<1x128x128xf32>
    %264 = vector.shape_cast %263 : vector<1x128x128xf32> to vector<128x128xf32>
    %265 = vector.shape_cast %262 : vector<128x128xf32> to vector<1x128x128xf32>
    tpu.vector_store %arg27[%c0_284, %c0_285, %c0_286], %265 {strides = array<i32>} : memref<1x128x128xf32, #tpu.memory_space<vmem>>, vector<1x128x128xf32>,
    return
  }
  func.func @transform_0(%arg0: i32) -> (i32, i32, i32, i32, i32) {
    %c0_i32 = arith.constant 0 : i32
    %c0_i32_0 = arith.constant 0 : i32
    %c0_i32_1 = arith.constant 0 : i32
    %c0_i32_2 = arith.constant 0 : i32
    %c0_i32_3 = arith.constant 0 : i32
    return %arg0, %c0_i32, %c0_i32_0, %c0_i32_1, %c0_i32_2 : i32, i32, i32, i32, i32
  }
  func.func @transform_1(%arg0: i32) -> (i32, i32, i32, i32, i32) {
    %c0_i32 = arith.constant 0 : i32
    %c0_i32_0 = arith.constant 0 : i32
    %c0_i32_1 = arith.constant 0 : i32
    %c0_i32_2 = arith.constant 0 : i32
    %c0_i32_3 = arith.constant 0 : i32
    return %arg0, %c0_i32, %c0_i32_0, %c0_i32_1, %c0_i32_2 : i32, i32, i32, i32, i32
  }
  func.func @transform_2(%arg0: i32) -> (i32, i32, i32, i32) {
    %c0_i32 = arith.constant 0 : i32
    %c0_i32_0 = arith.constant 0 : i32
    %c0_i32_1 = arith.constant 0 : i32
    %c0_i32_2 = arith.constant 0 : i32
    return %arg0, %c0_i32, %c0_i32_0, %c0_i32_1 : i32, i32, i32, i32
  }
  func.func @transform_3(%arg0: i32) -> (i32, i32, i32) {
    %c0_i32 = arith.constant 0 : i32
    %c0_i32_0 = arith.constant 0 : i32
    %c0_i32_1 = arith.constant 0 : i32
    return %arg0, %c0_i32, %c0_i32_0 : i32, i32, i32
  }
  func.func @transform_4(%arg0: i32) -> (i32, i32, i32) {
    %c0_i32 = arith.constant 0 : i32
    %c0_i32_0 = arith.constant 0 : i32
    %c0_i32_1 = arith.constant 0 : i32
    return %arg0, %c0_i32, %c0_i32_0 : i32, i32, i32
  }
  func.func @transform_5(%arg0: i32) -> (i32, i32) {
    %c0_i32 = arith.constant 0 : i32
    %c0_i32_0 = arith.constant 0 : i32
    %c0_i32_1 = arith.constant 0 : i32
    return %c0_i32, %c0_i32_0 : i32, i32
  }
  func.func @transform_6(%arg0: i32) -> (i32, i32) {
    %c0_i32 = arith.constant 0 : i32
    %c0_i32_0 = arith.constant 0 : i32
    %c0_i32_1 = arith.constant 0 : i32
    return %c0_i32, %c0_i32_0 : i32, i32
  }
  func.func @transform_7(%arg0: i32) -> (i32, i32) {
    %c0_i32 = arith.constant 0 : i32
    %c0_i32_0 = arith.constant 0 : i32
    %c0_i32_1 = arith.constant 0 : i32
    return %c0_i32, %c0_i32_0 : i32, i32
  }
  func.func @transform_8(%arg0: i32) -> (i32, i32) {
    %c0_i32 = arith.constant 0 : i32
    %c0_i32_0 = arith.constant 0 : i32
    %c0_i32_1 = arith.constant 0 : i32
    return %c0_i32, %c0_i32_0 : i32, i32
  }
  func.func @transform_9(%arg0: i32) -> (i32, i32) {
    %c0_i32 = arith.constant 0 : i32
    %c0_i32_0 = arith.constant 0 : i32
    %c0_i32_1 = arith.constant 0 : i32
    return %c0_i32, %c0_i32_0 : i32, i32
  }
  func.func @transform_10(%arg0: i32) -> (i32, i32) {
    %c0_i32 = arith.constant 0 : i32
    %c0_i32_0 = arith.constant 0 : i32
    %c0_i32_1 = arith.constant 0 : i32
    return %c0_i32, %c0_i32_0 : i32, i32
  }
  func.func @transform_11(%arg0: i32) -> (i32, i32) {
    %c0_i32 = arith.constant 0 : i32
    %c0_i32_0 = arith.constant 0 : i32
    %c0_i32_1 = arith.constant 0 : i32
    return %c0_i32, %c0_i32_0 : i32, i32
  }
  func.func @transform_12(%arg0: i32) -> (i32, i32) {
    %c0_i32 = arith.constant 0 : i32
    %c0_i32_0 = arith.constant 0 : i32
    %c0_i32_1 = arith.constant 0 : i32
    return %c0_i32, %c0_i32_0 : i32, i32
  }
  func.func @transform_13(%arg0: i32) -> (i32, i32) {
    %c0_i32 = arith.constant 0 : i32
    %c0_i32_0 = arith.constant 0 : i32
    %c0_i32_1 = arith.constant 0 : i32
    return %c0_i32, %c0_i32_0 : i32, i32
  }
  func.func @transform_14(%arg0: i32) -> (i32, i32) {
    %c0_i32 = arith.constant 0 : i32
    %c0_i32_0 = arith.constant 0 : i32
    %c0_i32_1 = arith.constant 0 : i32
    return %c0_i32, %c0_i32_0 : i32, i32
  }
  func.func @transform_15(%arg0: i32) -> (i32, i32) {
    %c0_i32 = arith.constant 0 : i32
    %c0_i32_0 = arith.constant 0 : i32
    %c0_i32_1 = arith.constant 0 : i32
    return %c0_i32, %c0_i32_0 : i32, i32
  }
  func.func @transform_16(%arg0: i32) -> (i32, i32) {
    %c0_i32 = arith.constant 0 : i32
    %c0_i32_0 = arith.constant 0 : i32
    %c0_i32_1 = arith.constant 0 : i32
    return %c0_i32, %c0_i32_0 : i32, i32
  }
  func.func @transform_17(%arg0: i32) -> (i32, i32) {
    %c0_i32 = arith.constant 0 : i32
    %c0_i32_0 = arith.constant 0 : i32
    %c0_i32_1 = arith.constant 0 : i32
    return %c0_i32, %c0_i32_0 : i32, i32
  }
  func.func @transform_18(%arg0: i32) -> (i32, i32) {
    %c0_i32 = arith.constant 0 : i32
    %c0_i32_0 = arith.constant 0 : i32
    %c0_i32_1 = arith.constant 0 : i32
    return %c0_i32, %c0_i32_0 : i32, i32
  }
  func.func @transform_19(%arg0: i32) -> (i32, i32) {
    %c0_i32 = arith.constant 0 : i32
    %c0_i32_0 = arith.constant 0 : i32
    %c0_i32_1 = arith.constant 0 : i32
    return %c0_i32, %c0_i32_0 : i32, i32
  }
  func.func @transform_20(%arg0: i32) -> (i32, i32) {
    %c0_i32 = arith.constant 0 : i32
    %c0_i32_0 = arith.constant 0 : i32
    %c0_i32_1 = arith.constant 0 : i32
    return %c0_i32, %c0_i32_0 : i32, i32
  }
  func.func @transform_21(%arg0: i32) -> (i32, i32) {
    %c0_i32 = arith.constant 0 : i32
    %c0_i32_0 = arith.constant 0 : i32
    %c0_i32_1 = arith.constant 0 : i32
    return %c0_i32, %c0_i32_0 : i32, i32
  }
  func.func @transform_22(%arg0: i32) -> (i32, i32) {
    %c0_i32 = arith.constant 0 : i32
    %c0_i32_0 = arith.constant 0 : i32
    %c0_i32_1 = arith.constant 0 : i32
    return %c0_i32, %c0_i32_0 : i32, i32
  }
  func.func @transform_23(%arg0: i32) -> (i32, i32) {
    %c0_i32 = arith.constant 0 : i32
    %c0_i32_0 = arith.constant 0 : i32
    %c0_i32_1 = arith.constant 0 : i32
    return %c0_i32, %c0_i32_0 : i32, i32
  }
  func.func @transform_24(%arg0: i32) -> (i32, i32) {
    %c0_i32 = arith.constant 0 : i32
    %c0_i32_0 = arith.constant 0 : i32
    %c0_i32_1 = arith.constant 0 : i32
    return %c0_i32, %c0_i32_0 : i32, i32
  }
  func.func @transform_25(%arg0: i32) -> (i32, i32) {
    %c0_i32 = arith.constant 0 : i32
    %c0_i32_0 = arith.constant 0 : i32
    %c0_i32_1 = arith.constant 0 : i32
    return %c0_i32, %c0_i32_0 : i32, i32
  }
  func.func @transform_26(%arg0: i32) -> (i32, i32, i32) {
    %c0_i32 = arith.constant 0 : i32
    %c0_i32_0 = arith.constant 0 : i32
    %c0_i32_1 = arith.constant 0 : i32
    return %arg0, %c0_i32, %c0_i32_0 : i32, i32, i32
  }
}

</mosaic_0001>

<llo_original>
// kernel: net_forward.1
$region0: #{net_forward.1}
  #allocation0 [shape = 'u32[]', space=smem, size = 0x4, offset = 0x4, fixed_abs, tag = 'smem constant byte address 0x4 - core index']
  #allocation1 [shape = 'u32[144,128]{1,0:T(1,128)}', space=vmem, size = 0x12000, scoped, tag = 'internal scratch']
  #allocation2 [shape = 'f32[2,10,10,32]{3,2,1,0:T(8,128)}', space=vmem, size = 0x28000, scoped, tag = 'scratch operand']
  %s0 = inlined_call_operand.vmem [shape: f32[2,2,10,10,8], index: 0, kind: input, shape index: {}]
  %s1 = inlined_call_operand.vmem [shape: bf16[2,2,8,8,8], index: 1, kind: input, shape index: {}]
  %s2 = inlined_call_operand.vmem [shape: f32[2,10,10,8], index: 2, kind: input, shape index: {}]
  %s3 = inlined_call_operand.vmem [shape: bf16[2,8,32], index: 3, kind: input, shape index: {}]
  %s4 = inlined_call_operand.vmem [shape: f32[2,1,32], index: 4, kind: input, shape index: {}]
  %s5 = inlined_call_operand.vmem [shape: bf16[72,16], index: 5, kind: input, shape index: {}]
  %s6 = inlined_call_operand.vmem [shape: f32[1,16], index: 6, kind: input, shape index: {}]
  %s7 = inlined_call_operand.vmem [shape: bf16[144,8], index: 7, kind: input, shape index: {}]
  %s8 = inlined_call_operand.vmem [shape: f32[1,8], index: 8, kind: input, shape index: {}]
  %s9 = inlined_call_operand.vmem [shape: bf16[32,32], index: 9, kind: input, shape index: {}]
  %s10 = inlined_call_operand.vmem [shape: f32[1,32], index: 10, kind: input, shape index: {}]
  %s11 = inlined_call_operand.vmem [shape: bf16[32,32], index: 11, kind: input, shape index: {}]
  %s12 = inlined_call_operand.vmem [shape: f32[1,32], index: 12, kind: input, shape index: {}]
  %s13 = inlined_call_operand.vmem [shape: bf16[72,32], index: 13, kind: input, shape index: {}]
  %s14 = inlined_call_operand.vmem [shape: f32[1,32], index: 14, kind: input, shape index: {}]
  %s15 = inlined_call_operand.vmem [shape: bf16[72,32], index: 15, kind: input, shape index: {}]
  %s16 = inlined_call_operand.vmem [shape: f32[1,32], index: 16, kind: input, shape index: {}]
  %s17 = inlined_call_operand.vmem [shape: bf16[32,32], index: 17, kind: input, shape index: {}]
  %s18 = inlined_call_operand.vmem [shape: f32[1,32], index: 18, kind: input, shape index: {}]
  %s19 = inlined_call_operand.vmem [shape: bf16[32,32], index: 19, kind: input, shape index: {}]
  %s20 = inlined_call_operand.vmem [shape: f32[1,32], index: 20, kind: input, shape index: {}]
  %s21 = inlined_call_operand.vmem [shape: bf16[32,32], index: 21, kind: input, shape index: {}]
  %s22 = inlined_call_operand.vmem [shape: bf16[32,64], index: 22, kind: input, shape index: {}]
  %s23 = inlined_call_operand.vmem [shape: bf16[32,32], index: 23, kind: input, shape index: {}]
  %s24 = inlined_call_operand.vmem [shape: bf16[288,128], index: 24, kind: input, shape index: {}]
  %s25 = inlined_call_operand.vmem [shape: f32[1,128], index: 25, kind: input, shape index: {}]
  %s26 = inlined_call_operand.vmem [shape: f32[2,128,128], index: 26, kind: output, shape index: {}]
  %s27 = sld [smem:[#allocation0]]
  $region137: #{net_forward.1} parent=0
    _
  %s29 = ssub.s32 1, %s27
  %s30 = scalar_select 0, %s29, %s27
  loop: start=0, step=1, limit=4
  $region2: #{net_forward.1} parent=0 // loop_pre_header
    _
  $region3: #{net_forward.1} parent=0 // loop_header
    %s32 = sphi 0, %s36
    %p33 = scmp.ge.s32.totalorder %s32, 4
    %s42 = sphi 0, %s44
    %s45 = sphi 0, %s42
    %s46 = sphi 0, %s45
    %s62 = sphi 0, %s46
    %s68 = sphi 0, %s70
    %s71 = sphi 0, %s68
    %s72 = sphi 0, %s71
    %s88 = sphi 0, %s72
    %s94 = sphi 0, %s96
    %s97 = sphi 0, %s94
    %s98 = sphi 0, %s97
    %s114 = sphi 0, %s98
    %s120 = sphi 0, %s122
    %s123 = sphi 0, %s120
    %s124 = sphi 0, %s123
    %s140 = sphi 0, %s124
    %s146 = sphi 0, %s148
    %s149 = sphi 0, %s146
    %s150 = sphi 0, %s149
    %s166 = sphi 0, %s150
    %s170 = sphi 0, %s170
    %s172 = sphi 0, %s170
    %s173 = sphi 0, %s172
    %s187 = sphi 0, %s173
    %s191 = sphi 0, %s191
    %s193 = sphi 0, %s191
    %s194 = sphi 0, %s193
    %s208 = sphi 0, %s194
    %s212 = sphi 0, %s212
    %s214 = sphi 0, %s212
    %s215 = sphi 0, %s214
    %s229 = sphi 0, %s215
    %s233 = sphi 0, %s233
    %s235 = sphi 0, %s233
    %s236 = sphi 0, %s235
    %s250 = sphi 0, %s236
    %s254 = sphi 0, %s254
    %s256 = sphi 0, %s254
    %s257 = sphi 0, %s256
    %s271 = sphi 0, %s257
    %s275 = sphi 0, %s275
    %s277 = sphi 0, %s275
    %s278 = sphi 0, %s277
    %s292 = sphi 0, %s278
    %s296 = sphi 0, %s296
    %s298 = sphi 0, %s296
    %s299 = sphi 0, %s298
    %s313 = sphi 0, %s299
    %s317 = sphi 0, %s317
    %s319 = sphi 0, %s317
    %s320 = sphi 0, %s319
    %s334 = sphi 0, %s320
    %s338 = sphi 0, %s338
    %s340 = sphi 0, %s338
    %s341 = sphi 0, %s340
    %s355 = sphi 0, %s341
    %s359 = sphi 0, %s359
    %s361 = sphi 0, %s359
    %s362 = sphi 0, %s361
    %s376 = sphi 0, %s362
    %s380 = sphi 0, %s380
    %s382 = sphi 0, %s380
    %s383 = sphi 0, %s382
    %s397 = sphi 0, %s383
    %s401 = sphi 0, %s401
    %s403 = sphi 0, %s401
    %s404 = sphi 0, %s403
    %s418 = sphi 0, %s404
    %s422 = sphi 0, %s422
    %s424 = sphi 0, %s422
    %s425 = sphi 0, %s424
    %s439 = sphi 0, %s425
    %s443 = sphi 0, %s443
    %s445 = sphi 0, %s443
    %s446 = sphi 0, %s445
    %s460 = sphi 0, %s446
    %s464 = sphi 0, %s464
    %s466 = sphi 0, %s464
    %s467 = sphi 0, %s466
    %s481 = sphi 0, %s467
    %s485 = sphi 0, %s485
    %s487 = sphi 0, %s485
    %s488 = sphi 0, %s487
    %s502 = sphi 0, %s488
    %s506 = sphi 0, %s506
    %s508 = sphi 0, %s506
    %s509 = sphi 0, %s508
    %s523 = sphi 0, %s509
    %s527 = sphi 0, %s527
    %s529 = sphi 0, %s527
    %s530 = sphi 0, %s529
    %s544 = sphi 0, %s530
    %s548 = sphi 0, %s548
    %s550 = sphi 0, %s548
    %s551 = sphi 0, %s550
    %s565 = sphi 0, %s551
    %s569 = sphi 0, %s569
    %s571 = sphi 0, %s569
    %s572 = sphi 0, %s571
    %s586 = sphi 0, %s572
    %s590 = sphi 0, %s590
    %s592 = sphi 0, %s590
    %s593 = sphi 0, %s592
    %s607 = sphi 0, %s593
    %s613 = sphi 0, %s615
    %s616 = sphi 0, %s613
    %s617 = sphi 0, %s616
    %s633 = sphi 0, %s617
  $region4: #{net_forward.1} parent=0 // loop_header_branch
    %35 = sbr.rel (%p33) target = $region8
  $region5: #{net_forward.1} parent=0 // loop_body
    %s37 = ssub.s32 %s32, 1
    %s38 = ssub.s32 %s32, 2
    %s39 = sadd.s32 %s32, 1
    %s40 = ssub.s32 %s32, %s39
    %p41 = scmp.eq.s32.totalorder %s40, 0
    %s43 = sadd.s32 %s42, 1
    %s44 = scalar_select %p41, %s42, %s43
    %p47 = pneg %p41
    %p48 = scmp.eq.s32.totalorder %s32, 1
    %p49 = por %p47, %p48
    %p50 = scmp.ne.s32.totalorder %s42, %s45
    %p51 = scmp.eq.s32.totalorder %s32, 0
    %p52 = por %p50, %p51
    %p53 = scmp.ne.s32.totalorder %s42, %s45
    %p54 = scmp.eq.s32.totalorder %s37, 1
    %p55 = por %p53, %p54
    %p56 = scmp.ne.s32.totalorder %s45, %s46
    %p57 = scmp.eq.s32.totalorder %s37, 0
    %p58 = por %p56, %p57
    %p59 = scmp.ne.s32.totalorder %s45, %s46
    %p60 = scmp.eq.s32.totalorder %s38, 1
    %p61 = por %p59, %p60
    %p63 = scmp.ne.s32.totalorder %s46, %s62
    %p64 = scmp.eq.s32.totalorder %s38, 0
    %p65 = por %p63, %p64
    %s66 = ssub.s32 %s32, %s39
    %p67 = scmp.eq.s32.totalorder %s66, 0
    %s69 = sadd.s32 %s68, 1
    %s70 = scalar_select %p67, %s68, %s69
    %p73 = pneg %p67
    %p74 = scmp.eq.s32.totalorder %s32, 1
    %p75 = por %p73, %p74
    %p76 = scmp.ne.s32.totalorder %s68, %s71
    %p77 = scmp.eq.s32.totalorder %s32, 0
    %p78 = por %p76, %p77
    %p79 = scmp.ne.s32.totalorder %s68, %s71
    %p80 = scmp.eq.s32.totalorder %s37, 1
    %p81 = por %p79, %p80
    %p82 = scmp.ne.s32.totalorder %s71, %s72
    %p83 = scmp.eq.s32.totalorder %s37, 0
    %p84 = por %p82, %p83
    %p85 = scmp.ne.s32.totalorder %s71, %s72
    %p86 = scmp.eq.s32.totalorder %s38, 1
    %p87 = por %p85, %p86
    %p89 = scmp.ne.s32.totalorder %s72, %s88
    %p90 = scmp.eq.s32.totalorder %s38, 0
    %p91 = por %p89, %p90
    %s92 = ssub.s32 %s32, %s39
    %p93 = scmp.eq.s32.totalorder %s92, 0
    %s95 = sadd.s32 %s94, 1
    %s96 = scalar_select %p93, %s94, %s95
    %p99 = pneg %p93
    %p100 = scmp.eq.s32.totalorder %s32, 1
    %p101 = por %p99, %p100
    %p102 = scmp.ne.s32.totalorder %s94, %s97
    %p103 = scmp.eq.s32.totalorder %s32, 0
    %p104 = por %p102, %p103
    %p105 = scmp.ne.s32.totalorder %s94, %s97
    %p106 = scmp.eq.s32.totalorder %s37, 1
    %p107 = por %p105, %p106
    %p108 = scmp.ne.s32.totalorder %s97, %s98
    %p109 = scmp.eq.s32.totalorder %s37, 0
    %p110 = por %p108, %p109
    %p111 = scmp.ne.s32.totalorder %s97, %s98
    %p112 = scmp.eq.s32.totalorder %s38, 1
    %p113 = por %p111, %p112
    %p115 = scmp.ne.s32.totalorder %s98, %s114
    %p116 = scmp.eq.s32.totalorder %s38, 0
    %p117 = por %p115, %p116
    %s118 = ssub.s32 %s32, %s39
    %p119 = scmp.eq.s32.totalorder %s118, 0
    %s121 = sadd.s32 %s120, 1
    %s122 = scalar_select %p119, %s120, %s121
    %p125 = pneg %p119
    %p126 = scmp.eq.s32.totalorder %s32, 1
    %p127 = por %p125, %p126
    %p128 = scmp.ne.s32.totalorder %s120, %s123
    %p129 = scmp.eq.s32.totalorder %s32, 0
    %p130 = por %p128, %p129
    %p131 = scmp.ne.s32.totalorder %s120, %s123
    %p132 = scmp.eq.s32.totalorder %s37, 1
    %p133 = por %p131, %p132
    %p134 = scmp.ne.s32.totalorder %s123, %s124
    %p135 = scmp.eq.s32.totalorder %s37, 0
    %p136 = por %p134, %p135
    %p137 = scmp.ne.s32.totalorder %s123, %s124
    %p138 = scmp.eq.s32.totalorder %s38, 1
    %p139 = por %p137, %p138
    %p141 = scmp.ne.s32.totalorder %s124, %s140
    %p142 = scmp.eq.s32.totalorder %s38, 0
    %p143 = por %p141, %p142
    %s144 = ssub.s32 %s32, %s39
    %p145 = scmp.eq.s32.totalorder %s144, 0
    %s147 = sadd.s32 %s146, 1
    %s148 = scalar_select %p145, %s146, %s147
    %p151 = pneg %p145
    %p152 = scmp.eq.s32.totalorder %s32, 1
    %p153 = por %p151, %p152
    %p154 = scmp.ne.s32.totalorder %s146, %s149
    %p155 = scmp.eq.s32.totalorder %s32, 0
    %p156 = por %p154, %p155
    %p157 = scmp.ne.s32.totalorder %s146, %s149
    %p158 = scmp.eq.s32.totalorder %s37, 1
    %p159 = por %p157, %p158
    %p160 = scmp.ne.s32.totalorder %s149, %s150
    %p161 = scmp.eq.s32.totalorder %s37, 0
    %p162 = por %p160, %p161
    %p163 = scmp.ne.s32.totalorder %s149, %s150
    %p164 = scmp.eq.s32.totalorder %s38, 1
    %p165 = por %p163, %p164
    %p167 = scmp.ne.s32.totalorder %s150, %s166
    %p168 = scmp.eq.s32.totalorder %s38, 0
    %p169 = por %p167, %p168
    %s171 = sadd.s32 %s170, 1
    %p174 = scmp.eq.s32.totalorder %s32, 1
    %p175 = scmp.ne.s32.totalorder %s170, %s172
    %p176 = scmp.eq.s32.totalorder %s32, 0
    %p177 = por %p175, %p176
    %p178 = scmp.ne.s32.totalorder %s170, %s172
    %p179 = scmp.eq.s32.totalorder %s37, 1
    %p180 = por %p178, %p179
    %p181 = scmp.ne.s32.totalorder %s172, %s173
    %p182 = scmp.eq.s32.totalorder %s37, 0
    %p183 = por %p181, %p182
    %p184 = scmp.ne.s32.totalorder %s172, %s173
    %p185 = scmp.eq.s32.totalorder %s38, 1
    %p186 = por %p184, %p185
    %p188 = scmp.ne.s32.totalorder %s173, %s187
    %p189 = scmp.eq.s32.totalorder %s38, 0
    %p190 = por %p188, %p189
    %s192 = sadd.s32 %s191, 1
    %p195 = scmp.eq.s32.totalorder %s32, 1
    %p196 = scmp.ne.s32.totalorder %s191, %s193
    %p197 = scmp.eq.s32.totalorder %s32, 0
    %p198 = por %p196, %p197
    %p199 = scmp.ne.s32.totalorder %s191, %s193
    %p200 = scmp.eq.s32.totalorder %s37, 1
    %p201 = por %p199, %p200
    %p202 = scmp.ne.s32.totalorder %s193, %s194
    %p203 = scmp.eq.s32.totalorder %s37, 0
    %p204 = por %p202, %p203
    %p205 = scmp.ne.s32.totalorder %s193, %s194
    %p206 = scmp.eq.s32.totalorder %s38, 1
    %p207 = por %p205, %p206
    %p209 = scmp.ne.s32.totalorder %s194, %s208
    %p210 = scmp.eq.s32.totalorder %s38, 0
    %p211 = por %p209, %p210
    %s213 = sadd.s32 %s212, 1
    %p216 = scmp.eq.s32.totalorder %s32, 1
    %p217 = scmp.ne.s32.totalorder %s212, %s214
    %p218 = scmp.eq.s32.totalorder %s32, 0
    %p219 = por %p217, %p218
    %p220 = scmp.ne.s32.totalorder %s212, %s214
    %p221 = scmp.eq.s32.totalorder %s37, 1
    %p222 = por %p220, %p221
    %p223 = scmp.ne.s32.totalorder %s214, %s215
    %p224 = scmp.eq.s32.totalorder %s37, 0
    %p225 = por %p223, %p224
    %p226 = scmp.ne.s32.totalorder %s214, %s215
    %p227 = scmp.eq.s32.totalorder %s38, 1
    %p228 = por %p226, %p227
    %p230 = scmp.ne.s32.totalorder %s215, %s229
    %p231 = scmp.eq.s32.totalorder %s38, 0
    %p232 = por %p230, %p231
    %s234 = sadd.s32 %s233, 1
    %p237 = scmp.eq.s32.totalorder %s32, 1
    %p238 = scmp.ne.s32.totalorder %s233, %s235
    %p239 = scmp.eq.s32.totalorder %s32, 0
    %p240 = por %p238, %p239
    %p241 = scmp.ne.s32.totalorder %s233, %s235
    %p242 = scmp.eq.s32.totalorder %s37, 1
    %p243 = por %p241, %p242
    %p244 = scmp.ne.s32.totalorder %s235, %s236
    %p245 = scmp.eq.s32.totalorder %s37, 0
    %p246 = por %p244, %p245
    %p247 = scmp.ne.s32.totalorder %s235, %s236
    %p248 = scmp.eq.s32.totalorder %s38, 1
    %p249 = por %p247, %p248
    %p251 = scmp.ne.s32.totalorder %s236, %s250
    %p252 = scmp.eq.s32.totalorder %s38, 0
    %p253 = por %p251, %p252
    %s255 = sadd.s32 %s254, 1
    %p258 = scmp.eq.s32.totalorder %s32, 1
    %p259 = scmp.ne.s32.totalorder %s254, %s256
    %p260 = scmp.eq.s32.totalorder %s32, 0
    %p261 = por %p259, %p260
    %p262 = scmp.ne.s32.totalorder %s254, %s256
    %p263 = scmp.eq.s32.totalorder %s37, 1
    %p264 = por %p262, %p263
    %p265 = scmp.ne.s32.totalorder %s256, %s257
    %p266 = scmp.eq.s32.totalorder %s37, 0
    %p267 = por %p265, %p266
    %p268 = scmp.ne.s32.totalorder %s256, %s257
    %p269 = scmp.eq.s32.totalorder %s38, 1
    %p270 = por %p268, %p269
    %p272 = scmp.ne.s32.totalorder %s257, %s271
    %p273 = scmp.eq.s32.totalorder %s38, 0
    %p274 = por %p272, %p273
    %s276 = sadd.s32 %s275, 1
    %p279 = scmp.eq.s32.totalorder %s32, 1
    %p280 = scmp.ne.s32.totalorder %s275, %s277
    %p281 = scmp.eq.s32.totalorder %s32, 0
    %p282 = por %p280, %p281
    %p283 = scmp.ne.s32.totalorder %s275, %s277
    %p284 = scmp.eq.s32.totalorder %s37, 1
    %p285 = por %p283, %p284
    %p286 = scmp.ne.s32.totalorder %s277, %s278
    %p287 = scmp.eq.s32.totalorder %s37, 0
    %p288 = por %p286, %p287
    %p289 = scmp.ne.s32.totalorder %s277, %s278
    %p290 = scmp.eq.s32.totalorder %s38, 1
    %p291 = por %p289, %p290
    %p293 = scmp.ne.s32.totalorder %s278, %s292
    %p294 = scmp.eq.s32.totalorder %s38, 0
    %p295 = por %p293, %p294
    %s297 = sadd.s32 %s296, 1
    %p300 = scmp.eq.s32.totalorder %s32, 1
    %p301 = scmp.ne.s32.totalorder %s296, %s298
    %p302 = scmp.eq.s32.totalorder %s32, 0
    %p303 = por %p301, %p302
    %p304 = scmp.ne.s32.totalorder %s296, %s298
    %p305 = scmp.eq.s32.totalorder %s37, 1
    %p306 = por %p304, %p305
    %p307 = scmp.ne.s32.totalorder %s298, %s299
    %p308 = scmp.eq.s32.totalorder %s37, 0
    %p309 = por %p307, %p308
    %p310 = scmp.ne.s32.totalorder %s298, %s299
    %p311 = scmp.eq.s32.totalorder %s38, 1
    %p312 = por %p310, %p311
    %p314 = scmp.ne.s32.totalorder %s299, %s313
    %p315 = scmp.eq.s32.totalorder %s38, 0
    %p316 = por %p314, %p315
    %s318 = sadd.s32 %s317, 1
    %p321 = scmp.eq.s32.totalorder %s32, 1
    %p322 = scmp.ne.s32.totalorder %s317, %s319
    %p323 = scmp.eq.s32.totalorder %s32, 0
    %p324 = por %p322, %p323
    %p325 = scmp.ne.s32.totalorder %s317, %s319
    %p326 = scmp.eq.s32.totalorder %s37, 1
    %p327 = por %p325, %p326
    %p328 = scmp.ne.s32.totalorder %s319, %s320
    %p329 = scmp.eq.s32.totalorder %s37, 0
    %p330 = por %p328, %p329
    %p331 = scmp.ne.s32.totalorder %s319, %s320
    %p332 = scmp.eq.s32.totalorder %s38, 1
    %p333 = por %p331, %p332
    %p335 = scmp.ne.s32.totalorder %s320, %s334
    %p336 = scmp.eq.s32.totalorder %s38, 0
    %p337 = por %p335, %p336
    %s339 = sadd.s32 %s338, 1
    %p342 = scmp.eq.s32.totalorder %s32, 1
    %p343 = scmp.ne.s32.totalorder %s338, %s340
    %p344 = scmp.eq.s32.totalorder %s32, 0
    %p345 = por %p343, %p344
    %p346 = scmp.ne.s32.totalorder %s338, %s340
    %p347 = scmp.eq.s32.totalorder %s37, 1
    %p348 = por %p346, %p347
    %p349 = scmp.ne.s32.totalorder %s340, %s341
    %p350 = scmp.eq.s32.totalorder %s37, 0
    %p351 = por %p349, %p350
    %p352 = scmp.ne.s32.totalorder %s340, %s341
    %p353 = scmp.eq.s32.totalorder %s38, 1
    %p354 = por %p352, %p353
    %p356 = scmp.ne.s32.totalorder %s341, %s355
    %p357 = scmp.eq.s32.totalorder %s38, 0
    %p358 = por %p356, %p357
    %s360 = sadd.s32 %s359, 1
    %p363 = scmp.eq.s32.totalorder %s32, 1
    %p364 = scmp.ne.s32.totalorder %s359, %s361
    %p365 = scmp.eq.s32.totalorder %s32, 0
    %p366 = por %p364, %p365
    %p367 = scmp.ne.s32.totalorder %s359, %s361
    %p368 = scmp.eq.s32.totalorder %s37, 1
    %p369 = por %p367, %p368
    %p370 = scmp.ne.s32.totalorder %s361, %s362
    %p371 = scmp.eq.s32.totalorder %s37, 0
    %p372 = por %p370, %p371
    %p373 = scmp.ne.s32.totalorder %s361, %s362
    %p374 = scmp.eq.s32.totalorder %s38, 1
    %p375 = por %p373, %p374
    %p377 = scmp.ne.s32.totalorder %s362, %s376
    %p378 = scmp.eq.s32.totalorder %s38, 0
    %p379 = por %p377, %p378
    %s381 = sadd.s32 %s380, 1
    %p384 = scmp.eq.s32.totalorder %s32, 1
    %p385 = scmp.ne.s32.totalorder %s380, %s382
    %p386 = scmp.eq.s32.totalorder %s32, 0
    %p387 = por %p385, %p386
    %p388 = scmp.ne.s32.totalorder %s380, %s382
    %p389 = scmp.eq.s32.totalorder %s37, 1
    %p390 = por %p388, %p389
    %p391 = scmp.ne.s32.totalorder %s382, %s383
    %p392 = scmp.eq.s32.totalorder %s37, 0
    %p393 = por %p391, %p392
    %p394 = scmp.ne.s32.totalorder %s382, %s383
    %p395 = scmp.eq.s32.totalorder %s38, 1
    %p396 = por %p394, %p395
    %p398 = scmp.ne.s32.totalorder %s383, %s397
    %p399 = scmp.eq.s32.totalorder %s38, 0
    %p400 = por %p398, %p399
    %s402 = sadd.s32 %s401, 1
    %p405 = scmp.eq.s32.totalorder %s32, 1
    %p406 = scmp.ne.s32.totalorder %s401, %s403
    %p407 = scmp.eq.s32.totalorder %s32, 0
    %p408 = por %p406, %p407
    %p409 = scmp.ne.s32.totalorder %s401, %s403
    %p410 = scmp.eq.s32.totalorder %s37, 1
    %p411 = por %p409, %p410
    %p412 = scmp.ne.s32.totalorder %s403, %s404
    %p413 = scmp.eq.s32.totalorder %s37, 0
    %p414 = por %p412, %p413
    %p415 = scmp.ne.s32.totalorder %s403, %s404
    %p416 = scmp.eq.s32.totalorder %s38, 1
    %p417 = por %p415, %p416
    %p419 = scmp.ne.s32.totalorder %s404, %s418
    %p420 = scmp.eq.s32.totalorder %s38, 0
    %p421 = por %p419, %p420
    %s423 = sadd.s32 %s422, 1
    %p426 = scmp.eq.s32.totalorder %s32, 1
    %p427 = scmp.ne.s32.totalorder %s422, %s424
    %p428 = scmp.eq.s32.totalorder %s32, 0
    %p429 = por %p427, %p428
    %p430 = scmp.ne.s32.totalorder %s422, %s424
    %p431 = scmp.eq.s32.totalorder %s37, 1
    %p432 = por %p430, %p431
    %p433 = scmp.ne.s32.totalorder %s424, %s425
    %p434 = scmp.eq.s32.totalorder %s37, 0
    %p435 = por %p433, %p434
    %p436 = scmp.ne.s32.totalorder %s424, %s425
    %p437 = scmp.eq.s32.totalorder %s38, 1
    %p438 = por %p436, %p437
    %p440 = scmp.ne.s32.totalorder %s425, %s439
    %p441 = scmp.eq.s32.totalorder %s38, 0
    %p442 = por %p440, %p441
    %s444 = sadd.s32 %s443, 1
    %p447 = scmp.eq.s32.totalorder %s32, 1
    %p448 = scmp.ne.s32.totalorder %s443, %s445
    %p449 = scmp.eq.s32.totalorder %s32, 0
    %p450 = por %p448, %p449
    %p451 = scmp.ne.s32.totalorder %s443, %s445
    %p452 = scmp.eq.s32.totalorder %s37, 1
    %p453 = por %p451, %p452
    %p454 = scmp.ne.s32.totalorder %s445, %s446
    %p455 = scmp.eq.s32.totalorder %s37, 0
    %p456 = por %p454, %p455
    %p457 = scmp.ne.s32.totalorder %s445, %s446
    %p458 = scmp.eq.s32.totalorder %s38, 1
    %p459 = por %p457, %p458
    %p461 = scmp.ne.s32.totalorder %s446, %s460
    %p462 = scmp.eq.s32.totalorder %s38, 0
    %p463 = por %p461, %p462
    %s465 = sadd.s32 %s464, 1
    %p468 = scmp.eq.s32.totalorder %s32, 1
    %p469 = scmp.ne.s32.totalorder %s464, %s466
    %p470 = scmp.eq.s32.totalorder %s32, 0
    %p471 = por %p469, %p470
    %p472 = scmp.ne.s32.totalorder %s464, %s466
    %p473 = scmp.eq.s32.totalorder %s37, 1
    %p474 = por %p472, %p473
    %p475 = scmp.ne.s32.totalorder %s466, %s467
    %p476 = scmp.eq.s32.totalorder %s37, 0
    %p477 = por %p475, %p476
    %p478 = scmp.ne.s32.totalorder %s466, %s467
    %p479 = scmp.eq.s32.totalorder %s38, 1
    %p480 = por %p478, %p479
    %p482 = scmp.ne.s32.totalorder %s467, %s481
    %p483 = scmp.eq.s32.totalorder %s38, 0
    %p484 = por %p482, %p483
    %s486 = sadd.s32 %s485, 1
    %p489 = scmp.eq.s32.totalorder %s32, 1
    %p490 = scmp.ne.s32.totalorder %s485, %s487
    %p491 = scmp.eq.s32.totalorder %s32, 0
    %p492 = por %p490, %p491
    %p493 = scmp.ne.s32.totalorder %s485, %s487
    %p494 = scmp.eq.s32.totalorder %s37, 1
    %p495 = por %p493, %p494
    %p496 = scmp.ne.s32.totalorder %s487, %s488
    %p497 = scmp.eq.s32.totalorder %s37, 0
    %p498 = por %p496, %p497
    %p499 = scmp.ne.s32.totalorder %s487, %s488
    %p500 = scmp.eq.s32.totalorder %s38, 1
    %p501 = por %p499, %p500
    %p503 = scmp.ne.s32.totalorder %s488, %s502
    %p504 = scmp.eq.s32.totalorder %s38, 0
    %p505 = por %p503, %p504
    %s507 = sadd.s32 %s506, 1
    %p510 = scmp.eq.s32.totalorder %s32, 1
    %p511 = scmp.ne.s32.totalorder %s506, %s508
    %p512 = scmp.eq.s32.totalorder %s32, 0
    %p513 = por %p511, %p512
    %p514 = scmp.ne.s32.totalorder %s506, %s508
    %p515 = scmp.eq.s32.totalorder %s37, 1
    %p516 = por %p514, %p515
    %p517 = scmp.ne.s32.totalorder %s508, %s509
    %p518 = scmp.eq.s32.totalorder %s37, 0
    %p519 = por %p517, %p518
    %p520 = scmp.ne.s32.totalorder %s508, %s509
    %p521 = scmp.eq.s32.totalorder %s38, 1
    %p522 = por %p520, %p521
    %p524 = scmp.ne.s32.totalorder %s509, %s523
    %p525 = scmp.eq.s32.totalorder %s38, 0
    %p526 = por %p524, %p525
    %s528 = sadd.s32 %s527, 1
    %p531 = scmp.eq.s32.totalorder %s32, 1
    %p532 = scmp.ne.s32.totalorder %s527, %s529
    %p533 = scmp.eq.s32.totalorder %s32, 0
    %p534 = por %p532, %p533
    %p535 = scmp.ne.s32.totalorder %s527, %s529
    %p536 = scmp.eq.s32.totalorder %s37, 1
    %p537 = por %p535, %p536
    %p538 = scmp.ne.s32.totalorder %s529, %s530
    %p539 = scmp.eq.s32.totalorder %s37, 0
    %p540 = por %p538, %p539
    %p541 = scmp.ne.s32.totalorder %s529, %s530
    %p542 = scmp.eq.s32.totalorder %s38, 1
    %p543 = por %p541, %p542
    %p545 = scmp.ne.s32.totalorder %s530, %s544
    %p546 = scmp.eq.s32.totalorder %s38, 0
    %p547 = por %p545, %p546
    %s549 = sadd.s32 %s548, 1
    %p552 = scmp.eq.s32.totalorder %s32, 1
    %p553 = scmp.ne.s32.totalorder %s548, %s550
    %p554 = scmp.eq.s32.totalorder %s32, 0
    %p555 = por %p553, %p554
    %p556 = scmp.ne.s32.totalorder %s548, %s550
    %p557 = scmp.eq.s32.totalorder %s37, 1
    %p558 = por %p556, %p557
    %p559 = scmp.ne.s32.totalorder %s550, %s551
    %p560 = scmp.eq.s32.totalorder %s37, 0
    %p561 = por %p559, %p560
    %p562 = scmp.ne.s32.totalorder %s550, %s551
    %p563 = scmp.eq.s32.totalorder %s38, 1
    %p564 = por %p562, %p563
    %p566 = scmp.ne.s32.totalorder %s551, %s565
    %p567 = scmp.eq.s32.totalorder %s38, 0
    %p568 = por %p566, %p567
    %s570 = sadd.s32 %s569, 1
    %p573 = scmp.eq.s32.totalorder %s32, 1
    %p574 = scmp.ne.s32.totalorder %s569, %s571
    %p575 = scmp.eq.s32.totalorder %s32, 0
    %p576 = por %p574, %p575
    %p577 = scmp.ne.s32.totalorder %s569, %s571
    %p578 = scmp.eq.s32.totalorder %s37, 1
    %p579 = por %p577, %p578
    %p580 = scmp.ne.s32.totalorder %s571, %s572
    %p581 = scmp.eq.s32.totalorder %s37, 0
    %p582 = por %p580, %p581
    %p583 = scmp.ne.s32.totalorder %s571, %s572
    %p584 = scmp.eq.s32.totalorder %s38, 1
    %p585 = por %p583, %p584
    %p587 = scmp.ne.s32.totalorder %s572, %s586
    %p588 = scmp.eq.s32.totalorder %s38, 0
    %p589 = por %p587, %p588
    %s591 = sadd.s32 %s590, 1
    %p594 = scmp.eq.s32.totalorder %s32, 1
    %p595 = scmp.ne.s32.totalorder %s590, %s592
    %p596 = scmp.eq.s32.totalorder %s32, 0
    %p597 = por %p595, %p596
    %p598 = scmp.ne.s32.totalorder %s590, %s592
    %p599 = scmp.eq.s32.totalorder %s37, 1
    %p600 = por %p598, %p599
    %p601 = scmp.ne.s32.totalorder %s592, %s593
    %p602 = scmp.eq.s32.totalorder %s37, 0
    %p603 = por %p601, %p602
    %p604 = scmp.ne.s32.totalorder %s592, %s593
    %p605 = scmp.eq.s32.totalorder %s38, 1
    %p606 = por %p604, %p605
    %p608 = scmp.ne.s32.totalorder %s593, %s607
    %p609 = scmp.eq.s32.totalorder %s38, 0
    %p610 = por %p608, %p609
    %s611 = ssub.s32 %s32, %s39
    %p612 = scmp.eq.s32.totalorder %s611, 0
    %s614 = sadd.s32 %s613, 1
    %s615 = scalar_select %p612, %s613, %s614
    %p618 = pneg %p612
    %p619 = scmp.eq.s32.totalorder %s32, 1
    %p620 = por %p618, %p619
    %p621 = scmp.ne.s32.totalorder %s613, %s616
    %p622 = scmp.eq.s32.totalorder %s32, 0
    %p623 = por %p621, %p622
    %p624 = scmp.ne.s32.totalorder %s613, %s616
    %p625 = scmp.eq.s32.totalorder %s37, 1
    %p626 = por %p624, %p625
    %p627 = scmp.ne.s32.totalorder %s616, %s617
    %p628 = scmp.eq.s32.totalorder %s37, 0
    %p629 = por %p627, %p628
    %p630 = scmp.ne.s32.totalorder %s616, %s617
    %p631 = scmp.eq.s32.totalorder %s38, 1
    %p632 = por %p630, %p631
    %p634 = scmp.ne.s32.totalorder %s617, %s633
    %p635 = scmp.eq.s32.totalorder %s38, 0
    %p636 = por %p634, %p635
    %p637 = scmp.le.s32.totalorder 1, %s32
    %p638 = scmp.lt.s32.totalorder %s32, 3
    %p639 = pnand %p637, %p638
    %p640 = pneg %p639
    // Predicated region
    $region9: #{net_forward.1} parent=5 // pred_check
      _
    $region10: #{net_forward.1} parent=5 // pred_check_branch
      %642 = sbr.rel (%p639) target = $region12
    $region11: #{net_forward.1} parent=5 // pred_region
      %s643 = ssub.s32 %s32, 1
      // Predicated region
      $region13: #{net_forward.1} parent=11 // pred_check
        %p644 = pneg %p183
      $region14: #{net_forward.1} parent=11 // pred_check_branch
        %646 = sbr.rel (%p644) target = $region16
      $region15: #{net_forward.1} parent=11 // pred_region
        _
      $region16: #{net_forward.1} parent=11 // pred_fallthru
        _
      // Predicated region
      $region17: #{net_forward.1} parent=11 // pred_check
        %p647 = pneg %p204
      $region18: #{net_forward.1} parent=11 // pred_check_branch
        %649 = sbr.rel (%p647) target = $region20
      $region19: #{net_forward.1} parent=11 // pred_region
        _
      $region20: #{net_forward.1} parent=11 // pred_fallthru
        _
      // Predicated region
      $region21: #{net_forward.1} parent=11 // pred_check
        %p650 = pneg %p225
      $region22: #{net_forward.1} parent=11 // pred_check_branch
        %652 = sbr.rel (%p650) target = $region24
      $region23: #{net_forward.1} parent=11 // pred_region
        _
      $region24: #{net_forward.1} parent=11 // pred_fallthru
        _
      // Predicated region
      $region25: #{net_forward.1} parent=11 // pred_check
        %p653 = pneg %p246
      $region26: #{net_forward.1} parent=11 // pred_check_branch
        %655 = sbr.rel (%p653) target = $region28
      $region27: #{net_forward.1} parent=11 // pred_region
        _
      $region28: #{net_forward.1} parent=11 // pred_fallthru
        _
      // Predicated region
      $region29: #{net_forward.1} parent=11 // pred_check
        %p656 = pneg %p267
      $region30: #{net_forward.1} parent=11 // pred_check_branch
        %658 = sbr.rel (%p656) target = $region32
      $region31: #{net_forward.1} parent=11 // pred_region
        _
      $region32: #{net_forward.1} parent=11 // pred_fallthru
        _
      // Predicated region
      $region33: #{net_forward.1} parent=11 // pred_check
        %p659 = pneg %p288
      $region34: #{net_forward.1} parent=11 // pred_check_branch
        %661 = sbr.rel (%p659) target = $region36
      $region35: #{net_forward.1} parent=11 // pred_region
        _
      $region36: #{net_forward.1} parent=11 // pred_fallthru
        _
      // Predicated region
      $region37: #{net_forward.1} parent=11 // pred_check
        %p662 = pneg %p309
      $region38: #{net_forward.1} parent=11 // pred_check_branch
        %664 = sbr.rel (%p662) target = $region40
      $region39: #{net_forward.1} parent=11 // pred_region
        _
      $region40: #{net_forward.1} parent=11 // pred_fallthru
        _
      // Predicated region
      $region41: #{net_forward.1} parent=11 // pred_check
        %p665 = pneg %p330
      $region42: #{net_forward.1} parent=11 // pred_check_branch
        %667 = sbr.rel (%p665) target = $region44
      $region43: #{net_forward.1} parent=11 // pred_region
        _
      $region44: #{net_forward.1} parent=11 // pred_fallthru
        _
      // Predicated region
      $region45: #{net_forward.1} parent=11 // pred_check
        %p668 = pneg %p351
      $region46: #{net_forward.1} parent=11 // pred_check_branch
        %670 = sbr.rel (%p668) target = $region48
      $region47: #{net_forward.1} parent=11 // pred_region
        _
      $region48: #{net_forward.1} parent=11 // pred_fallthru
        _
      // Predicated region
      $region49: #{net_forward.1} parent=11 // pred_check
        %p671 = pneg %p372
      $region50: #{net_forward.1} parent=11 // pred_check_branch
        %673 = sbr.rel (%p671) target = $region52
      $region51: #{net_forward.1} parent=11 // pred_region
        _
      $region52: #{net_forward.1} parent=11 // pred_fallthru
        _
      // Predicated region
      $region53: #{net_forward.1} parent=11 // pred_check
        %p674 = pneg %p393
      $region54: #{net_forward.1} parent=11 // pred_check_branch
        %676 = sbr.rel (%p674) target = $region56
      $region55: #{net_forward.1} parent=11 // pred_region
        _
      $region56: #{net_forward.1} parent=11 // pred_fallthru
        _
      // Predicated region
      $region57: #{net_forward.1} parent=11 // pred_check
        %p677 = pneg %p414
      $region58: #{net_forward.1} parent=11 // pred_check_branch
        %679 = sbr.rel (%p677) target = $region60
      $region59: #{net_forward.1} parent=11 // pred_region
        _
      $region60: #{net_forward.1} parent=11 // pred_fallthru
        _
      // Predicated region
      $region61: #{net_forward.1} parent=11 // pred_check
        %p680 = pneg %p435
      $region62: #{net_forward.1} parent=11 // pred_check_branch
        %682 = sbr.rel (%p680) target = $region64
      $region63: #{net_forward.1} parent=11 // pred_region
        _
      $region64: #{net_forward.1} parent=11 // pred_fallthru
        _
      // Predicated region
      $region65: #{net_forward.1} parent=11 // pred_check
        %p683 = pneg %p456
      $region66: #{net_forward.1} parent=11 // pred_check_branch
        %685 = sbr.rel (%p683) target = $region68
      $region67: #{net_forward.1} parent=11 // pred_region
        _
      $region68: #{net_forward.1} parent=11 // pred_fallthru
        _
      // Predicated region
      $region69: #{net_forward.1} parent=11 // pred_check
        %p686 = pneg %p477
      $region70: #{net_forward.1} parent=11 // pred_check_branch
        %688 = sbr.rel (%p686) target = $region72
      $region71: #{net_forward.1} parent=11 // pred_region
        _
      $region72: #{net_forward.1} parent=11 // pred_fallthru
        _
      // Predicated region
      $region73: #{net_forward.1} parent=11 // pred_check
        %p689 = pneg %p498
      $region74: #{net_forward.1} parent=11 // pred_check_branch
        %691 = sbr.rel (%p689) target = $region76
      $region75: #{net_forward.1} parent=11 // pred_region
        _
      $region76: #{net_forward.1} parent=11 // pred_fallthru
        _
      // Predicated region
      $region77: #{net_forward.1} parent=11 // pred_check
        %p692 = pneg %p519
      $region78: #{net_forward.1} parent=11 // pred_check_branch
        %694 = sbr.rel (%p692) target = $region80
      $region79: #{net_forward.1} parent=11 // pred_region
        _
      $region80: #{net_forward.1} parent=11 // pred_fallthru
        _
      // Predicated region
      $region81: #{net_forward.1} parent=11 // pred_check
        %p695 = pneg %p540
      $region82: #{net_forward.1} parent=11 // pred_check_branch
        %697 = sbr.rel (%p695) target = $region84
      $region83: #{net_forward.1} parent=11 // pred_region
        _
      $region84: #{net_forward.1} parent=11 // pred_fallthru
        _
      // Predicated region
      $region85: #{net_forward.1} parent=11 // pred_check
        %p698 = pneg %p561
      $region86: #{net_forward.1} parent=11 // pred_check_branch
        %700 = sbr.rel (%p698) target = $region88
      $region87: #{net_forward.1} parent=11 // pred_region
        _
      $region88: #{net_forward.1} parent=11 // pred_fallthru
        _
      // Predicated region
      $region89: #{net_forward.1} parent=11 // pred_check
        %p701 = pneg %p582
      $region90: #{net_forward.1} parent=11 // pred_check_branch
        %703 = sbr.rel (%p701) target = $region92
      $region91: #{net_forward.1} parent=11 // pred_region
        _
      $region92: #{net_forward.1} parent=11 // pred_fallthru
        _
      // Predicated region
      $region93: #{net_forward.1} parent=11 // pred_check
        %p704 = pneg %p603
      $region94: #{net_forward.1} parent=11 // pred_check_branch
        %706 = sbr.rel (%p704) target = $region96
      $region95: #{net_forward.1} parent=11 // pred_region
        _
      $region96: #{net_forward.1} parent=11 // pred_fallthru
        _
    $region12: #{net_forward.1} parent=5 // pred_fallthru
      _
    %p707 = scmp.lt.s32.totalorder %s32, 2
    // Predicated region
    $region97: #{net_forward.1} parent=5 // pred_check
      %p708 = pneg %p707
    $region98: #{net_forward.1} parent=5 // pred_check_branch
      %710 = sbr.rel (%p708) target = $region100
    $region99: #{net_forward.1} parent=5 // pred_region
      // Predicated region
      $region101: #{net_forward.1} parent=99 // pred_check
        %p711 = pneg %p52
      $region102: #{net_forward.1} parent=99 // pred_check_branch
        %713 = sbr.rel (%p711) target = $region104
      $region103: #{net_forward.1} parent=99 // pred_region
        %p714 = scmp.lt.s32.totalorder %s32, 1
        %s715 = scalar_select %p714, %s32, 1
        %s716 = smul.addr %s715, 40
        %s717 = smul.addr %s716, 8
        %s718 = scalar_lea.vmem %s0, %s717
      $region104: #{net_forward.1} parent=99 // pred_fallthru
        _
      // Predicated region
      $region105: #{net_forward.1} parent=99 // pred_check
        %p719 = pneg %p78
      $region106: #{net_forward.1} parent=99 // pred_check_branch
        %721 = sbr.rel (%p719) target = $region108
      $region107: #{net_forward.1} parent=99 // pred_region
        %p722 = scmp.lt.s32.totalorder %s32, 1
        %s723 = scalar_select %p722, %s32, 1
        %s724 = smul.addr %s723, 16
        %s725 = smul.addr %s724, 4
        %s726 = scalar_lea.vmem %s1, %s725
      $region108: #{net_forward.1} parent=99 // pred_fallthru
        _
      // Predicated region
      $region109: #{net_forward.1} parent=99 // pred_check
        %p727 = pneg %p104
      $region110: #{net_forward.1} parent=99 // pred_check_branch
        %729 = sbr.rel (%p727) target = $region112
      $region111: #{net_forward.1} parent=99 // pred_region
        %p730 = scmp.lt.s32.totalorder %s32, 1
        %s731 = scalar_select %p730, %s32, 1
        %s732 = smul.addr %s731, 20
        %s733 = smul.addr %s732, 8
        %s734 = scalar_lea.vmem %s2, %s733
      $region112: #{net_forward.1} parent=99 // pred_fallthru
        _
      // Predicated region
      $region113: #{net_forward.1} parent=99 // pred_check
        %p735 = pneg %p130
      $region114: #{net_forward.1} parent=99 // pred_check_branch
        %737 = sbr.rel (%p735) target = $region116
      $region115: #{net_forward.1} parent=99 // pred_region
        %p738 = scmp.lt.s32.totalorder %s32, 1
        %s739 = scalar_select %p738, %s32, 1
        %s740 = smul.addr %s739, 4
        %s741 = scalar_lea.vmem %s3, %s740
      $region116: #{net_forward.1} parent=99 // pred_fallthru
        _
      // Predicated region
      $region117: #{net_forward.1} parent=99 // pred_check
        %p742 = pneg %p156
      $region118: #{net_forward.1} parent=99 // pred_check_branch
        %744 = sbr.rel (%p742) target = $region120
      $region119: #{net_forward.1} parent=99 // pred_region
        %p745 = scmp.lt.s32.totalorder %s32, 1
        %s746 = scalar_select %p745, %s32, 1
        %s747 = scalar_lea.vmem %s4, %s746
      $region120: #{net_forward.1} parent=99 // pred_fallthru
        _
    $region100: #{net_forward.1} parent=5 // pred_fallthru
      _
    %p748 = scmp.le.s32.totalorder 1, %s32
    %p749 = scmp.lt.s32.totalorder %s32, 3
    %p750 = pnand %p748, %p749
    %p751 = pneg %p750
    // Predicated region
    $region121: #{net_forward.1} parent=5 // pred_check
      _
    $region122: #{net_forward.1} parent=5 // pred_check_branch
      %753 = sbr.rel (%p750) target = $region124
    $region123: #{net_forward.1} parent=5 // pred_region
      %s754 = ssub.s32 %s32, 1
      %p755 = scmp.lt.s32.totalorder %s37, 1
      %s756 = scalar_select %p755, %s37, 1
      %s757 = smul.addr %s756, 40
      %s758 = smul.addr %s757, 8
      %s759 = scalar_lea.vmem %s0, %s758
      %p760 = pneg %p58
      %p761 = pneg %p55
      %p762 = scmp.lt.s32.totalorder %s37, 1
      %s763 = scalar_select %p762, %s37, 1
      %s764 = smul.addr %s763, 16
      %s765 = smul.addr %s764, 4
      %s766 = scalar_lea.vmem %s1, %s765
      %p767 = pneg %p84
      %p768 = pneg %p81
      %p769 = scmp.lt.s32.totalorder %s37, 1
      %s770 = scalar_select %p769, %s37, 1
      %s771 = smul.addr %s770, 20
      %s772 = smul.addr %s771, 8
      %s773 = scalar_lea.vmem %s2, %s772
      %p774 = pneg %p110
      %p775 = pneg %p107
      %p776 = scmp.lt.s32.totalorder %s37, 1
      %s777 = scalar_select %p776, %s37, 1
      %s778 = smul.addr %s777, 4
      %s779 = scalar_lea.vmem %s3, %s778
      %p780 = pneg %p136
      %p781 = pneg %p133
      %p782 = scmp.lt.s32.totalorder %s37, 1
      %s783 = scalar_select %p782, %s37, 1
      %s784 = scalar_lea.vmem %s4, %s783
      %p785 = pneg %p162
      %p786 = pneg %p159
      %p787 = pneg %p183
      %p788 = pneg %p180
      %p789 = pneg %p204
      %p790 = pneg %p201
      %p791 = pneg %p225
      %p792 = pneg %p222
      %p793 = pneg %p246
      %p794 = pneg %p243
      %p795 = pneg %p267
      %p796 = pneg %p264
      %p797 = pneg %p288
      %p798 = pneg %p285
      %p799 = pneg %p309
      %p800 = pneg %p306
      %p801 = pneg %p330
      %p802 = pneg %p327
      %p803 = pneg %p351
      %p804 = pneg %p348
      %p805 = pneg %p372
      %p806 = pneg %p369
      %p807 = pneg %p393
      %p808 = pneg %p390
      %p809 = pneg %p414
      %p810 = pneg %p411
      %p811 = pneg %p435
      %p812 = pneg %p432
      %p813 = pneg %p456
      %p814 = pneg %p453
      %p815 = pneg %p477
      %p816 = pneg %p474
      %p817 = pneg %p498
      %p818 = pneg %p495
      %p819 = pneg %p519
      %p820 = pneg %p516
      %p821 = pneg %p540
      %p822 = pneg %p537
      %p823 = pneg %p561
      %p824 = pneg %p558
      %p825 = pneg %p582
      %p826 = pneg %p579
      %p827 = pneg %p603
      %p828 = pneg %p600
      %p829 = pneg %p629
      %p830 = pneg %p626
      %p831 = scmp.lt.s32.totalorder %s37, 1
      %s832 = scalar_select %p831, %s37, 1
      %s833 = smul.addr %s832, 16
      %s834 = smul.addr %s833, 8
      %s835 = scalar_lea.vmem %s26, %s834
      %p836 = scmp.lt.s32.totalorder %s37, 1
      %s837 = scalar_select %p836, %s37, 1
      %s838 = smul.addr %s837, 40
      %s839 = smul.addr %s838, 8
      %s840 = scalar_lea.vmem %s0, %s839
      %p841 = scmp.lt.s32.totalorder %s37, 1
      %s842 = scalar_select %p841, %s37, 1
      %s843 = smul.addr %s842, 16
      %s844 = smul.addr %s843, 4
      %s845 = scalar_lea.vmem %s1, %s844
      %p846 = scmp.lt.s32.totalorder %s37, 1
      %s847 = scalar_select %p846, %s37, 1
      %s848 = smul.addr %s847, 20
      %s849 = smul.addr %s848, 8
      %s850 = scalar_lea.vmem %s2, %s849
      %p851 = scmp.lt.s32.totalorder %s37, 1
      %s852 = scalar_select %p851, %s37, 1
      %s853 = smul.addr %s852, 4
      %s854 = scalar_lea.vmem %s3, %s853
      %p855 = scmp.lt.s32.totalorder %s37, 1
      %s856 = scalar_select %p855, %s37, 1
      %s857 = scalar_lea.vmem %s4, %s856
      %p858 = scmp.lt.s32.totalorder %s37, 1
      %s859 = scalar_select %p858, %s37, 1
      %s860 = smul.addr %s859, 16
      %s861 = smul.addr %s860, 8
      %s862 = scalar_lea.vmem %s26, %s861
      %vm864 = vcmask 261120
      %865 = vst.msk [vmem:[#allocation2] sm:$0xff] %vm864, 0.0
      %vm866 = vcmask 254976
      %867 = vst.msk [vmem:[#allocation2 + $0x8] sm:$0x3] %vm866, 0.0
      %868 = vst.msk [vmem:[#allocation2 + $0x10] sm:$0xff] %vm864, 0.0
      %869 = vst.msk [vmem:[#allocation2 + $0x18] sm:$0x3] %vm866, 0.0
      %870 = vst.msk [vmem:[#allocation2 + $0x20] sm:$0xff] %vm864, 0.0
      %871 = vst.msk [vmem:[#allocation2 + $0x28] sm:$0x3] %vm866, 0.0
      %872 = vst.msk [vmem:[#allocation2 + $0x30] sm:$0xff] %vm864, 0.0
      %873 = vst.msk [vmem:[#allocation2 + $0x38] sm:$0x3] %vm866, 0.0
      %874 = vst.msk [vmem:[#allocation2 + $0x40] sm:$0xff] %vm864, 0.0
      %875 = vst.msk [vmem:[#allocation2 + $0x48] sm:$0x3] %vm866, 0.0
      %876 = vst.msk [vmem:[#allocation2 + $0x50] sm:$0xff] %vm864, 0.0
      %877 = vst.msk [vmem:[#allocation2 + $0x58] sm:$0x3] %vm866, 0.0
      %878 = vst.msk [vmem:[#allocation2 + $0x60] sm:$0xff] %vm864, 0.0
      %879 = vst.msk [vmem:[#allocation2 + $0x68] sm:$0x3] %vm866, 0.0
      %880 = vst.msk [vmem:[#allocation2 + $0x70] sm:$0xff] %vm864, 0.0
      %881 = vst.msk [vmem:[#allocation2 + $0x78] sm:$0x3] %vm866, 0.0
      %882 = vst.msk [vmem:[#allocation2 + $0x80] sm:$0xff] %vm864, 0.0
      %883 = vst.msk [vmem:[#allocation2 + $0x88] sm:$0x3] %vm866, 0.0
      %884 = vst.msk [vmem:[#allocation2 + $0x90] sm:$0xff] %vm864, 0.0
      %885 = vst.msk [vmem:[#allocation2 + $0x98] sm:$0x3] %vm866, 0.0
      %886 = vst.msk [vmem:[#allocation2 + $0xa0] sm:$0xff] %vm864, 0.0
      %887 = vst.msk [vmem:[#allocation2 + $0xa8] sm:$0x3] %vm866, 0.0
      %888 = vst.msk [vmem:[#allocation2 + $0xb0] sm:$0xff] %vm864, 0.0
      %889 = vst.msk [vmem:[#allocation2 + $0xb8] sm:$0x3] %vm866, 0.0
      %890 = vst.msk [vmem:[#allocation2 + $0xc0] sm:$0xff] %vm864, 0.0
      %891 = vst.msk [vmem:[#allocation2 + $0xc8] sm:$0x3] %vm866, 0.0
      %892 = vst.msk [vmem:[#allocation2 + $0xd0] sm:$0xff] %vm864, 0.0
      %893 = vst.msk [vmem:[#allocation2 + $0xd8] sm:$0x3] %vm866, 0.0
      %894 = vst.msk [vmem:[#allocation2 + $0xe0] sm:$0xff] %vm864, 0.0
      %895 = vst.msk [vmem:[#allocation2 + $0xe8] sm:$0x3] %vm866, 0.0
      %896 = vst.msk [vmem:[#allocation2 + $0xf0] sm:$0xff] %vm864, 0.0
      %897 = vst.msk [vmem:[#allocation2 + $0xf8] sm:$0x3] %vm866, 0.0
      %898 = vst.msk [vmem:[#allocation2 + $0x100] sm:$0xff] %vm864, 0.0
      %899 = vst.msk [vmem:[#allocation2 + $0x108] sm:$0x3] %vm866, 0.0
      %900 = vst.msk [vmem:[#allocation2 + $0x110] sm:$0xff] %vm864, 0.0
      %901 = vst.msk [vmem:[#allocation2 + $0x118] sm:$0x3] %vm866, 0.0
      %902 = vst.msk [vmem:[#allocation2 + $0x120] sm:$0xff] %vm864, 0.0
      %903 = vst.msk [vmem:[#allocation2 + $0x128] sm:$0x3] %vm866, 0.0
      %904 = vst.msk [vmem:[#allocation2 + $0x130] sm:$0xff] %vm864, 0.0
      %905 = vst.msk [vmem:[#allocation2 + $0x138] sm:$0x3] %vm866, 0.0
      %v906 = vld [vmem:[%s840] sm:$0xff]
      %v907 = vld [vmem:[%s840 + $0x10] sm:$0xff]
      %v908 = vld [vmem:[%s840 + $0x20] sm:$0xff]
      %v909 = vld [vmem:[%s840 + $0x30] sm:$0xff]
      %v910 = vld [vmem:[%s840 + $0x40] sm:$0xff]
      %v911 = vld [vmem:[%s840 + $0x50] sm:$0xff]
      %v912 = vld [vmem:[%s840 + $0x60] sm:$0xff]
      %v913 = vld [vmem:[%s840 + $0x70] sm:$0xff]
      %v914 = vld [vmem:[%s840 + $0xa0] sm:$0xff]
      %v915 = vld [vmem:[%s840 + $0xb0] sm:$0xff]
      %v916 = vld [vmem:[%s840 + $0xc0] sm:$0xff]
      %v917 = vld [vmem:[%s840 + $0xd0] sm:$0xff]
      %v918 = vld [vmem:[%s840 + $0xe0] sm:$0xff]
      %v919 = vld [vmem:[%s840 + $0xf0] sm:$0xff]
      %v920 = vld [vmem:[%s840 + $0x100] sm:$0xff]
      %v921 = vld [vmem:[%s840 + $0x110] sm:$0xff]
      %v922 = vld [vmem:[%s840 + $0x1] sm:$0xff]
      %v923 = vld [vmem:[%s840 + $0x11] sm:$0xff]
      %v924 = vld [vmem:[%s840 + $0x21] sm:$0xff]
      %v925 = vld [vmem:[%s840 + $0x31] sm:$0xff]
      %v926 = vld [vmem:[%s840 + $0x41] sm:$0xff]
      %v927 = vld [vmem:[%s840 + $0x51] sm:$0xff]
      %v928 = vld [vmem:[%s840 + $0x61] sm:$0xff]
      %v929 = vld [vmem:[%s840 + $0x71] sm:$0xff]
      %v930 = vld [vmem:[%s840 + $0xa1] sm:$0xff]
      %v931 = vld [vmem:[%s840 + $0xb1] sm:$0xff]
      %v932 = vld [vmem:[%s840 + $0xc1] sm:$0xff]
      %v933 = vld [vmem:[%s840 + $0xd1] sm:$0xff]
      %v934 = vld [vmem:[%s840 + $0xe1] sm:$0xff]
      %v935 = vld [vmem:[%s840 + $0xf1] sm:$0xff]
      %v936 = vld [vmem:[%s840 + $0x101] sm:$0xff]
      %v937 = vld [vmem:[%s840 + $0x111] sm:$0xff]
      %v938 = vld [vmem:[%s840 + $0x2] sm:$0xff]
      %v939 = vld [vmem:[%s840 + $0x12] sm:$0xff]
      %v940 = vld [vmem:[%s840 + $0x22] sm:$0xff]
      %v941 = vld [vmem:[%s840 + $0x32] sm:$0xff]
      %v942 = vld [vmem:[%s840 + $0x42] sm:$0xff]
      %v943 = vld [vmem:[%s840 + $0x52] sm:$0xff]
      %v944 = vld [vmem:[%s840 + $0x62] sm:$0xff]
      %v945 = vld [vmem:[%s840 + $0x72] sm:$0xff]
      %v946 = vld [vmem:[%s840 + $0xa2] sm:$0xff]
      %v947 = vld [vmem:[%s840 + $0xb2] sm:$0xff]
      %v948 = vld [vmem:[%s840 + $0xc2] sm:$0xff]
      %v949 = vld [vmem:[%s840 + $0xd2] sm:$0xff]
      %v950 = vld [vmem:[%s840 + $0xe2] sm:$0xff]
      %v951 = vld [vmem:[%s840 + $0xf2] sm:$0xff]
      %v952 = vld [vmem:[%s840 + $0x102] sm:$0xff]
      %v953 = vld [vmem:[%s840 + $0x112] sm:$0xff]
      %s954 = scalar_lea.vmem %s840, 16
      %v955 = vld [vmem:[%s954] sm:$0xff]
      %v956 = vld [vmem:[%s954 + $0x10] sm:$0xff]
      %v957 = vld [vmem:[%s954 + $0x20] sm:$0xff]
      %v958 = vld [vmem:[%s954 + $0x30] sm:$0xff]
      %v959 = vld [vmem:[%s954 + $0x40] sm:$0xff]
      %v960 = vld [vmem:[%s954 + $0x50] sm:$0xff]
      %v961 = vld [vmem:[%s954 + $0x60] sm:$0xff]
      %v962 = vld [vmem:[%s954 + $0x70] sm:$0xff]
      %v963 = vld [vmem:[%s954 + $0xa0] sm:$0xff]
      %v964 = vld [vmem:[%s954 + $0xb0] sm:$0xff]
      %v965 = vld [vmem:[%s954 + $0xc0] sm:$0xff]
      %v966 = vld [vmem:[%s954 + $0xd0] sm:$0xff]
      %v967 = vld [vmem:[%s954 + $0xe0] sm:$0xff]
      %v968 = vld [vmem:[%s954 + $0xf0] sm:$0xff]
      %v969 = vld [vmem:[%s954 + $0x100] sm:$0xff]
      %v970 = vld [vmem:[%s954 + $0x110] sm:$0xff]
      %v971 = vld [vmem:[%s954 + $0x1] sm:$0xff]
      %v972 = vld [vmem:[%s954 + $0x11] sm:$0xff]
      %v973 = vld [vmem:[%s954 + $0x21] sm:$0xff]
      %v974 = vld [vmem:[%s954 + $0x31] sm:$0xff]
      %v975 = vld [vmem:[%s954 + $0x41] sm:$0xff]
      %v976 = vld [vmem:[%s954 + $0x51] sm:$0xff]
      %v977 = vld [vmem:[%s954 + $0x61] sm:$0xff]
      %v978 = vld [vmem:[%s954 + $0x71] sm:$0xff]
      %v979 = vld [vmem:[%s954 + $0xa1] sm:$0xff]
      %v980 = vld [vmem:[%s954 + $0xb1] sm:$0xff]
      %v981 = vld [vmem:[%s954 + $0xc1] sm:$0xff]
      %v982 = vld [vmem:[%s954 + $0xd1] sm:$0xff]
      %v983 = vld [vmem:[%s954 + $0xe1] sm:$0xff]
      %v984 = vld [vmem:[%s954 + $0xf1] sm:$0xff]
      %v985 = vld [vmem:[%s954 + $0x101] sm:$0xff]
      %v986 = vld [vmem:[%s954 + $0x111] sm:$0xff]
      %v987 = vld [vmem:[%s954 + $0x2] sm:$0xff]
      %v988 = vld [vmem:[%s954 + $0x12] sm:$0xff]
      %v989 = vld [vmem:[%s954 + $0x22] sm:$0xff]
      %v990 = vld [vmem:[%s954 + $0x32] sm:$0xff]
      %v991 = vld [vmem:[%s954 + $0x42] sm:$0xff]
      %v992 = vld [vmem:[%s954 + $0x52] sm:$0xff]
      %v993 = vld [vmem:[%s954 + $0x62] sm:$0xff]
      %v994 = vld [vmem:[%s954 + $0x72] sm:$0xff]
      %v995 = vld [vmem:[%s954 + $0xa2] sm:$0xff]
      %v996 = vld [vmem:[%s954 + $0xb2] sm:$0xff]
      %v997 = vld [vmem:[%s954 + $0xc2] sm:$0xff]
      %v998 = vld [vmem:[%s954 + $0xd2] sm:$0xff]
      %v999 = vld [vmem:[%s954 + $0xe2] sm:$0xff]
      %v1000 = vld [vmem:[%s954 + $0xf2] sm:$0xff]
      %v1001 = vld [vmem:[%s954 + $0x102] sm:$0xff]
      %v1002 = vld [vmem:[%s954 + $0x112] sm:$0xff]
      %s1003 = scalar_lea.vmem %s840, 32
      %v1004 = vld [vmem:[%s1003] sm:$0xff]
      %v1005 = vld [vmem:[%s1003 + $0x10] sm:$0xff]
      %v1006 = vld [vmem:[%s1003 + $0x20] sm:$0xff]
      %v1007 = vld [vmem:[%s1003 + $0x30] sm:$0xff]
      %v1008 = vld [vmem:[%s1003 + $0x40] sm:$0xff]
      %v1009 = vld [vmem:[%s1003 + $0x50] sm:$0xff]
      %v1010 = vld [vmem:[%s1003 + $0x60] sm:$0xff]
      %v1011 = vld [vmem:[%s1003 + $0x70] sm:$0xff]
      %v1012 = vld [vmem:[%s1003 + $0xa0] sm:$0xff]
      %v1013 = vld [vmem:[%s1003 + $0xb0] sm:$0xff]
      %v1014 = vld [vmem:[%s1003 + $0xc0] sm:$0xff]
      %v1015 = vld [vmem:[%s1003 + $0xd0] sm:$0xff]
      %v1016 = vld [vmem:[%s1003 + $0xe0] sm:$0xff]
      %v1017 = vld [vmem:[%s1003 + $0xf0] sm:$0xff]
      %v1018 = vld [vmem:[%s1003 + $0x100] sm:$0xff]
      %v1019 = vld [vmem:[%s1003 + $0x110] sm:$0xff]
      %v1020 = vld [vmem:[%s1003 + $0x1] sm:$0xff]
      %v1021 = vld [vmem:[%s1003 + $0x11] sm:$0xff]
      %v1022 = vld [vmem:[%s1003 + $0x21] sm:$0xff]
      %v1023 = vld [vmem:[%s1003 + $0x31] sm:$0xff]
      %v1024 = vld [vmem:[%s1003 + $0x41] sm:$0xff]
      %v1025 = vld [vmem:[%s1003 + $0x51] sm:$0xff]
      %v1026 = vld [vmem:[%s1003 + $0x61] sm:$0xff]
      %v1027 = vld [vmem:[%s1003 + $0x71] sm:$0xff]
      %v1028 = vld [vmem:[%s1003 + $0xa1] sm:$0xff]
      %v1029 = vld [vmem:[%s1003 + $0xb1] sm:$0xff]
      %v1030 = vld [vmem:[%s1003 + $0xc1] sm:$0xff]
      %v1031 = vld [vmem:[%s1003 + $0xd1] sm:$0xff]
      %v1032 = vld [vmem:[%s1003 + $0xe1] sm:$0xff]
      %v1033 = vld [vmem:[%s1003 + $0xf1] sm:$0xff]
      %v1034 = vld [vmem:[%s1003 + $0x101] sm:$0xff]
      %v1035 = vld [vmem:[%s1003 + $0x111] sm:$0xff]
      %v1036 = vld [vmem:[%s1003 + $0x2] sm:$0xff]
      %v1037 = vld [vmem:[%s1003 + $0x12] sm:$0xff]
      %v1038 = vld [vmem:[%s1003 + $0x22] sm:$0xff]
      %v1039 = vld [vmem:[%s1003 + $0x32] sm:$0xff]
      %v1040 = vld [vmem:[%s1003 + $0x42] sm:$0xff]
      %v1041 = vld [vmem:[%s1003 + $0x52] sm:$0xff]
      %v1042 = vld [vmem:[%s1003 + $0x62] sm:$0xff]
      %v1043 = vld [vmem:[%s1003 + $0x72] sm:$0xff]
      %v1044 = vld [vmem:[%s1003 + $0xa2] sm:$0xff]
      %v1045 = vld [vmem:[%s1003 + $0xb2] sm:$0xff]
      %v1046 = vld [vmem:[%s1003 + $0xc2] sm:$0xff]
      %v1047 = vld [vmem:[%s1003 + $0xd2] sm:$0xff]
      %v1048 = vld [vmem:[%s1003 + $0xe2] sm:$0xff]
      %v1049 = vld [vmem:[%s1003 + $0xf2] sm:$0xff]
      %v1050 = vld [vmem:[%s1003 + $0x102] sm:$0xff]
      %v1051 = vld [vmem:[%s1003 + $0x112] sm:$0xff]
      %1068 = vrot.lane.b32.xlu0 %v922, 8
      %v1069 = vpop.permute.xlu0 %1068
      %1070 = vrot.lane.b32.xlu0 %v923, 8
      %v1071 = vpop.permute.xlu0 %1070
      %1072 = vrot.lane.b32.xlu0 %v924, 8
      %v1073 = vpop.permute.xlu0 %1072
      %1074 = vrot.lane.b32.xlu0 %v925, 8
      %v1075 = vpop.permute.xlu0 %1074
      %1076 = vrot.lane.b32.xlu0 %v926, 8
      %v1077 = vpop.permute.xlu0 %1076
      %1078 = vrot.lane.b32.xlu0 %v927, 8
      %v1079 = vpop.permute.xlu0 %1078
      %1080 = vrot.lane.b32.xlu0 %v928, 8
      %v1081 = vpop.permute.xlu0 %1080
      %1082 = vrot.lane.b32.xlu0 %v929, 8
      %v1083 = vpop.permute.xlu0 %1082
      %1084 = vrot.lane.b32.xlu0 %v930, 8
      %v1085 = vpop.permute.xlu0 %1084
      %1086 = vrot.lane.b32.xlu0 %v931, 8
      %v1087 = vpop.permute.xlu0 %1086
      %1088 = vrot.lane.b32.xlu0 %v932, 8
      %v1089 = vpop.permute.xlu0 %1088
      %1090 = vrot.lane.b32.xlu0 %v933, 8
      %v1091 = vpop.permute.xlu0 %1090
      %1092 = vrot.lane.b32.xlu0 %v934, 8
      %v1093 = vpop.permute.xlu0 %1092
      %1094 = vrot.lane.b32.xlu0 %v935, 8
      %v1095 = vpop.permute.xlu0 %1094
      %1096 = vrot.lane.b32.xlu0 %v936, 8
      %v1097 = vpop.permute.xlu0 %1096
      %1098 = vrot.lane.b32.xlu0 %v937, 8
      %v1099 = vpop.permute.xlu0 %1098
      %1132 = vrot.lane.b32.xlu0 %v938, 16
      %v1133 = vpop.permute.xlu0 %1132
      %1134 = vrot.lane.b32.xlu0 %v939, 16
      %v1135 = vpop.permute.xlu0 %1134
      %1136 = vrot.lane.b32.xlu0 %v940, 16
      %v1137 = vpop.permute.xlu0 %1136
      %1138 = vrot.lane.b32.xlu0 %v941, 16
      %v1139 = vpop.permute.xlu0 %1138
      %1140 = vrot.lane.b32.xlu0 %v942, 16
      %v1141 = vpop.permute.xlu0 %1140
      %1142 = vrot.lane.b32.xlu0 %v943, 16
      %v1143 = vpop.permute.xlu0 %1142
      %1144 = vrot.lane.b32.xlu0 %v944, 16
      %v1145 = vpop.permute.xlu0 %1144
      %1146 = vrot.lane.b32.xlu0 %v945, 16
      %v1147 = vpop.permute.xlu0 %1146
      %1148 = vrot.lane.b32.xlu0 %v946, 16
      %v1149 = vpop.permute.xlu0 %1148
      %1150 = vrot.lane.b32.xlu0 %v947, 16
      %v1151 = vpop.permute.xlu0 %1150
      %1152 = vrot.lane.b32.xlu0 %v948, 16
      %v1153 = vpop.permute.xlu0 %1152
      %1154 = vrot.lane.b32.xlu0 %v949, 16
      %v1155 = vpop.permute.xlu0 %1154
      %1156 = vrot.lane.b32.xlu0 %v950, 16
      %v1157 = vpop.permute.xlu0 %1156
      %1158 = vrot.lane.b32.xlu0 %v951, 16
      %v1159 = vpop.permute.xlu0 %1158
      %1160 = vrot.lane.b32.xlu0 %v952, 16
      %v1161 = vpop.permute.xlu0 %1160
      %1162 = vrot.lane.b32.xlu0 %v953, 16
      %v1163 = vpop.permute.xlu0 %1162
      %1196 = vrot.lane.b32.xlu0 %v955, 24
      %v1197 = vpop.permute.xlu0 %1196
      %1198 = vrot.lane.b32.xlu0 %v956, 24
      %v1199 = vpop.permute.xlu0 %1198
      %1200 = vrot.lane.b32.xlu0 %v957, 24
      %v1201 = vpop.permute.xlu0 %1200
      %1202 = vrot.lane.b32.xlu0 %v958, 24
      %v1203 = vpop.permute.xlu0 %1202
      %1204 = vrot.lane.b32.xlu0 %v959, 24
      %v1205 = vpop.permute.xlu0 %1204
      %1206 = vrot.lane.b32.xlu0 %v960, 24
      %v1207 = vpop.permute.xlu0 %1206
      %1208 = vrot.lane.b32.xlu0 %v961, 24
      %v1209 = vpop.permute.xlu0 %1208
      %1210 = vrot.lane.b32.xlu0 %v962, 24
      %v1211 = vpop.permute.xlu0 %1210
      %1212 = vrot.lane.b32.xlu0 %v963, 24
      %v1213 = vpop.permute.xlu0 %1212
      %1214 = vrot.lane.b32.xlu0 %v964, 24
      %v1215 = vpop.permute.xlu0 %1214
      %1216 = vrot.lane.b32.xlu0 %v965, 24
      %v1217 = vpop.permute.xlu0 %1216
      %1218 = vrot.lane.b32.xlu0 %v966, 24
      %v1219 = vpop.permute.xlu0 %1218
      %1220 = vrot.lane.b32.xlu0 %v967, 24
      %v1221 = vpop.permute.xlu0 %1220
      %1222 = vrot.lane.b32.xlu0 %v968, 24
      %v1223 = vpop.permute.xlu0 %1222
      %1224 = vrot.lane.b32.xlu0 %v969, 24
      %v1225 = vpop.permute.xlu0 %1224
      %1226 = vrot.lane.b32.xlu0 %v970, 24
      %v1227 = vpop.permute.xlu0 %1226
      %1260 = vrot.lane.b32.xlu0 %v971, 32
      %v1261 = vpop.permute.xlu0 %1260
      %1262 = vrot.lane.b32.xlu0 %v972, 32
      %v1263 = vpop.permute.xlu0 %1262
      %1264 = vrot.lane.b32.xlu0 %v973, 32
      %v1265 = vpop.permute.xlu0 %1264
      %1266 = vrot.lane.b32.xlu0 %v974, 32
      %v1267 = vpop.permute.xlu0 %1266
      %1268 = vrot.lane.b32.xlu0 %v975, 32
      %v1269 = vpop.permute.xlu0 %1268
      %1270 = vrot.lane.b32.xlu0 %v976, 32
      %v1271 = vpop.permute.xlu0 %1270
      %1272 = vrot.lane.b32.xlu0 %v977, 32
      %v1273 = vpop.permute.xlu0 %1272
      %1274 = vrot.lane.b32.xlu0 %v978, 32
      %v1275 = vpop.permute.xlu0 %1274
      %1276 = vrot.lane.b32.xlu0 %v979, 32
      %v1277 = vpop.permute.xlu0 %1276
      %1278 = vrot.lane.b32.xlu0 %v980, 32
      %v1279 = vpop.permute.xlu0 %1278
      %1280 = vrot.lane.b32.xlu0 %v981, 32
      %v1281 = vpop.permute.xlu0 %1280
      %1282 = vrot.lane.b32.xlu0 %v982, 32
      %v1283 = vpop.permute.xlu0 %1282
      %1284 = vrot.lane.b32.xlu0 %v983, 32
      %v1285 = vpop.permute.xlu0 %1284
      %1286 = vrot.lane.b32.xlu0 %v984, 32
      %v1287 = vpop.permute.xlu0 %1286
      %1288 = vrot.lane.b32.xlu0 %v985, 32
      %v1289 = vpop.permute.xlu0 %1288
      %1290 = vrot.lane.b32.xlu0 %v986, 32
      %v1291 = vpop.permute.xlu0 %1290
      %1324 = vrot.lane.b32.xlu0 %v987, 40
      %v1325 = vpop.permute.xlu0 %1324
      %1326 = vrot.lane.b32.xlu0 %v988, 40
      %v1327 = vpop.permute.xlu0 %1326
      %1328 = vrot.lane.b32.xlu0 %v989, 40
      %v1329 = vpop.permute.xlu0 %1328
      %1330 = vrot.lane.b32.xlu0 %v990, 40
      %v1331 = vpop.permute.xlu0 %1330
      %1332 = vrot.lane.b32.xlu0 %v991, 40
      %v1333 = vpop.permute.xlu0 %1332
      %1334 = vrot.lane.b32.xlu0 %v992, 40
      %v1335 = vpop.permute.xlu0 %1334
      %1336 = vrot.lane.b32.xlu0 %v993, 40
      %v1337 = vpop.permute.xlu0 %1336
      %1338 = vrot.lane.b32.xlu0 %v994, 40
      %v1339 = vpop.permute.xlu0 %1338
      %1340 = vrot.lane.b32.xlu0 %v995, 40
      %v1341 = vpop.permute.xlu0 %1340
      %1342 = vrot.lane.b32.xlu0 %v996, 40
      %v1343 = vpop.permute.xlu0 %1342
      %1344 = vrot.lane.b32.xlu0 %v997, 40
      %v1345 = vpop.permute.xlu0 %1344
      %1346 = vrot.lane.b32.xlu0 %v998, 40
      %v1347 = vpop.permute.xlu0 %1346
      %1348 = vrot.lane.b32.xlu0 %v999, 40
      %v1349 = vpop.permute.xlu0 %1348
      %1350 = vrot.lane.b32.xlu0 %v1000, 40
      %v1351 = vpop.permute.xlu0 %1350
      %1352 = vrot.lane.b32.xlu0 %v1001, 40
      %v1353 = vpop.permute.xlu0 %1352
      %1354 = vrot.lane.b32.xlu0 %v1002, 40
      %v1355 = vpop.permute.xlu0 %1354
      %1388 = vrot.lane.b32.xlu0 %v1004, 48
      %v1389 = vpop.permute.xlu0 %1388
      %1390 = vrot.lane.b32.xlu0 %v1005, 48
      %v1391 = vpop.permute.xlu0 %1390
      %1392 = vrot.lane.b32.xlu0 %v1006, 48
      %v1393 = vpop.permute.xlu0 %1392
      %1394 = vrot.lane.b32.xlu0 %v1007, 48
      %v1395 = vpop.permute.xlu0 %1394
      %1396 = vrot.lane.b32.xlu0 %v1008, 48
      %v1397 = vpop.permute.xlu0 %1396
      %1398 = vrot.lane.b32.xlu0 %v1009, 48
      %v1399 = vpop.permute.xlu0 %1398
      %1400 = vrot.lane.b32.xlu0 %v1010, 48
      %v1401 = vpop.permute.xlu0 %1400
      %1402 = vrot.lane.b32.xlu0 %v1011, 48
      %v1403 = vpop.permute.xlu0 %1402
      %1404 = vrot.lane.b32.xlu0 %v1012, 48
      %v1405 = vpop.permute.xlu0 %1404
      %1406 = vrot.lane.b32.xlu0 %v1013, 48
      %v1407 = vpop.permute.xlu0 %1406
      %1408 = vrot.lane.b32.xlu0 %v1014, 48
      %v1409 = vpop.permute.xlu0 %1408
      %1410 = vrot.lane.b32.xlu0 %v1015, 48
      %v1411 = vpop.permute.xlu0 %1410
      %1412 = vrot.lane.b32.xlu0 %v1016, 48
      %v1413 = vpop.permute.xlu0 %1412
      %1414 = vrot.lane.b32.xlu0 %v1017, 48
      %v1415 = vpop.permute.xlu0 %1414
      %1416 = vrot.lane.b32.xlu0 %v1018, 48
      %v1417 = vpop.permute.xlu0 %1416
      %1418 = vrot.lane.b32.xlu0 %v1019, 48
      %v1419 = vpop.permute.xlu0 %1418
      %1452 = vrot.lane.b32.xlu0 %v1020, 56
      %v1453 = vpop.permute.xlu0 %1452
      %1454 = vrot.lane.b32.xlu0 %v1021, 56
      %v1455 = vpop.permute.xlu0 %1454
      %1456 = vrot.lane.b32.xlu0 %v1022, 56
      %v1457 = vpop.permute.xlu0 %1456
      %1458 = vrot.lane.b32.xlu0 %v1023, 56
      %v1459 = vpop.permute.xlu0 %1458
      %1460 = vrot.lane.b32.xlu0 %v1024, 56
      %v1461 = vpop.permute.xlu0 %1460
      %1462 = vrot.lane.b32.xlu0 %v1025, 56
      %v1463 = vpop.permute.xlu0 %1462
      %1464 = vrot.lane.b32.xlu0 %v1026, 56
      %v1465 = vpop.permute.xlu0 %1464
      %1466 = vrot.lane.b32.xlu0 %v1027, 56
      %v1467 = vpop.permute.xlu0 %1466
      %1468 = vrot.lane.b32.xlu0 %v1028, 56
      %v1469 = vpop.permute.xlu0 %1468
      %1470 = vrot.lane.b32.xlu0 %v1029, 56
      %v1471 = vpop.permute.xlu0 %1470
      %1472 = vrot.lane.b32.xlu0 %v1030, 56
      %v1473 = vpop.permute.xlu0 %1472
      %1474 = vrot.lane.b32.xlu0 %v1031, 56
      %v1475 = vpop.permute.xlu0 %1474
      %1476 = vrot.lane.b32.xlu0 %v1032, 56
      %v1477 = vpop.permute.xlu0 %1476
      %1478 = vrot.lane.b32.xlu0 %v1033, 56
      %v1479 = vpop.permute.xlu0 %1478
      %1480 = vrot.lane.b32.xlu0 %v1034, 56
      %v1481 = vpop.permute.xlu0 %1480
      %1482 = vrot.lane.b32.xlu0 %v1035, 56
      %v1483 = vpop.permute.xlu0 %1482
      %1516 = vrot.lane.b32.xlu0 %v1036, 64
      %v1517 = vpop.permute.xlu0 %1516
      %1518 = vrot.lane.b32.xlu0 %v1037, 64
      %v1519 = vpop.permute.xlu0 %1518
      %1520 = vrot.lane.b32.xlu0 %v1038, 64
      %v1521 = vpop.permute.xlu0 %1520
      %1522 = vrot.lane.b32.xlu0 %v1039, 64
      %v1523 = vpop.permute.xlu0 %1522
      %1524 = vrot.lane.b32.xlu0 %v1040, 64
      %v1525 = vpop.permute.xlu0 %1524
      %1526 = vrot.lane.b32.xlu0 %v1041, 64
      %v1527 = vpop.permute.xlu0 %1526
      %1528 = vrot.lane.b32.xlu0 %v1042, 64
      %v1529 = vpop.permute.xlu0 %1528
      %1530 = vrot.lane.b32.xlu0 %v1043, 64
      %v1531 = vpop.permute.xlu0 %1530
      %1532 = vrot.lane.b32.xlu0 %v1044, 64
      %v1533 = vpop.permute.xlu0 %1532
      %1534 = vrot.lane.b32.xlu0 %v1045, 64
      %v1535 = vpop.permute.xlu0 %1534
      %1536 = vrot.lane.b32.xlu0 %v1046, 64
      %v1537 = vpop.permute.xlu0 %1536
      %1538 = vrot.lane.b32.xlu0 %v1047, 64
      %v1539 = vpop.permute.xlu0 %1538
      %1540 = vrot.lane.b32.xlu0 %v1048, 64
      %v1541 = vpop.permute.xlu0 %1540
      %1542 = vrot.lane.b32.xlu0 %v1049, 64
      %v1543 = vpop.permute.xlu0 %1542
      %1544 = vrot.lane.b32.xlu0 %v1050, 64
      %v1545 = vpop.permute.xlu0 %1544
      %1546 = vrot.lane.b32.xlu0 %v1051, 64
      %v1547 = vpop.permute.xlu0 %1546
      %vm1564 = vcmask 64512
      %v1565 = vsel %vm1564, %v906, %v1069
      %v1566 = vsel %vm1564, %v907, %v1071
      %v1567 = vsel %vm1564, %v908, %v1073
      %v1568 = vsel %vm1564, %v909, %v1075
      %v1569 = vsel %vm1564, %v910, %v1077
      %v1570 = vsel %vm1564, %v911, %v1079
      %v1571 = vsel %vm1564, %v912, %v1081
      %v1572 = vsel %vm1564, %v913, %v1083
      %v1573 = vsel %vm1564, %v914, %v1085
      %v1574 = vsel %vm1564, %v915, %v1087
      %v1575 = vsel %vm1564, %v916, %v1089
      %v1576 = vsel %vm1564, %v917, %v1091
      %v1577 = vsel %vm1564, %v918, %v1093
      %v1578 = vsel %vm1564, %v919, %v1095
      %v1579 = vsel %vm1564, %v920, %v1097
      %v1580 = vsel %vm1564, %v921, %v1099
      %vm1581 = vcmask 130048
      %v1582 = vsel %vm1581, %v1565, %v1133
      %v1583 = vsel %vm1581, %v1566, %v1135
      %v1584 = vsel %vm1581, %v1567, %v1137
      %v1585 = vsel %vm1581, %v1568, %v1139
      %v1586 = vsel %vm1581, %v1569, %v1141
      %v1587 = vsel %vm1581, %v1570, %v1143
      %v1588 = vsel %vm1581, %v1571, %v1145
      %v1589 = vsel %vm1581, %v1572, %v1147
      %v1590 = vsel %vm1581, %v1573, %v1149
      %v1591 = vsel %vm1581, %v1574, %v1151
      %v1592 = vsel %vm1581, %v1575, %v1153
      %v1593 = vsel %vm1581, %v1576, %v1155
      %v1594 = vsel %vm1581, %v1577, %v1157
      %v1595 = vsel %vm1581, %v1578, %v1159
      %v1596 = vsel %vm1581, %v1579, %v1161
      %v1597 = vsel %vm1581, %v1580, %v1163
      %vm1598 = vcmask 195584
      %v1599 = vsel %vm1598, %v1582, %v1197
      %v1600 = vsel %vm1598, %v1583, %v1199
      %v1601 = vsel %vm1598, %v1584, %v1201
      %v1602 = vsel %vm1598, %v1585, %v1203
      %v1603 = vsel %vm1598, %v1586, %v1205
      %v1604 = vsel %vm1598, %v1587, %v1207
      %v1605 = vsel %vm1598, %v1588, %v1209
      %v1606 = vsel %vm1598, %v1589, %v1211
      %v1607 = vsel %vm1598, %v1590, %v1213
      %v1608 = vsel %vm1598, %v1591, %v1215
      %v1609 = vsel %vm1598, %v1592, %v1217
      %v1610 = vsel %vm1598, %v1593, %v1219
      %v1611 = vsel %vm1598, %v1594, %v1221
      %v1612 = vsel %vm1598, %v1595, %v1223
      %v1613 = vsel %vm1598, %v1596, %v1225
      %v1614 = vsel %vm1598, %v1597, %v1227
      %v1615 = vsel %vm864, %v1599, %v1261
      %v1616 = vsel %vm864, %v1600, %v1263
      %v1617 = vsel %vm864, %v1601, %v1265
      %v1618 = vsel %vm864, %v1602, %v1267
      %v1619 = vsel %vm864, %v1603, %v1269
      %v1620 = vsel %vm864, %v1604, %v1271
      %v1621 = vsel %vm864, %v1605, %v1273
      %v1622 = vsel %vm864, %v1606, %v1275
      %v1623 = vsel %vm864, %v1607, %v1277
      %v1624 = vsel %vm864, %v1608, %v1279
      %v1625 = vsel %vm864, %v1609, %v1281
      %v1626 = vsel %vm864, %v1610, %v1283
      %v1627 = vsel %vm864, %v1611, %v1285
      %v1628 = vsel %vm864, %v1612, %v1287
      %v1629 = vsel %vm864, %v1613, %v1289
      %v1630 = vsel %vm864, %v1614, %v1291
      %vm1631 = vcmask 326656
      %v1632 = vsel %vm1631, %v1615, %v1325
      %v1633 = vsel %vm1631, %v1616, %v1327
      %v1634 = vsel %vm1631, %v1617, %v1329
      %v1635 = vsel %vm1631, %v1618, %v1331
      %v1636 = vsel %vm1631, %v1619, %v1333
      %v1637 = vsel %vm1631, %v1620, %v1335
      %v1638 = vsel %vm1631, %v1621, %v1337
      %v1639 = vsel %vm1631, %v1622, %v1339
      %v1640 = vsel %vm1631, %v1623, %v1341
      %v1641 = vsel %vm1631, %v1624, %v1343
      %v1642 = vsel %vm1631, %v1625, %v1345
      %v1643 = vsel %vm1631, %v1626, %v1347
      %v1644 = vsel %vm1631, %v1627, %v1349
      %v1645 = vsel %vm1631, %v1628, %v1351
      %v1646 = vsel %vm1631, %v1629, %v1353
      %v1647 = vsel %vm1631, %v1630, %v1355
      %vm1648 = vcmask 392192
      %v1649 = vsel %vm1648, %v1632, %v1389
      %v1650 = vsel %vm1648, %v1633, %v1391
      %v1651 = vsel %vm1648, %v1634, %v1393
      %v1652 = vsel %vm1648, %v1635, %v1395
      %v1653 = vsel %vm1648, %v1636, %v1397
      %v1654 = vsel %vm1648, %v1637, %v1399
      %v1655 = vsel %vm1648, %v1638, %v1401
      %v1656 = vsel %vm1648, %v1639, %v1403
      %v1657 = vsel %vm1648, %v1640, %v1405
      %v1658 = vsel %vm1648, %v1641, %v1407
      %v1659 = vsel %vm1648, %v1642, %v1409
      %v1660 = vsel %vm1648, %v1643, %v1411
      %v1661 = vsel %vm1648, %v1644, %v1413
      %v1662 = vsel %vm1648, %v1645, %v1415
      %v1663 = vsel %vm1648, %v1646, %v1417
      %v1664 = vsel %vm1648, %v1647, %v1419
      %vm1665 = vcmask 457728
      %v1666 = vsel %vm1665, %v1649, %v1453
      %v1667 = vsel %vm1665, %v1650, %v1455
      %v1668 = vsel %vm1665, %v1651, %v1457
      %v1669 = vsel %vm1665, %v1652, %v1459
      %v1670 = vsel %vm1665, %v1653, %v1461
      %v1671 = vsel %vm1665, %v1654, %v1463
      %v1672 = vsel %vm1665, %v1655, %v1465
      %v1673 = vsel %vm1665, %v1656, %v1467
      %v1674 = vsel %vm1665, %v1657, %v1469
      %v1675 = vsel %vm1665, %v1658, %v1471
      %v1676 = vsel %vm1665, %v1659, %v1473
      %v1677 = vsel %vm1665, %v1660, %v1475
      %v1678 = vsel %vm1665, %v1661, %v1477
      %v1679 = vsel %vm1665, %v1662, %v1479
      %v1680 = vsel %vm1665, %v1663, %v1481
      %v1681 = vsel %vm1665, %v1664, %v1483
      %vm1682 = vcmask 523264
      %v1683 = vsel %vm1682, %v1666, %v1517
      %v1684 = vsel %vm1682, %v1667, %v1519
      %v1685 = vsel %vm1682, %v1668, %v1521
      %v1686 = vsel %vm1682, %v1669, %v1523
      %v1687 = vsel %vm1682, %v1670, %v1525
      %v1688 = vsel %vm1682, %v1671, %v1527
      %v1689 = vsel %vm1682, %v1672, %v1529
      %v1690 = vsel %vm1682, %v1673, %v1531
      %v1691 = vsel %vm1682, %v1674, %v1533
      %v1692 = vsel %vm1682, %v1675, %v1535
      %v1693 = vsel %vm1682, %v1676, %v1537
      %v1694 = vsel %vm1682, %v1677, %v1539
      %v1695 = vsel %vm1682, %v1678, %v1541
      %v1696 = vsel %vm1682, %v1679, %v1543
      %v1697 = vsel %vm1682, %v1680, %v1545
      %v1698 = vsel %vm1682, %v1681, %v1547
      %v1699 = vpack.c.bf16 %v1684, %v1683
      %v1700 = vpack.c.bf16 %v1686, %v1685
      %v1701 = vpack.c.bf16 %v1688, %v1687
      %v1702 = vpack.c.bf16 %v1690, %v1689
      %v1703 = vpack.c.bf16 %v1692, %v1691
      %v1704 = vpack.c.bf16 %v1694, %v1693
      %v1705 = vpack.c.bf16 %v1696, %v1695
      %v1706 = vpack.c.bf16 %v1698, %v1697
      %v1707 = vld [vmem:[%s5] sm:$0xf]
      %v1708 = vld [vmem:[%s5 + $0x4] sm:$0xf]
      %v1709 = vld [vmem:[%s5 + $0x8] sm:$0xf]
      %v1710 = vld [vmem:[%s5 + $0xc] sm:$0xf]
      %v1711 = vld [vmem:[%s5 + $0x10] sm:$0xf]
      %v1712 = vld [vmem:[%s5 + $0x14] sm:$0xf]
      %v1713 = vld [vmem:[%s5 + $0x18] sm:$0xf]
      %v1714 = vld [vmem:[%s5 + $0x1c] sm:$0xf]
      %v1715 = vld [vmem:[%s5 + $0x20] sm:$0xf]
      %v1716 = vld [vmem:[%s6] sm:$0x1]
      %v1718 = vlaneseq
      %v1719 = vshrl.u32 %v1718, 7
      %v1720 = vsub.s32 0, %v1719
      %v1721 = vrot.slane %v1716, %v1720
      %v1732 = vunpack.c.l.b16 %v1707
      %v1733 = vunpack.c.l.b16 %v1708
      %v1734 = vunpack.c.l.b16 %v1709
      %v1735 = vunpack.c.l.b16 %v1710
      %v1736 = vunpack.c.l.b16 %v1711
      %v1737 = vunpack.c.l.b16 %v1712
      %v1738 = vunpack.c.l.b16 %v1713
      %v1739 = vunpack.c.l.b16 %v1714
      %v1740 = vunpack.c.l.b16 %v1715
      %v1741 = vpack.c.b16 %v1733, %v1732
      %v1742 = vpack.c.b16 %v1735, %v1734
      %v1743 = vpack.c.b16 %v1737, %v1736
      %v1744 = vpack.c.b16 %v1739, %v1738
      %v1745 = vpack.c.b16 %v1740, %v1740
      %vm1750 = vcmask 588800
      %v1752 = vsel %vm1750, %v1699, 0
      %v1755 = vsel %vm1750, %v1700, 0
      %v1758 = vsel %vm1750, %v1701, 0
      %v1761 = vsel %vm1750, %v1702, 0
      %v1764 = vsel %vm1750, %v1703, 0
      %v1767 = vsel %vm1750, %v1704, 0
      %v1770 = vsel %vm1750, %v1705, 0
      %v1773 = vsel %vm1750, %v1706, 0
      %vm1775 = vcmask 1043456
      %v1777 = vsel %vm1775, %v1745, 0
      %1779 = vmatprep.subr.bf16.mxu0 0
      %1780 = vmatpush1.bf16.msra.mxu0 0
      %1781 = vmatprep.subr.bf16.mxu0 0
      %1782 = vmatpush1.bf16.msra.mxu0 0
      %1783 = vmatprep.subr.bf16.mxu0 0
      %1784 = vmatpush1.bf16.msra.mxu0 0
      %1785 = vmatprep.subr.bf16.mxu0 0
      %1786 = vmatpush1.bf16.msra.mxu0 %v1777
      %1787 = vmatprep.subr.bf16.mxu0 0
      %1788 = vmatpush1.bf16.msra.mxu0 %v1744
      %1789 = vmatprep.subr.bf16.mxu0 0
      %1790 = vmatpush1.bf16.msra.mxu0 %v1743
      %1791 = vmatprep.subr.bf16.mxu0 0
      %1792 = vmatpush1.bf16.msra.mxu0 %v1742
      %1793 = vmatprep.subr.bf16.mxu0 0
      %1794 = vmatpush1.bf16.msra.mxu0 %v1741
      %1795 = vmatprep.subr.bf16.mxu0 0
      %1796 = vmatpush2.bf16.msra.mxu0 0
      %1797 = vmatprep.subr.bf16.mxu0 0
      %1798 = vmatpush2.bf16.msra.mxu0 0
      %1799 = vmatprep.subr.bf16.mxu0 0
      %1800 = vmatpush2.bf16.msra.mxu0 0
      %1801 = vmatprep.subr.bf16.mxu0 0
      %1802 = vmatpush2.bf16.msra.mxu0 0
      %1803 = vmatprep.subr.bf16.mxu0 0
      %1804 = vmatpush2.bf16.msra.mxu0 0
      %1805 = vmatprep.subr.bf16.mxu0 0
      %1806 = vmatpush2.bf16.msra.mxu0 0
      %1807 = vmatprep.subr.bf16.mxu0 0
      %1808 = vmatpush2.bf16.msra.mxu0 0
      %1809 = vmatprep.subr.bf16.mxu0 0
      %1810 = vmatpush2.bf16.msra.mxu0 0
      %1811 = vmatprep.mubr.bf16.mxu0 0
      %1812 = vmatmul.mubr.bf16.gmra.mxu0 %v1752
      %v1813 = vpop.f32.mrf.mxu0
      %v1814 = vadd.f32 %v1721, %v1813
      %v1815 = vpop.f32.mrf.mxu0
      %v1816 = vpop.f32.mrf.mxu0
      %v1817 = vadd.f32 %v1721, %v1816
      %v1818 = vpop.f32.mrf.mxu0
      %1819 = vmatprep.mubr.bf16.mxu0 0
      %1820 = vmatmul.mubr.bf16.gmra.mxu0 %v1755
      %v1821 = vpop.f32.mrf.mxu0
      %v1822 = vadd.f32 %v1721, %v1821
      %v1823 = vpop.f32.mrf.mxu0
      %v1824 = vpop.f32.mrf.mxu0
      %v1825 = vadd.f32 %v1721, %v1824
      %v1826 = vpop.f32.mrf.mxu0
      %1827 = vmatprep.mubr.bf16.mxu0 0
      %1828 = vmatmul.mubr.bf16.gmra.mxu0 %v1758
      %v1829 = vpop.f32.mrf.mxu0
      %v1830 = vadd.f32 %v1721, %v1829
      %v1831 = vpop.f32.mrf.mxu0
      %v1832 = vpop.f32.mrf.mxu0
      %v1833 = vadd.f32 %v1721, %v1832
      %v1834 = vpop.f32.mrf.mxu0
      %1835 = vmatprep.mubr.bf16.mxu0 0
      %1836 = vmatmul.mubr.bf16.gmra.mxu0 %v1761
      %v1837 = vpop.f32.mrf.mxu0
      %v1838 = vadd.f32 %v1721, %v1837
      %v1839 = vpop.f32.mrf.mxu0
      %v1840 = vpop.f32.mrf.mxu0
      %v1841 = vadd.f32 %v1721, %v1840
      %v1842 = vpop.f32.mrf.mxu0
      %1843 = vmatprep.mubr.bf16.mxu0 0
      %1844 = vmatmul.mubr.bf16.gmra.mxu0 %v1764
      %v1845 = vpop.f32.mrf.mxu0
      %v1846 = vadd.f32 %v1721, %v1845
      %v1847 = vpop.f32.mrf.mxu0
      %v1848 = vpop.f32.mrf.mxu0
      %v1849 = vadd.f32 %v1721, %v1848
      %v1850 = vpop.f32.mrf.mxu0
      %1851 = vmatprep.mubr.bf16.mxu0 0
      %1852 = vmatmul.mubr.bf16.gmra.mxu0 %v1767
      %v1853 = vpop.f32.mrf.mxu0
      %v1854 = vadd.f32 %v1721, %v1853
      %v1855 = vpop.f32.mrf.mxu0
      %v1856 = vpop.f32.mrf.mxu0
      %v1857 = vadd.f32 %v1721, %v1856
      %v1858 = vpop.f32.mrf.mxu0
      %1859 = vmatprep.mubr.bf16.mxu0 0
      %1860 = vmatmul.mubr.bf16.gmra.mxu0 %v1770
      %v1861 = vpop.f32.mrf.mxu0
      %v1862 = vadd.f32 %v1721, %v1861
      %v1863 = vpop.f32.mrf.mxu0
      %v1864 = vpop.f32.mrf.mxu0
      %v1865 = vadd.f32 %v1721, %v1864
      %v1866 = vpop.f32.mrf.mxu0
      %1867 = vmatprep.mubr.bf16.mxu0 0
      %1868 = vmatmul.mubr.bf16.gmra.mxu0 %v1773
      %v1869 = vpop.f32.mrf.mxu0
      %v1870 = vadd.f32 %v1721, %v1869
      %v1871 = vpop.f32.mrf.mxu0
      %v1872 = vpop.f32.mrf.mxu0
      %v1873 = vadd.f32 %v1721, %v1872
      %v1874 = vpop.f32.mrf.mxu0
      %1875 = vdwg.mxu0
      %v1876 = vsub.f32 0.0, %v1814
      %v1877 = vsub.f32 0.0, %v1817
      %v1878 = vsub.f32 0.0, %v1822
      %v1879 = vsub.f32 0.0, %v1825
      %v1880 = vsub.f32 0.0, %v1830
      %v1881 = vsub.f32 0.0, %v1833
      %v1882 = vsub.f32 0.0, %v1838
      %v1883 = vsub.f32 0.0, %v1841
      %v1884 = vsub.f32 0.0, %v1846
      %v1885 = vsub.f32 0.0, %v1849
      %v1886 = vsub.f32 0.0, %v1854
      %v1887 = vsub.f32 0.0, %v1857
      %v1888 = vsub.f32 0.0, %v1862
      %v1889 = vsub.f32 0.0, %v1865
      %v1890 = vsub.f32 0.0, %v1870
      %v1891 = vsub.f32 0.0, %v1873
      %v1892 = vmul.f32 %v1876, 1.442695
      %v1893 = vpow.pop %v1892
      %v1894 = vmul.f32 %v1877, 1.442695
      %v1895 = vpow.pop %v1894
      %v1896 = vmul.f32 %v1878, 1.442695
      %v1897 = vpow.pop %v1896
      %v1898 = vmul.f32 %v1879, 1.442695
      %v1899 = vpow.pop %v1898
      %v1900 = vmul.f32 %v1880, 1.442695
      %v1901 = vpow.pop %v1900
      %v1902 = vmul.f32 %v1881, 1.442695
      %v1903 = vpow.pop %v1902
      %v1904 = vmul.f32 %v1882, 1.442695
      %v1905 = vpow.pop %v1904
      %v1906 = vmul.f32 %v1883, 1.442695
      %v1907 = vpow.pop %v1906
      %v1908 = vmul.f32 %v1884, 1.442695
      %v1909 = vpow.pop %v1908
      %v1910 = vmul.f32 %v1885, 1.442695
      %v1911 = vpow.pop %v1910
      %v1912 = vmul.f32 %v1886, 1.442695
      %v1913 = vpow.pop %v1912
      %v1914 = vmul.f32 %v1887, 1.442695
      %v1915 = vpow.pop %v1914
      %v1916 = vmul.f32 %v1888, 1.442695
      %v1917 = vpow.pop %v1916
      %v1918 = vmul.f32 %v1889, 1.442695
      %v1919 = vpow.pop %v1918
      %v1920 = vmul.f32 %v1890, 1.442695
      %v1921 = vpow.pop %v1920
      %v1922 = vmul.f32 %v1891, 1.442695
      %v1923 = vpow.pop %v1922
      %v1924 = vadd.f32 %v1893, 1.0
      %v1925 = vadd.f32 %v1895, 1.0
      %v1926 = vadd.f32 %v1897, 1.0
      %v1927 = vadd.f32 %v1899, 1.0
      %v1928 = vadd.f32 %v1901, 1.0
      %v1929 = vadd.f32 %v1903, 1.0
      %v1930 = vadd.f32 %v1905, 1.0
      %v1931 = vadd.f32 %v1907, 1.0
      %v1932 = vadd.f32 %v1909, 1.0
      %v1933 = vadd.f32 %v1911, 1.0
      %v1934 = vadd.f32 %v1913, 1.0
      %v1935 = vadd.f32 %v1915, 1.0
      %v1936 = vadd.f32 %v1917, 1.0
      %v1937 = vadd.f32 %v1919, 1.0
      %v1938 = vadd.f32 %v1921, 1.0
      %v1939 = vadd.f32 %v1923, 1.0
      %v1940 = vrcp.pop %v1924
      %v1941 = vrcp.pop %v1925
      %v1942 = vrcp.pop %v1926
      %v1943 = vrcp.pop %v1927
      %v1944 = vrcp.pop %v1928
      %v1945 = vrcp.pop %v1929
      %v1946 = vrcp.pop %v1930
      %v1947 = vrcp.pop %v1931
      %v1948 = vrcp.pop %v1932
      %v1949 = vrcp.pop %v1933
      %v1950 = vrcp.pop %v1934
      %v1951 = vrcp.pop %v1935
      %v1952 = vrcp.pop %v1936
      %v1953 = vrcp.pop %v1937
      %v1954 = vrcp.pop %v1938
      %v1955 = vrcp.pop %v1939
      %v1956 = vmul.f32 %v1814, %v1940
      %v1957 = vmul.f32 %v1817, %v1941
      %v1958 = vmul.f32 %v1822, %v1942
      %v1959 = vmul.f32 %v1825, %v1943
      %v1960 = vmul.f32 %v1830, %v1944
      %v1961 = vmul.f32 %v1833, %v1945
      %v1962 = vmul.f32 %v1838, %v1946
      %v1963 = vmul.f32 %v1841, %v1947
      %v1964 = vmul.f32 %v1846, %v1948
      %v1965 = vmul.f32 %v1849, %v1949
      %v1966 = vmul.f32 %v1854, %v1950
      %v1967 = vmul.f32 %v1857, %v1951
      %v1968 = vmul.f32 %v1862, %v1952
      %v1969 = vmul.f32 %v1865, %v1953
      %v1970 = vmul.f32 %v1870, %v1954
      %v1971 = vmul.f32 %v1873, %v1955
      %s1972 = scalar_lea.vmem [#allocation2], 16
      %1973 = vst.msk [vmem:[%s1972 + $0x1] sm:$0xff] %vm1581, %v1956
      %1974 = vst.msk [vmem:[%s1972 + $0x11] sm:$0xff] %vm1581, %v1957
      %1975 = vst.msk [vmem:[%s1972 + $0x21] sm:$0xff] %vm1581, %v1958
      %1976 = vst.msk [vmem:[%s1972 + $0x31] sm:$0xff] %vm1581, %v1959
      %1977 = vst.msk [vmem:[%s1972 + $0x41] sm:$0xff] %vm1581, %v1960
      %1978 = vst.msk [vmem:[%s1972 + $0x51] sm:$0xff] %vm1581, %v1961
      %1979 = vst.msk [vmem:[%s1972 + $0x61] sm:$0xff] %vm1581, %v1962
      %1980 = vst.msk [vmem:[%s1972 + $0x71] sm:$0xff] %vm1581, %v1963
      %1981 = vst.msk [vmem:[%s1972 + $0xa1] sm:$0xff] %vm1581, %v1964
      %1982 = vst.msk [vmem:[%s1972 + $0xb1] sm:$0xff] %vm1581, %v1965
      %1983 = vst.msk [vmem:[%s1972 + $0xc1] sm:$0xff] %vm1581, %v1966
      %1984 = vst.msk [vmem:[%s1972 + $0xd1] sm:$0xff] %vm1581, %v1967
      %1985 = vst.msk [vmem:[%s1972 + $0xe1] sm:$0xff] %vm1581, %v1968
      %1986 = vst.msk [vmem:[%s1972 + $0xf1] sm:$0xff] %vm1581, %v1969
      %1987 = vst.msk [vmem:[%s1972 + $0x101] sm:$0xff] %vm1581, %v1970
      %1988 = vst.msk [vmem:[%s1972 + $0x111] sm:$0xff] %vm1581, %v1971
      %v1989 = vld [vmem:[#allocation2] sm:$0xff]
      %v1990 = vld [vmem:[#allocation2 + $0x10] sm:$0xff]
      %v1991 = vld [vmem:[#allocation2 + $0x20] sm:$0xff]
      %v1992 = vld [vmem:[#allocation2 + $0x30] sm:$0xff]
      %v1993 = vld [vmem:[#allocation2 + $0x40] sm:$0xff]
      %v1994 = vld [vmem:[#allocation2 + $0x50] sm:$0xff]
      %v1995 = vld [vmem:[#allocation2 + $0x60] sm:$0xff]
      %v1996 = vld [vmem:[#allocation2 + $0x70] sm:$0xff]
      %v1997 = vld [vmem:[#allocation2 + $0xa0] sm:$0xff]
      %v1998 = vld [vmem:[#allocation2 + $0xb0] sm:$0xff]
      %v1999 = vld [vmem:[#allocation2 + $0xc0] sm:$0xff]
      %v2000 = vld [vmem:[#allocation2 + $0xd0] sm:$0xff]
      %v2001 = vld [vmem:[#allocation2 + $0xe0] sm:$0xff]
      %v2002 = vld [vmem:[#allocation2 + $0xf0] sm:$0xff]
      %v2003 = vld [vmem:[#allocation2 + $0x100] sm:$0xff]
      %v2004 = vld [vmem:[#allocation2 + $0x110] sm:$0xff]
      %v2005 = vld [vmem:[#allocation2 + $0x1] sm:$0xff]
      %v2006 = vld [vmem:[#allocation2 + $0x11] sm:$0xff]
      %v2007 = vld [vmem:[#allocation2 + $0x21] sm:$0xff]
      %v2008 = vld [vmem:[#allocation2 + $0x31] sm:$0xff]
      %v2009 = vld [vmem:[#allocation2 + $0x41] sm:$0xff]
      %v2010 = vld [vmem:[#allocation2 + $0x51] sm:$0xff]
      %v2011 = vld [vmem:[#allocation2 + $0x61] sm:$0xff]
      %v2012 = vld [vmem:[#allocation2 + $0x71] sm:$0xff]
      %v2013 = vld [vmem:[#allocation2 + $0xa1] sm:$0xff]
      %v2014 = vld [vmem:[#allocation2 + $0xb1] sm:$0xff]
      %v2015 = vld [vmem:[#allocation2 + $0xc1] sm:$0xff]
      %v2016 = vld [vmem:[#allocation2 + $0xd1] sm:$0xff]
      %v2017 = vld [vmem:[#allocation2 + $0xe1] sm:$0xff]
      %v2018 = vld [vmem:[#allocation2 + $0xf1] sm:$0xff]
      %v2019 = vld [vmem:[#allocation2 + $0x101] sm:$0xff]
      %v2020 = vld [vmem:[#allocation2 + $0x111] sm:$0xff]
      %v2021 = vld [vmem:[#allocation2 + $0x2] sm:$0xff]
      %v2022 = vld [vmem:[#allocation2 + $0x12] sm:$0xff]
      %v2023 = vld [vmem:[#allocation2 + $0x22] sm:$0xff]
      %v2024 = vld [vmem:[#allocation2 + $0x32] sm:$0xff]
      %v2025 = vld [vmem:[#allocation2 + $0x42] sm:$0xff]
      %v2026 = vld [vmem:[#allocation2 + $0x52] sm:$0xff]
      %v2027 = vld [vmem:[#allocation2 + $0x62] sm:$0xff]
      %v2028 = vld [vmem:[#allocation2 + $0x72] sm:$0xff]
      %v2029 = vld [vmem:[#allocation2 + $0xa2] sm:$0xff]
      %v2030 = vld [vmem:[#allocation2 + $0xb2] sm:$0xff]
      %v2031 = vld [vmem:[#allocation2 + $0xc2] sm:$0xff]
      %v2032 = vld [vmem:[#allocation2 + $0xd2] sm:$0xff]
      %v2033 = vld [vmem:[#allocation2 + $0xe2] sm:$0xff]
      %v2034 = vld [vmem:[#allocation2 + $0xf2] sm:$0xff]
      %v2035 = vld [vmem:[#allocation2 + $0x102] sm:$0xff]
      %v2036 = vld [vmem:[#allocation2 + $0x112] sm:$0xff]
      %v2037 = vld [vmem:[%s1972] sm:$0xff]
      %v2038 = vld [vmem:[%s1972 + $0x10] sm:$0xff]
      %v2039 = vld [vmem:[%s1972 + $0x20] sm:$0xff]
      %v2040 = vld [vmem:[%s1972 + $0x30] sm:$0xff]
      %v2041 = vld [vmem:[%s1972 + $0x40] sm:$0xff]
      %v2042 = vld [vmem:[%s1972 + $0x50] sm:$0xff]
      %v2043 = vld [vmem:[%s1972 + $0x60] sm:$0xff]
      %v2044 = vld [vmem:[%s1972 + $0x70] sm:$0xff]
      %v2045 = vld [vmem:[%s1972 + $0xa0] sm:$0xff]
      %v2046 = vld [vmem:[%s1972 + $0xb0] sm:$0xff]
      %v2047 = vld [vmem:[%s1972 + $0xc0] sm:$0xff]
      %v2048 = vld [vmem:[%s1972 + $0xd0] sm:$0xff]
      %v2049 = vld [vmem:[%s1972 + $0xe0] sm:$0xff]
      %v2050 = vld [vmem:[%s1972 + $0xf0] sm:$0xff]
      %v2051 = vld [vmem:[%s1972 + $0x100] sm:$0xff]
      %v2052 = vld [vmem:[%s1972 + $0x110] sm:$0xff]
      %v2053 = vld [vmem:[%s1972 + $0x1] sm:$0xff]
      %v2054 = vld [vmem:[%s1972 + $0x11] sm:$0xff]
      %v2055 = vld [vmem:[%s1972 + $0x21] sm:$0xff]
      %v2056 = vld [vmem:[%s1972 + $0x31] sm:$0xff]
      %v2057 = vld [vmem:[%s1972 + $0x41] sm:$0xff]
      %v2058 = vld [vmem:[%s1972 + $0x51] sm:$0xff]
      %v2059 = vld [vmem:[%s1972 + $0x61] sm:$0xff]
      %v2060 = vld [vmem:[%s1972 + $0x71] sm:$0xff]
      %v2061 = vld [vmem:[%s1972 + $0xa1] sm:$0xff]
      %v2062 = vld [vmem:[%s1972 + $0xb1] sm:$0xff]
      %v2063 = vld [vmem:[%s1972 + $0xc1] sm:$0xff]
      %v2064 = vld [vmem:[%s1972 + $0xd1] sm:$0xff]
      %v2065 = vld [vmem:[%s1972 + $0xe1] sm:$0xff]
      %v2066 = vld [vmem:[%s1972 + $0xf1] sm:$0xff]
      %v2067 = vld [vmem:[%s1972 + $0x101] sm:$0xff]
      %v2068 = vld [vmem:[%s1972 + $0x111] sm:$0xff]
      %v2069 = vld [vmem:[%s1972 + $0x2] sm:$0xff]
      %v2070 = vld [vmem:[%s1972 + $0x12] sm:$0xff]
      %v2071 = vld [vmem:[%s1972 + $0x22] sm:$0xff]
      %v2072 = vld [vmem:[%s1972 + $0x32] sm:$0xff]
      %v2073 = vld [vmem:[%s1972 + $0x42] sm:$0xff]
      %v2074 = vld [vmem:[%s1972 + $0x52] sm:$0xff]
      %v2075 = vld [vmem:[%s1972 + $0x62] sm:$0xff]
      %v2076 = vld [vmem:[%s1972 + $0x72] sm:$0xff]
      %v2077 = vld [vmem:[%s1972 + $0xa2] sm:$0xff]
      %v2078 = vld [vmem:[%s1972 + $0xb2] sm:$0xff]
      %v2079 = vld [vmem:[%s1972 + $0xc2] sm:$0xff]
      %v2080 = vld [vmem:[%s1972 + $0xd2] sm:$0xff]
      %v2081 = vld [vmem:[%s1972 + $0xe2] sm:$0xff]
      %v2082 = vld [vmem:[%s1972 + $0xf2] sm:$0xff]
      %v2083 = vld [vmem:[%s1972 + $0x102] sm:$0xff]
      %v2084 = vld [vmem:[%s1972 + $0x112] sm:$0xff]
      %s2085 = scalar_lea.vmem [#allocation2], 32
      %v2086 = vld [vmem:[%s2085] sm:$0xff]
      %v2087 = vld [vmem:[%s2085 + $0x10] sm:$0xff]
      %v2088 = vld [vmem:[%s2085 + $0x20] sm:$0xff]
      %v2089 = vld [vmem:[%s2085 + $0x30] sm:$0xff]
      %v2090 = vld [vmem:[%s2085 + $0x40] sm:$0xff]
      %v2091 = vld [vmem:[%s2085 + $0x50] sm:$0xff]
      %v2092 = vld [vmem:[%s2085 + $0x60] sm:$0xff]
      %v2093 = vld [vmem:[%s2085 + $0x70] sm:$0xff]
      %v2094 = vld [vmem:[%s2085 + $0xa0] sm:$0xff]
      %v2095 = vld [vmem:[%s2085 + $0xb0] sm:$0xff]
      %v2096 = vld [vmem:[%s2085 + $0xc0] sm:$0xff]
      %v2097 = vld [vmem:[%s2085 + $0xd0] sm:$0xff]
      %v2098 = vld [vmem:[%s2085 + $0xe0] sm:$0xff]
      %v2099 = vld [vmem:[%s2085 + $0xf0] sm:$0xff]
      %v2100 = vld [vmem:[%s2085 + $0x100] sm:$0xff]
      %v2101 = vld [vmem:[%s2085 + $0x110] sm:$0xff]
      %v2102 = vld [vmem:[%s2085 + $0x1] sm:$0xff]
      %v2103 = vld [vmem:[%s2085 + $0x11] sm:$0xff]
      %v2104 = vld [vmem:[%s2085 + $0x21] sm:$0xff]
      %v2105 = vld [vmem:[%s2085 + $0x31] sm:$0xff]
      %v2106 = vld [vmem:[%s2085 + $0x41] sm:$0xff]
      %v2107 = vld [vmem:[%s2085 + $0x51] sm:$0xff]
      %v2108 = vld [vmem:[%s2085 + $0x61] sm:$0xff]
      %v2109 = vld [vmem:[%s2085 + $0x71] sm:$0xff]
      %v2110 = vld [vmem:[%s2085 + $0xa1] sm:$0xff]
      %v2111 = vld [vmem:[%s2085 + $0xb1] sm:$0xff]
      %v2112 = vld [vmem:[%s2085 + $0xc1] sm:$0xff]
      %v2113 = vld [vmem:[%s2085 + $0xd1] sm:$0xff]
      %v2114 = vld [vmem:[%s2085 + $0xe1] sm:$0xff]
      %v2115 = vld [vmem:[%s2085 + $0xf1] sm:$0xff]
      %v2116 = vld [vmem:[%s2085 + $0x101] sm:$0xff]
      %v2117 = vld [vmem:[%s2085 + $0x111] sm:$0xff]
      %v2118 = vld [vmem:[%s2085 + $0x2] sm:$0xff]
      %v2119 = vld [vmem:[%s2085 + $0x12] sm:$0xff]
      %v2120 = vld [vmem:[%s2085 + $0x22] sm:$0xff]
      %v2121 = vld [vmem:[%s2085 + $0x32] sm:$0xff]
      %v2122 = vld [vmem:[%s2085 + $0x42] sm:$0xff]
      %v2123 = vld [vmem:[%s2085 + $0x52] sm:$0xff]
      %v2124 = vld [vmem:[%s2085 + $0x62] sm:$0xff]
      %v2125 = vld [vmem:[%s2085 + $0x72] sm:$0xff]
      %v2126 = vld [vmem:[%s2085 + $0xa2] sm:$0xff]
      %v2127 = vld [vmem:[%s2085 + $0xb2] sm:$0xff]
      %v2128 = vld [vmem:[%s2085 + $0xc2] sm:$0xff]
      %v2129 = vld [vmem:[%s2085 + $0xd2] sm:$0xff]
      %v2130 = vld [vmem:[%s2085 + $0xe2] sm:$0xff]
      %v2131 = vld [vmem:[%s2085 + $0xf2] sm:$0xff]
      %v2132 = vld [vmem:[%s2085 + $0x102] sm:$0xff]
      %v2133 = vld [vmem:[%s2085 + $0x112] sm:$0xff]
      %2150 = vrot.lane.b32.xlu0 %v2005, 16
      %v2151 = vpop.permute.xlu0 %2150
      %2152 = vrot.lane.b32.xlu0 %v2006, 16
      %v2153 = vpop.permute.xlu0 %2152
      %2154 = vrot.lane.b32.xlu0 %v2007, 16
      %v2155 = vpop.permute.xlu0 %2154
      %2156 = vrot.lane.b32.xlu0 %v2008, 16
      %v2157 = vpop.permute.xlu0 %2156
      %2158 = vrot.lane.b32.xlu0 %v2009, 16
      %v2159 = vpop.permute.xlu0 %2158
      %2160 = vrot.lane.b32.xlu0 %v2010, 16
      %v2161 = vpop.permute.xlu0 %2160
      %2162 = vrot.lane.b32.xlu0 %v2011, 16
      %v2163 = vpop.permute.xlu0 %2162
      %2164 = vrot.lane.b32.xlu0 %v2012, 16
      %v2165 = vpop.permute.xlu0 %2164
      %2166 = vrot.lane.b32.xlu0 %v2013, 16
      %v2167 = vpop.permute.xlu0 %2166
      %2168 = vrot.lane.b32.xlu0 %v2014, 16
      %v2169 = vpop.permute.xlu0 %2168
      %2170 = vrot.lane.b32.xlu0 %v2015, 16
      %v2171 = vpop.permute.xlu0 %2170
      %2172 = vrot.lane.b32.xlu0 %v2016, 16
      %v2173 = vpop.permute.xlu0 %2172
      %2174 = vrot.lane.b32.xlu0 %v2017, 16
      %v2175 = vpop.permute.xlu0 %2174
      %2176 = vrot.lane.b32.xlu0 %v2018, 16
      %v2177 = vpop.permute.xlu0 %2176
      %2178 = vrot.lane.b32.xlu0 %v2019, 16
      %v2179 = vpop.permute.xlu0 %2178
      %2180 = vrot.lane.b32.xlu0 %v2020, 16
      %v2181 = vpop.permute.xlu0 %2180
      %2214 = vrot.lane.b32.xlu0 %v2021, 32
      %v2215 = vpop.permute.xlu0 %2214
      %2216 = vrot.lane.b32.xlu0 %v2022, 32
      %v2217 = vpop.permute.xlu0 %2216
      %2218 = vrot.lane.b32.xlu0 %v2023, 32
      %v2219 = vpop.permute.xlu0 %2218
      %2220 = vrot.lane.b32.xlu0 %v2024, 32
      %v2221 = vpop.permute.xlu0 %2220
      %2222 = vrot.lane.b32.xlu0 %v2025, 32
      %v2223 = vpop.permute.xlu0 %2222
      %2224 = vrot.lane.b32.xlu0 %v2026, 32
      %v2225 = vpop.permute.xlu0 %2224
      %2226 = vrot.lane.b32.xlu0 %v2027, 32
      %v2227 = vpop.permute.xlu0 %2226
      %2228 = vrot.lane.b32.xlu0 %v2028, 32
      %v2229 = vpop.permute.xlu0 %2228
      %2230 = vrot.lane.b32.xlu0 %v2029, 32
      %v2231 = vpop.permute.xlu0 %2230
      %2232 = vrot.lane.b32.xlu0 %v2030, 32
      %v2233 = vpop.permute.xlu0 %2232
      %2234 = vrot.lane.b32.xlu0 %v2031, 32
      %v2235 = vpop.permute.xlu0 %2234
      %2236 = vrot.lane.b32.xlu0 %v2032, 32
      %v2237 = vpop.permute.xlu0 %2236
      %2238 = vrot.lane.b32.xlu0 %v2033, 32
      %v2239 = vpop.permute.xlu0 %2238
      %2240 = vrot.lane.b32.xlu0 %v2034, 32
      %v2241 = vpop.permute.xlu0 %2240
      %2242 = vrot.lane.b32.xlu0 %v2035, 32
      %v2243 = vpop.permute.xlu0 %2242
      %2244 = vrot.lane.b32.xlu0 %v2036, 32
      %v2245 = vpop.permute.xlu0 %2244
      %2278 = vrot.lane.b32.xlu0 %v2037, 48
      %v2279 = vpop.permute.xlu0 %2278
      %2280 = vrot.lane.b32.xlu0 %v2038, 48
      %v2281 = vpop.permute.xlu0 %2280
      %2282 = vrot.lane.b32.xlu0 %v2039, 48
      %v2283 = vpop.permute.xlu0 %2282
      %2284 = vrot.lane.b32.xlu0 %v2040, 48
      %v2285 = vpop.permute.xlu0 %2284
      %2286 = vrot.lane.b32.xlu0 %v2041, 48
      %v2287 = vpop.permute.xlu0 %2286
      %2288 = vrot.lane.b32.xlu0 %v2042, 48
      %v2289 = vpop.permute.xlu0 %2288
      %2290 = vrot.lane.b32.xlu0 %v2043, 48
      %v2291 = vpop.permute.xlu0 %2290
      %2292 = vrot.lane.b32.xlu0 %v2044, 48
      %v2293 = vpop.permute.xlu0 %2292
      %2294 = vrot.lane.b32.xlu0 %v2045, 48
      %v2295 = vpop.permute.xlu0 %2294
      %2296 = vrot.lane.b32.xlu0 %v2046, 48
      %v2297 = vpop.permute.xlu0 %2296
      %2298 = vrot.lane.b32.xlu0 %v2047, 48
      %v2299 = vpop.permute.xlu0 %2298
      %2300 = vrot.lane.b32.xlu0 %v2048, 48
      %v2301 = vpop.permute.xlu0 %2300
      %2302 = vrot.lane.b32.xlu0 %v2049, 48
      %v2303 = vpop.permute.xlu0 %2302
      %2304 = vrot.lane.b32.xlu0 %v2050, 48
      %v2305 = vpop.permute.xlu0 %2304
      %2306 = vrot.lane.b32.xlu0 %v2051, 48
      %v2307 = vpop.permute.xlu0 %2306
      %2308 = vrot.lane.b32.xlu0 %v2052, 48
      %v2309 = vpop.permute.xlu0 %2308
      %2342 = vrot.lane.b32.xlu0 %v2053, 64
      %v2343 = vpop.permute.xlu0 %2342
      %2344 = vrot.lane.b32.xlu0 %v2054, 64
      %v2345 = vpop.permute.xlu0 %2344
      %2346 = vrot.lane.b32.xlu0 %v2055, 64
      %v2347 = vpop.permute.xlu0 %2346
      %2348 = vrot.lane.b32.xlu0 %v2056, 64
      %v2349 = vpop.permute.xlu0 %2348
      %2350 = vrot.lane.b32.xlu0 %v2057, 64
      %v2351 = vpop.permute.xlu0 %2350
      %2352 = vrot.lane.b32.xlu0 %v2058, 64
      %v2353 = vpop.permute.xlu0 %2352
      %2354 = vrot.lane.b32.xlu0 %v2059, 64
      %v2355 = vpop.permute.xlu0 %2354
      %2356 = vrot.lane.b32.xlu0 %v2060, 64
      %v2357 = vpop.permute.xlu0 %2356
      %2358 = vrot.lane.b32.xlu0 %v2061, 64
      %v2359 = vpop.permute.xlu0 %2358
      %2360 = vrot.lane.b32.xlu0 %v2062, 64
      %v2361 = vpop.permute.xlu0 %2360
      %2362 = vrot.lane.b32.xlu0 %v2063, 64
      %v2363 = vpop.permute.xlu0 %2362
      %2364 = vrot.lane.b32.xlu0 %v2064, 64
      %v2365 = vpop.permute.xlu0 %2364
      %2366 = vrot.lane.b32.xlu0 %v2065, 64
      %v2367 = vpop.permute.xlu0 %2366
      %2368 = vrot.lane.b32.xlu0 %v2066, 64
      %v2369 = vpop.permute.xlu0 %2368
      %2370 = vrot.lane.b32.xlu0 %v2067, 64
      %v2371 = vpop.permute.xlu0 %2370
      %2372 = vrot.lane.b32.xlu0 %v2068, 64
      %v2373 = vpop.permute.xlu0 %2372
      %2406 = vrot.lane.b32.xlu0 %v2069, 80
      %v2407 = vpop.permute.xlu0 %2406
      %2408 = vrot.lane.b32.xlu0 %v2070, 80
      %v2409 = vpop.permute.xlu0 %2408
      %2410 = vrot.lane.b32.xlu0 %v2071, 80
      %v2411 = vpop.permute.xlu0 %2410
      %2412 = vrot.lane.b32.xlu0 %v2072, 80
      %v2413 = vpop.permute.xlu0 %2412
      %2414 = vrot.lane.b32.xlu0 %v2073, 80
      %v2415 = vpop.permute.xlu0 %2414
      %2416 = vrot.lane.b32.xlu0 %v2074, 80
      %v2417 = vpop.permute.xlu0 %2416
      %2418 = vrot.lane.b32.xlu0 %v2075, 80
      %v2419 = vpop.permute.xlu0 %2418
      %2420 = vrot.lane.b32.xlu0 %v2076, 80
      %v2421 = vpop.permute.xlu0 %2420
      %2422 = vrot.lane.b32.xlu0 %v2077, 80
      %v2423 = vpop.permute.xlu0 %2422
      %2424 = vrot.lane.b32.xlu0 %v2078, 80
      %v2425 = vpop.permute.xlu0 %2424
      %2426 = vrot.lane.b32.xlu0 %v2079, 80
      %v2427 = vpop.permute.xlu0 %2426
      %2428 = vrot.lane.b32.xlu0 %v2080, 80
      %v2429 = vpop.permute.xlu0 %2428
      %2430 = vrot.lane.b32.xlu0 %v2081, 80
      %v2431 = vpop.permute.xlu0 %2430
      %2432 = vrot.lane.b32.xlu0 %v2082, 80
      %v2433 = vpop.permute.xlu0 %2432
      %2434 = vrot.lane.b32.xlu0 %v2083, 80
      %v2435 = vpop.permute.xlu0 %2434
      %2436 = vrot.lane.b32.xlu0 %v2084, 80
      %v2437 = vpop.permute.xlu0 %2436
      %2470 = vrot.lane.b32.xlu0 %v2086, 96
      %v2471 = vpop.permute.xlu0 %2470
      %2472 = vrot.lane.b32.xlu0 %v2087, 96
      %v2473 = vpop.permute.xlu0 %2472
      %2474 = vrot.lane.b32.xlu0 %v2088, 96
      %v2475 = vpop.permute.xlu0 %2474
      %2476 = vrot.lane.b32.xlu0 %v2089, 96
      %v2477 = vpop.permute.xlu0 %2476
      %2478 = vrot.lane.b32.xlu0 %v2090, 96
      %v2479 = vpop.permute.xlu0 %2478
      %2480 = vrot.lane.b32.xlu0 %v2091, 96
      %v2481 = vpop.permute.xlu0 %2480
      %2482 = vrot.lane.b32.xlu0 %v2092, 96
      %v2483 = vpop.permute.xlu0 %2482
      %2484 = vrot.lane.b32.xlu0 %v2093, 96
      %v2485 = vpop.permute.xlu0 %2484
      %2486 = vrot.lane.b32.xlu0 %v2094, 96
      %v2487 = vpop.permute.xlu0 %2486
      %2488 = vrot.lane.b32.xlu0 %v2095, 96
      %v2489 = vpop.permute.xlu0 %2488
      %2490 = vrot.lane.b32.xlu0 %v2096, 96
      %v2491 = vpop.permute.xlu0 %2490
      %2492 = vrot.lane.b32.xlu0 %v2097, 96
      %v2493 = vpop.permute.xlu0 %2492
      %2494 = vrot.lane.b32.xlu0 %v2098, 96
      %v2495 = vpop.permute.xlu0 %2494
      %2496 = vrot.lane.b32.xlu0 %v2099, 96
      %v2497 = vpop.permute.xlu0 %2496
      %2498 = vrot.lane.b32.xlu0 %v2100, 96
      %v2499 = vpop.permute.xlu0 %2498
      %2500 = vrot.lane.b32.xlu0 %v2101, 96
      %v2501 = vpop.permute.xlu0 %2500
      %2534 = vrot.lane.b32.xlu0 %v2102, 112
      %v2535 = vpop.permute.xlu0 %2534
      %2536 = vrot.lane.b32.xlu0 %v2103, 112
      %v2537 = vpop.permute.xlu0 %2536
      %2538 = vrot.lane.b32.xlu0 %v2104, 112
      %v2539 = vpop.permute.xlu0 %2538
      %2540 = vrot.lane.b32.xlu0 %v2105, 112
      %v2541 = vpop.permute.xlu0 %2540
      %2542 = vrot.lane.b32.xlu0 %v2106, 112
      %v2543 = vpop.permute.xlu0 %2542
      %2544 = vrot.lane.b32.xlu0 %v2107, 112
      %v2545 = vpop.permute.xlu0 %2544
      %2546 = vrot.lane.b32.xlu0 %v2108, 112
      %v2547 = vpop.permute.xlu0 %2546
      %2548 = vrot.lane.b32.xlu0 %v2109, 112
      %v2549 = vpop.permute.xlu0 %2548
      %2550 = vrot.lane.b32.xlu0 %v2110, 112
      %v2551 = vpop.permute.xlu0 %2550
      %2552 = vrot.lane.b32.xlu0 %v2111, 112
      %v2553 = vpop.permute.xlu0 %2552
      %2554 = vrot.lane.b32.xlu0 %v2112, 112
      %v2555 = vpop.permute.xlu0 %2554
      %2556 = vrot.lane.b32.xlu0 %v2113, 112
      %v2557 = vpop.permute.xlu0 %2556
      %2558 = vrot.lane.b32.xlu0 %v2114, 112
      %v2559 = vpop.permute.xlu0 %2558
      %2560 = vrot.lane.b32.xlu0 %v2115, 112
      %v2561 = vpop.permute.xlu0 %2560
      %2562 = vrot.lane.b32.xlu0 %v2116, 112
      %v2563 = vpop.permute.xlu0 %2562
      %2564 = vrot.lane.b32.xlu0 %v2117, 112
      %v2565 = vpop.permute.xlu0 %2564
      %v2582 = vsel %vm1581, %v1989, %v2151
      %v2583 = vsel %vm1581, %v1990, %v2153
      %v2584 = vsel %vm1581, %v1991, %v2155
      %v2585 = vsel %vm1581, %v1992, %v2157
      %v2586 = vsel %vm1581, %v1993, %v2159
      %v2587 = vsel %vm1581, %v1994, %v2161
      %v2588 = vsel %vm1581, %v1995, %v2163
      %v2589 = vsel %vm1581, %v1996, %v2165
      %v2590 = vsel %vm1581, %v1997, %v2167
      %v2591 = vsel %vm1581, %v1998, %v2169
      %v2592 = vsel %vm1581, %v1999, %v2171
      %v2593 = vsel %vm1581, %v2000, %v2173
      %v2594 = vsel %vm1581, %v2001, %v2175
      %v2595 = vsel %vm1581, %v2002, %v2177
      %v2596 = vsel %vm1581, %v2003, %v2179
      %v2597 = vsel %vm1581, %v2004, %v2181
      %v2598 = vsel %vm864, %v2582, %v2215
      %v2599 = vsel %vm864, %v2583, %v2217
      %v2600 = vsel %vm864, %v2584, %v2219
      %v2601 = vsel %vm864, %v2585, %v2221
      %v2602 = vsel %vm864, %v2586, %v2223
      %v2603 = vsel %vm864, %v2587, %v2225
      %v2604 = vsel %vm864, %v2588, %v2227
      %v2605 = vsel %vm864, %v2589, %v2229
      %v2606 = vsel %vm864, %v2590, %v2231
      %v2607 = vsel %vm864, %v2591, %v2233
      %v2608 = vsel %vm864, %v2592, %v2235
      %v2609 = vsel %vm864, %v2593, %v2237
      %v2610 = vsel %vm864, %v2594, %v2239
      %v2611 = vsel %vm864, %v2595, %v2241
      %v2612 = vsel %vm864, %v2596, %v2243
      %v2613 = vsel %vm864, %v2597, %v2245
      %v2614 = vsel %vm1648, %v2598, %v2279
      %v2615 = vsel %vm1648, %v2599, %v2281
      %v2616 = vsel %vm1648, %v2600, %v2283
      %v2617 = vsel %vm1648, %v2601, %v2285
      %v2618 = vsel %vm1648, %v2602, %v2287
      %v2619 = vsel %vm1648, %v2603, %v2289
      %v2620 = vsel %vm1648, %v2604, %v2291
      %v2621 = vsel %vm1648, %v2605, %v2293
      %v2622 = vsel %vm1648, %v2606, %v2295
      %v2623 = vsel %vm1648, %v2607, %v2297
      %v2624 = vsel %vm1648, %v2608, %v2299
      %v2625 = vsel %vm1648, %v2609, %v2301
      %v2626 = vsel %vm1648, %v2610, %v2303
      %v2627 = vsel %vm1648, %v2611, %v2305
      %v2628 = vsel %vm1648, %v2612, %v2307
      %v2629 = vsel %vm1648, %v2613, %v2309
      %v2630 = vsel %vm1682, %v2614, %v2343
      %v2631 = vsel %vm1682, %v2615, %v2345
      %v2632 = vsel %vm1682, %v2616, %v2347
      %v2633 = vsel %vm1682, %v2617, %v2349
      %v2634 = vsel %vm1682, %v2618, %v2351
      %v2635 = vsel %vm1682, %v2619, %v2353
      %v2636 = vsel %vm1682, %v2620, %v2355
      %v2637 = vsel %vm1682, %v2621, %v2357
      %v2638 = vsel %vm1682, %v2622, %v2359
      %v2639 = vsel %vm1682, %v2623, %v2361
      %v2640 = vsel %vm1682, %v2624, %v2363
      %v2641 = vsel %vm1682, %v2625, %v2365
      %v2642 = vsel %vm1682, %v2626, %v2367
      %v2643 = vsel %vm1682, %v2627, %v2369
      %v2644 = vsel %vm1682, %v2628, %v2371
      %v2645 = vsel %vm1682, %v2629, %v2373
      %vm2646 = vcmask 654336
      %v2647 = vsel %vm2646, %v2630, %v2407
      %v2648 = vsel %vm2646, %v2631, %v2409
      %v2649 = vsel %vm2646, %v2632, %v2411
      %v2650 = vsel %vm2646, %v2633, %v2413
      %v2651 = vsel %vm2646, %v2634, %v2415
      %v2652 = vsel %vm2646, %v2635, %v2417
      %v2653 = vsel %vm2646, %v2636, %v2419
      %v2654 = vsel %vm2646, %v2637, %v2421
      %v2655 = vsel %vm2646, %v2638, %v2423
      %v2656 = vsel %vm2646, %v2639, %v2425
      %v2657 = vsel %vm2646, %v2640, %v2427
      %v2658 = vsel %vm2646, %v2641, %v2429
      %v2659 = vsel %vm2646, %v2642, %v2431
      %v2660 = vsel %vm2646, %v2643, %v2433
      %v2661 = vsel %vm2646, %v2644, %v2435
      %v2662 = vsel %vm2646, %v2645, %v2437
      %vm2663 = vcmask 785408
      %v2664 = vsel %vm2663, %v2647, %v2471
      %v2665 = vsel %vm2663, %v2648, %v2473
      %v2666 = vsel %vm2663, %v2649, %v2475
      %v2667 = vsel %vm2663, %v2650, %v2477
      %v2668 = vsel %vm2663, %v2651, %v2479
      %v2669 = vsel %vm2663, %v2652, %v2481
      %v2670 = vsel %vm2663, %v2653, %v2483
      %v2671 = vsel %vm2663, %v2654, %v2485
      %v2672 = vsel %vm2663, %v2655, %v2487
      %v2673 = vsel %vm2663, %v2656, %v2489
      %v2674 = vsel %vm2663, %v2657, %v2491
      %v2675 = vsel %vm2663, %v2658, %v2493
      %v2676 = vsel %vm2663, %v2659, %v2495
      %v2677 = vsel %vm2663, %v2660, %v2497
      %v2678 = vsel %vm2663, %v2661, %v2499
      %v2679 = vsel %vm2663, %v2662, %v2501
      %vm2680 = vcmask 916480
      %v2681 = vsel %vm2680, %v2664, %v2535
      %v2682 = vsel %vm2680, %v2665, %v2537
      %v2683 = vsel %vm2680, %v2666, %v2539
      %v2684 = vsel %vm2680, %v2667, %v2541
      %v2685 = vsel %vm2680, %v2668, %v2543
      %v2686 = vsel %vm2680, %v2669, %v2545
      %v2687 = vsel %vm2680, %v2670, %v2547
      %v2688 = vsel %vm2680, %v2671, %v2549
      %v2689 = vsel %vm2680, %v2672, %v2551
      %v2690 = vsel %vm2680, %v2673, %v2553
      %v2691 = vsel %vm2680, %v2674, %v2555
      %v2692 = vsel %vm2680, %v2675, %v2557
      %v2693 = vsel %vm2680, %v2676, %v2559
      %v2694 = vsel %vm2680, %v2677, %v2561
      %v2695 = vsel %vm2680, %v2678, %v2563
      %v2696 = vsel %vm2680, %v2679, %v2565
      %v2697 = vpack.c.bf16 %v2682, %v2681
      %v2698 = vpack.c.bf16 %v2119, %v2118
      %v2699 = vpack.c.bf16 %v2684, %v2683
      %v2700 = vpack.c.bf16 %v2121, %v2120
      %v2701 = vpack.c.bf16 %v2686, %v2685
      %v2702 = vpack.c.bf16 %v2123, %v2122
      %v2703 = vpack.c.bf16 %v2688, %v2687
      %v2704 = vpack.c.bf16 %v2125, %v2124
      %v2705 = vpack.c.bf16 %v2690, %v2689
      %v2706 = vpack.c.bf16 %v2127, %v2126
      %v2707 = vpack.c.bf16 %v2692, %v2691
      %v2708 = vpack.c.bf16 %v2129, %v2128
      %v2709 = vpack.c.bf16 %v2694, %v2693
      %v2710 = vpack.c.bf16 %v2131, %v2130
      %v2711 = vpack.c.bf16 %v2696, %v2695
      %v2712 = vpack.c.bf16 %v2133, %v2132
      %v2713 = vld [vmem:[%s7] sm:$0xf]
      %v2714 = vld [vmem:[%s7 + $0x4] sm:$0xf]
      %v2715 = vld [vmem:[%s7 + $0x8] sm:$0xf]
      %v2716 = vld [vmem:[%s7 + $0xc] sm:$0xf]
      %v2717 = vld [vmem:[%s7 + $0x10] sm:$0xf]
      %v2718 = vld [vmem:[%s7 + $0x14] sm:$0xf]
      %v2719 = vld [vmem:[%s7 + $0x18] sm:$0xf]
      %v2720 = vld [vmem:[%s7 + $0x1c] sm:$0xf]
      %v2721 = vld [vmem:[%s7 + $0x20] sm:$0xf]
      %v2722 = vld [vmem:[%s7 + $0x24] sm:$0xf]
      %v2723 = vld [vmem:[%s7 + $0x28] sm:$0xf]
      %v2724 = vld [vmem:[%s7 + $0x2c] sm:$0xf]
      %v2725 = vld [vmem:[%s7 + $0x30] sm:$0xf]
      %v2726 = vld [vmem:[%s7 + $0x34] sm:$0xf]
      %v2727 = vld [vmem:[%s7 + $0x38] sm:$0xf]
      %v2728 = vld [vmem:[%s7 + $0x3c] sm:$0xf]
      %v2729 = vld [vmem:[%s7 + $0x40] sm:$0xf]
      %v2730 = vld [vmem:[%s7 + $0x44] sm:$0xf]
      %v2731 = vld [vmem:[%s8] sm:$0x1]
      %v2733 = vlaneseq
      %v2734 = vshrl.u32 %v2733, 7
      %v2735 = vsub.s32 0, %v2734
      %v2736 = vrot.slane %v2731, %v2735
      %v2756 = vunpack.c.l.b16 %v2713
      %v2757 = vunpack.c.l.b16 %v2714
      %v2758 = vunpack.c.l.b16 %v2715
      %v2759 = vunpack.c.l.b16 %v2716
      %v2760 = vunpack.c.l.b16 %v2717
      %v2761 = vunpack.c.l.b16 %v2718
      %v2762 = vunpack.c.l.b16 %v2719
      %v2763 = vunpack.c.l.b16 %v2720
      %v2764 = vunpack.c.l.b16 %v2721
      %v2765 = vunpack.c.l.b16 %v2722
      %v2766 = vunpack.c.l.b16 %v2723
      %v2767 = vunpack.c.l.b16 %v2724
      %v2768 = vunpack.c.l.b16 %v2725
      %v2769 = vunpack.c.l.b16 %v2726
      %v2770 = vunpack.c.l.b16 %v2727
      %v2771 = vunpack.c.l.b16 %v2728
      %v2772 = vunpack.c.l.b16 %v2729
      %v2773 = vunpack.c.l.b16 %v2730
      %v2774 = vpack.c.b16 %v2757, %v2756
      %v2775 = vpack.c.b16 %v2759, %v2758
      %v2776 = vpack.c.b16 %v2761, %v2760
      %v2777 = vpack.c.b16 %v2763, %v2762
      %v2778 = vpack.c.b16 %v2765, %v2764
      %v2779 = vpack.c.b16 %v2767, %v2766
      %v2780 = vpack.c.b16 %v2769, %v2768
      %v2781 = vpack.c.b16 %v2771, %v2770
      %v2782 = vpack.c.b16 %v2773, %v2772
      %v2793 = vsel %vm1581, %v2698, 0
      %v2796 = vsel %vm1581, %v2700, 0
      %v2799 = vsel %vm1581, %v2702, 0
      %v2802 = vsel %vm1581, %v2704, 0
      %v2805 = vsel %vm1581, %v2706, 0
      %v2808 = vsel %vm1581, %v2708, 0
      %v2811 = vsel %vm1581, %v2710, 0
      %v2814 = vsel %vm1581, %v2712, 0
      %2816 = vmatprep.subr.bf16.mxu0 0
      %2817 = vmatpush1.bf16.msra.mxu0 %v2781
      %2818 = vmatprep.subr.bf16.mxu0 0
      %2819 = vmatpush1.bf16.msra.mxu0 %v2780
      %2820 = vmatprep.subr.bf16.mxu0 0
      %2821 = vmatpush1.bf16.msra.mxu0 %v2779
      %2822 = vmatprep.subr.bf16.mxu0 0
      %2823 = vmatpush1.bf16.msra.mxu0 %v2778
      %2824 = vmatprep.subr.bf16.mxu0 0
      %2825 = vmatpush1.bf16.msra.mxu0 %v2777
      %2826 = vmatprep.subr.bf16.mxu0 0
      %2827 = vmatpush1.bf16.msra.mxu0 %v2776
      %2828 = vmatprep.subr.bf16.mxu0 0
      %2829 = vmatpush1.bf16.msra.mxu0 %v2775
      %2830 = vmatprep.subr.bf16.mxu0 0
      %2831 = vmatpush1.bf16.msra.mxu0 %v2774
      %2832 = vmatprep.subr.bf16.mxu0 0
      %2833 = vmatpush2.bf16.msra.mxu0 0
      %2834 = vmatprep.subr.bf16.mxu0 0
      %2835 = vmatpush2.bf16.msra.mxu0 0
      %2836 = vmatprep.subr.bf16.mxu0 0
      %2837 = vmatpush2.bf16.msra.mxu0 0
      %2838 = vmatprep.subr.bf16.mxu0 0
      %2839 = vmatpush2.bf16.msra.mxu0 0
      %2840 = vmatprep.subr.bf16.mxu0 0
      %2841 = vmatpush2.bf16.msra.mxu0 0
      %2842 = vmatprep.subr.bf16.mxu0 0
      %2843 = vmatpush2.bf16.msra.mxu0 0
      %2844 = vmatprep.subr.bf16.mxu0 0
      %2845 = vmatpush2.bf16.msra.mxu0 0
      %2846 = vmatprep.subr.bf16.mxu0 0
      %2847 = vmatpush2.bf16.msra.mxu0 %v2782
      %2848 = vmatprep.mubr.bf16.mxu0 %v2793
      %2849 = vmatmul.mubr.bf16.gmra.mxu0 %v2697
      %v2850 = vpop.f32.mrf.mxu0
      %v2851 = vadd.f32 %v2736, %v2850
      %v2852 = vpop.f32.mrf.mxu0
      %v2853 = vpop.f32.mrf.mxu0
      %v2854 = vadd.f32 %v2736, %v2853
      %v2855 = vpop.f32.mrf.mxu0
      %2856 = vmatprep.mubr.bf16.mxu0 %v2796
      %2857 = vmatmul.mubr.bf16.gmra.mxu0 %v2699
      %v2858 = vpop.f32.mrf.mxu0
      %v2859 = vadd.f32 %v2736, %v2858
      %v2860 = vpop.f32.mrf.mxu0
      %v2861 = vpop.f32.mrf.mxu0
      %v2862 = vadd.f32 %v2736, %v2861
      %v2863 = vpop.f32.mrf.mxu0
      %2864 = vmatprep.mubr.bf16.mxu0 %v2799
      %2865 = vmatmul.mubr.bf16.gmra.mxu0 %v2701
      %v2866 = vpop.f32.mrf.mxu0
      %v2867 = vadd.f32 %v2736, %v2866
      %v2868 = vpop.f32.mrf.mxu0
      %v2869 = vpop.f32.mrf.mxu0
      %v2870 = vadd.f32 %v2736, %v2869
      %v2871 = vpop.f32.mrf.mxu0
      %2872 = vmatprep.mubr.bf16.mxu0 %v2802
      %2873 = vmatmul.mubr.bf16.gmra.mxu0 %v2703
      %v2874 = vpop.f32.mrf.mxu0
      %v2875 = vadd.f32 %v2736, %v2874
      %v2876 = vpop.f32.mrf.mxu0
      %v2877 = vpop.f32.mrf.mxu0
      %v2878 = vadd.f32 %v2736, %v2877
      %v2879 = vpop.f32.mrf.mxu0
      %2880 = vmatprep.mubr.bf16.mxu0 %v2805
      %2881 = vmatmul.mubr.bf16.gmra.mxu0 %v2705
      %v2882 = vpop.f32.mrf.mxu0
      %v2883 = vadd.f32 %v2736, %v2882
      %v2884 = vpop.f32.mrf.mxu0
      %v2885 = vpop.f32.mrf.mxu0
      %v2886 = vadd.f32 %v2736, %v2885
      %v2887 = vpop.f32.mrf.mxu0
      %2888 = vmatprep.mubr.bf16.mxu0 %v2808
      %2889 = vmatmul.mubr.bf16.gmra.mxu0 %v2707
      %v2890 = vpop.f32.mrf.mxu0
      %v2891 = vadd.f32 %v2736, %v2890
      %v2892 = vpop.f32.mrf.mxu0
      %v2893 = vpop.f32.mrf.mxu0
      %v2894 = vadd.f32 %v2736, %v2893
      %v2895 = vpop.f32.mrf.mxu0
      %2896 = vmatprep.mubr.bf16.mxu0 %v2811
      %2897 = vmatmul.mubr.bf16.gmra.mxu0 %v2709
      %v2898 = vpop.f32.mrf.mxu0
      %v2899 = vadd.f32 %v2736, %v2898
      %v2900 = vpop.f32.mrf.mxu0
      %v2901 = vpop.f32.mrf.mxu0
      %v2902 = vadd.f32 %v2736, %v2901
      %v2903 = vpop.f32.mrf.mxu0
      %2904 = vmatprep.mubr.bf16.mxu0 %v2814
      %2905 = vmatmul.mubr.bf16.gmra.mxu0 %v2711
      %v2906 = vpop.f32.mrf.mxu0
      %v2907 = vadd.f32 %v2736, %v2906
      %v2908 = vpop.f32.mrf.mxu0
      %v2909 = vpop.f32.mrf.mxu0
      %v2910 = vadd.f32 %v2736, %v2909
      %v2911 = vpop.f32.mrf.mxu0
      %2912 = vdwg.mxu0
      %v2913 = vld [vmem:[%s857] sm:$0x1]
      %v2915 = vlaneseq
      %v2916 = vshrl.u32 %v2915, 7
      %v2917 = vsub.s32 0, %v2916
      %v2918 = vrot.slane %v2913, %v2917
      %v2920 = vpack.c.bf16 %v2918, %v2918
      %v2921 = vld [vmem:[%s17] sm:$0xf]
      %v2922 = vld [vmem:[%s17 + $0x4] sm:$0xf]
      %v2923 = vld [vmem:[%s17 + $0x8] sm:$0xf]
      %v2924 = vld [vmem:[%s17 + $0xc] sm:$0xf]
      %v2925 = vld [vmem:[%s18] sm:$0x1]
      %v2927 = vlaneseq
      %v2928 = vshrl.u32 %v2927, 7
      %v2929 = vsub.s32 0, %v2928
      %v2930 = vrot.slane %v2925, %v2929
      %v2936 = vunpack.c.l.b16 %v2921
      %v2937 = vunpack.c.l.b16 %v2922
      %v2938 = vunpack.c.l.b16 %v2923
      %v2939 = vunpack.c.l.b16 %v2924
      %v2940 = vpack.c.b16 %v2937, %v2936
      %v2941 = vpack.c.b16 %v2939, %v2938
      %v2945 = vsel %vm864, %v2920, 0
      %2947 = vmatprep.subr.bf16.mxu0 0
      %2948 = vmatpush1.bf16.msra.mxu0 0
      %2949 = vmatprep.subr.bf16.mxu0 0
      %2950 = vmatpush1.bf16.msra.mxu0 0
      %2951 = vmatprep.subr.bf16.mxu0 0
      %2952 = vmatpush1.bf16.msra.mxu0 0
      %2953 = vmatprep.subr.bf16.mxu0 0
      %2954 = vmatpush1.bf16.msra.mxu0 0
      %2955 = vmatprep.subr.bf16.mxu0 0
      %2956 = vmatpush1.bf16.msra.mxu0 0
      %2957 = vmatprep.subr.bf16.mxu0 0
      %2958 = vmatpush1.bf16.msra.mxu0 0
      %2959 = vmatprep.subr.bf16.mxu0 0
      %2960 = vmatpush1.bf16.msra.mxu0 %v2941
      %2961 = vmatprep.subr.bf16.mxu0 0
      %2962 = vmatpush1.bf16.msra.mxu0 %v2940
      %2963 = vmatprep.subr.bf16.mxu0 0
      %2964 = vmatpush2.bf16.msra.mxu0 0
      %2965 = vmatprep.subr.bf16.mxu0 0
      %2966 = vmatpush2.bf16.msra.mxu0 0
      %2967 = vmatprep.subr.bf16.mxu0 0
      %2968 = vmatpush2.bf16.msra.mxu0 0
      %2969 = vmatprep.subr.bf16.mxu0 0
      %2970 = vmatpush2.bf16.msra.mxu0 0
      %2971 = vmatprep.subr.bf16.mxu0 0
      %2972 = vmatpush2.bf16.msra.mxu0 0
      %2973 = vmatprep.subr.bf16.mxu0 0
      %2974 = vmatpush2.bf16.msra.mxu0 0
      %2975 = vmatprep.subr.bf16.mxu0 0
      %2976 = vmatpush2.bf16.msra.mxu0 0
      %2977 = vmatprep.subr.bf16.mxu0 0
      %2978 = vmatpush2.bf16.msra.mxu0 0
      %2979 = vmatprep.mubr.bf16.mxu0 0
      %2980 = vmatmul.mubr.bf16.gmra.mxu0 %v2945
      %v2981 = vpop.f32.mrf.mxu0
      %v2982 = vadd.f32 %v2930, %v2981
      %v2983 = vpop.f32.mrf.mxu0
      %v2984 = vpop.f32.mrf.mxu0
      %v2985 = vpop.f32.mrf.mxu0
      %2986 = vdwg.mxu0
      %v2987 = vsub.f32 0.0, %v2982
      %v2988 = vmul.f32 %v2987, 1.442695
      %v2989 = vpow.pop %v2988
      %v2990 = vadd.f32 %v2989, 1.0
      %v2991 = vrcp.pop %v2990
      %v2992 = vmul.f32 %v2982, %v2991
      %v2993 = vpack.c.bf16 %v2992, %v2992
      %v2994 = vld [vmem:[%s19] sm:$0xf]
      %v2995 = vld [vmem:[%s19 + $0x4] sm:$0xf]
      %v2996 = vld [vmem:[%s19 + $0x8] sm:$0xf]
      %v2997 = vld [vmem:[%s19 + $0xc] sm:$0xf]
      %v2998 = vld [vmem:[%s20] sm:$0x1]
      %v3000 = vlaneseq
      %v3001 = vshrl.u32 %v3000, 7
      %v3002 = vsub.s32 0, %v3001
      %v3003 = vrot.slane %v2998, %v3002
      %v3009 = vunpack.c.l.b16 %v2994
      %v3010 = vunpack.c.l.b16 %v2995
      %v3011 = vunpack.c.l.b16 %v2996
      %v3012 = vunpack.c.l.b16 %v2997
      %v3013 = vpack.c.b16 %v3010, %v3009
      %v3014 = vpack.c.b16 %v3012, %v3011
      %v3018 = vsel %vm864, %v2993, 0
      %3020 = vmatprep.subr.bf16.mxu0 0
      %3021 = vmatpush1.bf16.msra.mxu0 0
      %3022 = vmatprep.subr.bf16.mxu0 0
      %3023 = vmatpush1.bf16.msra.mxu0 0
      %3024 = vmatprep.subr.bf16.mxu0 0
      %3025 = vmatpush1.bf16.msra.mxu0 0
      %3026 = vmatprep.subr.bf16.mxu0 0
      %3027 = vmatpush1.bf16.msra.mxu0 0
      %3028 = vmatprep.subr.bf16.mxu0 0
      %3029 = vmatpush1.bf16.msra.mxu0 0
      %3030 = vmatprep.subr.bf16.mxu0 0
      %3031 = vmatpush1.bf16.msra.mxu0 0
      %3032 = vmatprep.subr.bf16.mxu0 0
      %3033 = vmatpush1.bf16.msra.mxu0 %v3014
      %3034 = vmatprep.subr.bf16.mxu0 0
      %3035 = vmatpush1.bf16.msra.mxu0 %v3013
      %3036 = vmatprep.subr.bf16.mxu0 0
      %3037 = vmatpush2.bf16.msra.mxu0 0
      %3038 = vmatprep.subr.bf16.mxu0 0
      %3039 = vmatpush2.bf16.msra.mxu0 0
      %3040 = vmatprep.subr.bf16.mxu0 0
      %3041 = vmatpush2.bf16.msra.mxu0 0
      %3042 = vmatprep.subr.bf16.mxu0 0
      %3043 = vmatpush2.bf16.msra.mxu0 0
      %3044 = vmatprep.subr.bf16.mxu0 0
      %3045 = vmatpush2.bf16.msra.mxu0 0
      %3046 = vmatprep.subr.bf16.mxu0 0
      %3047 = vmatpush2.bf16.msra.mxu0 0
      %3048 = vmatprep.subr.bf16.mxu0 0
      %3049 = vmatpush2.bf16.msra.mxu0 0
      %3050 = vmatprep.subr.bf16.mxu0 0
      %3051 = vmatpush2.bf16.msra.mxu0 0
      %3052 = vmatprep.mubr.bf16.mxu0 0
      %3053 = vmatmul.mubr.bf16.gmra.mxu0 %v3018
      %v3054 = vpop.f32.mrf.mxu0
      %v3055 = vadd.f32 %v3003, %v3054
      %v3056 = vpop.f32.mrf.mxu0
      %v3057 = vpop.f32.mrf.mxu0
      %v3058 = vpop.f32.mrf.mxu0
      %3059 = vdwg.mxu0
      %v3060 = vld [vmem:[%s845] sm:$0xf]
      %v3061 = vld [vmem:[%s845 + $0x4] sm:$0xf]
      %v3062 = vld [vmem:[%s845 + $0x8] sm:$0xf]
      %v3063 = vld [vmem:[%s845 + $0xc] sm:$0xf]
      %v3064 = vld [vmem:[%s845 + $0x10] sm:$0xf]
      %v3065 = vld [vmem:[%s845 + $0x14] sm:$0xf]
      %v3066 = vld [vmem:[%s845 + $0x18] sm:$0xf]
      %v3067 = vld [vmem:[%s845 + $0x1c] sm:$0xf]
      %v3068 = vld [vmem:[%s845 + $0x20] sm:$0xf]
      %v3069 = vld [vmem:[%s845 + $0x24] sm:$0xf]
      %v3070 = vld [vmem:[%s845 + $0x28] sm:$0xf]
      %v3071 = vld [vmem:[%s845 + $0x2c] sm:$0xf]
      %v3072 = vld [vmem:[%s845 + $0x30] sm:$0xf]
      %v3073 = vld [vmem:[%s845 + $0x34] sm:$0xf]
      %v3074 = vld [vmem:[%s845 + $0x38] sm:$0xf]
      %v3075 = vld [vmem:[%s845 + $0x3c] sm:$0xf]
      %v3076 = vunpack.c.l.bf16 %v3060
      %v3077 = vunpack.c.l.bf16 %v3061
      %v3078 = vunpack.c.l.bf16 %v3062
      %v3079 = vunpack.c.l.bf16 %v3063
      %v3080 = vunpack.c.l.bf16 %v3064
      %v3081 = vunpack.c.l.bf16 %v3065
      %v3082 = vunpack.c.l.bf16 %v3066
      %v3083 = vunpack.c.l.bf16 %v3067
      %v3084 = vunpack.c.l.bf16 %v3068
      %v3085 = vunpack.c.l.bf16 %v3069
      %v3086 = vunpack.c.l.bf16 %v3070
      %v3087 = vunpack.c.l.bf16 %v3071
      %v3088 = vunpack.c.l.bf16 %v3072
      %v3089 = vunpack.c.l.bf16 %v3073
      %v3090 = vunpack.c.l.bf16 %v3074
      %v3091 = vunpack.c.l.bf16 %v3075
      %v3092 = vadd.f32 %v3076, %v2851
      %v3093 = vadd.f32 %v3077, %v2854
      %v3094 = vadd.f32 %v3078, %v2859
      %v3095 = vadd.f32 %v3079, %v2862
      %v3096 = vadd.f32 %v3080, %v2867
      %v3097 = vadd.f32 %v3081, %v2870
      %v3098 = vadd.f32 %v3082, %v2875
      %v3099 = vadd.f32 %v3083, %v2878
      %v3100 = vadd.f32 %v3084, %v2883
      %v3101 = vadd.f32 %v3085, %v2886
      %v3102 = vadd.f32 %v3086, %v2891
      %v3103 = vadd.f32 %v3087, %v2894
      %v3104 = vadd.f32 %v3088, %v2899
      %v3105 = vadd.f32 %v3089, %v2902
      %v3106 = vadd.f32 %v3090, %v2907
      %v3107 = vadd.f32 %v3091, %v2910
      %3108 = vst.msk [vmem:[%s1972 + $0x1] sm:$0xff] %vm1564, %v3092
      %3109 = vst.msk [vmem:[%s1972 + $0x11] sm:$0xff] %vm1564, %v3093
      %3110 = vst.msk [vmem:[%s1972 + $0x21] sm:$0xff] %vm1564, %v3094
      %3111 = vst.msk [vmem:[%s1972 + $0x31] sm:$0xff] %vm1564, %v3095
      %3112 = vst.msk [vmem:[%s1972 + $0x41] sm:$0xff] %vm1564, %v3096
      %3113 = vst.msk [vmem:[%s1972 + $0x51] sm:$0xff] %vm1564, %v3097
      %3114 = vst.msk [vmem:[%s1972 + $0x61] sm:$0xff] %vm1564, %v3098
      %3115 = vst.msk [vmem:[%s1972 + $0x71] sm:$0xff] %vm1564, %v3099
      %3116 = vst.msk [vmem:[%s1972 + $0xa1] sm:$0xff] %vm1564, %v3100
      %3117 = vst.msk [vmem:[%s1972 + $0xb1] sm:$0xff] %vm1564, %v3101
      %3118 = vst.msk [vmem:[%s1972 + $0xc1] sm:$0xff] %vm1564, %v3102
      %3119 = vst.msk [vmem:[%s1972 + $0xd1] sm:$0xff] %vm1564, %v3103
      %3120 = vst.msk [vmem:[%s1972 + $0xe1] sm:$0xff] %vm1564, %v3104
      %3121 = vst.msk [vmem:[%s1972 + $0xf1] sm:$0xff] %vm1564, %v3105
      %3122 = vst.msk [vmem:[%s1972 + $0x101] sm:$0xff] %vm1564, %v3106
      %3123 = vst.msk [vmem:[%s1972 + $0x111] sm:$0xff] %vm1564, %v3107
      %v3124 = vld [vmem:[#allocation2] sm:$0xff]
      %v3125 = vld [vmem:[#allocation2 + $0x10] sm:$0xff]
      %v3126 = vld [vmem:[#allocation2 + $0x20] sm:$0xff]
      %v3127 = vld [vmem:[#allocation2 + $0x30] sm:$0xff]
      %v3128 = vld [vmem:[#allocation2 + $0x40] sm:$0xff]
      %v3129 = vld [vmem:[#allocation2 + $0x50] sm:$0xff]
      %v3130 = vld [vmem:[#allocation2 + $0x60] sm:$0xff]
      %v3131 = vld [vmem:[#allocation2 + $0x70] sm:$0xff]
      %v3132 = vld [vmem:[#allocation2 + $0xa0] sm:$0xff]
      %v3133 = vld [vmem:[#allocation2 + $0xb0] sm:$0xff]
      %v3134 = vld [vmem:[#allocation2 + $0xc0] sm:$0xff]
      %v3135 = vld [vmem:[#allocation2 + $0xd0] sm:$0xff]
      %v3136 = vld [vmem:[#allocation2 + $0xe0] sm:$0xff]
      %v3137 = vld [vmem:[#allocation2 + $0xf0] sm:$0xff]
      %v3138 = vld [vmem:[#allocation2 + $0x100] sm:$0xff]
      %v3139 = vld [vmem:[#allocation2 + $0x110] sm:$0xff]
      %v3140 = vld [vmem:[#allocation2 + $0x1] sm:$0xff]
      %v3141 = vld [vmem:[#allocation2 + $0x11] sm:$0xff]
      %v3142 = vld [vmem:[#allocation2 + $0x21] sm:$0xff]
      %v3143 = vld [vmem:[#allocation2 + $0x31] sm:$0xff]
      %v3144 = vld [vmem:[#allocation2 + $0x41] sm:$0xff]
      %v3145 = vld [vmem:[#allocation2 + $0x51] sm:$0xff]
      %v3146 = vld [vmem:[#allocation2 + $0x61] sm:$0xff]
      %v3147 = vld [vmem:[#allocation2 + $0x71] sm:$0xff]
      %v3148 = vld [vmem:[#allocation2 + $0xa1] sm:$0xff]
      %v3149 = vld [vmem:[#allocation2 + $0xb1] sm:$0xff]
      %v3150 = vld [vmem:[#allocation2 + $0xc1] sm:$0xff]
      %v3151 = vld [vmem:[#allocation2 + $0xd1] sm:$0xff]
      %v3152 = vld [vmem:[#allocation2 + $0xe1] sm:$0xff]
      %v3153 = vld [vmem:[#allocation2 + $0xf1] sm:$0xff]
      %v3154 = vld [vmem:[#allocation2 + $0x101] sm:$0xff]
      %v3155 = vld [vmem:[#allocation2 + $0x111] sm:$0xff]
      %v3156 = vld [vmem:[#allocation2 + $0x2] sm:$0xff]
      %v3157 = vld [vmem:[#allocation2 + $0x12] sm:$0xff]
      %v3158 = vld [vmem:[#allocation2 + $0x22] sm:$0xff]
      %v3159 = vld [vmem:[#allocation2 + $0x32] sm:$0xff]
      %v3160 = vld [vmem:[#allocation2 + $0x42] sm:$0xff]
      %v3161 = vld [vmem:[#allocation2 + $0x52] sm:$0xff]
      %v3162 = vld [vmem:[#allocation2 + $0x62] sm:$0xff]
      %v3163 = vld [vmem:[#allocation2 + $0x72] sm:$0xff]
      %v3164 = vld [vmem:[#allocation2 + $0xa2] sm:$0xff]
      %v3165 = vld [vmem:[#allocation2 + $0xb2] sm:$0xff]
      %v3166 = vld [vmem:[#allocation2 + $0xc2] sm:$0xff]
      %v3167 = vld [vmem:[#allocation2 + $0xd2] sm:$0xff]
      %v3168 = vld [vmem:[#allocation2 + $0xe2] sm:$0xff]
      %v3169 = vld [vmem:[#allocation2 + $0xf2] sm:$0xff]
      %v3170 = vld [vmem:[#allocation2 + $0x102] sm:$0xff]
      %v3171 = vld [vmem:[#allocation2 + $0x112] sm:$0xff]
      %v3172 = vld [vmem:[%s1972] sm:$0xff]
      %v3173 = vld [vmem:[%s1972 + $0x10] sm:$0xff]
      %v3174 = vld [vmem:[%s1972 + $0x20] sm:$0xff]
      %v3175 = vld [vmem:[%s1972 + $0x30] sm:$0xff]
      %v3176 = vld [vmem:[%s1972 + $0x40] sm:$0xff]
      %v3177 = vld [vmem:[%s1972 + $0x50] sm:$0xff]
      %v3178 = vld [vmem:[%s1972 + $0x60] sm:$0xff]
      %v3179 = vld [vmem:[%s1972 + $0x70] sm:$0xff]
      %v3180 = vld [vmem:[%s1972 + $0xa0] sm:$0xff]
      %v3181 = vld [vmem:[%s1972 + $0xb0] sm:$0xff]
      %v3182 = vld [vmem:[%s1972 + $0xc0] sm:$0xff]
      %v3183 = vld [vmem:[%s1972 + $0xd0] sm:$0xff]
      %v3184 = vld [vmem:[%s1972 + $0xe0] sm:$0xff]
      %v3185 = vld [vmem:[%s1972 + $0xf0] sm:$0xff]
      %v3186 = vld [vmem:[%s1972 + $0x100] sm:$0xff]
      %v3187 = vld [vmem:[%s1972 + $0x110] sm:$0xff]
      %v3188 = vld [vmem:[%s1972 + $0x1] sm:$0xff]
      %v3189 = vld [vmem:[%s1972 + $0x11] sm:$0xff]
      %v3190 = vld [vmem:[%s1972 + $0x21] sm:$0xff]
      %v3191 = vld [vmem:[%s1972 + $0x31] sm:$0xff]
      %v3192 = vld [vmem:[%s1972 + $0x41] sm:$0xff]
      %v3193 = vld [vmem:[%s1972 + $0x51] sm:$0xff]
      %v3194 = vld [vmem:[%s1972 + $0x61] sm:$0xff]
      %v3195 = vld [vmem:[%s1972 + $0x71] sm:$0xff]
      %v3196 = vld [vmem:[%s1972 + $0xa1] sm:$0xff]
      %v3197 = vld [vmem:[%s1972 + $0xb1] sm:$0xff]
      %v3198 = vld [vmem:[%s1972 + $0xc1] sm:$0xff]
      %v3199 = vld [vmem:[%s1972 + $0xd1] sm:$0xff]
      %v3200 = vld [vmem:[%s1972 + $0xe1] sm:$0xff]
      %v3201 = vld [vmem:[%s1972 + $0xf1] sm:$0xff]
      %v3202 = vld [vmem:[%s1972 + $0x101] sm:$0xff]
      %v3203 = vld [vmem:[%s1972 + $0x111] sm:$0xff]
      %v3204 = vld [vmem:[%s1972 + $0x2] sm:$0xff]
      %v3205 = vld [vmem:[%s1972 + $0x12] sm:$0xff]
      %v3206 = vld [vmem:[%s1972 + $0x22] sm:$0xff]
      %v3207 = vld [vmem:[%s1972 + $0x32] sm:$0xff]
      %v3208 = vld [vmem:[%s1972 + $0x42] sm:$0xff]
      %v3209 = vld [vmem:[%s1972 + $0x52] sm:$0xff]
      %v3210 = vld [vmem:[%s1972 + $0x62] sm:$0xff]
      %v3211 = vld [vmem:[%s1972 + $0x72] sm:$0xff]
      %v3212 = vld [vmem:[%s1972 + $0xa2] sm:$0xff]
      %v3213 = vld [vmem:[%s1972 + $0xb2] sm:$0xff]
      %v3214 = vld [vmem:[%s1972 + $0xc2] sm:$0xff]
      %v3215 = vld [vmem:[%s1972 + $0xd2] sm:$0xff]
      %v3216 = vld [vmem:[%s1972 + $0xe2] sm:$0xff]
      %v3217 = vld [vmem:[%s1972 + $0xf2] sm:$0xff]
      %v3218 = vld [vmem:[%s1972 + $0x102] sm:$0xff]
      %v3219 = vld [vmem:[%s1972 + $0x112] sm:$0xff]
      %v3220 = vld [vmem:[%s2085] sm:$0xff]
      %v3221 = vld [vmem:[%s2085 + $0x10] sm:$0xff]
      %v3222 = vld [vmem:[%s2085 + $0x20] sm:$0xff]
      %v3223 = vld [vmem:[%s2085 + $0x30] sm:$0xff]
      %v3224 = vld [vmem:[%s2085 + $0x40] sm:$0xff]
      %v3225 = vld [vmem:[%s2085 + $0x50] sm:$0xff]
      %v3226 = vld [vmem:[%s2085 + $0x60] sm:$0xff]
      %v3227 = vld [vmem:[%s2085 + $0x70] sm:$0xff]
      %v3228 = vld [vmem:[%s2085 + $0xa0] sm:$0xff]
      %v3229 = vld [vmem:[%s2085 + $0xb0] sm:$0xff]
      %v3230 = vld [vmem:[%s2085 + $0xc0] sm:$0xff]
      %v3231 = vld [vmem:[%s2085 + $0xd0] sm:$0xff]
      %v3232 = vld [vmem:[%s2085 + $0xe0] sm:$0xff]
      %v3233 = vld [vmem:[%s2085 + $0xf0] sm:$0xff]
      %v3234 = vld [vmem:[%s2085 + $0x100] sm:$0xff]
      %v3235 = vld [vmem:[%s2085 + $0x110] sm:$0xff]
      %v3236 = vld [vmem:[%s2085 + $0x1] sm:$0xff]
      %v3237 = vld [vmem:[%s2085 + $0x11] sm:$0xff]
      %v3238 = vld [vmem:[%s2085 + $0x21] sm:$0xff]
      %v3239 = vld [vmem:[%s2085 + $0x31] sm:$0xff]
      %v3240 = vld [vmem:[%s2085 + $0x41] sm:$0xff]
      %v3241 = vld [vmem:[%s2085 + $0x51] sm:$0xff]
      %v3242 = vld [vmem:[%s2085 + $0x61] sm:$0xff]
      %v3243 = vld [vmem:[%s2085 + $0x71] sm:$0xff]
      %v3244 = vld [vmem:[%s2085 + $0xa1] sm:$0xff]
      %v3245 = vld [vmem:[%s2085 + $0xb1] sm:$0xff]
      %v3246 = vld [vmem:[%s2085 + $0xc1] sm:$0xff]
      %v3247 = vld [vmem:[%s2085 + $0xd1] sm:$0xff]
      %v3248 = vld [vmem:[%s2085 + $0xe1] sm:$0xff]
      %v3249 = vld [vmem:[%s2085 + $0xf1] sm:$0xff]
      %v3250 = vld [vmem:[%s2085 + $0x101] sm:$0xff]
      %v3251 = vld [vmem:[%s2085 + $0x111] sm:$0xff]
      %v3252 = vld [vmem:[%s2085 + $0x2] sm:$0xff]
      %v3253 = vld [vmem:[%s2085 + $0x12] sm:$0xff]
      %v3254 = vld [vmem:[%s2085 + $0x22] sm:$0xff]
      %v3255 = vld [vmem:[%s2085 + $0x32] sm:$0xff]
      %v3256 = vld [vmem:[%s2085 + $0x42] sm:$0xff]
      %v3257 = vld [vmem:[%s2085 + $0x52] sm:$0xff]
      %v3258 = vld [vmem:[%s2085 + $0x62] sm:$0xff]
      %v3259 = vld [vmem:[%s2085 + $0x72] sm:$0xff]
      %v3260 = vld [vmem:[%s2085 + $0xa2] sm:$0xff]
      %v3261 = vld [vmem:[%s2085 + $0xb2] sm:$0xff]
      %v3262 = vld [vmem:[%s2085 + $0xc2] sm:$0xff]
      %v3263 = vld [vmem:[%s2085 + $0xd2] sm:$0xff]
      %v3264 = vld [vmem:[%s2085 + $0xe2] sm:$0xff]
      %v3265 = vld [vmem:[%s2085 + $0xf2] sm:$0xff]
      %v3266 = vld [vmem:[%s2085 + $0x102] sm:$0xff]
      %v3267 = vld [vmem:[%s2085 + $0x112] sm:$0xff]
      %3284 = vrot.lane.b32.xlu0 %v3140, 8
      %v3285 = vpop.permute.xlu0 %3284
      %3286 = vrot.lane.b32.xlu0 %v3141, 8
      %v3287 = vpop.permute.xlu0 %3286
      %3288 = vrot.lane.b32.xlu0 %v3142, 8
      %v3289 = vpop.permute.xlu0 %3288
      %3290 = vrot.lane.b32.xlu0 %v3143, 8
      %v3291 = vpop.permute.xlu0 %3290
      %3292 = vrot.lane.b32.xlu0 %v3144, 8
      %v3293 = vpop.permute.xlu0 %3292
      %3294 = vrot.lane.b32.xlu0 %v3145, 8
      %v3295 = vpop.permute.xlu0 %3294
      %3296 = vrot.lane.b32.xlu0 %v3146, 8
      %v3297 = vpop.permute.xlu0 %3296
      %3298 = vrot.lane.b32.xlu0 %v3147, 8
      %v3299 = vpop.permute.xlu0 %3298
      %3300 = vrot.lane.b32.xlu0 %v3148, 8
      %v3301 = vpop.permute.xlu0 %3300
      %3302 = vrot.lane.b32.xlu0 %v3149, 8
      %v3303 = vpop.permute.xlu0 %3302
      %3304 = vrot.lane.b32.xlu0 %v3150, 8
      %v3305 = vpop.permute.xlu0 %3304
      %3306 = vrot.lane.b32.xlu0 %v3151, 8
      %v3307 = vpop.permute.xlu0 %3306
      %3308 = vrot.lane.b32.xlu0 %v3152, 8
      %v3309 = vpop.permute.xlu0 %3308
      %3310 = vrot.lane.b32.xlu0 %v3153, 8
      %v3311 = vpop.permute.xlu0 %3310
      %3312 = vrot.lane.b32.xlu0 %v3154, 8
      %v3313 = vpop.permute.xlu0 %3312
      %3314 = vrot.lane.b32.xlu0 %v3155, 8
      %v3315 = vpop.permute.xlu0 %3314
      %3348 = vrot.lane.b32.xlu0 %v3156, 16
      %v3349 = vpop.permute.xlu0 %3348
      %3350 = vrot.lane.b32.xlu0 %v3157, 16
      %v3351 = vpop.permute.xlu0 %3350
      %3352 = vrot.lane.b32.xlu0 %v3158, 16
      %v3353 = vpop.permute.xlu0 %3352
      %3354 = vrot.lane.b32.xlu0 %v3159, 16
      %v3355 = vpop.permute.xlu0 %3354
      %3356 = vrot.lane.b32.xlu0 %v3160, 16
      %v3357 = vpop.permute.xlu0 %3356
      %3358 = vrot.lane.b32.xlu0 %v3161, 16
      %v3359 = vpop.permute.xlu0 %3358
      %3360 = vrot.lane.b32.xlu0 %v3162, 16
      %v3361 = vpop.permute.xlu0 %3360
      %3362 = vrot.lane.b32.xlu0 %v3163, 16
      %v3363 = vpop.permute.xlu0 %3362
      %3364 = vrot.lane.b32.xlu0 %v3164, 16
      %v3365 = vpop.permute.xlu0 %3364
      %3366 = vrot.lane.b32.xlu0 %v3165, 16
      %v3367 = vpop.permute.xlu0 %3366
      %3368 = vrot.lane.b32.xlu0 %v3166, 16
      %v3369 = vpop.permute.xlu0 %3368
      %3370 = vrot.lane.b32.xlu0 %v3167, 16
      %v3371 = vpop.permute.xlu0 %3370
      %3372 = vrot.lane.b32.xlu0 %v3168, 16
      %v3373 = vpop.permute.xlu0 %3372
      %3374 = vrot.lane.b32.xlu0 %v3169, 16
      %v3375 = vpop.permute.xlu0 %3374
      %3376 = vrot.lane.b32.xlu0 %v3170, 16
      %v3377 = vpop.permute.xlu0 %3376
      %3378 = vrot.lane.b32.xlu0 %v3171, 16
      %v3379 = vpop.permute.xlu0 %3378
      %3412 = vrot.lane.b32.xlu0 %v3172, 24
      %v3413 = vpop.permute.xlu0 %3412
      %3414 = vrot.lane.b32.xlu0 %v3173, 24
      %v3415 = vpop.permute.xlu0 %3414
      %3416 = vrot.lane.b32.xlu0 %v3174, 24
      %v3417 = vpop.permute.xlu0 %3416
      %3418 = vrot.lane.b32.xlu0 %v3175, 24
      %v3419 = vpop.permute.xlu0 %3418
      %3420 = vrot.lane.b32.xlu0 %v3176, 24
      %v3421 = vpop.permute.xlu0 %3420
      %3422 = vrot.lane.b32.xlu0 %v3177, 24
      %v3423 = vpop.permute.xlu0 %3422
      %3424 = vrot.lane.b32.xlu0 %v3178, 24
      %v3425 = vpop.permute.xlu0 %3424
      %3426 = vrot.lane.b32.xlu0 %v3179, 24
      %v3427 = vpop.permute.xlu0 %3426
      %3428 = vrot.lane.b32.xlu0 %v3180, 24
      %v3429 = vpop.permute.xlu0 %3428
      %3430 = vrot.lane.b32.xlu0 %v3181, 24
      %v3431 = vpop.permute.xlu0 %3430
      %3432 = vrot.lane.b32.xlu0 %v3182, 24
      %v3433 = vpop.permute.xlu0 %3432
      %3434 = vrot.lane.b32.xlu0 %v3183, 24
      %v3435 = vpop.permute.xlu0 %3434
      %3436 = vrot.lane.b32.xlu0 %v3184, 24
      %v3437 = vpop.permute.xlu0 %3436
      %3438 = vrot.lane.b32.xlu0 %v3185, 24
      %v3439 = vpop.permute.xlu0 %3438
      %3440 = vrot.lane.b32.xlu0 %v3186, 24
      %v3441 = vpop.permute.xlu0 %3440
      %3442 = vrot.lane.b32.xlu0 %v3187, 24
      %v3443 = vpop.permute.xlu0 %3442
      %3476 = vrot.lane.b32.xlu0 %v3188, 32
      %v3477 = vpop.permute.xlu0 %3476
      %3478 = vrot.lane.b32.xlu0 %v3189, 32
      %v3479 = vpop.permute.xlu0 %3478
      %3480 = vrot.lane.b32.xlu0 %v3190, 32
      %v3481 = vpop.permute.xlu0 %3480
      %3482 = vrot.lane.b32.xlu0 %v3191, 32
      %v3483 = vpop.permute.xlu0 %3482
      %3484 = vrot.lane.b32.xlu0 %v3192, 32
      %v3485 = vpop.permute.xlu0 %3484
      %3486 = vrot.lane.b32.xlu0 %v3193, 32
      %v3487 = vpop.permute.xlu0 %3486
      %3488 = vrot.lane.b32.xlu0 %v3194, 32
      %v3489 = vpop.permute.xlu0 %3488
      %3490 = vrot.lane.b32.xlu0 %v3195, 32
      %v3491 = vpop.permute.xlu0 %3490
      %3492 = vrot.lane.b32.xlu0 %v3196, 32
      %v3493 = vpop.permute.xlu0 %3492
      %3494 = vrot.lane.b32.xlu0 %v3197, 32
      %v3495 = vpop.permute.xlu0 %3494
      %3496 = vrot.lane.b32.xlu0 %v3198, 32
      %v3497 = vpop.permute.xlu0 %3496
      %3498 = vrot.lane.b32.xlu0 %v3199, 32
      %v3499 = vpop.permute.xlu0 %3498
      %3500 = vrot.lane.b32.xlu0 %v3200, 32
      %v3501 = vpop.permute.xlu0 %3500
      %3502 = vrot.lane.b32.xlu0 %v3201, 32
      %v3503 = vpop.permute.xlu0 %3502
      %3504 = vrot.lane.b32.xlu0 %v3202, 32
      %v3505 = vpop.permute.xlu0 %3504
      %3506 = vrot.lane.b32.xlu0 %v3203, 32
      %v3507 = vpop.permute.xlu0 %3506
      %3540 = vrot.lane.b32.xlu0 %v3204, 40
      %v3541 = vpop.permute.xlu0 %3540
      %3542 = vrot.lane.b32.xlu0 %v3205, 40
      %v3543 = vpop.permute.xlu0 %3542
      %3544 = vrot.lane.b32.xlu0 %v3206, 40
      %v3545 = vpop.permute.xlu0 %3544
      %3546 = vrot.lane.b32.xlu0 %v3207, 40
      %v3547 = vpop.permute.xlu0 %3546
      %3548 = vrot.lane.b32.xlu0 %v3208, 40
      %v3549 = vpop.permute.xlu0 %3548
      %3550 = vrot.lane.b32.xlu0 %v3209, 40
      %v3551 = vpop.permute.xlu0 %3550
      %3552 = vrot.lane.b32.xlu0 %v3210, 40
      %v3553 = vpop.permute.xlu0 %3552
      %3554 = vrot.lane.b32.xlu0 %v3211, 40
      %v3555 = vpop.permute.xlu0 %3554
      %3556 = vrot.lane.b32.xlu0 %v3212, 40
      %v3557 = vpop.permute.xlu0 %3556
      %3558 = vrot.lane.b32.xlu0 %v3213, 40
      %v3559 = vpop.permute.xlu0 %3558
      %3560 = vrot.lane.b32.xlu0 %v3214, 40
      %v3561 = vpop.permute.xlu0 %3560
      %3562 = vrot.lane.b32.xlu0 %v3215, 40
      %v3563 = vpop.permute.xlu0 %3562
      %3564 = vrot.lane.b32.xlu0 %v3216, 40
      %v3565 = vpop.permute.xlu0 %3564
      %3566 = vrot.lane.b32.xlu0 %v3217, 40
      %v3567 = vpop.permute.xlu0 %3566
      %3568 = vrot.lane.b32.xlu0 %v3218, 40
      %v3569 = vpop.permute.xlu0 %3568
      %3570 = vrot.lane.b32.xlu0 %v3219, 40
      %v3571 = vpop.permute.xlu0 %3570
      %3604 = vrot.lane.b32.xlu0 %v3220, 48
      %v3605 = vpop.permute.xlu0 %3604
      %3606 = vrot.lane.b32.xlu0 %v3221, 48
      %v3607 = vpop.permute.xlu0 %3606
      %3608 = vrot.lane.b32.xlu0 %v3222, 48
      %v3609 = vpop.permute.xlu0 %3608
      %3610 = vrot.lane.b32.xlu0 %v3223, 48
      %v3611 = vpop.permute.xlu0 %3610
      %3612 = vrot.lane.b32.xlu0 %v3224, 48
      %v3613 = vpop.permute.xlu0 %3612
      %3614 = vrot.lane.b32.xlu0 %v3225, 48
      %v3615 = vpop.permute.xlu0 %3614
      %3616 = vrot.lane.b32.xlu0 %v3226, 48
      %v3617 = vpop.permute.xlu0 %3616
      %3618 = vrot.lane.b32.xlu0 %v3227, 48
      %v3619 = vpop.permute.xlu0 %3618
      %3620 = vrot.lane.b32.xlu0 %v3228, 48
      %v3621 = vpop.permute.xlu0 %3620
      %3622 = vrot.lane.b32.xlu0 %v3229, 48
      %v3623 = vpop.permute.xlu0 %3622
      %3624 = vrot.lane.b32.xlu0 %v3230, 48
      %v3625 = vpop.permute.xlu0 %3624
      %3626 = vrot.lane.b32.xlu0 %v3231, 48
      %v3627 = vpop.permute.xlu0 %3626
      %3628 = vrot.lane.b32.xlu0 %v3232, 48
      %v3629 = vpop.permute.xlu0 %3628
      %3630 = vrot.lane.b32.xlu0 %v3233, 48
      %v3631 = vpop.permute.xlu0 %3630
      %3632 = vrot.lane.b32.xlu0 %v3234, 48
      %v3633 = vpop.permute.xlu0 %3632
      %3634 = vrot.lane.b32.xlu0 %v3235, 48
      %v3635 = vpop.permute.xlu0 %3634
      %3668 = vrot.lane.b32.xlu0 %v3236, 56
      %v3669 = vpop.permute.xlu0 %3668
      %3670 = vrot.lane.b32.xlu0 %v3237, 56
      %v3671 = vpop.permute.xlu0 %3670
      %3672 = vrot.lane.b32.xlu0 %v3238, 56
      %v3673 = vpop.permute.xlu0 %3672
      %3674 = vrot.lane.b32.xlu0 %v3239, 56
      %v3675 = vpop.permute.xlu0 %3674
      %3676 = vrot.lane.b32.xlu0 %v3240, 56
      %v3677 = vpop.permute.xlu0 %3676
      %3678 = vrot.lane.b32.xlu0 %v3241, 56
      %v3679 = vpop.permute.xlu0 %3678
      %3680 = vrot.lane.b32.xlu0 %v3242, 56
      %v3681 = vpop.permute.xlu0 %3680
      %3682 = vrot.lane.b32.xlu0 %v3243, 56
      %v3683 = vpop.permute.xlu0 %3682
      %3684 = vrot.lane.b32.xlu0 %v3244, 56
      %v3685 = vpop.permute.xlu0 %3684
      %3686 = vrot.lane.b32.xlu0 %v3245, 56
      %v3687 = vpop.permute.xlu0 %3686
      %3688 = vrot.lane.b32.xlu0 %v3246, 56
      %v3689 = vpop.permute.xlu0 %3688
      %3690 = vrot.lane.b32.xlu0 %v3247, 56
      %v3691 = vpop.permute.xlu0 %3690
      %3692 = vrot.lane.b32.xlu0 %v3248, 56
      %v3693 = vpop.permute.xlu0 %3692
      %3694 = vrot.lane.b32.xlu0 %v3249, 56
      %v3695 = vpop.permute.xlu0 %3694
      %3696 = vrot.lane.b32.xlu0 %v3250, 56
      %v3697 = vpop.permute.xlu0 %3696
      %3698 = vrot.lane.b32.xlu0 %v3251, 56
      %v3699 = vpop.permute.xlu0 %3698
      %3732 = vrot.lane.b32.xlu0 %v3252, 64
      %v3733 = vpop.permute.xlu0 %3732
      %3734 = vrot.lane.b32.xlu0 %v3253, 64
      %v3735 = vpop.permute.xlu0 %3734
      %3736 = vrot.lane.b32.xlu0 %v3254, 64
      %v3737 = vpop.permute.xlu0 %3736
      %3738 = vrot.lane.b32.xlu0 %v3255, 64
      %v3739 = vpop.permute.xlu0 %3738
      %3740 = vrot.lane.b32.xlu0 %v3256, 64
      %v3741 = vpop.permute.xlu0 %3740
      %3742 = vrot.lane.b32.xlu0 %v3257, 64
      %v3743 = vpop.permute.xlu0 %3742
      %3744 = vrot.lane.b32.xlu0 %v3258, 64
      %v3745 = vpop.permute.xlu0 %3744
      %3746 = vrot.lane.b32.xlu0 %v3259, 64
      %v3747 = vpop.permute.xlu0 %3746
      %3748 = vrot.lane.b32.xlu0 %v3260, 64
      %v3749 = vpop.permute.xlu0 %3748
      %3750 = vrot.lane.b32.xlu0 %v3261, 64
      %v3751 = vpop.permute.xlu0 %3750
      %3752 = vrot.lane.b32.xlu0 %v3262, 64
      %v3753 = vpop.permute.xlu0 %3752
      %3754 = vrot.lane.b32.xlu0 %v3263, 64
      %v3755 = vpop.permute.xlu0 %3754
      %3756 = vrot.lane.b32.xlu0 %v3264, 64
      %v3757 = vpop.permute.xlu0 %3756
      %3758 = vrot.lane.b32.xlu0 %v3265, 64
      %v3759 = vpop.permute.xlu0 %3758
      %3760 = vrot.lane.b32.xlu0 %v3266, 64
      %v3761 = vpop.permute.xlu0 %3760
      %3762 = vrot.lane.b32.xlu0 %v3267, 64
      %v3763 = vpop.permute.xlu0 %3762
      %v3780 = vsel %vm1564, %v3124, %v3285
      %v3781 = vsel %vm1564, %v3125, %v3287
      %v3782 = vsel %vm1564, %v3126, %v3289
      %v3783 = vsel %vm1564, %v3127, %v3291
      %v3784 = vsel %vm1564, %v3128, %v3293
      %v3785 = vsel %vm1564, %v3129, %v3295
      %v3786 = vsel %vm1564, %v3130, %v3297
      %v3787 = vsel %vm1564, %v3131, %v3299
      %v3788 = vsel %vm1564, %v3132, %v3301
      %v3789 = vsel %vm1564, %v3133, %v3303
      %v3790 = vsel %vm1564, %v3134, %v3305
      %v3791 = vsel %vm1564, %v3135, %v3307
      %v3792 = vsel %vm1564, %v3136, %v3309
      %v3793 = vsel %vm1564, %v3137, %v3311
      %v3794 = vsel %vm1564, %v3138, %v3313
      %v3795 = vsel %vm1564, %v3139, %v3315
      %v3796 = vsel %vm1581, %v3780, %v3349
      %v3797 = vsel %vm1581, %v3781, %v3351
      %v3798 = vsel %vm1581, %v3782, %v3353
      %v3799 = vsel %vm1581, %v3783, %v3355
      %v3800 = vsel %vm1581, %v3784, %v3357
      %v3801 = vsel %vm1581, %v3785, %v3359
      %v3802 = vsel %vm1581, %v3786, %v3361
      %v3803 = vsel %vm1581, %v3787, %v3363
      %v3804 = vsel %vm1581, %v3788, %v3365
      %v3805 = vsel %vm1581, %v3789, %v3367
      %v3806 = vsel %vm1581, %v3790, %v3369
      %v3807 = vsel %vm1581, %v3791, %v3371
      %v3808 = vsel %vm1581, %v3792, %v3373
      %v3809 = vsel %vm1581, %v3793, %v3375
      %v3810 = vsel %vm1581, %v3794, %v3377
      %v3811 = vsel %vm1581, %v3795, %v3379
      %v3812 = vsel %vm1598, %v3796, %v3413
      %v3813 = vsel %vm1598, %v3797, %v3415
      %v3814 = vsel %vm1598, %v3798, %v3417
      %v3815 = vsel %vm1598, %v3799, %v3419
      %v3816 = vsel %vm1598, %v3800, %v3421
      %v3817 = vsel %vm1598, %v3801, %v3423
      %v3818 = vsel %vm1598, %v3802, %v3425
      %v3819 = vsel %vm1598, %v3803, %v3427
      %v3820 = vsel %vm1598, %v3804, %v3429
      %v3821 = vsel %vm1598, %v3805, %v3431
      %v3822 = vsel %vm1598, %v3806, %v3433
      %v3823 = vsel %vm1598, %v3807, %v3435
      %v3824 = vsel %vm1598, %v3808, %v3437
      %v3825 = vsel %vm1598, %v3809, %v3439
      %v3826 = vsel %vm1598, %v3810, %v3441
      %v3827 = vsel %vm1598, %v3811, %v3443
      %v3828 = vsel %vm864, %v3812, %v3477
      %v3829 = vsel %vm864, %v3813, %v3479
      %v3830 = vsel %vm864, %v3814, %v3481
      %v3831 = vsel %vm864, %v3815, %v3483
      %v3832 = vsel %vm864, %v3816, %v3485
      %v3833 = vsel %vm864, %v3817, %v3487
      %v3834 = vsel %vm864, %v3818, %v3489
      %v3835 = vsel %vm864, %v3819, %v3491
      %v3836 = vsel %vm864, %v3820, %v3493
      %v3837 = vsel %vm864, %v3821, %v3495
      %v3838 = vsel %vm864, %v3822, %v3497
      %v3839 = vsel %vm864, %v3823, %v3499
      %v3840 = vsel %vm864, %v3824, %v3501
      %v3841 = vsel %vm864, %v3825, %v3503
      %v3842 = vsel %vm864, %v3826, %v3505
      %v3843 = vsel %vm864, %v3827, %v3507
      %v3844 = vsel %vm1631, %v3828, %v3541
      %v3845 = vsel %vm1631, %v3829, %v3543
      %v3846 = vsel %vm1631, %v3830, %v3545
      %v3847 = vsel %vm1631, %v3831, %v3547
      %v3848 = vsel %vm1631, %v3832, %v3549
      %v3849 = vsel %vm1631, %v3833, %v3551
      %v3850 = vsel %vm1631, %v3834, %v3553
      %v3851 = vsel %vm1631, %v3835, %v3555
      %v3852 = vsel %vm1631, %v3836, %v3557
      %v3853 = vsel %vm1631, %v3837, %v3559
      %v3854 = vsel %vm1631, %v3838, %v3561
      %v3855 = vsel %vm1631, %v3839, %v3563
      %v3856 = vsel %vm1631, %v3840, %v3565
      %v3857 = vsel %vm1631, %v3841, %v3567
      %v3858 = vsel %vm1631, %v3842, %v3569
      %v3859 = vsel %vm1631, %v3843, %v3571
      %v3860 = vsel %vm1648, %v3844, %v3605
      %v3861 = vsel %vm1648, %v3845, %v3607
      %v3862 = vsel %vm1648, %v3846, %v3609
      %v3863 = vsel %vm1648, %v3847, %v3611
      %v3864 = vsel %vm1648, %v3848, %v3613
      %v3865 = vsel %vm1648, %v3849, %v3615
      %v3866 = vsel %vm1648, %v3850, %v3617
      %v3867 = vsel %vm1648, %v3851, %v3619
      %v3868 = vsel %vm1648, %v3852, %v3621
      %v3869 = vsel %vm1648, %v3853, %v3623
      %v3870 = vsel %vm1648, %v3854, %v3625
      %v3871 = vsel %vm1648, %v3855, %v3627
      %v3872 = vsel %vm1648, %v3856, %v3629
      %v3873 = vsel %vm1648, %v3857, %v3631
      %v3874 = vsel %vm1648, %v3858, %v3633
      %v3875 = vsel %vm1648, %v3859, %v3635
      %v3876 = vsel %vm1665, %v3860, %v3669
      %v3877 = vsel %vm1665, %v3861, %v3671
      %v3878 = vsel %vm1665, %v3862, %v3673
      %v3879 = vsel %vm1665, %v3863, %v3675
      %v3880 = vsel %vm1665, %v3864, %v3677
      %v3881 = vsel %vm1665, %v3865, %v3679
      %v3882 = vsel %vm1665, %v3866, %v3681
      %v3883 = vsel %vm1665, %v3867, %v3683
      %v3884 = vsel %vm1665, %v3868, %v3685
      %v3885 = vsel %vm1665, %v3869, %v3687
      %v3886 = vsel %vm1665, %v3870, %v3689
      %v3887 = vsel %vm1665, %v3871, %v3691
      %v3888 = vsel %vm1665, %v3872, %v3693
      %v3889 = vsel %vm1665, %v3873, %v3695
      %v3890 = vsel %vm1665, %v3874, %v3697
      %v3891 = vsel %vm1665, %v3875, %v3699
      %v3892 = vsel %vm1682, %v3876, %v3733
      %v3893 = vsel %vm1682, %v3877, %v3735
      %v3894 = vsel %vm1682, %v3878, %v3737
      %v3895 = vsel %vm1682, %v3879, %v3739
      %v3896 = vsel %vm1682, %v3880, %v3741
      %v3897 = vsel %vm1682, %v3881, %v3743
      %v3898 = vsel %vm1682, %v3882, %v3745
      %v3899 = vsel %vm1682, %v3883, %v3747
      %v3900 = vsel %vm1682, %v3884, %v3749
      %v3901 = vsel %vm1682, %v3885, %v3751
      %v3902 = vsel %vm1682, %v3886, %v3753
      %v3903 = vsel %vm1682, %v3887, %v3755
      %v3904 = vsel %vm1682, %v3888, %v3757
      %v3905 = vsel %vm1682, %v3889, %v3759
      %v3906 = vsel %vm1682, %v3890, %v3761
      %v3907 = vsel %vm1682, %v3891, %v3763
      %v3908 = vpack.c.bf16 %v3893, %v3892
      %v3909 = vpack.c.bf16 %v3895, %v3894
      %v3910 = vpack.c.bf16 %v3897, %v3896
      %v3911 = vpack.c.bf16 %v3899, %v3898
      %v3912 = vpack.c.bf16 %v3901, %v3900
      %v3913 = vpack.c.bf16 %v3903, %v3902
      %v3914 = vpack.c.bf16 %v3905, %v3904
      %v3915 = vpack.c.bf16 %v3907, %v3906
      %v3916 = vld [vmem:[%s15] sm:$0xf]
      %v3917 = vld [vmem:[%s15 + $0x4] sm:$0xf]
      %v3918 = vld [vmem:[%s15 + $0x8] sm:$0xf]
      %v3919 = vld [vmem:[%s15 + $0xc] sm:$0xf]
      %v3920 = vld [vmem:[%s15 + $0x10] sm:$0xf]
      %v3921 = vld [vmem:[%s15 + $0x14] sm:$0xf]
      %v3922 = vld [vmem:[%s15 + $0x18] sm:$0xf]
      %v3923 = vld [vmem:[%s15 + $0x1c] sm:$0xf]
      %v3924 = vld [vmem:[%s15 + $0x20] sm:$0xf]
      %v3925 = vld [vmem:[%s16] sm:$0x1]
      %v3927 = vlaneseq
      %v3928 = vshrl.u32 %v3927, 7
      %v3929 = vsub.s32 0, %v3928
      %v3930 = vrot.slane %v3925, %v3929
      %v3941 = vunpack.c.l.b16 %v3916
      %v3942 = vunpack.c.l.b16 %v3917
      %v3943 = vunpack.c.l.b16 %v3918
      %v3944 = vunpack.c.l.b16 %v3919
      %v3945 = vunpack.c.l.b16 %v3920
      %v3946 = vunpack.c.l.b16 %v3921
      %v3947 = vunpack.c.l.b16 %v3922
      %v3948 = vunpack.c.l.b16 %v3923
      %v3949 = vunpack.c.l.b16 %v3924
      %v3950 = vpack.c.b16 %v3942, %v3941
      %v3951 = vpack.c.b16 %v3944, %v3943
      %v3952 = vpack.c.b16 %v3946, %v3945
      %v3953 = vpack.c.b16 %v3948, %v3947
      %v3954 = vpack.c.b16 %v3949, %v3949
      %v3960 = vsel %vm1750, %v3908, 0
      %v3963 = vsel %vm1750, %v3909, 0
      %v3966 = vsel %vm1750, %v3910, 0
      %v3969 = vsel %vm1750, %v3911, 0
      %v3972 = vsel %vm1750, %v3912, 0
      %v3975 = vsel %vm1750, %v3913, 0
      %v3978 = vsel %vm1750, %v3914, 0
      %v3981 = vsel %vm1750, %v3915, 0
      %v3984 = vsel %vm1775, %v3954, 0
      %3986 = vmatprep.subr.bf16.mxu0 0
      %3987 = vmatpush1.bf16.msra.mxu0 0
      %3988 = vmatprep.subr.bf16.mxu0 0
      %3989 = vmatpush1.bf16.msra.mxu0 0
      %3990 = vmatprep.subr.bf16.mxu0 0
      %3991 = vmatpush1.bf16.msra.mxu0 0
      %3992 = vmatprep.subr.bf16.mxu0 0
      %3993 = vmatpush1.bf16.msra.mxu0 %v3984
      %3994 = vmatprep.subr.bf16.mxu0 0
      %3995 = vmatpush1.bf16.msra.mxu0 %v3953
      %3996 = vmatprep.subr.bf16.mxu0 0
      %3997 = vmatpush1.bf16.msra.mxu0 %v3952
      %3998 = vmatprep.subr.bf16.mxu0 0
      %3999 = vmatpush1.bf16.msra.mxu0 %v3951
      %4000 = vmatprep.subr.bf16.mxu0 0
      %4001 = vmatpush1.bf16.msra.mxu0 %v3950
      %4002 = vmatprep.subr.bf16.mxu0 0
      %4003 = vmatpush2.bf16.msra.mxu0 0
      %4004 = vmatprep.subr.bf16.mxu0 0
      %4005 = vmatpush2.bf16.msra.mxu0 0
      %4006 = vmatprep.subr.bf16.mxu0 0
      %4007 = vmatpush2.bf16.msra.mxu0 0
      %4008 = vmatprep.subr.bf16.mxu0 0
      %4009 = vmatpush2.bf16.msra.mxu0 0
      %4010 = vmatprep.subr.bf16.mxu0 0
      %4011 = vmatpush2.bf16.msra.mxu0 0
      %4012 = vmatprep.subr.bf16.mxu0 0
      %4013 = vmatpush2.bf16.msra.mxu0 0
      %4014 = vmatprep.subr.bf16.mxu0 0
      %4015 = vmatpush2.bf16.msra.mxu0 0
      %4016 = vmatprep.subr.bf16.mxu0 0
      %4017 = vmatpush2.bf16.msra.mxu0 0
      %4018 = vmatprep.mubr.bf16.mxu0 0
      %4019 = vmatmul.mubr.bf16.gmra.mxu0 %v3960
      %v4020 = vpop.f32.mrf.mxu0
      %v4021 = vadd.f32 %v3930, %v4020
      %v4022 = vpop.f32.mrf.mxu0
      %v4023 = vpop.f32.mrf.mxu0
      %v4024 = vadd.f32 %v3930, %v4023
      %v4025 = vpop.f32.mrf.mxu0
      %4026 = vmatprep.mubr.bf16.mxu0 0
      %4027 = vmatmul.mubr.bf16.gmra.mxu0 %v3963
      %v4028 = vpop.f32.mrf.mxu0
      %v4029 = vadd.f32 %v3930, %v4028
      %v4030 = vpop.f32.mrf.mxu0
      %v4031 = vpop.f32.mrf.mxu0
      %v4032 = vadd.f32 %v3930, %v4031
      %v4033 = vpop.f32.mrf.mxu0
      %4034 = vmatprep.mubr.bf16.mxu0 0
      %4035 = vmatmul.mubr.bf16.gmra.mxu0 %v3966
      %v4036 = vpop.f32.mrf.mxu0
      %v4037 = vadd.f32 %v3930, %v4036
      %v4038 = vpop.f32.mrf.mxu0
      %v4039 = vpop.f32.mrf.mxu0
      %v4040 = vadd.f32 %v3930, %v4039
      %v4041 = vpop.f32.mrf.mxu0
      %4042 = vmatprep.mubr.bf16.mxu0 0
      %4043 = vmatmul.mubr.bf16.gmra.mxu0 %v3969
      %v4044 = vpop.f32.mrf.mxu0
      %v4045 = vadd.f32 %v3930, %v4044
      %v4046 = vpop.f32.mrf.mxu0
      %v4047 = vpop.f32.mrf.mxu0
      %v4048 = vadd.f32 %v3930, %v4047
      %v4049 = vpop.f32.mrf.mxu0
      %4050 = vmatprep.mubr.bf16.mxu0 0
      %4051 = vmatmul.mubr.bf16.gmra.mxu0 %v3972
      %v4052 = vpop.f32.mrf.mxu0
      %v4053 = vadd.f32 %v3930, %v4052
      %v4054 = vpop.f32.mrf.mxu0
      %v4055 = vpop.f32.mrf.mxu0
      %v4056 = vadd.f32 %v3930, %v4055
      %v4057 = vpop.f32.mrf.mxu0
      %4058 = vmatprep.mubr.bf16.mxu0 0
      %4059 = vmatmul.mubr.bf16.gmra.mxu0 %v3975
      %v4060 = vpop.f32.mrf.mxu0
      %v4061 = vadd.f32 %v3930, %v4060
      %v4062 = vpop.f32.mrf.mxu0
      %v4063 = vpop.f32.mrf.mxu0
      %v4064 = vadd.f32 %v3930, %v4063
      %v4065 = vpop.f32.mrf.mxu0
      %4066 = vmatprep.mubr.bf16.mxu0 0
      %4067 = vmatmul.mubr.bf16.gmra.mxu0 %v3978
      %v4068 = vpop.f32.mrf.mxu0
      %v4069 = vadd.f32 %v3930, %v4068
      %v4070 = vpop.f32.mrf.mxu0
      %v4071 = vpop.f32.mrf.mxu0
      %v4072 = vadd.f32 %v3930, %v4071
      %v4073 = vpop.f32.mrf.mxu0
      %4074 = vmatprep.mubr.bf16.mxu0 0
      %4075 = vmatmul.mubr.bf16.gmra.mxu0 %v3981
      %v4076 = vpop.f32.mrf.mxu0
      %v4077 = vadd.f32 %v3930, %v4076
      %v4078 = vpop.f32.mrf.mxu0
      %v4079 = vpop.f32.mrf.mxu0
      %v4080 = vadd.f32 %v3930, %v4079
      %v4081 = vpop.f32.mrf.mxu0
      %4082 = vdwg.mxu0
      %v4083 = vlaneseq
      %v4084 = vshrl.u32 %v4083, 7
      %v4085 = vsub.s32 0, %v4084
      %v4086 = vrot.slane %v3055, %v4085
      %v4087 = vadd.f32 %v4021, %v4086
      %v4088 = vadd.f32 %v4024, %v4086
      %v4089 = vadd.f32 %v4029, %v4086
      %v4090 = vadd.f32 %v4032, %v4086
      %v4091 = vadd.f32 %v4037, %v4086
      %v4092 = vadd.f32 %v4040, %v4086
      %v4093 = vadd.f32 %v4045, %v4086
      %v4094 = vadd.f32 %v4048, %v4086
      %v4095 = vadd.f32 %v4053, %v4086
      %v4096 = vadd.f32 %v4056, %v4086
      %v4097 = vadd.f32 %v4061, %v4086
      %v4098 = vadd.f32 %v4064, %v4086
      %v4099 = vadd.f32 %v4069, %v4086
      %v4100 = vadd.f32 %v4072, %v4086
      %v4101 = vadd.f32 %v4077, %v4086
      %v4102 = vadd.f32 %v4080, %v4086
      %v4103 = vsub.f32 0.0, %v4087
      %v4104 = vsub.f32 0.0, %v4088
      %v4105 = vsub.f32 0.0, %v4089
      %v4106 = vsub.f32 0.0, %v4090
      %v4107 = vsub.f32 0.0, %v4091
      %v4108 = vsub.f32 0.0, %v4092
      %v4109 = vsub.f32 0.0, %v4093
      %v4110 = vsub.f32 0.0, %v4094
      %v4111 = vsub.f32 0.0, %v4095
      %v4112 = vsub.f32 0.0, %v4096
      %v4113 = vsub.f32 0.0, %v4097
      %v4114 = vsub.f32 0.0, %v4098
      %v4115 = vsub.f32 0.0, %v4099
      %v4116 = vsub.f32 0.0, %v4100
      %v4117 = vsub.f32 0.0, %v4101
      %v4118 = vsub.f32 0.0, %v4102
      %v4119 = vmul.f32 %v4103, 1.442695
      %v4120 = vpow.pop %v4119
      %v4121 = vmul.f32 %v4104, 1.442695
      %v4122 = vpow.pop %v4121
      %v4123 = vmul.f32 %v4105, 1.442695
      %v4124 = vpow.pop %v4123
      %v4125 = vmul.f32 %v4106, 1.442695
      %v4126 = vpow.pop %v4125
      %v4127 = vmul.f32 %v4107, 1.442695
      %v4128 = vpow.pop %v4127
      %v4129 = vmul.f32 %v4108, 1.442695
      %v4130 = vpow.pop %v4129
      %v4131 = vmul.f32 %v4109, 1.442695
      %v4132 = vpow.pop %v4131
      %v4133 = vmul.f32 %v4110, 1.442695
      %v4134 = vpow.pop %v4133
      %v4135 = vmul.f32 %v4111, 1.442695
      %v4136 = vpow.pop %v4135
      %v4137 = vmul.f32 %v4112, 1.442695
      %v4138 = vpow.pop %v4137
      %v4139 = vmul.f32 %v4113, 1.442695
      %v4140 = vpow.pop %v4139
      %v4141 = vmul.f32 %v4114, 1.442695
      %v4142 = vpow.pop %v4141
      %v4143 = vmul.f32 %v4115, 1.442695
      %v4144 = vpow.pop %v4143
      %v4145 = vmul.f32 %v4116, 1.442695
      %v4146 = vpow.pop %v4145
      %v4147 = vmul.f32 %v4117, 1.442695
      %v4148 = vpow.pop %v4147
      %v4149 = vmul.f32 %v4118, 1.442695
      %v4150 = vpow.pop %v4149
      %v4151 = vadd.f32 %v4120, 1.0
      %v4152 = vadd.f32 %v4122, 1.0
      %v4153 = vadd.f32 %v4124, 1.0
      %v4154 = vadd.f32 %v4126, 1.0
      %v4155 = vadd.f32 %v4128, 1.0
      %v4156 = vadd.f32 %v4130, 1.0
      %v4157 = vadd.f32 %v4132, 1.0
      %v4158 = vadd.f32 %v4134, 1.0
      %v4159 = vadd.f32 %v4136, 1.0
      %v4160 = vadd.f32 %v4138, 1.0
      %v4161 = vadd.f32 %v4140, 1.0
      %v4162 = vadd.f32 %v4142, 1.0
      %v4163 = vadd.f32 %v4144, 1.0
      %v4164 = vadd.f32 %v4146, 1.0
      %v4165 = vadd.f32 %v4148, 1.0
      %v4166 = vadd.f32 %v4150, 1.0
      %v4167 = vrcp.pop %v4151
      %v4168 = vrcp.pop %v4152
      %v4169 = vrcp.pop %v4153
      %v4170 = vrcp.pop %v4154
      %v4171 = vrcp.pop %v4155
      %v4172 = vrcp.pop %v4156
      %v4173 = vrcp.pop %v4157
      %v4174 = vrcp.pop %v4158
      %v4175 = vrcp.pop %v4159
      %v4176 = vrcp.pop %v4160
      %v4177 = vrcp.pop %v4161
      %v4178 = vrcp.pop %v4162
      %v4179 = vrcp.pop %v4163
      %v4180 = vrcp.pop %v4164
      %v4181 = vrcp.pop %v4165
      %v4182 = vrcp.pop %v4166
      %v4183 = vmul.f32 %v4087, %v4167
      %v4184 = vmul.f32 %v4088, %v4168
      %v4185 = vmul.f32 %v4089, %v4169
      %v4186 = vmul.f32 %v4090, %v4170
      %v4187 = vmul.f32 %v4091, %v4171
      %v4188 = vmul.f32 %v4092, %v4172
      %v4189 = vmul.f32 %v4093, %v4173
      %v4190 = vmul.f32 %v4094, %v4174
      %v4191 = vmul.f32 %v4095, %v4175
      %v4192 = vmul.f32 %v4096, %v4176
      %v4193 = vmul.f32 %v4097, %v4177
      %v4194 = vmul.f32 %v4098, %v4178
      %v4195 = vmul.f32 %v4099, %v4179
      %v4196 = vmul.f32 %v4100, %v4180
      %v4197 = vmul.f32 %v4101, %v4181
      %v4198 = vmul.f32 %v4102, %v4182
      %v4199 = vld [vmem:[%s854] sm:$0xf]
      %v4200 = vld [vmem:[%s9] sm:$0xf]
      %v4201 = vld [vmem:[%s9 + $0x4] sm:$0xf]
      %v4202 = vld [vmem:[%s9 + $0x8] sm:$0xf]
      %v4203 = vld [vmem:[%s9 + $0xc] sm:$0xf]
      %v4204 = vld [vmem:[%s10] sm:$0x1]
      %v4206 = vlaneseq
      %v4207 = vshrl.u32 %v4206, 7
      %v4208 = vsub.s32 0, %v4207
      %v4209 = vrot.slane %v4204, %v4208
      %v4215 = vunpack.c.l.b16 %v4200
      %v4216 = vunpack.c.l.b16 %v4201
      %v4217 = vunpack.c.l.b16 %v4202
      %v4218 = vunpack.c.l.b16 %v4203
      %v4219 = vpack.c.b16 %v4216, %v4215
      %v4220 = vpack.c.b16 %v4218, %v4217
      %v4224 = vsel %vm864, %v4199, 0
      %4226 = vmatprep.subr.bf16.mxu0 0
      %4227 = vmatpush1.bf16.msra.mxu0 0
      %4228 = vmatprep.subr.bf16.mxu0 0
      %4229 = vmatpush1.bf16.msra.mxu0 0
      %4230 = vmatprep.subr.bf16.mxu0 0
      %4231 = vmatpush1.bf16.msra.mxu0 0
      %4232 = vmatprep.subr.bf16.mxu0 0
      %4233 = vmatpush1.bf16.msra.mxu0 0
      %4234 = vmatprep.subr.bf16.mxu0 0
      %4235 = vmatpush1.bf16.msra.mxu0 0
      %4236 = vmatprep.subr.bf16.mxu0 0
      %4237 = vmatpush1.bf16.msra.mxu0 0
      %4238 = vmatprep.subr.bf16.mxu0 0
      %4239 = vmatpush1.bf16.msra.mxu0 %v4220
      %4240 = vmatprep.subr.bf16.mxu0 0
      %4241 = vmatpush1.bf16.msra.mxu0 %v4219
      %4242 = vmatprep.subr.bf16.mxu0 0
      %4243 = vmatpush2.bf16.msra.mxu0 0
      %4244 = vmatprep.subr.bf16.mxu0 0
      %4245 = vmatpush2.bf16.msra.mxu0 0
      %4246 = vmatprep.subr.bf16.mxu0 0
      %4247 = vmatpush2.bf16.msra.mxu0 0
      %4248 = vmatprep.subr.bf16.mxu0 0
      %4249 = vmatpush2.bf16.msra.mxu0 0
      %4250 = vmatprep.subr.bf16.mxu0 0
      %4251 = vmatpush2.bf16.msra.mxu0 0
      %4252 = vmatprep.subr.bf16.mxu0 0
      %4253 = vmatpush2.bf16.msra.mxu0 0
      %4254 = vmatprep.subr.bf16.mxu0 0
      %4255 = vmatpush2.bf16.msra.mxu0 0
      %4256 = vmatprep.subr.bf16.mxu0 0
      %4257 = vmatpush2.bf16.msra.mxu0 0
      %4258 = vmatprep.mubr.bf16.mxu0 0
      %4259 = vmatmul.mubr.bf16.gmra.mxu0 %v4224
      %v4260 = vpop.f32.mrf.mxu0
      %v4261 = vadd.f32 %v4209, %v4260
      %v4262 = vpop.f32.mrf.mxu0
      %v4263 = vpop.f32.mrf.mxu0
      %v4264 = vpop.f32.mrf.mxu0
      %4265 = vdwg.mxu0
      %v4266 = vmax.f32 %v4261, 0.0
      %v4267 = vpack.c.bf16 %v4266, %v4266
      %v4268 = vld [vmem:[%s11] sm:$0xf]
      %v4269 = vld [vmem:[%s11 + $0x4] sm:$0xf]
      %v4270 = vld [vmem:[%s11 + $0x8] sm:$0xf]
      %v4271 = vld [vmem:[%s11 + $0xc] sm:$0xf]
      %v4272 = vld [vmem:[%s12] sm:$0x1]
      %v4274 = vlaneseq
      %v4275 = vshrl.u32 %v4274, 7
      %v4276 = vsub.s32 0, %v4275
      %v4277 = vrot.slane %v4272, %v4276
      %v4283 = vunpack.c.l.b16 %v4268
      %v4284 = vunpack.c.l.b16 %v4269
      %v4285 = vunpack.c.l.b16 %v4270
      %v4286 = vunpack.c.l.b16 %v4271
      %v4287 = vpack.c.b16 %v4284, %v4283
      %v4288 = vpack.c.b16 %v4286, %v4285
      %v4292 = vsel %vm864, %v4267, 0
      %4294 = vmatprep.subr.bf16.mxu0 0
      %4295 = vmatpush1.bf16.msra.mxu0 0
      %4296 = vmatprep.subr.bf16.mxu0 0
      %4297 = vmatpush1.bf16.msra.mxu0 0
      %4298 = vmatprep.subr.bf16.mxu0 0
      %4299 = vmatpush1.bf16.msra.mxu0 0
      %4300 = vmatprep.subr.bf16.mxu0 0
      %4301 = vmatpush1.bf16.msra.mxu0 0
      %4302 = vmatprep.subr.bf16.mxu0 0
      %4303 = vmatpush1.bf16.msra.mxu0 0
      %4304 = vmatprep.subr.bf16.mxu0 0
      %4305 = vmatpush1.bf16.msra.mxu0 0
      %4306 = vmatprep.subr.bf16.mxu0 0
      %4307 = vmatpush1.bf16.msra.mxu0 %v4288
      %4308 = vmatprep.subr.bf16.mxu0 0
      %4309 = vmatpush1.bf16.msra.mxu0 %v4287
      %4310 = vmatprep.subr.bf16.mxu0 0
      %4311 = vmatpush2.bf16.msra.mxu0 0
      %4312 = vmatprep.subr.bf16.mxu0 0
      %4313 = vmatpush2.bf16.msra.mxu0 0
      %4314 = vmatprep.subr.bf16.mxu0 0
      %4315 = vmatpush2.bf16.msra.mxu0 0
      %4316 = vmatprep.subr.bf16.mxu0 0
      %4317 = vmatpush2.bf16.msra.mxu0 0
      %4318 = vmatprep.subr.bf16.mxu0 0
      %4319 = vmatpush2.bf16.msra.mxu0 0
      %4320 = vmatprep.subr.bf16.mxu0 0
      %4321 = vmatpush2.bf16.msra.mxu0 0
      %4322 = vmatprep.subr.bf16.mxu0 0
      %4323 = vmatpush2.bf16.msra.mxu0 0
      %4324 = vmatprep.subr.bf16.mxu0 0
      %4325 = vmatpush2.bf16.msra.mxu0 0
      %4326 = vmatprep.mubr.bf16.mxu0 0
      %4327 = vmatmul.mubr.bf16.gmra.mxu0 %v4292
      %v4328 = vpop.f32.mrf.mxu0
      %v4329 = vadd.f32 %v4277, %v4328
      %v4330 = vpop.f32.mrf.mxu0
      %v4331 = vpop.f32.mrf.mxu0
      %v4332 = vpop.f32.mrf.mxu0
      %4333 = vdwg.mxu0
      %v4334 = vld [vmem:[%s850] sm:$0xff]
      %v4335 = vld [vmem:[%s850 + $0x10] sm:$0xff]
      %v4336 = vld [vmem:[%s850 + $0x20] sm:$0xff]
      %v4337 = vld [vmem:[%s850 + $0x30] sm:$0xff]
      %v4338 = vld [vmem:[%s850 + $0x40] sm:$0xff]
      %v4339 = vld [vmem:[%s850 + $0x50] sm:$0xff]
      %v4340 = vld [vmem:[%s850 + $0x60] sm:$0xff]
      %v4341 = vld [vmem:[%s850 + $0x70] sm:$0xff]
      %v4342 = vld [vmem:[%s850 + $0x1] sm:$0xff]
      %v4343 = vld [vmem:[%s850 + $0x11] sm:$0xff]
      %v4344 = vld [vmem:[%s850 + $0x21] sm:$0xff]
      %v4345 = vld [vmem:[%s850 + $0x31] sm:$0xff]
      %v4346 = vld [vmem:[%s850 + $0x41] sm:$0xff]
      %v4347 = vld [vmem:[%s850 + $0x51] sm:$0xff]
      %v4348 = vld [vmem:[%s850 + $0x61] sm:$0xff]
      %v4349 = vld [vmem:[%s850 + $0x71] sm:$0xff]
      %v4350 = vld [vmem:[%s850 + $0x2] sm:$0xff]
      %v4351 = vld [vmem:[%s850 + $0x12] sm:$0xff]
      %v4352 = vld [vmem:[%s850 + $0x22] sm:$0xff]
      %v4353 = vld [vmem:[%s850 + $0x32] sm:$0xff]
      %v4354 = vld [vmem:[%s850 + $0x42] sm:$0xff]
      %v4355 = vld [vmem:[%s850 + $0x52] sm:$0xff]
      %v4356 = vld [vmem:[%s850 + $0x62] sm:$0xff]
      %v4357 = vld [vmem:[%s850 + $0x72] sm:$0xff]
      %s4358 = scalar_lea.vmem %s850, 16
      %v4359 = vld [vmem:[%s4358] sm:$0xff]
      %v4360 = vld [vmem:[%s4358 + $0x10] sm:$0xff]
      %v4361 = vld [vmem:[%s4358 + $0x20] sm:$0xff]
      %v4362 = vld [vmem:[%s4358 + $0x30] sm:$0xff]
      %v4363 = vld [vmem:[%s4358 + $0x40] sm:$0xff]
      %v4364 = vld [vmem:[%s4358 + $0x50] sm:$0xff]
      %v4365 = vld [vmem:[%s4358 + $0x60] sm:$0xff]
      %v4366 = vld [vmem:[%s4358 + $0x70] sm:$0xff]
      %v4367 = vld [vmem:[%s4358 + $0x1] sm:$0xff]
      %v4368 = vld [vmem:[%s4358 + $0x11] sm:$0xff]
      %v4369 = vld [vmem:[%s4358 + $0x21] sm:$0xff]
      %v4370 = vld [vmem:[%s4358 + $0x31] sm:$0xff]
      %v4371 = vld [vmem:[%s4358 + $0x41] sm:$0xff]
      %v4372 = vld [vmem:[%s4358 + $0x51] sm:$0xff]
      %v4373 = vld [vmem:[%s4358 + $0x61] sm:$0xff]
      %v4374 = vld [vmem:[%s4358 + $0x71] sm:$0xff]
      %v4375 = vld [vmem:[%s4358 + $0x2] sm:$0xff]
      %v4376 = vld [vmem:[%s4358 + $0x12] sm:$0xff]
      %v4377 = vld [vmem:[%s4358 + $0x22] sm:$0xff]
      %v4378 = vld [vmem:[%s4358 + $0x32] sm:$0xff]
      %v4379 = vld [vmem:[%s4358 + $0x42] sm:$0xff]
      %v4380 = vld [vmem:[%s4358 + $0x52] sm:$0xff]
      %v4381 = vld [vmem:[%s4358 + $0x62] sm:$0xff]
      %v4382 = vld [vmem:[%s4358 + $0x72] sm:$0xff]
      %s4383 = scalar_lea.vmem %s850, 32
      %v4384 = vld [vmem:[%s4383] sm:$0xff]
      %v4385 = vld [vmem:[%s4383 + $0x10] sm:$0xff]
      %v4386 = vld [vmem:[%s4383 + $0x20] sm:$0xff]
      %v4387 = vld [vmem:[%s4383 + $0x30] sm:$0xff]
      %v4388 = vld [vmem:[%s4383 + $0x40] sm:$0xff]
      %v4389 = vld [vmem:[%s4383 + $0x50] sm:$0xff]
      %v4390 = vld [vmem:[%s4383 + $0x60] sm:$0xff]
      %v4391 = vld [vmem:[%s4383 + $0x70] sm:$0xff]
      %v4392 = vld [vmem:[%s4383 + $0x1] sm:$0xff]
      %v4393 = vld [vmem:[%s4383 + $0x11] sm:$0xff]
      %v4394 = vld [vmem:[%s4383 + $0x21] sm:$0xff]
      %v4395 = vld [vmem:[%s4383 + $0x31] sm:$0xff]
      %v4396 = vld [vmem:[%s4383 + $0x41] sm:$0xff]
      %v4397 = vld [vmem:[%s4383 + $0x51] sm:$0xff]
      %v4398 = vld [vmem:[%s4383 + $0x61] sm:$0xff]
      %v4399 = vld [vmem:[%s4383 + $0x71] sm:$0xff]
      %v4400 = vld [vmem:[%s4383 + $0x2] sm:$0xff]
      %v4401 = vld [vmem:[%s4383 + $0x12] sm:$0xff]
      %v4402 = vld [vmem:[%s4383 + $0x22] sm:$0xff]
      %v4403 = vld [vmem:[%s4383 + $0x32] sm:$0xff]
      %v4404 = vld [vmem:[%s4383 + $0x42] sm:$0xff]
      %v4405 = vld [vmem:[%s4383 + $0x52] sm:$0xff]
      %v4406 = vld [vmem:[%s4383 + $0x62] sm:$0xff]
      %v4407 = vld [vmem:[%s4383 + $0x72] sm:$0xff]
      %4416 = vrot.lane.b32.xlu0 %v4342, 8
      %v4417 = vpop.permute.xlu0 %4416
      %4418 = vrot.lane.b32.xlu0 %v4343, 8
      %v4419 = vpop.permute.xlu0 %4418
      %4420 = vrot.lane.b32.xlu0 %v4344, 8
      %v4421 = vpop.permute.xlu0 %4420
      %4422 = vrot.lane.b32.xlu0 %v4345, 8
      %v4423 = vpop.permute.xlu0 %4422
      %4424 = vrot.lane.b32.xlu0 %v4346, 8
      %v4425 = vpop.permute.xlu0 %4424
      %4426 = vrot.lane.b32.xlu0 %v4347, 8
      %v4427 = vpop.permute.xlu0 %4426
      %4428 = vrot.lane.b32.xlu0 %v4348, 8
      %v4429 = vpop.permute.xlu0 %4428
      %4430 = vrot.lane.b32.xlu0 %v4349, 8
      %v4431 = vpop.permute.xlu0 %4430
      %4448 = vrot.lane.b32.xlu0 %v4350, 16
      %v4449 = vpop.permute.xlu0 %4448
      %4450 = vrot.lane.b32.xlu0 %v4351, 16
      %v4451 = vpop.permute.xlu0 %4450
      %4452 = vrot.lane.b32.xlu0 %v4352, 16
      %v4453 = vpop.permute.xlu0 %4452
      %4454 = vrot.lane.b32.xlu0 %v4353, 16
      %v4455 = vpop.permute.xlu0 %4454
      %4456 = vrot.lane.b32.xlu0 %v4354, 16
      %v4457 = vpop.permute.xlu0 %4456
      %4458 = vrot.lane.b32.xlu0 %v4355, 16
      %v4459 = vpop.permute.xlu0 %4458
      %4460 = vrot.lane.b32.xlu0 %v4356, 16
      %v4461 = vpop.permute.xlu0 %4460
      %4462 = vrot.lane.b32.xlu0 %v4357, 16
      %v4463 = vpop.permute.xlu0 %4462
      %4480 = vrot.lane.b32.xlu0 %v4359, 24
      %v4481 = vpop.permute.xlu0 %4480
      %4482 = vrot.lane.b32.xlu0 %v4360, 24
      %v4483 = vpop.permute.xlu0 %4482
      %4484 = vrot.lane.b32.xlu0 %v4361, 24
      %v4485 = vpop.permute.xlu0 %4484
      %4486 = vrot.lane.b32.xlu0 %v4362, 24
      %v4487 = vpop.permute.xlu0 %4486
      %4488 = vrot.lane.b32.xlu0 %v4363, 24
      %v4489 = vpop.permute.xlu0 %4488
      %4490 = vrot.lane.b32.xlu0 %v4364, 24
      %v4491 = vpop.permute.xlu0 %4490
      %4492 = vrot.lane.b32.xlu0 %v4365, 24
      %v4493 = vpop.permute.xlu0 %4492
      %4494 = vrot.lane.b32.xlu0 %v4366, 24
      %v4495 = vpop.permute.xlu0 %4494
      %4512 = vrot.lane.b32.xlu0 %v4367, 32
      %v4513 = vpop.permute.xlu0 %4512
      %4514 = vrot.lane.b32.xlu0 %v4368, 32
      %v4515 = vpop.permute.xlu0 %4514
      %4516 = vrot.lane.b32.xlu0 %v4369, 32
      %v4517 = vpop.permute.xlu0 %4516
      %4518 = vrot.lane.b32.xlu0 %v4370, 32
      %v4519 = vpop.permute.xlu0 %4518
      %4520 = vrot.lane.b32.xlu0 %v4371, 32
      %v4521 = vpop.permute.xlu0 %4520
      %4522 = vrot.lane.b32.xlu0 %v4372, 32
      %v4523 = vpop.permute.xlu0 %4522
      %4524 = vrot.lane.b32.xlu0 %v4373, 32
      %v4525 = vpop.permute.xlu0 %4524
      %4526 = vrot.lane.b32.xlu0 %v4374, 32
      %v4527 = vpop.permute.xlu0 %4526
      %4544 = vrot.lane.b32.xlu0 %v4375, 40
      %v4545 = vpop.permute.xlu0 %4544
      %4546 = vrot.lane.b32.xlu0 %v4376, 40
      %v4547 = vpop.permute.xlu0 %4546
      %4548 = vrot.lane.b32.xlu0 %v4377, 40
      %v4549 = vpop.permute.xlu0 %4548
      %4550 = vrot.lane.b32.xlu0 %v4378, 40
      %v4551 = vpop.permute.xlu0 %4550
      %4552 = vrot.lane.b32.xlu0 %v4379, 40
      %v4553 = vpop.permute.xlu0 %4552
      %4554 = vrot.lane.b32.xlu0 %v4380, 40
      %v4555 = vpop.permute.xlu0 %4554
      %4556 = vrot.lane.b32.xlu0 %v4381, 40
      %v4557 = vpop.permute.xlu0 %4556
      %4558 = vrot.lane.b32.xlu0 %v4382, 40
      %v4559 = vpop.permute.xlu0 %4558
      %4576 = vrot.lane.b32.xlu0 %v4384, 48
      %v4577 = vpop.permute.xlu0 %4576
      %4578 = vrot.lane.b32.xlu0 %v4385, 48
      %v4579 = vpop.permute.xlu0 %4578
      %4580 = vrot.lane.b32.xlu0 %v4386, 48
      %v4581 = vpop.permute.xlu0 %4580
      %4582 = vrot.lane.b32.xlu0 %v4387, 48
      %v4583 = vpop.permute.xlu0 %4582
      %4584 = vrot.lane.b32.xlu0 %v4388, 48
      %v4585 = vpop.permute.xlu0 %4584
      %4586 = vrot.lane.b32.xlu0 %v4389, 48
      %v4587 = vpop.permute.xlu0 %4586
      %4588 = vrot.lane.b32.xlu0 %v4390, 48
      %v4589 = vpop.permute.xlu0 %4588
      %4590 = vrot.lane.b32.xlu0 %v4391, 48
      %v4591 = vpop.permute.xlu0 %4590
      %4608 = vrot.lane.b32.xlu0 %v4392, 56
      %v4609 = vpop.permute.xlu0 %4608
      %4610 = vrot.lane.b32.xlu0 %v4393, 56
      %v4611 = vpop.permute.xlu0 %4610
      %4612 = vrot.lane.b32.xlu0 %v4394, 56
      %v4613 = vpop.permute.xlu0 %4612
      %4614 = vrot.lane.b32.xlu0 %v4395, 56
      %v4615 = vpop.permute.xlu0 %4614
      %4616 = vrot.lane.b32.xlu0 %v4396, 56
      %v4617 = vpop.permute.xlu0 %4616
      %4618 = vrot.lane.b32.xlu0 %v4397, 56
      %v4619 = vpop.permute.xlu0 %4618
      %4620 = vrot.lane.b32.xlu0 %v4398, 56
      %v4621 = vpop.permute.xlu0 %4620
      %4622 = vrot.lane.b32.xlu0 %v4399, 56
      %v4623 = vpop.permute.xlu0 %4622
      %4640 = vrot.lane.b32.xlu0 %v4400, 64
      %v4641 = vpop.permute.xlu0 %4640
      %4642 = vrot.lane.b32.xlu0 %v4401, 64
      %v4643 = vpop.permute.xlu0 %4642
      %4644 = vrot.lane.b32.xlu0 %v4402, 64
      %v4645 = vpop.permute.xlu0 %4644
      %4646 = vrot.lane.b32.xlu0 %v4403, 64
      %v4647 = vpop.permute.xlu0 %4646
      %4648 = vrot.lane.b32.xlu0 %v4404, 64
      %v4649 = vpop.permute.xlu0 %4648
      %4650 = vrot.lane.b32.xlu0 %v4405, 64
      %v4651 = vpop.permute.xlu0 %4650
      %4652 = vrot.lane.b32.xlu0 %v4406, 64
      %v4653 = vpop.permute.xlu0 %4652
      %4654 = vrot.lane.b32.xlu0 %v4407, 64
      %v4655 = vpop.permute.xlu0 %4654
      %v4664 = vsel %vm1564, %v4334, %v4417
      %v4665 = vsel %vm1564, %v4335, %v4419
      %v4666 = vsel %vm1564, %v4336, %v4421
      %v4667 = vsel %vm1564, %v4337, %v4423
      %v4668 = vsel %vm1564, %v4338, %v4425
      %v4669 = vsel %vm1564, %v4339, %v4427
      %v4670 = vsel %vm1564, %v4340, %v4429
      %v4671 = vsel %vm1564, %v4341, %v4431
      %v4672 = vsel %vm1581, %v4664, %v4449
      %v4673 = vsel %vm1581, %v4665, %v4451
      %v4674 = vsel %vm1581, %v4666, %v4453
      %v4675 = vsel %vm1581, %v4667, %v4455
      %v4676 = vsel %vm1581, %v4668, %v4457
      %v4677 = vsel %vm1581, %v4669, %v4459
      %v4678 = vsel %vm1581, %v4670, %v4461
      %v4679 = vsel %vm1581, %v4671, %v4463
      %v4680 = vsel %vm1598, %v4672, %v4481
      %v4681 = vsel %vm1598, %v4673, %v4483
      %v4682 = vsel %vm1598, %v4674, %v4485
      %v4683 = vsel %vm1598, %v4675, %v4487
      %v4684 = vsel %vm1598, %v4676, %v4489
      %v4685 = vsel %vm1598, %v4677, %v4491
      %v4686 = vsel %vm1598, %v4678, %v4493
      %v4687 = vsel %vm1598, %v4679, %v4495
      %v4688 = vsel %vm864, %v4680, %v4513
      %v4689 = vsel %vm864, %v4681, %v4515
      %v4690 = vsel %vm864, %v4682, %v4517
      %v4691 = vsel %vm864, %v4683, %v4519
      %v4692 = vsel %vm864, %v4684, %v4521
      %v4693 = vsel %vm864, %v4685, %v4523
      %v4694 = vsel %vm864, %v4686, %v4525
      %v4695 = vsel %vm864, %v4687, %v4527
      %v4696 = vsel %vm1631, %v4688, %v4545
      %v4697 = vsel %vm1631, %v4689, %v4547
      %v4698 = vsel %vm1631, %v4690, %v4549
      %v4699 = vsel %vm1631, %v4691, %v4551
      %v4700 = vsel %vm1631, %v4692, %v4553
      %v4701 = vsel %vm1631, %v4693, %v4555
      %v4702 = vsel %vm1631, %v4694, %v4557
      %v4703 = vsel %vm1631, %v4695, %v4559
      %v4704 = vsel %vm1648, %v4696, %v4577
      %v4705 = vsel %vm1648, %v4697, %v4579
      %v4706 = vsel %vm1648, %v4698, %v4581
      %v4707 = vsel %vm1648, %v4699, %v4583
      %v4708 = vsel %vm1648, %v4700, %v4585
      %v4709 = vsel %vm1648, %v4701, %v4587
      %v4710 = vsel %vm1648, %v4702, %v4589
      %v4711 = vsel %vm1648, %v4703, %v4591
      %v4712 = vsel %vm1665, %v4704, %v4609
      %v4713 = vsel %vm1665, %v4705, %v4611
      %v4714 = vsel %vm1665, %v4706, %v4613
      %v4715 = vsel %vm1665, %v4707, %v4615
      %v4716 = vsel %vm1665, %v4708, %v4617
      %v4717 = vsel %vm1665, %v4709, %v4619
      %v4718 = vsel %vm1665, %v4710, %v4621
      %v4719 = vsel %vm1665, %v4711, %v4623
      %v4720 = vsel %vm1682, %v4712, %v4641
      %v4721 = vsel %vm1682, %v4713, %v4643
      %v4722 = vsel %vm1682, %v4714, %v4645
      %v4723 = vsel %vm1682, %v4715, %v4647
      %v4724 = vsel %vm1682, %v4716, %v4649
      %v4725 = vsel %vm1682, %v4717, %v4651
      %v4726 = vsel %vm1682, %v4718, %v4653
      %v4727 = vsel %vm1682, %v4719, %v4655
      %v4728 = vpack.c.bf16 %v4721, %v4720
      %v4729 = vpack.c.bf16 %v4723, %v4722
      %v4730 = vpack.c.bf16 %v4725, %v4724
      %v4731 = vpack.c.bf16 %v4727, %v4726
      %v4732 = vld [vmem:[%s13] sm:$0xf]
      %v4733 = vld [vmem:[%s13 + $0x4] sm:$0xf]
      %v4734 = vld [vmem:[%s13 + $0x8] sm:$0xf]
      %v4735 = vld [vmem:[%s13 + $0xc] sm:$0xf]
      %v4736 = vld [vmem:[%s13 + $0x10] sm:$0xf]
      %v4737 = vld [vmem:[%s13 + $0x14] sm:$0xf]
      %v4738 = vld [vmem:[%s13 + $0x18] sm:$0xf]
      %v4739 = vld [vmem:[%s13 + $0x1c] sm:$0xf]
      %v4740 = vld [vmem:[%s13 + $0x20] sm:$0xf]
      %v4741 = vld [vmem:[%s14] sm:$0x1]
      %v4743 = vlaneseq
      %v4744 = vshrl.u32 %v4743, 7
      %v4745 = vsub.s32 0, %v4744
      %v4746 = vrot.slane %v4741, %v4745
      %v4757 = vunpack.c.l.b16 %v4732
      %v4758 = vunpack.c.l.b16 %v4733
      %v4759 = vunpack.c.l.b16 %v4734
      %v4760 = vunpack.c.l.b16 %v4735
      %v4761 = vunpack.c.l.b16 %v4736
      %v4762 = vunpack.c.l.b16 %v4737
      %v4763 = vunpack.c.l.b16 %v4738
      %v4764 = vunpack.c.l.b16 %v4739
      %v4765 = vunpack.c.l.b16 %v4740
      %v4766 = vpack.c.b16 %v4758, %v4757
      %v4767 = vpack.c.b16 %v4760, %v4759
      %v4768 = vpack.c.b16 %v4762, %v4761
      %v4769 = vpack.c.b16 %v4764, %v4763
      %v4770 = vpack.c.b16 %v4765, %v4765
      %v4776 = vsel %vm1750, %v4728, 0
      %v4779 = vsel %vm1750, %v4729, 0
      %v4782 = vsel %vm1750, %v4730, 0
      %v4785 = vsel %vm1750, %v4731, 0
      %v4788 = vsel %vm1775, %v4770, 0
      %4790 = vmatprep.subr.bf16.mxu0 0
      %4791 = vmatpush1.bf16.msra.mxu0 0
      %4792 = vmatprep.subr.bf16.mxu0 0
      %4793 = vmatpush1.bf16.msra.mxu0 0
      %4794 = vmatprep.subr.bf16.mxu0 0
      %4795 = vmatpush1.bf16.msra.mxu0 0
      %4796 = vmatprep.subr.bf16.mxu0 0
      %4797 = vmatpush1.bf16.msra.mxu0 %v4788
      %4798 = vmatprep.subr.bf16.mxu0 0
      %4799 = vmatpush1.bf16.msra.mxu0 %v4769
      %4800 = vmatprep.subr.bf16.mxu0 0
      %4801 = vmatpush1.bf16.msra.mxu0 %v4768
      %4802 = vmatprep.subr.bf16.mxu0 0
      %4803 = vmatpush1.bf16.msra.mxu0 %v4767
      %4804 = vmatprep.subr.bf16.mxu0 0
      %4805 = vmatpush1.bf16.msra.mxu0 %v4766
      %4806 = vmatprep.subr.bf16.mxu0 0
      %4807 = vmatpush2.bf16.msra.mxu0 0
      %4808 = vmatprep.subr.bf16.mxu0 0
      %4809 = vmatpush2.bf16.msra.mxu0 0
      %4810 = vmatprep.subr.bf16.mxu0 0
      %4811 = vmatpush2.bf16.msra.mxu0 0
      %4812 = vmatprep.subr.bf16.mxu0 0
      %4813 = vmatpush2.bf16.msra.mxu0 0
      %4814 = vmatprep.subr.bf16.mxu0 0
      %4815 = vmatpush2.bf16.msra.mxu0 0
      %4816 = vmatprep.subr.bf16.mxu0 0
      %4817 = vmatpush2.bf16.msra.mxu0 0
      %4818 = vmatprep.subr.bf16.mxu0 0
      %4819 = vmatpush2.bf16.msra.mxu0 0
      %4820 = vmatprep.subr.bf16.mxu0 0
      %4821 = vmatpush2.bf16.msra.mxu0 0
      %4822 = vmatprep.mubr.bf16.mxu0 0
      %4823 = vmatmul.mubr.bf16.gmra.mxu0 %v4776
      %v4824 = vpop.f32.mrf.mxu0
      %v4825 = vadd.f32 %v4746, %v4824
      %v4826 = vpop.f32.mrf.mxu0
      %v4827 = vpop.f32.mrf.mxu0
      %v4828 = vadd.f32 %v4746, %v4827
      %v4829 = vpop.f32.mrf.mxu0
      %4830 = vmatprep.mubr.bf16.mxu0 0
      %4831 = vmatmul.mubr.bf16.gmra.mxu0 %v4779
      %v4832 = vpop.f32.mrf.mxu0
      %v4833 = vadd.f32 %v4746, %v4832
      %v4834 = vpop.f32.mrf.mxu0
      %v4835 = vpop.f32.mrf.mxu0
      %v4836 = vadd.f32 %v4746, %v4835
      %v4837 = vpop.f32.mrf.mxu0
      %4838 = vmatprep.mubr.bf16.mxu0 0
      %4839 = vmatmul.mubr.bf16.gmra.mxu0 %v4782
      %v4840 = vpop.f32.mrf.mxu0
      %v4841 = vadd.f32 %v4746, %v4840
      %v4842 = vpop.f32.mrf.mxu0
      %v4843 = vpop.f32.mrf.mxu0
      %v4844 = vadd.f32 %v4746, %v4843
      %v4845 = vpop.f32.mrf.mxu0
      %4846 = vmatprep.mubr.bf16.mxu0 0
      %4847 = vmatmul.mubr.bf16.gmra.mxu0 %v4785
      %v4848 = vpop.f32.mrf.mxu0
      %v4849 = vadd.f32 %v4746, %v4848
      %v4850 = vpop.f32.mrf.mxu0
      %v4851 = vpop.f32.mrf.mxu0
      %v4852 = vadd.f32 %v4746, %v4851
      %v4853 = vpop.f32.mrf.mxu0
      %4854 = vdwg.mxu0
      %v4855 = vsub.f32 0.0, %v4825
      %v4856 = vsub.f32 0.0, %v4828
      %v4857 = vsub.f32 0.0, %v4833
      %v4858 = vsub.f32 0.0, %v4836
      %v4859 = vsub.f32 0.0, %v4841
      %v4860 = vsub.f32 0.0, %v4844
      %v4861 = vsub.f32 0.0, %v4849
      %v4862 = vsub.f32 0.0, %v4852
      %v4863 = vmul.f32 %v4855, 1.442695
      %v4864 = vpow.pop %v4863
      %v4865 = vmul.f32 %v4856, 1.442695
      %v4866 = vpow.pop %v4865
      %v4867 = vmul.f32 %v4857, 1.442695
      %v4868 = vpow.pop %v4867
      %v4869 = vmul.f32 %v4858, 1.442695
      %v4870 = vpow.pop %v4869
      %v4871 = vmul.f32 %v4859, 1.442695
      %v4872 = vpow.pop %v4871
      %v4873 = vmul.f32 %v4860, 1.442695
      %v4874 = vpow.pop %v4873
      %v4875 = vmul.f32 %v4861, 1.442695
      %v4876 = vpow.pop %v4875
      %v4877 = vmul.f32 %v4862, 1.442695
      %v4878 = vpow.pop %v4877
      %v4879 = vadd.f32 %v4864, 1.0
      %v4880 = vadd.f32 %v4866, 1.0
      %v4881 = vadd.f32 %v4868, 1.0
      %v4882 = vadd.f32 %v4870, 1.0
      %v4883 = vadd.f32 %v4872, 1.0
      %v4884 = vadd.f32 %v4874, 1.0
      %v4885 = vadd.f32 %v4876, 1.0
      %v4886 = vadd.f32 %v4878, 1.0
      %v4887 = vrcp.pop %v4879
      %v4888 = vrcp.pop %v4880
      %v4889 = vrcp.pop %v4881
      %v4890 = vrcp.pop %v4882
      %v4891 = vrcp.pop %v4883
      %v4892 = vrcp.pop %v4884
      %v4893 = vrcp.pop %v4885
      %v4894 = vrcp.pop %v4886
      %v4895 = vmul.f32 %v4825, %v4887
      %v4896 = vmul.f32 %v4828, %v4888
      %v4897 = vmul.f32 %v4833, %v4889
      %v4898 = vmul.f32 %v4836, %v4890
      %v4899 = vmul.f32 %v4841, %v4891
      %v4900 = vmul.f32 %v4844, %v4892
      %v4901 = vmul.f32 %v4849, %v4893
      %v4902 = vmul.f32 %v4852, %v4894
      %v4903 = vpack.c.bf16 %v4184, %v4183
      %v4904 = vpack.c.bf16 %v4186, %v4185
      %v4905 = vpack.c.bf16 %v4188, %v4187
      %v4906 = vpack.c.bf16 %v4190, %v4189
      %v4907 = vpack.c.bf16 %v4192, %v4191
      %v4908 = vpack.c.bf16 %v4194, %v4193
      %v4909 = vpack.c.bf16 %v4196, %v4195
      %v4910 = vpack.c.bf16 %v4198, %v4197
      %v4911 = vld [vmem:[%s21] sm:$0xf]
      %v4912 = vld [vmem:[%s21 + $0x4] sm:$0xf]
      %v4913 = vld [vmem:[%s21 + $0x8] sm:$0xf]
      %v4914 = vld [vmem:[%s21 + $0xc] sm:$0xf]
      %v4919 = vunpack.c.l.b16 %v4911
      %v4920 = vunpack.c.l.b16 %v4912
      %v4921 = vunpack.c.l.b16 %v4913
      %v4922 = vunpack.c.l.b16 %v4914
      %v4923 = vpack.c.b16 %v4920, %v4919
      %v4924 = vpack.c.b16 %v4922, %v4921
      %v4928 = vsel %vm864, %v4903, 0
      %v4931 = vsel %vm864, %v4904, 0
      %v4934 = vsel %vm864, %v4905, 0
      %v4937 = vsel %vm864, %v4906, 0
      %v4940 = vsel %vm864, %v4907, 0
      %v4943 = vsel %vm864, %v4908, 0
      %v4946 = vsel %vm864, %v4909, 0
      %v4949 = vsel %vm864, %v4910, 0
      %4951 = vmatprep.subr.bf16.mxu0 0
      %4952 = vmatpush1.bf16.msra.mxu0 0
      %4953 = vmatprep.subr.bf16.mxu0 0
      %4954 = vmatpush1.bf16.msra.mxu0 0
      %4955 = vmatprep.subr.bf16.mxu0 0
      %4956 = vmatpush1.bf16.msra.mxu0 0
      %4957 = vmatprep.subr.bf16.mxu0 0
      %4958 = vmatpush1.bf16.msra.mxu0 0
      %4959 = vmatprep.subr.bf16.mxu0 0
      %4960 = vmatpush1.bf16.msra.mxu0 0
      %4961 = vmatprep.subr.bf16.mxu0 0
      %4962 = vmatpush1.bf16.msra.mxu0 0
      %4963 = vmatprep.subr.bf16.mxu0 0
      %4964 = vmatpush1.bf16.msra.mxu0 %v4924
      %4965 = vmatprep.subr.bf16.mxu0 0
      %4966 = vmatpush1.bf16.msra.mxu0 %v4923
      %4967 = vmatprep.subr.bf16.mxu0 0
      %4968 = vmatpush2.bf16.msra.mxu0 0
      %4969 = vmatprep.subr.bf16.mxu0 0
      %4970 = vmatpush2.bf16.msra.mxu0 0
      %4971 = vmatprep.subr.bf16.mxu0 0
      %4972 = vmatpush2.bf16.msra.mxu0 0
      %4973 = vmatprep.subr.bf16.mxu0 0
      %4974 = vmatpush2.bf16.msra.mxu0 0
      %4975 = vmatprep.subr.bf16.mxu0 0
      %4976 = vmatpush2.bf16.msra.mxu0 0
      %4977 = vmatprep.subr.bf16.mxu0 0
      %4978 = vmatpush2.bf16.msra.mxu0 0
      %4979 = vmatprep.subr.bf16.mxu0 0
      %4980 = vmatpush2.bf16.msra.mxu0 0
      %4981 = vmatprep.subr.bf16.mxu0 0
      %4982 = vmatpush2.bf16.msra.mxu0 0
      %4983 = vmatprep.mubr.bf16.mxu0 0
      %4984 = vmatmul.mubr.bf16.gmra.mxu0 %v4928
      %v4985 = vpop.f32.mrf.mxu0
      %v4986 = vadd.f32 0.0, %v4985
      %v4987 = vpop.f32.mrf.mxu0
      %v4988 = vpop.f32.mrf.mxu0
      %v4989 = vadd.f32 0.0, %v4988
      %v4990 = vpop.f32.mrf.mxu0
      %4991 = vmatprep.mubr.bf16.mxu0 0
      %4992 = vmatmul.mubr.bf16.gmra.mxu0 %v4931
      %v4993 = vpop.f32.mrf.mxu0
      %v4994 = vadd.f32 0.0, %v4993
      %v4995 = vpop.f32.mrf.mxu0
      %v4996 = vpop.f32.mrf.mxu0
      %v4997 = vadd.f32 0.0, %v4996
      %v4998 = vpop.f32.mrf.mxu0
      %4999 = vmatprep.mubr.bf16.mxu0 0
      %5000 = vmatmul.mubr.bf16.gmra.mxu0 %v4934
      %v5001 = vpop.f32.mrf.mxu0
      %v5002 = vadd.f32 0.0, %v5001
      %v5003 = vpop.f32.mrf.mxu0
      %v5004 = vpop.f32.mrf.mxu0
      %v5005 = vadd.f32 0.0, %v5004
      %v5006 = vpop.f32.mrf.mxu0
      %5007 = vmatprep.mubr.bf16.mxu0 0
      %5008 = vmatmul.mubr.bf16.gmra.mxu0 %v4937
      %v5009 = vpop.f32.mrf.mxu0
      %v5010 = vadd.f32 0.0, %v5009
      %v5011 = vpop.f32.mrf.mxu0
      %v5012 = vpop.f32.mrf.mxu0
      %v5013 = vadd.f32 0.0, %v5012
      %v5014 = vpop.f32.mrf.mxu0
      %5015 = vmatprep.mubr.bf16.mxu0 0
      %5016 = vmatmul.mubr.bf16.gmra.mxu0 %v4940
      %v5017 = vpop.f32.mrf.mxu0
      %v5018 = vadd.f32 0.0, %v5017
      %v5019 = vpop.f32.mrf.mxu0
      %v5020 = vpop.f32.mrf.mxu0
      %v5021 = vadd.f32 0.0, %v5020
      %v5022 = vpop.f32.mrf.mxu0
      %5023 = vmatprep.mubr.bf16.mxu0 0
      %5024 = vmatmul.mubr.bf16.gmra.mxu0 %v4943
      %v5025 = vpop.f32.mrf.mxu0
      %v5026 = vadd.f32 0.0, %v5025
      %v5027 = vpop.f32.mrf.mxu0
      %v5028 = vpop.f32.mrf.mxu0
      %v5029 = vadd.f32 0.0, %v5028
      %v5030 = vpop.f32.mrf.mxu0
      %5031 = vmatprep.mubr.bf16.mxu0 0
      %5032 = vmatmul.mubr.bf16.gmra.mxu0 %v4946
      %v5033 = vpop.f32.mrf.mxu0
      %v5034 = vadd.f32 0.0, %v5033
      %v5035 = vpop.f32.mrf.mxu0
      %v5036 = vpop.f32.mrf.mxu0
      %v5037 = vadd.f32 0.0, %v5036
      %v5038 = vpop.f32.mrf.mxu0
      %5039 = vmatprep.mubr.bf16.mxu0 0
      %5040 = vmatmul.mubr.bf16.gmra.mxu0 %v4949
      %v5041 = vpop.f32.mrf.mxu0
      %v5042 = vadd.f32 0.0, %v5041
      %v5043 = vpop.f32.mrf.mxu0
      %v5044 = vpop.f32.mrf.mxu0
      %v5045 = vadd.f32 0.0, %v5044
      %v5046 = vpop.f32.mrf.mxu0
      %5047 = vdwg.mxu0
      %v5048 = vpack.c.bf16 %v4895, %v4329
      %v5049 = vpack.c.bf16 %v4897, %v4896
      %v5050 = vpack.c.bf16 %v4899, %v4898
      %v5051 = vpack.c.bf16 %v4901, %v4900
      %v5052 = vpack.c.bf16 %v4902, %v4902
      %v5053 = vld [vmem:[%s22] sm:$0xf]
      %v5054 = vld [vmem:[%s22 + $0x4] sm:$0xf]
      %v5055 = vld [vmem:[%s22 + $0x8] sm:$0xf]
      %v5056 = vld [vmem:[%s22 + $0xc] sm:$0xf]
      %v5061 = vunpack.c.l.b16 %v5053
      %v5062 = vunpack.c.l.b16 %v5054
      %v5063 = vunpack.c.l.b16 %v5055
      %v5064 = vunpack.c.l.b16 %v5056
      %v5065 = vpack.c.b16 %v5062, %v5061
      %v5066 = vpack.c.b16 %v5064, %v5063
      %v5070 = vsel %vm864, %v5048, 0
      %v5073 = vsel %vm864, %v5049, 0
      %v5076 = vsel %vm864, %v5050, 0
      %v5079 = vsel %vm864, %v5051, 0
      %v5082 = vsel %vm864, %v5052, 0
      %5084 = vmatprep.subr.bf16.mxu0 0
      %5085 = vmatpush1.bf16.msra.mxu0 0
      %5086 = vmatprep.subr.bf16.mxu0 0
      %5087 = vmatpush1.bf16.msra.mxu0 0
      %5088 = vmatprep.subr.bf16.mxu0 0
      %5089 = vmatpush1.bf16.msra.mxu0 0
      %5090 = vmatprep.subr.bf16.mxu0 0
      %5091 = vmatpush1.bf16.msra.mxu0 0
      %5092 = vmatprep.subr.bf16.mxu0 0
      %5093 = vmatpush1.bf16.msra.mxu0 0
      %5094 = vmatprep.subr.bf16.mxu0 0
      %5095 = vmatpush1.bf16.msra.mxu0 0
      %5096 = vmatprep.subr.bf16.mxu0 0
      %5097 = vmatpush1.bf16.msra.mxu0 %v5066
      %5098 = vmatprep.subr.bf16.mxu0 0
      %5099 = vmatpush1.bf16.msra.mxu0 %v5065
      %5100 = vmatprep.subr.bf16.mxu0 0
      %5101 = vmatpush2.bf16.msra.mxu0 0
      %5102 = vmatprep.subr.bf16.mxu0 0
      %5103 = vmatpush2.bf16.msra.mxu0 0
      %5104 = vmatprep.subr.bf16.mxu0 0
      %5105 = vmatpush2.bf16.msra.mxu0 0
      %5106 = vmatprep.subr.bf16.mxu0 0
      %5107 = vmatpush2.bf16.msra.mxu0 0
      %5108 = vmatprep.subr.bf16.mxu0 0
      %5109 = vmatpush2.bf16.msra.mxu0 0
      %5110 = vmatprep.subr.bf16.mxu0 0
      %5111 = vmatpush2.bf16.msra.mxu0 0
      %5112 = vmatprep.subr.bf16.mxu0 0
      %5113 = vmatpush2.bf16.msra.mxu0 0
      %5114 = vmatprep.subr.bf16.mxu0 0
      %5115 = vmatpush2.bf16.msra.mxu0 0
      %5116 = vmatprep.mubr.bf16.mxu0 0
      %5117 = vmatmul.mubr.bf16.gmra.mxu0 %v5070
      %v5118 = vpop.f32.mrf.mxu0
      %v5119 = vadd.f32 0.0, %v5118
      %v5120 = vpop.f32.mrf.mxu0
      %v5121 = vpop.f32.mrf.mxu0
      %v5122 = vadd.f32 0.0, %v5121
      %v5123 = vpop.f32.mrf.mxu0
      %5124 = vmatprep.mubr.bf16.mxu0 0
      %5125 = vmatmul.mubr.bf16.gmra.mxu0 %v5073
      %v5126 = vpop.f32.mrf.mxu0
      %v5127 = vadd.f32 0.0, %v5126
      %v5128 = vpop.f32.mrf.mxu0
      %v5129 = vpop.f32.mrf.mxu0
      %v5130 = vadd.f32 0.0, %v5129
      %v5131 = vpop.f32.mrf.mxu0
      %5132 = vmatprep.mubr.bf16.mxu0 0
      %5133 = vmatmul.mubr.bf16.gmra.mxu0 %v5076
      %v5134 = vpop.f32.mrf.mxu0
      %v5135 = vadd.f32 0.0, %v5134
      %v5136 = vpop.f32.mrf.mxu0
      %v5137 = vpop.f32.mrf.mxu0
      %v5138 = vadd.f32 0.0, %v5137
      %v5139 = vpop.f32.mrf.mxu0
      %5140 = vmatprep.mubr.bf16.mxu0 0
      %5141 = vmatmul.mubr.bf16.gmra.mxu0 %v5079
      %v5142 = vpop.f32.mrf.mxu0
      %v5143 = vadd.f32 0.0, %v5142
      %v5144 = vpop.f32.mrf.mxu0
      %v5145 = vpop.f32.mrf.mxu0
      %v5146 = vadd.f32 0.0, %v5145
      %v5147 = vpop.f32.mrf.mxu0
      %5148 = vmatprep.mubr.bf16.mxu0 0
      %5149 = vmatmul.mubr.bf16.gmra.mxu0 %v5082
      %v5150 = vpop.f32.mrf.mxu0
      %v5151 = vadd.f32 0.0, %v5150
      %v5152 = vpop.f32.mrf.mxu0
      %v5153 = vpop.f32.mrf.mxu0
      %v5154 = vpop.f32.mrf.mxu0
      %5155 = vdwg.mxu0
      %v5156 = vpack.c.bf16 %v4989, %v4986
      %v5157 = vpack.c.bf16 %v4997, %v4994
      %v5158 = vpack.c.bf16 %v5005, %v5002
      %v5159 = vpack.c.bf16 %v5013, %v5010
      %v5160 = vpack.c.bf16 %v5021, %v5018
      %v5161 = vpack.c.bf16 %v5029, %v5026
      %v5162 = vpack.c.bf16 %v5037, %v5034
      %v5163 = vpack.c.bf16 %v5045, %v5042
      %v5164 = vpack.c.bf16 %v5122, %v5119
      %v5165 = vpack.c.bf16 %v5130, %v5127
      %v5166 = vpack.c.bf16 %v5138, %v5135
      %v5167 = vpack.c.bf16 %v5146, %v5143
      %v5168 = vpack.c.bf16 %v5151, %v5151
      %v5170 = vsel %vm864, %v5156, 0
      %v5173 = vsel %vm864, %v5157, 0
      %v5176 = vsel %vm864, %v5158, 0
      %v5179 = vsel %vm864, %v5159, 0
      %v5182 = vsel %vm864, %v5160, 0
      %v5185 = vsel %vm864, %v5161, 0
      %v5188 = vsel %vm864, %v5162, 0
      %v5191 = vsel %vm864, %v5163, 0
      %v5194 = vsel %vm864, %v5164, 0
      %v5197 = vsel %vm864, %v5165, 0
      %v5200 = vsel %vm864, %v5166, 0
      %v5203 = vsel %vm864, %v5167, 0
      %v5206 = vsel %vm864, %v5168, 0
      %5208 = vmatprep.subr.bf16.mxu0 0
      %5209 = vmatpush1.bf16.xpose.msra.mxu0 0
      %5210 = vmatprep.subr.bf16.mxu0 0
      %5211 = vmatpush1.bf16.xpose.msra.mxu0 0
      %5212 = vmatprep.subr.bf16.mxu0 0
      %5213 = vmatpush1.bf16.xpose.msra.mxu0 0
      %5214 = vmatprep.subr.bf16.mxu0 0
      %5215 = vmatpush1.bf16.xpose.msra.mxu0 %v5206
      %5216 = vmatprep.subr.bf16.mxu0 0
      %5217 = vmatpush1.bf16.xpose.msra.mxu0 %v5203
      %5218 = vmatprep.subr.bf16.mxu0 0
      %5219 = vmatpush1.bf16.xpose.msra.mxu0 %v5200
      %5220 = vmatprep.subr.bf16.mxu0 0
      %5221 = vmatpush1.bf16.xpose.msra.mxu0 %v5197
      %5222 = vmatprep.subr.bf16.mxu0 0
      %5223 = vmatpush1.bf16.xpose.msra.mxu0 %v5194
      %5224 = vmatprep.subr.bf16.mxu0 0
      %5225 = vmatpush2.bf16.xpose.msra.mxu0 0
      %5226 = vmatprep.subr.bf16.mxu0 0
      %5227 = vmatpush2.bf16.xpose.msra.mxu0 0
      %5228 = vmatprep.subr.bf16.mxu0 0
      %5229 = vmatpush2.bf16.xpose.msra.mxu0 0
      %5230 = vmatprep.subr.bf16.mxu0 0
      %5231 = vmatpush2.bf16.xpose.msra.mxu0 0
      %5232 = vmatprep.subr.bf16.mxu0 0
      %5233 = vmatpush2.bf16.xpose.msra.mxu0 0
      %5234 = vmatprep.subr.bf16.mxu0 0
      %5235 = vmatpush2.bf16.xpose.msra.mxu0 0
      %5236 = vmatprep.subr.bf16.mxu0 0
      %5237 = vmatpush2.bf16.xpose.msra.mxu0 0
      %5238 = vmatprep.subr.bf16.mxu0 0
      %5239 = vmatpush2.bf16.xpose.msra.mxu0 0
      %5240 = vmatprep.mubr.bf16.mxu0 0
      %5241 = vmatmul.mubr.bf16.gmra.mxu0 %v5170
      %v5242 = vpop.f32.mrf.mxu0
      %v5243 = vadd.f32 0.0, %v5242
      %v5244 = vpop.f32.mrf.mxu0
      %v5245 = vpop.f32.mrf.mxu0
      %v5246 = vadd.f32 0.0, %v5245
      %v5247 = vpop.f32.mrf.mxu0
      %5248 = vmatprep.mubr.bf16.mxu0 0
      %5249 = vmatmul.mubr.bf16.gmra.mxu0 %v5173
      %v5250 = vpop.f32.mrf.mxu0
      %v5251 = vadd.f32 0.0, %v5250
      %v5252 = vpop.f32.mrf.mxu0
      %v5253 = vpop.f32.mrf.mxu0
      %v5254 = vadd.f32 0.0, %v5253
      %v5255 = vpop.f32.mrf.mxu0
      %5256 = vmatprep.mubr.bf16.mxu0 0
      %5257 = vmatmul.mubr.bf16.gmra.mxu0 %v5176
      %v5258 = vpop.f32.mrf.mxu0
      %v5259 = vadd.f32 0.0, %v5258
      %v5260 = vpop.f32.mrf.mxu0
      %v5261 = vpop.f32.mrf.mxu0
      %v5262 = vadd.f32 0.0, %v5261
      %v5263 = vpop.f32.mrf.mxu0
      %5264 = vmatprep.mubr.bf16.mxu0 0
      %5265 = vmatmul.mubr.bf16.gmra.mxu0 %v5179
      %v5266 = vpop.f32.mrf.mxu0
      %v5267 = vadd.f32 0.0, %v5266
      %v5268 = vpop.f32.mrf.mxu0
      %v5269 = vpop.f32.mrf.mxu0
      %v5270 = vadd.f32 0.0, %v5269
      %v5271 = vpop.f32.mrf.mxu0
      %5272 = vmatprep.mubr.bf16.mxu0 0
      %5273 = vmatmul.mubr.bf16.gmra.mxu0 %v5182
      %v5274 = vpop.f32.mrf.mxu0
      %v5275 = vadd.f32 0.0, %v5274
      %v5276 = vpop.f32.mrf.mxu0
      %v5277 = vpop.f32.mrf.mxu0
      %v5278 = vadd.f32 0.0, %v5277
      %v5279 = vpop.f32.mrf.mxu0
      %5280 = vmatprep.mubr.bf16.mxu0 0
      %5281 = vmatmul.mubr.bf16.gmra.mxu0 %v5185
      %v5282 = vpop.f32.mrf.mxu0
      %v5283 = vadd.f32 0.0, %v5282
      %v5284 = vpop.f32.mrf.mxu0
      %v5285 = vpop.f32.mrf.mxu0
      %v5286 = vadd.f32 0.0, %v5285
      %v5287 = vpop.f32.mrf.mxu0
      %5288 = vmatprep.mubr.bf16.mxu0 0
      %5289 = vmatmul.mubr.bf16.gmra.mxu0 %v5188
      %v5290 = vpop.f32.mrf.mxu0
      %v5291 = vadd.f32 0.0, %v5290
      %v5292 = vpop.f32.mrf.mxu0
      %v5293 = vpop.f32.mrf.mxu0
      %v5294 = vadd.f32 0.0, %v5293
      %v5295 = vpop.f32.mrf.mxu0
      %5296 = vmatprep.mubr.bf16.mxu0 0
      %5297 = vmatmul.mubr.bf16.gmra.mxu0 %v5191
      %v5298 = vpop.f32.mrf.mxu0
      %v5299 = vadd.f32 0.0, %v5298
      %v5300 = vpop.f32.mrf.mxu0
      %v5301 = vpop.f32.mrf.mxu0
      %v5302 = vadd.f32 0.0, %v5301
      %v5303 = vpop.f32.mrf.mxu0
      %5304 = vdwg.mxu0
      %v5305 = vmul.f32 %v5243, 0.17677669
      %v5306 = vmul.f32 %v5246, 0.17677669
      %v5307 = vmul.f32 %v5251, 0.17677669
      %v5308 = vmul.f32 %v5254, 0.17677669
      %v5309 = vmul.f32 %v5259, 0.17677669
      %v5310 = vmul.f32 %v5262, 0.17677669
      %v5311 = vmul.f32 %v5267, 0.17677669
      %v5312 = vmul.f32 %v5270, 0.17677669
      %v5313 = vmul.f32 %v5275, 0.17677669
      %v5314 = vmul.f32 %v5278, 0.17677669
      %v5315 = vmul.f32 %v5283, 0.17677669
      %v5316 = vmul.f32 %v5286, 0.17677669
      %v5317 = vmul.f32 %v5291, 0.17677669
      %v5318 = vmul.f32 %v5294, 0.17677669
      %v5319 = vmul.f32 %v5299, 0.17677669
      %v5320 = vmul.f32 %v5302, 0.17677669
      %v5321 = vlaneseq
      %v5322 = vand.u32 %v5321, 127
      %vm5323 = vcmp.lt.s32.totalorder %v5322, 6
      %vm5324 = vcmp.ge.s32.totalorder %v5322, 8
      %vm5325 = vmor %vm5323, %vm5324
      %v5326 = vsel %vm5325, %v5305, -1e+30
      %v5327 = vsel %vm5325, %v5306, -1e+30
      %v5328 = vsel %vm5325, %v5307, -1e+30
      %v5329 = vsel %vm5325, %v5308, -1e+30
      %v5330 = vsel %vm5325, %v5309, -1e+30
      %v5331 = vsel %vm5325, %v5310, -1e+30
      %v5332 = vsel %vm5325, %v5311, -1e+30
      %v5333 = vsel %vm5325, %v5312, -1e+30
      %v5334 = vsel %vm5325, %v5313, -1e+30
      %v5335 = vsel %vm5325, %v5314, -1e+30
      %v5336 = vsel %vm5325, %v5315, -1e+30
      %v5337 = vsel %vm5325, %v5316, -1e+30
      %v5338 = vsel %vm5325, %v5317, -1e+30
      %v5339 = vsel %vm5325, %v5318, -1e+30
      %v5340 = vsel %vm5325, %v5319, -1e+30
      %v5341 = vsel %vm5325, %v5320, -1e+30
      %v5342 = vsel %vm1750, %v5326, -inf
      %5343 = vmax.xlane.f32.xlu0 %v5342
      %v5344 = vpop.xlane.xlu0 %5343
      %v5345 = vsel %vm1750, %v5327, -inf
      %5346 = vmax.xlane.f32.xlu0 %v5345
      %v5347 = vpop.xlane.xlu0 %5346
      %v5348 = vsel %vm1750, %v5328, -inf
      %5349 = vmax.xlane.f32.xlu0 %v5348
      %v5350 = vpop.xlane.xlu0 %5349
      %v5351 = vsel %vm1750, %v5329, -inf
      %5352 = vmax.xlane.f32.xlu0 %v5351
      %v5353 = vpop.xlane.xlu0 %5352
      %v5354 = vsel %vm1750, %v5330, -inf
      %5355 = vmax.xlane.f32.xlu0 %v5354
      %v5356 = vpop.xlane.xlu0 %5355
      %v5357 = vsel %vm1750, %v5331, -inf
      %5358 = vmax.xlane.f32.xlu0 %v5357
      %v5359 = vpop.xlane.xlu0 %5358
      %v5360 = vsel %vm1750, %v5332, -inf
      %5361 = vmax.xlane.f32.xlu0 %v5360
      %v5362 = vpop.xlane.xlu0 %5361
      %v5363 = vsel %vm1750, %v5333, -inf
      %5364 = vmax.xlane.f32.xlu0 %v5363
      %v5365 = vpop.xlane.xlu0 %5364
      %v5366 = vsel %vm1750, %v5334, -inf
      %5367 = vmax.xlane.f32.xlu0 %v5366
      %v5368 = vpop.xlane.xlu0 %5367
      %v5369 = vsel %vm1750, %v5335, -inf
      %5370 = vmax.xlane.f32.xlu0 %v5369
      %v5371 = vpop.xlane.xlu0 %5370
      %v5372 = vsel %vm1750, %v5336, -inf
      %5373 = vmax.xlane.f32.xlu0 %v5372
      %v5374 = vpop.xlane.xlu0 %5373
      %v5375 = vsel %vm1750, %v5337, -inf
      %5376 = vmax.xlane.f32.xlu0 %v5375
      %v5377 = vpop.xlane.xlu0 %5376
      %v5378 = vsel %vm1750, %v5338, -inf
      %5379 = vmax.xlane.f32.xlu0 %v5378
      %v5380 = vpop.xlane.xlu0 %5379
      %v5381 = vsel %vm1750, %v5339, -inf
      %5382 = vmax.xlane.f32.xlu0 %v5381
      %v5383 = vpop.xlane.xlu0 %5382
      %v5384 = vsel %vm1750, %v5340, -inf
      %5385 = vmax.xlane.f32.xlu0 %v5384
      %v5386 = vpop.xlane.xlu0 %5385
      %v5387 = vsel %vm1750, %v5341, -inf
      %5388 = vmax.xlane.f32.xlu0 %v5387
      %v5389 = vpop.xlane.xlu0 %5388
      %v5390 = vsub.f32 %v5326, %v5344
      %v5391 = vsub.f32 %v5327, %v5347
      %v5392 = vsub.f32 %v5328, %v5350
      %v5393 = vsub.f32 %v5329, %v5353
      %v5394 = vsub.f32 %v5330, %v5356
      %v5395 = vsub.f32 %v5331, %v5359
      %v5396 = vsub.f32 %v5332, %v5362
      %v5397 = vsub.f32 %v5333, %v5365
      %v5398 = vsub.f32 %v5334, %v5368
      %v5399 = vsub.f32 %v5335, %v5371
      %v5400 = vsub.f32 %v5336, %v5374
      %v5401 = vsub.f32 %v5337, %v5377
      %v5402 = vsub.f32 %v5338, %v5380
      %v5403 = vsub.f32 %v5339, %v5383
      %v5404 = vsub.f32 %v5340, %v5386
      %v5405 = vsub.f32 %v5341, %v5389
      %v5406 = vmul.f32 %v5390, 1.442695
      %v5407 = vpow.pop %v5406
      %v5408 = vmul.f32 %v5391, 1.442695
      %v5409 = vpow.pop %v5408
      %v5410 = vmul.f32 %v5392, 1.442695
      %v5411 = vpow.pop %v5410
      %v5412 = vmul.f32 %v5393, 1.442695
      %v5413 = vpow.pop %v5412
      %v5414 = vmul.f32 %v5394, 1.442695
      %v5415 = vpow.pop %v5414
      %v5416 = vmul.f32 %v5395, 1.442695
      %v5417 = vpow.pop %v5416
      %v5418 = vmul.f32 %v5396, 1.442695
      %v5419 = vpow.pop %v5418
      %v5420 = vmul.f32 %v5397, 1.442695
      %v5421 = vpow.pop %v5420
      %v5422 = vmul.f32 %v5398, 1.442695
      %v5423 = vpow.pop %v5422
      %v5424 = vmul.f32 %v5399, 1.442695
      %v5425 = vpow.pop %v5424
      %v5426 = vmul.f32 %v5400, 1.442695
      %v5427 = vpow.pop %v5426
      %v5428 = vmul.f32 %v5401, 1.442695
      %v5429 = vpow.pop %v5428
      %v5430 = vmul.f32 %v5402, 1.442695
      %v5431 = vpow.pop %v5430
      %v5432 = vmul.f32 %v5403, 1.442695
      %v5433 = vpow.pop %v5432
      %v5434 = vmul.f32 %v5404, 1.442695
      %v5435 = vpow.pop %v5434
      %v5436 = vmul.f32 %v5405, 1.442695
      %v5437 = vpow.pop %v5436
      %v5438 = vsel %vm1750, %v5407, 0.0
      %5439 = vadd.xlane.f32.xlu0 %v5438
      %v5440 = vpop.xlane.xlu0 %5439
      %v5441 = vsel %vm1750, %v5409, 0.0
      %5442 = vadd.xlane.f32.xlu0 %v5441
      %v5443 = vpop.xlane.xlu0 %5442
      %v5444 = vsel %vm1750, %v5411, 0.0
      %5445 = vadd.xlane.f32.xlu0 %v5444
      %v5446 = vpop.xlane.xlu0 %5445
      %v5447 = vsel %vm1750, %v5413, 0.0
      %5448 = vadd.xlane.f32.xlu0 %v5447
      %v5449 = vpop.xlane.xlu0 %5448
      %v5450 = vsel %vm1750, %v5415, 0.0
      %5451 = vadd.xlane.f32.xlu0 %v5450
      %v5452 = vpop.xlane.xlu0 %5451
      %v5453 = vsel %vm1750, %v5417, 0.0
      %5454 = vadd.xlane.f32.xlu0 %v5453
      %v5455 = vpop.xlane.xlu0 %5454
      %v5456 = vsel %vm1750, %v5419, 0.0
      %5457 = vadd.xlane.f32.xlu0 %v5456
      %v5458 = vpop.xlane.xlu0 %5457
      %v5459 = vsel %vm1750, %v5421, 0.0
      %5460 = vadd.xlane.f32.xlu0 %v5459
      %v5461 = vpop.xlane.xlu0 %5460
      %v5462 = vsel %vm1750, %v5423, 0.0
      %5463 = vadd.xlane.f32.xlu0 %v5462
      %v5464 = vpop.xlane.xlu0 %5463
      %v5465 = vsel %vm1750, %v5425, 0.0
      %5466 = vadd.xlane.f32.xlu0 %v5465
      %v5467 = vpop.xlane.xlu0 %5466
      %v5468 = vsel %vm1750, %v5427, 0.0
      %5469 = vadd.xlane.f32.xlu0 %v5468
      %v5470 = vpop.xlane.xlu0 %5469
      %v5471 = vsel %vm1750, %v5429, 0.0
      %5472 = vadd.xlane.f32.xlu0 %v5471
      %v5473 = vpop.xlane.xlu0 %5472
      %v5474 = vsel %vm1750, %v5431, 0.0
      %5475 = vadd.xlane.f32.xlu0 %v5474
      %v5476 = vpop.xlane.xlu0 %5475
      %v5477 = vsel %vm1750, %v5433, 0.0
      %5478 = vadd.xlane.f32.xlu0 %v5477
      %v5479 = vpop.xlane.xlu0 %5478
      %v5480 = vsel %vm1750, %v5435, 0.0
      %5481 = vadd.xlane.f32.xlu0 %v5480
      %v5482 = vpop.xlane.xlu0 %5481
      %v5483 = vsel %vm1750, %v5437, 0.0
      %5484 = vadd.xlane.f32.xlu0 %v5483
      %v5485 = vpop.xlane.xlu0 %5484
      %v5486 = vrcp.pop %v5440
      %v5487 = vrcp.pop %v5443
      %v5488 = vrcp.pop %v5446
      %v5489 = vrcp.pop %v5449
      %v5490 = vrcp.pop %v5452
      %v5491 = vrcp.pop %v5455
      %v5492 = vrcp.pop %v5458
      %v5493 = vrcp.pop %v5461
      %v5494 = vrcp.pop %v5464
      %v5495 = vrcp.pop %v5467
      %v5496 = vrcp.pop %v5470
      %v5497 = vrcp.pop %v5473
      %v5498 = vrcp.pop %v5476
      %v5499 = vrcp.pop %v5479
      %v5500 = vrcp.pop %v5482
      %v5501 = vrcp.pop %v5485
      %v5502 = vpack.c.bf16 %v5409, %v5407
      %v5503 = vpack.c.bf16 %v5413, %v5411
      %v5504 = vpack.c.bf16 %v5417, %v5415
      %v5505 = vpack.c.bf16 %v5421, %v5419
      %v5506 = vpack.c.bf16 %v5425, %v5423
      %v5507 = vpack.c.bf16 %v5429, %v5427
      %v5508 = vpack.c.bf16 %v5433, %v5431
      %v5509 = vpack.c.bf16 %v5437, %v5435
      %5515 = vrot.lane.b32.xlu0 %v5164, 96
      %v5516 = vpop.permute.xlu0 %5515
      %5517 = vrot.lane.b32.xlu0 %v5165, 96
      %v5518 = vpop.permute.xlu0 %5517
      %5519 = vrot.lane.b32.xlu0 %v5166, 96
      %v5520 = vpop.permute.xlu0 %5519
      %5521 = vrot.lane.b32.xlu0 %v5167, 96
      %v5522 = vpop.permute.xlu0 %5521
      %5523 = vrot.lane.b32.xlu0 %v5168, 96
      %v5524 = vpop.permute.xlu0 %5523
      %v5530 = vsel %vm1750, %v5502, 0
      %v5533 = vsel %vm1750, %v5503, 0
      %v5536 = vsel %vm1750, %v5504, 0
      %v5539 = vsel %vm1750, %v5505, 0
      %v5542 = vsel %vm1750, %v5506, 0
      %v5545 = vsel %vm1750, %v5507, 0
      %v5548 = vsel %vm1750, %v5508, 0
      %v5551 = vsel %vm1750, %v5509, 0
      %v5554 = vsel %vm1775, %v5524, 0
      %5556 = vmatprep.subr.bf16.mxu0 0
      %5557 = vmatpush1.bf16.msra.mxu0 0
      %5558 = vmatprep.subr.bf16.mxu0 0
      %5559 = vmatpush1.bf16.msra.mxu0 0
      %5560 = vmatprep.subr.bf16.mxu0 0
      %5561 = vmatpush1.bf16.msra.mxu0 0
      %5562 = vmatprep.subr.bf16.mxu0 0
      %5563 = vmatpush1.bf16.msra.mxu0 %v5554
      %5564 = vmatprep.subr.bf16.mxu0 0
      %5565 = vmatpush1.bf16.msra.mxu0 %v5522
      %5566 = vmatprep.subr.bf16.mxu0 0
      %5567 = vmatpush1.bf16.msra.mxu0 %v5520
      %5568 = vmatprep.subr.bf16.mxu0 0
      %5569 = vmatpush1.bf16.msra.mxu0 %v5518
      %5570 = vmatprep.subr.bf16.mxu0 0
      %5571 = vmatpush1.bf16.msra.mxu0 %v5516
      %5572 = vmatprep.subr.bf16.mxu0 0
      %5573 = vmatpush2.bf16.msra.mxu0 0
      %5574 = vmatprep.subr.bf16.mxu0 0
      %5575 = vmatpush2.bf16.msra.mxu0 0
      %5576 = vmatprep.subr.bf16.mxu0 0
      %5577 = vmatpush2.bf16.msra.mxu0 0
      %5578 = vmatprep.subr.bf16.mxu0 0
      %5579 = vmatpush2.bf16.msra.mxu0 0
      %5580 = vmatprep.subr.bf16.mxu0 0
      %5581 = vmatpush2.bf16.msra.mxu0 0
      %5582 = vmatprep.subr.bf16.mxu0 0
      %5583 = vmatpush2.bf16.msra.mxu0 0
      %5584 = vmatprep.subr.bf16.mxu0 0
      %5585 = vmatpush2.bf16.msra.mxu0 0
      %5586 = vmatprep.subr.bf16.mxu0 0
      %5587 = vmatpush2.bf16.msra.mxu0 0
      %5588 = vmatprep.mubr.bf16.mxu0 0
      %5589 = vmatmul.mubr.bf16.gmra.mxu0 %v5530
      %v5590 = vpop.f32.mrf.mxu0
      %v5591 = vadd.f32 0.0, %v5590
      %v5592 = vpop.f32.mrf.mxu0
      %v5593 = vpop.f32.mrf.mxu0
      %v5594 = vadd.f32 0.0, %v5593
      %v5595 = vpop.f32.mrf.mxu0
      %5596 = vmatprep.mubr.bf16.mxu0 0
      %5597 = vmatmul.mubr.bf16.gmra.mxu0 %v5533
      %v5598 = vpop.f32.mrf.mxu0
      %v5599 = vadd.f32 0.0, %v5598
      %v5600 = vpop.f32.mrf.mxu0
      %v5601 = vpop.f32.mrf.mxu0
      %v5602 = vadd.f32 0.0, %v5601
      %v5603 = vpop.f32.mrf.mxu0
      %5604 = vmatprep.mubr.bf16.mxu0 0
      %5605 = vmatmul.mubr.bf16.gmra.mxu0 %v5536
      %v5606 = vpop.f32.mrf.mxu0
      %v5607 = vadd.f32 0.0, %v5606
      %v5608 = vpop.f32.mrf.mxu0
      %v5609 = vpop.f32.mrf.mxu0
      %v5610 = vadd.f32 0.0, %v5609
      %v5611 = vpop.f32.mrf.mxu0
      %5612 = vmatprep.mubr.bf16.mxu0 0
      %5613 = vmatmul.mubr.bf16.gmra.mxu0 %v5539
      %v5614 = vpop.f32.mrf.mxu0
      %v5615 = vadd.f32 0.0, %v5614
      %v5616 = vpop.f32.mrf.mxu0
      %v5617 = vpop.f32.mrf.mxu0
      %v5618 = vadd.f32 0.0, %v5617
      %v5619 = vpop.f32.mrf.mxu0
      %5620 = vmatprep.mubr.bf16.mxu0 0
      %5621 = vmatmul.mubr.bf16.gmra.mxu0 %v5542
      %v5622 = vpop.f32.mrf.mxu0
      %v5623 = vadd.f32 0.0, %v5622
      %v5624 = vpop.f32.mrf.mxu0
      %v5625 = vpop.f32.mrf.mxu0
      %v5626 = vadd.f32 0.0, %v5625
      %v5627 = vpop.f32.mrf.mxu0
      %5628 = vmatprep.mubr.bf16.mxu0 0
      %5629 = vmatmul.mubr.bf16.gmra.mxu0 %v5545
      %v5630 = vpop.f32.mrf.mxu0
      %v5631 = vadd.f32 0.0, %v5630
      %v5632 = vpop.f32.mrf.mxu0
      %v5633 = vpop.f32.mrf.mxu0
      %v5634 = vadd.f32 0.0, %v5633
      %v5635 = vpop.f32.mrf.mxu0
      %5636 = vmatprep.mubr.bf16.mxu0 0
      %5637 = vmatmul.mubr.bf16.gmra.mxu0 %v5548
      %v5638 = vpop.f32.mrf.mxu0
      %v5639 = vadd.f32 0.0, %v5638
      %v5640 = vpop.f32.mrf.mxu0
      %v5641 = vpop.f32.mrf.mxu0
      %v5642 = vadd.f32 0.0, %v5641
      %v5643 = vpop.f32.mrf.mxu0
      %5644 = vmatprep.mubr.bf16.mxu0 0
      %5645 = vmatmul.mubr.bf16.gmra.mxu0 %v5551
      %v5646 = vpop.f32.mrf.mxu0
      %v5647 = vadd.f32 0.0, %v5646
      %v5648 = vpop.f32.mrf.mxu0
      %v5649 = vpop.f32.mrf.mxu0
      %v5650 = vadd.f32 0.0, %v5649
      %v5651 = vpop.f32.mrf.mxu0
      %5652 = vdwg.mxu0
      %v5653 = vmul.f32 %v5591, %v5486
      %v5654 = vmul.f32 %v5594, %v5487
      %v5655 = vmul.f32 %v5599, %v5488
      %v5656 = vmul.f32 %v5602, %v5489
      %v5657 = vmul.f32 %v5607, %v5490
      %v5658 = vmul.f32 %v5610, %v5491
      %v5659 = vmul.f32 %v5615, %v5492
      %v5660 = vmul.f32 %v5618, %v5493
      %v5661 = vmul.f32 %v5623, %v5494
      %v5662 = vmul.f32 %v5626, %v5495
      %v5663 = vmul.f32 %v5631, %v5496
      %v5664 = vmul.f32 %v5634, %v5497
      %v5665 = vmul.f32 %v5639, %v5498
      %v5666 = vmul.f32 %v5642, %v5499
      %v5667 = vmul.f32 %v5647, %v5500
      %v5668 = vmul.f32 %v5650, %v5501
      %v5669 = vpack.c.bf16 %v5654, %v5653
      %v5670 = vpack.c.bf16 %v5656, %v5655
      %v5671 = vpack.c.bf16 %v5658, %v5657
      %v5672 = vpack.c.bf16 %v5660, %v5659
      %v5673 = vpack.c.bf16 %v5662, %v5661
      %v5674 = vpack.c.bf16 %v5664, %v5663
      %v5675 = vpack.c.bf16 %v5666, %v5665
      %v5676 = vpack.c.bf16 %v5668, %v5667
      %v5677 = vld [vmem:[%s23] sm:$0xf]
      %v5678 = vld [vmem:[%s23 + $0x4] sm:$0xf]
      %v5679 = vld [vmem:[%s23 + $0x8] sm:$0xf]
      %v5680 = vld [vmem:[%s23 + $0xc] sm:$0xf]
      %v5685 = vunpack.c.l.b16 %v5677
      %v5686 = vunpack.c.l.b16 %v5678
      %v5687 = vunpack.c.l.b16 %v5679
      %v5688 = vunpack.c.l.b16 %v5680
      %v5689 = vpack.c.b16 %v5686, %v5685
      %v5690 = vpack.c.b16 %v5688, %v5687
      %v5694 = vsel %vm864, %v5669, 0
      %v5697 = vsel %vm864, %v5670, 0
      %v5700 = vsel %vm864, %v5671, 0
      %v5703 = vsel %vm864, %v5672, 0
      %v5706 = vsel %vm864, %v5673, 0
      %v5709 = vsel %vm864, %v5674, 0
      %v5712 = vsel %vm864, %v5675, 0
      %v5715 = vsel %vm864, %v5676, 0
      %5717 = vmatprep.subr.bf16.mxu0 0
      %5718 = vmatpush1.bf16.msra.mxu0 0
      %5719 = vmatprep.subr.bf16.mxu0 0
      %5720 = vmatpush1.bf16.msra.mxu0 0
      %5721 = vmatprep.subr.bf16.mxu0 0
      %5722 = vmatpush1.bf16.msra.mxu0 0
      %5723 = vmatprep.subr.bf16.mxu0 0
      %5724 = vmatpush1.bf16.msra.mxu0 0
      %5725 = vmatprep.subr.bf16.mxu0 0
      %5726 = vmatpush1.bf16.msra.mxu0 0
      %5727 = vmatprep.subr.bf16.mxu0 0
      %5728 = vmatpush1.bf16.msra.mxu0 0
      %5729 = vmatprep.subr.bf16.mxu0 0
      %5730 = vmatpush1.bf16.msra.mxu0 %v5690
      %5731 = vmatprep.subr.bf16.mxu0 0
      %5732 = vmatpush1.bf16.msra.mxu0 %v5689
      %5733 = vmatprep.subr.bf16.mxu0 0
      %5734 = vmatpush2.bf16.msra.mxu0 0
      %5735 = vmatprep.subr.bf16.mxu0 0
      %5736 = vmatpush2.bf16.msra.mxu0 0
      %5737 = vmatprep.subr.bf16.mxu0 0
      %5738 = vmatpush2.bf16.msra.mxu0 0
      %5739 = vmatprep.subr.bf16.mxu0 0
      %5740 = vmatpush2.bf16.msra.mxu0 0
      %5741 = vmatprep.subr.bf16.mxu0 0
      %5742 = vmatpush2.bf16.msra.mxu0 0
      %5743 = vmatprep.subr.bf16.mxu0 0
      %5744 = vmatpush2.bf16.msra.mxu0 0
      %5745 = vmatprep.subr.bf16.mxu0 0
      %5746 = vmatpush2.bf16.msra.mxu0 0
      %5747 = vmatprep.subr.bf16.mxu0 0
      %5748 = vmatpush2.bf16.msra.mxu0 0
      %5749 = vmatprep.mubr.bf16.mxu0 0
      %5750 = vmatmul.mubr.bf16.gmra.mxu0 %v5694
      %v5751 = vpop.f32.mrf.mxu0
      %v5752 = vadd.f32 0.0, %v5751
      %v5753 = vpop.f32.mrf.mxu0
      %v5754 = vpop.f32.mrf.mxu0
      %v5755 = vadd.f32 0.0, %v5754
      %v5756 = vpop.f32.mrf.mxu0
      %5757 = vmatprep.mubr.bf16.mxu0 0
      %5758 = vmatmul.mubr.bf16.gmra.mxu0 %v5697
      %v5759 = vpop.f32.mrf.mxu0
      %v5760 = vadd.f32 0.0, %v5759
      %v5761 = vpop.f32.mrf.mxu0
      %v5762 = vpop.f32.mrf.mxu0
      %v5763 = vadd.f32 0.0, %v5762
      %v5764 = vpop.f32.mrf.mxu0
      %5765 = vmatprep.mubr.bf16.mxu0 0
      %5766 = vmatmul.mubr.bf16.gmra.mxu0 %v5700
      %v5767 = vpop.f32.mrf.mxu0
      %v5768 = vadd.f32 0.0, %v5767
      %v5769 = vpop.f32.mrf.mxu0
      %v5770 = vpop.f32.mrf.mxu0
      %v5771 = vadd.f32 0.0, %v5770
      %v5772 = vpop.f32.mrf.mxu0
      %5773 = vmatprep.mubr.bf16.mxu0 0
      %5774 = vmatmul.mubr.bf16.gmra.mxu0 %v5703
      %v5775 = vpop.f32.mrf.mxu0
      %v5776 = vadd.f32 0.0, %v5775
      %v5777 = vpop.f32.mrf.mxu0
      %v5778 = vpop.f32.mrf.mxu0
      %v5779 = vadd.f32 0.0, %v5778
      %v5780 = vpop.f32.mrf.mxu0
      %5781 = vmatprep.mubr.bf16.mxu0 0
      %5782 = vmatmul.mubr.bf16.gmra.mxu0 %v5706
      %v5783 = vpop.f32.mrf.mxu0
      %v5784 = vadd.f32 0.0, %v5783
      %v5785 = vpop.f32.mrf.mxu0
      %v5786 = vpop.f32.mrf.mxu0
      %v5787 = vadd.f32 0.0, %v5786
      %v5788 = vpop.f32.mrf.mxu0
      %5789 = vmatprep.mubr.bf16.mxu0 0
      %5790 = vmatmul.mubr.bf16.gmra.mxu0 %v5709
      %v5791 = vpop.f32.mrf.mxu0
      %v5792 = vadd.f32 0.0, %v5791
      %v5793 = vpop.f32.mrf.mxu0
      %v5794 = vpop.f32.mrf.mxu0
      %v5795 = vadd.f32 0.0, %v5794
      %v5796 = vpop.f32.mrf.mxu0
      %5797 = vmatprep.mubr.bf16.mxu0 0
      %5798 = vmatmul.mubr.bf16.gmra.mxu0 %v5712
      %v5799 = vpop.f32.mrf.mxu0
      %v5800 = vadd.f32 0.0, %v5799
      %v5801 = vpop.f32.mrf.mxu0
      %v5802 = vpop.f32.mrf.mxu0
      %v5803 = vadd.f32 0.0, %v5802
      %v5804 = vpop.f32.mrf.mxu0
      %5805 = vmatprep.mubr.bf16.mxu0 0
      %5806 = vmatmul.mubr.bf16.gmra.mxu0 %v5715
      %v5807 = vpop.f32.mrf.mxu0
      %v5808 = vadd.f32 0.0, %v5807
      %v5809 = vpop.f32.mrf.mxu0
      %v5810 = vpop.f32.mrf.mxu0
      %v5811 = vadd.f32 0.0, %v5810
      %v5812 = vpop.f32.mrf.mxu0
      %5813 = vdwg.mxu0
      %v5814 = vadd.f32 %v4183, %v5752
      %v5815 = vadd.f32 %v4184, %v5755
      %v5816 = vadd.f32 %v4185, %v5760
      %v5817 = vadd.f32 %v4186, %v5763
      %v5818 = vadd.f32 %v4187, %v5768
      %v5819 = vadd.f32 %v4188, %v5771
      %v5820 = vadd.f32 %v4189, %v5776
      %v5821 = vadd.f32 %v4190, %v5779
      %v5822 = vadd.f32 %v4191, %v5784
      %v5823 = vadd.f32 %v4192, %v5787
      %v5824 = vadd.f32 %v4193, %v5792
      %v5825 = vadd.f32 %v4194, %v5795
      %v5826 = vadd.f32 %v4195, %v5800
      %v5827 = vadd.f32 %v4196, %v5803
      %v5828 = vadd.f32 %v4197, %v5808
      %v5829 = vadd.f32 %v4198, %v5811
      %v5830 = vsub.f32 0.0, %v5814
      %v5831 = vsub.f32 0.0, %v5815
      %v5832 = vsub.f32 0.0, %v5816
      %v5833 = vsub.f32 0.0, %v5817
      %v5834 = vsub.f32 0.0, %v5818
      %v5835 = vsub.f32 0.0, %v5819
      %v5836 = vsub.f32 0.0, %v5820
      %v5837 = vsub.f32 0.0, %v5821
      %v5838 = vsub.f32 0.0, %v5822
      %v5839 = vsub.f32 0.0, %v5823
      %v5840 = vsub.f32 0.0, %v5824
      %v5841 = vsub.f32 0.0, %v5825
      %v5842 = vsub.f32 0.0, %v5826
      %v5843 = vsub.f32 0.0, %v5827
      %v5844 = vsub.f32 0.0, %v5828
      %v5845 = vsub.f32 0.0, %v5829
      %v5846 = vmul.f32 %v5830, 1.442695
      %v5847 = vpow.pop %v5846
      %v5848 = vmul.f32 %v5831, 1.442695
      %v5849 = vpow.pop %v5848
      %v5850 = vmul.f32 %v5832, 1.442695
      %v5851 = vpow.pop %v5850
      %v5852 = vmul.f32 %v5833, 1.442695
      %v5853 = vpow.pop %v5852
      %v5854 = vmul.f32 %v5834, 1.442695
      %v5855 = vpow.pop %v5854
      %v5856 = vmul.f32 %v5835, 1.442695
      %v5857 = vpow.pop %v5856
      %v5858 = vmul.f32 %v5836, 1.442695
      %v5859 = vpow.pop %v5858
      %v5860 = vmul.f32 %v5837, 1.442695
      %v5861 = vpow.pop %v5860
      %v5862 = vmul.f32 %v5838, 1.442695
      %v5863 = vpow.pop %v5862
      %v5864 = vmul.f32 %v5839, 1.442695
      %v5865 = vpow.pop %v5864
      %v5866 = vmul.f32 %v5840, 1.442695
      %v5867 = vpow.pop %v5866
      %v5868 = vmul.f32 %v5841, 1.442695
      %v5869 = vpow.pop %v5868
      %v5870 = vmul.f32 %v5842, 1.442695
      %v5871 = vpow.pop %v5870
      %v5872 = vmul.f32 %v5843, 1.442695
      %v5873 = vpow.pop %v5872
      %v5874 = vmul.f32 %v5844, 1.442695
      %v5875 = vpow.pop %v5874
      %v5876 = vmul.f32 %v5845, 1.442695
      %v5877 = vpow.pop %v5876
      %v5878 = vadd.f32 %v5847, 1.0
      %v5879 = vadd.f32 %v5849, 1.0
      %v5880 = vadd.f32 %v5851, 1.0
      %v5881 = vadd.f32 %v5853, 1.0
      %v5882 = vadd.f32 %v5855, 1.0
      %v5883 = vadd.f32 %v5857, 1.0
      %v5884 = vadd.f32 %v5859, 1.0
      %v5885 = vadd.f32 %v5861, 1.0
      %v5886 = vadd.f32 %v5863, 1.0
      %v5887 = vadd.f32 %v5865, 1.0
      %v5888 = vadd.f32 %v5867, 1.0
      %v5889 = vadd.f32 %v5869, 1.0
      %v5890 = vadd.f32 %v5871, 1.0
      %v5891 = vadd.f32 %v5873, 1.0
      %v5892 = vadd.f32 %v5875, 1.0
      %v5893 = vadd.f32 %v5877, 1.0
      %v5894 = vrcp.pop %v5878
      %v5895 = vrcp.pop %v5879
      %v5896 = vrcp.pop %v5880
      %v5897 = vrcp.pop %v5881
      %v5898 = vrcp.pop %v5882
      %v5899 = vrcp.pop %v5883
      %v5900 = vrcp.pop %v5884
      %v5901 = vrcp.pop %v5885
      %v5902 = vrcp.pop %v5886
      %v5903 = vrcp.pop %v5887
      %v5904 = vrcp.pop %v5888
      %v5905 = vrcp.pop %v5889
      %v5906 = vrcp.pop %v5890
      %v5907 = vrcp.pop %v5891
      %v5908 = vrcp.pop %v5892
      %v5909 = vrcp.pop %v5893
      %v5910 = vmul.f32 %v5814, %v5894
      %v5911 = vmul.f32 %v5815, %v5895
      %v5912 = vmul.f32 %v5816, %v5896
      %v5913 = vmul.f32 %v5817, %v5897
      %v5914 = vmul.f32 %v5818, %v5898
      %v5915 = vmul.f32 %v5819, %v5899
      %v5916 = vmul.f32 %v5820, %v5900
      %v5917 = vmul.f32 %v5821, %v5901
      %v5918 = vmul.f32 %v5822, %v5902
      %v5919 = vmul.f32 %v5823, %v5903
      %v5920 = vmul.f32 %v5824, %v5904
      %v5921 = vmul.f32 %v5825, %v5905
      %v5922 = vmul.f32 %v5826, %v5906
      %v5923 = vmul.f32 %v5827, %v5907
      %v5924 = vmul.f32 %v5828, %v5908
      %v5925 = vmul.f32 %v5829, %v5909
      %5926 = vst.msk [vmem:[%s1972 + $0x1] sm:$0xff] %vm864, %v5910
      %5927 = vst.msk [vmem:[%s1972 + $0x11] sm:$0xff] %vm864, %v5911
      %5928 = vst.msk [vmem:[%s1972 + $0x21] sm:$0xff] %vm864, %v5912
      %5929 = vst.msk [vmem:[%s1972 + $0x31] sm:$0xff] %vm864, %v5913
      %5930 = vst.msk [vmem:[%s1972 + $0x41] sm:$0xff] %vm864, %v5914
      %5931 = vst.msk [vmem:[%s1972 + $0x51] sm:$0xff] %vm864, %v5915
      %5932 = vst.msk [vmem:[%s1972 + $0x61] sm:$0xff] %vm864, %v5916
      %5933 = vst.msk [vmem:[%s1972 + $0x71] sm:$0xff] %vm864, %v5917
      %5934 = vst.msk [vmem:[%s1972 + $0xa1] sm:$0xff] %vm864, %v5918
      %5935 = vst.msk [vmem:[%s1972 + $0xb1] sm:$0xff] %vm864, %v5919
      %5936 = vst.msk [vmem:[%s1972 + $0xc1] sm:$0xff] %vm864, %v5920
      %5937 = vst.msk [vmem:[%s1972 + $0xd1] sm:$0xff] %vm864, %v5921
      %5938 = vst.msk [vmem:[%s1972 + $0xe1] sm:$0xff] %vm864, %v5922
      %5939 = vst.msk [vmem:[%s1972 + $0xf1] sm:$0xff] %vm864, %v5923
      %5940 = vst.msk [vmem:[%s1972 + $0x101] sm:$0xff] %vm864, %v5924
      %5941 = vst.msk [vmem:[%s1972 + $0x111] sm:$0xff] %vm864, %v5925
      %v5942 = vld [vmem:[#allocation2] sm:$0xff]
      %v5943 = vld [vmem:[#allocation2 + $0x10] sm:$0xff]
      %v5944 = vld [vmem:[#allocation2 + $0x20] sm:$0xff]
      %v5945 = vld [vmem:[#allocation2 + $0x30] sm:$0xff]
      %v5946 = vld [vmem:[#allocation2 + $0x40] sm:$0xff]
      %v5947 = vld [vmem:[#allocation2 + $0x50] sm:$0xff]
      %v5948 = vld [vmem:[#allocation2 + $0x60] sm:$0xff]
      %v5949 = vld [vmem:[#allocation2 + $0x70] sm:$0xff]
      %v5950 = vld [vmem:[#allocation2 + $0xa0] sm:$0xff]
      %v5951 = vld [vmem:[#allocation2 + $0xb0] sm:$0xff]
      %v5952 = vld [vmem:[#allocation2 + $0xc0] sm:$0xff]
      %v5953 = vld [vmem:[#allocation2 + $0xd0] sm:$0xff]
      %v5954 = vld [vmem:[#allocation2 + $0xe0] sm:$0xff]
      %v5955 = vld [vmem:[#allocation2 + $0xf0] sm:$0xff]
      %v5956 = vld [vmem:[#allocation2 + $0x100] sm:$0xff]
      %v5957 = vld [vmem:[#allocation2 + $0x110] sm:$0xff]
      %v5958 = vld [vmem:[#allocation2 + $0x1] sm:$0xff]
      %v5959 = vld [vmem:[#allocation2 + $0x11] sm:$0xff]
      %v5960 = vld [vmem:[#allocation2 + $0x21] sm:$0xff]
      %v5961 = vld [vmem:[#allocation2 + $0x31] sm:$0xff]
      %v5962 = vld [vmem:[#allocation2 + $0x41] sm:$0xff]
      %v5963 = vld [vmem:[#allocation2 + $0x51] sm:$0xff]
      %v5964 = vld [vmem:[#allocation2 + $0x61] sm:$0xff]
      %v5965 = vld [vmem:[#allocation2 + $0x71] sm:$0xff]
      %v5966 = vld [vmem:[#allocation2 + $0xa1] sm:$0xff]
      %v5967 = vld [vmem:[#allocation2 + $0xb1] sm:$0xff]
      %v5968 = vld [vmem:[#allocation2 + $0xc1] sm:$0xff]
      %v5969 = vld [vmem:[#allocation2 + $0xd1] sm:$0xff]
      %v5970 = vld [vmem:[#allocation2 + $0xe1] sm:$0xff]
      %v5971 = vld [vmem:[#allocation2 + $0xf1] sm:$0xff]
      %v5972 = vld [vmem:[#allocation2 + $0x101] sm:$0xff]
      %v5973 = vld [vmem:[#allocation2 + $0x111] sm:$0xff]
      %v5974 = vld [vmem:[#allocation2 + $0x2] sm:$0xff]
      %v5975 = vld [vmem:[#allocation2 + $0x12] sm:$0xff]
      %v5976 = vld [vmem:[#allocation2 + $0x22] sm:$0xff]
      %v5977 = vld [vmem:[#allocation2 + $0x32] sm:$0xff]
      %v5978 = vld [vmem:[#allocation2 + $0x42] sm:$0xff]
      %v5979 = vld [vmem:[#allocation2 + $0x52] sm:$0xff]
      %v5980 = vld [vmem:[#allocation2 + $0x62] sm:$0xff]
      %v5981 = vld [vmem:[#allocation2 + $0x72] sm:$0xff]
      %v5982 = vld [vmem:[#allocation2 + $0xa2] sm:$0xff]
      %v5983 = vld [vmem:[#allocation2 + $0xb2] sm:$0xff]
      %v5984 = vld [vmem:[#allocation2 + $0xc2] sm:$0xff]
      %v5985 = vld [vmem:[#allocation2 + $0xd2] sm:$0xff]
      %v5986 = vld [vmem:[#allocation2 + $0xe2] sm:$0xff]
      %v5987 = vld [vmem:[#allocation2 + $0xf2] sm:$0xff]
      %v5988 = vld [vmem:[#allocation2 + $0x102] sm:$0xff]
      %v5989 = vld [vmem:[#allocation2 + $0x112] sm:$0xff]
      %v5990 = vld [vmem:[%s1972] sm:$0xff]
      %v5991 = vld [vmem:[%s1972 + $0x10] sm:$0xff]
      %v5992 = vld [vmem:[%s1972 + $0x20] sm:$0xff]
      %v5993 = vld [vmem:[%s1972 + $0x30] sm:$0xff]
      %v5994 = vld [vmem:[%s1972 + $0x40] sm:$0xff]
      %v5995 = vld [vmem:[%s1972 + $0x50] sm:$0xff]
      %v5996 = vld [vmem:[%s1972 + $0x60] sm:$0xff]
      %v5997 = vld [vmem:[%s1972 + $0x70] sm:$0xff]
      %v5998 = vld [vmem:[%s1972 + $0xa0] sm:$0xff]
      %v5999 = vld [vmem:[%s1972 + $0xb0] sm:$0xff]
      %v6000 = vld [vmem:[%s1972 + $0xc0] sm:$0xff]
      %v6001 = vld [vmem:[%s1972 + $0xd0] sm:$0xff]
      %v6002 = vld [vmem:[%s1972 + $0xe0] sm:$0xff]
      %v6003 = vld [vmem:[%s1972 + $0xf0] sm:$0xff]
      %v6004 = vld [vmem:[%s1972 + $0x100] sm:$0xff]
      %v6005 = vld [vmem:[%s1972 + $0x110] sm:$0xff]
      %v6006 = vld [vmem:[%s1972 + $0x1] sm:$0xff]
      %v6007 = vld [vmem:[%s1972 + $0x11] sm:$0xff]
      %v6008 = vld [vmem:[%s1972 + $0x21] sm:$0xff]
      %v6009 = vld [vmem:[%s1972 + $0x31] sm:$0xff]
      %v6010 = vld [vmem:[%s1972 + $0x41] sm:$0xff]
      %v6011 = vld [vmem:[%s1972 + $0x51] sm:$0xff]
      %v6012 = vld [vmem:[%s1972 + $0x61] sm:$0xff]
      %v6013 = vld [vmem:[%s1972 + $0x71] sm:$0xff]
      %v6014 = vld [vmem:[%s1972 + $0xa1] sm:$0xff]
      %v6015 = vld [vmem:[%s1972 + $0xb1] sm:$0xff]
      %v6016 = vld [vmem:[%s1972 + $0xc1] sm:$0xff]
      %v6017 = vld [vmem:[%s1972 + $0xd1] sm:$0xff]
      %v6018 = vld [vmem:[%s1972 + $0xe1] sm:$0xff]
      %v6019 = vld [vmem:[%s1972 + $0xf1] sm:$0xff]
      %v6020 = vld [vmem:[%s1972 + $0x101] sm:$0xff]
      %v6021 = vld [vmem:[%s1972 + $0x111] sm:$0xff]
      %v6022 = vld [vmem:[%s1972 + $0x2] sm:$0xff]
      %v6023 = vld [vmem:[%s1972 + $0x12] sm:$0xff]
      %v6024 = vld [vmem:[%s1972 + $0x22] sm:$0xff]
      %v6025 = vld [vmem:[%s1972 + $0x32] sm:$0xff]
      %v6026 = vld [vmem:[%s1972 + $0x42] sm:$0xff]
      %v6027 = vld [vmem:[%s1972 + $0x52] sm:$0xff]
      %v6028 = vld [vmem:[%s1972 + $0x62] sm:$0xff]
      %v6029 = vld [vmem:[%s1972 + $0x72] sm:$0xff]
      %v6030 = vld [vmem:[%s1972 + $0xa2] sm:$0xff]
      %v6031 = vld [vmem:[%s1972 + $0xb2] sm:$0xff]
      %v6032 = vld [vmem:[%s1972 + $0xc2] sm:$0xff]
      %v6033 = vld [vmem:[%s1972 + $0xd2] sm:$0xff]
      %v6034 = vld [vmem:[%s1972 + $0xe2] sm:$0xff]
      %v6035 = vld [vmem:[%s1972 + $0xf2] sm:$0xff]
      %v6036 = vld [vmem:[%s1972 + $0x102] sm:$0xff]
      %v6037 = vld [vmem:[%s1972 + $0x112] sm:$0xff]
      %v6038 = vld [vmem:[%s2085] sm:$0xff]
      %v6039 = vld [vmem:[%s2085 + $0x10] sm:$0xff]
      %v6040 = vld [vmem:[%s2085 + $0x20] sm:$0xff]
      %v6041 = vld [vmem:[%s2085 + $0x30] sm:$0xff]
      %v6042 = vld [vmem:[%s2085 + $0x40] sm:$0xff]
      %v6043 = vld [vmem:[%s2085 + $0x50] sm:$0xff]
      %v6044 = vld [vmem:[%s2085 + $0x60] sm:$0xff]
      %v6045 = vld [vmem:[%s2085 + $0x70] sm:$0xff]
      %v6046 = vld [vmem:[%s2085 + $0xa0] sm:$0xff]
      %v6047 = vld [vmem:[%s2085 + $0xb0] sm:$0xff]
      %v6048 = vld [vmem:[%s2085 + $0xc0] sm:$0xff]
      %v6049 = vld [vmem:[%s2085 + $0xd0] sm:$0xff]
      %v6050 = vld [vmem:[%s2085 + $0xe0] sm:$0xff]
      %v6051 = vld [vmem:[%s2085 + $0xf0] sm:$0xff]
      %v6052 = vld [vmem:[%s2085 + $0x100] sm:$0xff]
      %v6053 = vld [vmem:[%s2085 + $0x110] sm:$0xff]
      %v6054 = vld [vmem:[%s2085 + $0x1] sm:$0xff]
      %v6055 = vld [vmem:[%s2085 + $0x11] sm:$0xff]
      %v6056 = vld [vmem:[%s2085 + $0x21] sm:$0xff]
      %v6057 = vld [vmem:[%s2085 + $0x31] sm:$0xff]
      %v6058 = vld [vmem:[%s2085 + $0x41] sm:$0xff]
      %v6059 = vld [vmem:[%s2085 + $0x51] sm:$0xff]
      %v6060 = vld [vmem:[%s2085 + $0x61] sm:$0xff]
      %v6061 = vld [vmem:[%s2085 + $0x71] sm:$0xff]
      %v6062 = vld [vmem:[%s2085 + $0xa1] sm:$0xff]
      %v6063 = vld [vmem:[%s2085 + $0xb1] sm:$0xff]
      %v6064 = vld [vmem:[%s2085 + $0xc1] sm:$0xff]
      %v6065 = vld [vmem:[%s2085 + $0xd1] sm:$0xff]
      %v6066 = vld [vmem:[%s2085 + $0xe1] sm:$0xff]
      %v6067 = vld [vmem:[%s2085 + $0xf1] sm:$0xff]
      %v6068 = vld [vmem:[%s2085 + $0x101] sm:$0xff]
      %v6069 = vld [vmem:[%s2085 + $0x111] sm:$0xff]
      %v6070 = vld [vmem:[%s2085 + $0x2] sm:$0xff]
      %v6071 = vld [vmem:[%s2085 + $0x12] sm:$0xff]
      %v6072 = vld [vmem:[%s2085 + $0x22] sm:$0xff]
      %v6073 = vld [vmem:[%s2085 + $0x32] sm:$0xff]
      %v6074 = vld [vmem:[%s2085 + $0x42] sm:$0xff]
      %v6075 = vld [vmem:[%s2085 + $0x52] sm:$0xff]
      %v6076 = vld [vmem:[%s2085 + $0x62] sm:$0xff]
      %v6077 = vld [vmem:[%s2085 + $0x72] sm:$0xff]
      %v6078 = vld [vmem:[%s2085 + $0xa2] sm:$0xff]
      %v6079 = vld [vmem:[%s2085 + $0xb2] sm:$0xff]
      %v6080 = vld [vmem:[%s2085 + $0xc2] sm:$0xff]
      %v6081 = vld [vmem:[%s2085 + $0xd2] sm:$0xff]
      %v6082 = vld [vmem:[%s2085 + $0xe2] sm:$0xff]
      %v6083 = vld [vmem:[%s2085 + $0xf2] sm:$0xff]
      %v6084 = vld [vmem:[%s2085 + $0x102] sm:$0xff]
      %v6085 = vld [vmem:[%s2085 + $0x112] sm:$0xff]
      %6102 = vrot.lane.b32.xlu0 %v5958, 32
      %v6103 = vpop.permute.xlu0 %6102
      %6104 = vrot.lane.b32.xlu0 %v5959, 32
      %v6105 = vpop.permute.xlu0 %6104
      %6106 = vrot.lane.b32.xlu0 %v5960, 32
      %v6107 = vpop.permute.xlu0 %6106
      %6108 = vrot.lane.b32.xlu0 %v5961, 32
      %v6109 = vpop.permute.xlu0 %6108
      %6110 = vrot.lane.b32.xlu0 %v5962, 32
      %v6111 = vpop.permute.xlu0 %6110
      %6112 = vrot.lane.b32.xlu0 %v5963, 32
      %v6113 = vpop.permute.xlu0 %6112
      %6114 = vrot.lane.b32.xlu0 %v5964, 32
      %v6115 = vpop.permute.xlu0 %6114
      %6116 = vrot.lane.b32.xlu0 %v5965, 32
      %v6117 = vpop.permute.xlu0 %6116
      %6118 = vrot.lane.b32.xlu0 %v5966, 32
      %v6119 = vpop.permute.xlu0 %6118
      %6120 = vrot.lane.b32.xlu0 %v5967, 32
      %v6121 = vpop.permute.xlu0 %6120
      %6122 = vrot.lane.b32.xlu0 %v5968, 32
      %v6123 = vpop.permute.xlu0 %6122
      %6124 = vrot.lane.b32.xlu0 %v5969, 32
      %v6125 = vpop.permute.xlu0 %6124
      %6126 = vrot.lane.b32.xlu0 %v5970, 32
      %v6127 = vpop.permute.xlu0 %6126
      %6128 = vrot.lane.b32.xlu0 %v5971, 32
      %v6129 = vpop.permute.xlu0 %6128
      %6130 = vrot.lane.b32.xlu0 %v5972, 32
      %v6131 = vpop.permute.xlu0 %6130
      %6132 = vrot.lane.b32.xlu0 %v5973, 32
      %v6133 = vpop.permute.xlu0 %6132
      %6166 = vrot.lane.b32.xlu0 %v5974, 64
      %v6167 = vpop.permute.xlu0 %6166
      %6168 = vrot.lane.b32.xlu0 %v5975, 64
      %v6169 = vpop.permute.xlu0 %6168
      %6170 = vrot.lane.b32.xlu0 %v5976, 64
      %v6171 = vpop.permute.xlu0 %6170
      %6172 = vrot.lane.b32.xlu0 %v5977, 64
      %v6173 = vpop.permute.xlu0 %6172
      %6174 = vrot.lane.b32.xlu0 %v5978, 64
      %v6175 = vpop.permute.xlu0 %6174
      %6176 = vrot.lane.b32.xlu0 %v5979, 64
      %v6177 = vpop.permute.xlu0 %6176
      %6178 = vrot.lane.b32.xlu0 %v5980, 64
      %v6179 = vpop.permute.xlu0 %6178
      %6180 = vrot.lane.b32.xlu0 %v5981, 64
      %v6181 = vpop.permute.xlu0 %6180
      %6182 = vrot.lane.b32.xlu0 %v5982, 64
      %v6183 = vpop.permute.xlu0 %6182
      %6184 = vrot.lane.b32.xlu0 %v5983, 64
      %v6185 = vpop.permute.xlu0 %6184
      %6186 = vrot.lane.b32.xlu0 %v5984, 64
      %v6187 = vpop.permute.xlu0 %6186
      %6188 = vrot.lane.b32.xlu0 %v5985, 64
      %v6189 = vpop.permute.xlu0 %6188
      %6190 = vrot.lane.b32.xlu0 %v5986, 64
      %v6191 = vpop.permute.xlu0 %6190
      %6192 = vrot.lane.b32.xlu0 %v5987, 64
      %v6193 = vpop.permute.xlu0 %6192
      %6194 = vrot.lane.b32.xlu0 %v5988, 64
      %v6195 = vpop.permute.xlu0 %6194
      %6196 = vrot.lane.b32.xlu0 %v5989, 64
      %v6197 = vpop.permute.xlu0 %6196
      %6230 = vrot.lane.b32.xlu0 %v5990, 96
      %v6231 = vpop.permute.xlu0 %6230
      %6232 = vrot.lane.b32.xlu0 %v5991, 96
      %v6233 = vpop.permute.xlu0 %6232
      %6234 = vrot.lane.b32.xlu0 %v5992, 96
      %v6235 = vpop.permute.xlu0 %6234
      %6236 = vrot.lane.b32.xlu0 %v5993, 96
      %v6237 = vpop.permute.xlu0 %6236
      %6238 = vrot.lane.b32.xlu0 %v5994, 96
      %v6239 = vpop.permute.xlu0 %6238
      %6240 = vrot.lane.b32.xlu0 %v5995, 96
      %v6241 = vpop.permute.xlu0 %6240
      %6242 = vrot.lane.b32.xlu0 %v5996, 96
      %v6243 = vpop.permute.xlu0 %6242
      %6244 = vrot.lane.b32.xlu0 %v5997, 96
      %v6245 = vpop.permute.xlu0 %6244
      %6246 = vrot.lane.b32.xlu0 %v5998, 96
      %v6247 = vpop.permute.xlu0 %6246
      %6248 = vrot.lane.b32.xlu0 %v5999, 96
      %v6249 = vpop.permute.xlu0 %6248
      %6250 = vrot.lane.b32.xlu0 %v6000, 96
      %v6251 = vpop.permute.xlu0 %6250
      %6252 = vrot.lane.b32.xlu0 %v6001, 96
      %v6253 = vpop.permute.xlu0 %6252
      %6254 = vrot.lane.b32.xlu0 %v6002, 96
      %v6255 = vpop.permute.xlu0 %6254
      %6256 = vrot.lane.b32.xlu0 %v6003, 96
      %v6257 = vpop.permute.xlu0 %6256
      %6258 = vrot.lane.b32.xlu0 %v6004, 96
      %v6259 = vpop.permute.xlu0 %6258
      %6260 = vrot.lane.b32.xlu0 %v6005, 96
      %v6261 = vpop.permute.xlu0 %6260
      %6294 = vrot.lane.b32.xlu0 %v6022, 32
      %v6295 = vpop.permute.xlu0 %6294
      %6296 = vrot.lane.b32.xlu0 %v6023, 32
      %v6297 = vpop.permute.xlu0 %6296
      %6298 = vrot.lane.b32.xlu0 %v6024, 32
      %v6299 = vpop.permute.xlu0 %6298
      %6300 = vrot.lane.b32.xlu0 %v6025, 32
      %v6301 = vpop.permute.xlu0 %6300
      %6302 = vrot.lane.b32.xlu0 %v6026, 32
      %v6303 = vpop.permute.xlu0 %6302
      %6304 = vrot.lane.b32.xlu0 %v6027, 32
      %v6305 = vpop.permute.xlu0 %6304
      %6306 = vrot.lane.b32.xlu0 %v6028, 32
      %v6307 = vpop.permute.xlu0 %6306
      %6308 = vrot.lane.b32.xlu0 %v6029, 32
      %v6309 = vpop.permute.xlu0 %6308
      %6310 = vrot.lane.b32.xlu0 %v6030, 32
      %v6311 = vpop.permute.xlu0 %6310
      %6312 = vrot.lane.b32.xlu0 %v6031, 32
      %v6313 = vpop.permute.xlu0 %6312
      %6314 = vrot.lane.b32.xlu0 %v6032, 32
      %v6315 = vpop.permute.xlu0 %6314
      %6316 = vrot.lane.b32.xlu0 %v6033, 32
      %v6317 = vpop.permute.xlu0 %6316
      %6318 = vrot.lane.b32.xlu0 %v6034, 32
      %v6319 = vpop.permute.xlu0 %6318
      %6320 = vrot.lane.b32.xlu0 %v6035, 32
      %v6321 = vpop.permute.xlu0 %6320
      %6322 = vrot.lane.b32.xlu0 %v6036, 32
      %v6323 = vpop.permute.xlu0 %6322
      %6324 = vrot.lane.b32.xlu0 %v6037, 32
      %v6325 = vpop.permute.xlu0 %6324
      %6358 = vrot.lane.b32.xlu0 %v6038, 64
      %v6359 = vpop.permute.xlu0 %6358
      %6360 = vrot.lane.b32.xlu0 %v6039, 64
      %v6361 = vpop.permute.xlu0 %6360
      %6362 = vrot.lane.b32.xlu0 %v6040, 64
      %v6363 = vpop.permute.xlu0 %6362
      %6364 = vrot.lane.b32.xlu0 %v6041, 64
      %v6365 = vpop.permute.xlu0 %6364
      %6366 = vrot.lane.b32.xlu0 %v6042, 64
      %v6367 = vpop.permute.xlu0 %6366
      %6368 = vrot.lane.b32.xlu0 %v6043, 64
      %v6369 = vpop.permute.xlu0 %6368
      %6370 = vrot.lane.b32.xlu0 %v6044, 64
      %v6371 = vpop.permute.xlu0 %6370
      %6372 = vrot.lane.b32.xlu0 %v6045, 64
      %v6373 = vpop.permute.xlu0 %6372
      %6374 = vrot.lane.b32.xlu0 %v6046, 64
      %v6375 = vpop.permute.xlu0 %6374
      %6376 = vrot.lane.b32.xlu0 %v6047, 64
      %v6377 = vpop.permute.xlu0 %6376
      %6378 = vrot.lane.b32.xlu0 %v6048, 64
      %v6379 = vpop.permute.xlu0 %6378
      %6380 = vrot.lane.b32.xlu0 %v6049, 64
      %v6381 = vpop.permute.xlu0 %6380
      %6382 = vrot.lane.b32.xlu0 %v6050, 64
      %v6383 = vpop.permute.xlu0 %6382
      %6384 = vrot.lane.b32.xlu0 %v6051, 64
      %v6385 = vpop.permute.xlu0 %6384
      %6386 = vrot.lane.b32.xlu0 %v6052, 64
      %v6387 = vpop.permute.xlu0 %6386
      %6388 = vrot.lane.b32.xlu0 %v6053, 64
      %v6389 = vpop.permute.xlu0 %6388
      %6422 = vrot.lane.b32.xlu0 %v6054, 96
      %v6423 = vpop.permute.xlu0 %6422
      %6424 = vrot.lane.b32.xlu0 %v6055, 96
      %v6425 = vpop.permute.xlu0 %6424
      %6426 = vrot.lane.b32.xlu0 %v6056, 96
      %v6427 = vpop.permute.xlu0 %6426
      %6428 = vrot.lane.b32.xlu0 %v6057, 96
      %v6429 = vpop.permute.xlu0 %6428
      %6430 = vrot.lane.b32.xlu0 %v6058, 96
      %v6431 = vpop.permute.xlu0 %6430
      %6432 = vrot.lane.b32.xlu0 %v6059, 96
      %v6433 = vpop.permute.xlu0 %6432
      %6434 = vrot.lane.b32.xlu0 %v6060, 96
      %v6435 = vpop.permute.xlu0 %6434
      %6436 = vrot.lane.b32.xlu0 %v6061, 96
      %v6437 = vpop.permute.xlu0 %6436
      %6438 = vrot.lane.b32.xlu0 %v6062, 96
      %v6439 = vpop.permute.xlu0 %6438
      %6440 = vrot.lane.b32.xlu0 %v6063, 96
      %v6441 = vpop.permute.xlu0 %6440
      %6442 = vrot.lane.b32.xlu0 %v6064, 96
      %v6443 = vpop.permute.xlu0 %6442
      %6444 = vrot.lane.b32.xlu0 %v6065, 96
      %v6445 = vpop.permute.xlu0 %6444
      %6446 = vrot.lane.b32.xlu0 %v6066, 96
      %v6447 = vpop.permute.xlu0 %6446
      %6448 = vrot.lane.b32.xlu0 %v6067, 96
      %v6449 = vpop.permute.xlu0 %6448
      %6450 = vrot.lane.b32.xlu0 %v6068, 96
      %v6451 = vpop.permute.xlu0 %6450
      %6452 = vrot.lane.b32.xlu0 %v6069, 96
      %v6453 = vpop.permute.xlu0 %6452
      %v6470 = vsel %vm864, %v5942, %v6103
      %v6471 = vsel %vm864, %v5943, %v6105
      %v6472 = vsel %vm864, %v5944, %v6107
      %v6473 = vsel %vm864, %v5945, %v6109
      %v6474 = vsel %vm864, %v5946, %v6111
      %v6475 = vsel %vm864, %v5947, %v6113
      %v6476 = vsel %vm864, %v5948, %v6115
      %v6477 = vsel %vm864, %v5949, %v6117
      %v6478 = vsel %vm864, %v5950, %v6119
      %v6479 = vsel %vm864, %v5951, %v6121
      %v6480 = vsel %vm864, %v5952, %v6123
      %v6481 = vsel %vm864, %v5953, %v6125
      %v6482 = vsel %vm864, %v5954, %v6127
      %v6483 = vsel %vm864, %v5955, %v6129
      %v6484 = vsel %vm864, %v5956, %v6131
      %v6485 = vsel %vm864, %v5957, %v6133
      %v6486 = vsel %vm1682, %v6470, %v6167
      %v6487 = vsel %vm1682, %v6471, %v6169
      %v6488 = vsel %vm1682, %v6472, %v6171
      %v6489 = vsel %vm1682, %v6473, %v6173
      %v6490 = vsel %vm1682, %v6474, %v6175
      %v6491 = vsel %vm1682, %v6475, %v6177
      %v6492 = vsel %vm1682, %v6476, %v6179
      %v6493 = vsel %vm1682, %v6477, %v6181
      %v6494 = vsel %vm1682, %v6478, %v6183
      %v6495 = vsel %vm1682, %v6479, %v6185
      %v6496 = vsel %vm1682, %v6480, %v6187
      %v6497 = vsel %vm1682, %v6481, %v6189
      %v6498 = vsel %vm1682, %v6482, %v6191
      %v6499 = vsel %vm1682, %v6483, %v6193
      %v6500 = vsel %vm1682, %v6484, %v6195
      %v6501 = vsel %vm1682, %v6485, %v6197
      %v6502 = vsel %vm2663, %v6486, %v6231
      %v6503 = vsel %vm2663, %v6487, %v6233
      %v6504 = vsel %vm2663, %v6488, %v6235
      %v6505 = vsel %vm2663, %v6489, %v6237
      %v6506 = vsel %vm2663, %v6490, %v6239
      %v6507 = vsel %vm2663, %v6491, %v6241
      %v6508 = vsel %vm2663, %v6492, %v6243
      %v6509 = vsel %vm2663, %v6493, %v6245
      %v6510 = vsel %vm2663, %v6494, %v6247
      %v6511 = vsel %vm2663, %v6495, %v6249
      %v6512 = vsel %vm2663, %v6496, %v6251
      %v6513 = vsel %vm2663, %v6497, %v6253
      %v6514 = vsel %vm2663, %v6498, %v6255
      %v6515 = vsel %vm2663, %v6499, %v6257
      %v6516 = vsel %vm2663, %v6500, %v6259
      %v6517 = vsel %vm2663, %v6501, %v6261
      %v6518 = vsel %vm864, %v6006, %v6295
      %v6519 = vsel %vm864, %v6007, %v6297
      %v6520 = vsel %vm864, %v6008, %v6299
      %v6521 = vsel %vm864, %v6009, %v6301
      %v6522 = vsel %vm864, %v6010, %v6303
      %v6523 = vsel %vm864, %v6011, %v6305
      %v6524 = vsel %vm864, %v6012, %v6307
      %v6525 = vsel %vm864, %v6013, %v6309
      %v6526 = vsel %vm864, %v6014, %v6311
      %v6527 = vsel %vm864, %v6015, %v6313
      %v6528 = vsel %vm864, %v6016, %v6315
      %v6529 = vsel %vm864, %v6017, %v6317
      %v6530 = vsel %vm864, %v6018, %v6319
      %v6531 = vsel %vm864, %v6019, %v6321
      %v6532 = vsel %vm864, %v6020, %v6323
      %v6533 = vsel %vm864, %v6021, %v6325
      %v6534 = vsel %vm1682, %v6518, %v6359
      %v6535 = vsel %vm1682, %v6519, %v6361
      %v6536 = vsel %vm1682, %v6520, %v6363
      %v6537 = vsel %vm1682, %v6521, %v6365
      %v6538 = vsel %vm1682, %v6522, %v6367
      %v6539 = vsel %vm1682, %v6523, %v6369
      %v6540 = vsel %vm1682, %v6524, %v6371
      %v6541 = vsel %vm1682, %v6525, %v6373
      %v6542 = vsel %vm1682, %v6526, %v6375
      %v6543 = vsel %vm1682, %v6527, %v6377
      %v6544 = vsel %vm1682, %v6528, %v6379
      %v6545 = vsel %vm1682, %v6529, %v6381
      %v6546 = vsel %vm1682, %v6530, %v6383
      %v6547 = vsel %vm1682, %v6531, %v6385
      %v6548 = vsel %vm1682, %v6532, %v6387
      %v6549 = vsel %vm1682, %v6533, %v6389
      %v6550 = vsel %vm2663, %v6534, %v6423
      %v6551 = vsel %vm2663, %v6535, %v6425
      %v6552 = vsel %vm2663, %v6536, %v6427
      %v6553 = vsel %vm2663, %v6537, %v6429
      %v6554 = vsel %vm2663, %v6538, %v6431
      %v6555 = vsel %vm2663, %v6539, %v6433
      %v6556 = vsel %vm2663, %v6540, %v6435
      %v6557 = vsel %vm2663, %v6541, %v6437
      %v6558 = vsel %vm2663, %v6542, %v6439
      %v6559 = vsel %vm2663, %v6543, %v6441
      %v6560 = vsel %vm2663, %v6544, %v6443
      %v6561 = vsel %vm2663, %v6545, %v6445
      %v6562 = vsel %vm2663, %v6546, %v6447
      %v6563 = vsel %vm2663, %v6547, %v6449
      %v6564 = vsel %vm2663, %v6548, %v6451
      %v6565 = vsel %vm2663, %v6549, %v6453
      %v6566 = vpack.c.bf16 %v6503, %v6502
      %v6567 = vpack.c.bf16 %v6551, %v6550
      %v6568 = vpack.c.bf16 %v6071, %v6070
      %v6569 = vpack.c.bf16 %v6505, %v6504
      %v6570 = vpack.c.bf16 %v6553, %v6552
      %v6571 = vpack.c.bf16 %v6073, %v6072
      %v6572 = vpack.c.bf16 %v6507, %v6506
      %v6573 = vpack.c.bf16 %v6555, %v6554
      %v6574 = vpack.c.bf16 %v6075, %v6074
      %v6575 = vpack.c.bf16 %v6509, %v6508
      %v6576 = vpack.c.bf16 %v6557, %v6556
      %v6577 = vpack.c.bf16 %v6077, %v6076
      %v6578 = vpack.c.bf16 %v6511, %v6510
      %v6579 = vpack.c.bf16 %v6559, %v6558
      %v6580 = vpack.c.bf16 %v6079, %v6078
      %v6581 = vpack.c.bf16 %v6513, %v6512
      %v6582 = vpack.c.bf16 %v6561, %v6560
      %v6583 = vpack.c.bf16 %v6081, %v6080
      %v6584 = vpack.c.bf16 %v6515, %v6514
      %v6585 = vpack.c.bf16 %v6563, %v6562
      %v6586 = vpack.c.bf16 %v6083, %v6082
      %v6587 = vpack.c.bf16 %v6517, %v6516
      %v6588 = vpack.c.bf16 %v6565, %v6564
      %v6589 = vpack.c.bf16 %v6085, %v6084
      %v6590 = vld [vmem:[%s24] sm:$0xf]
      %v6591 = vld [vmem:[%s24 + $0x4] sm:$0xf]
      %v6592 = vld [vmem:[%s24 + $0x8] sm:$0xf]
      %v6593 = vld [vmem:[%s24 + $0xc] sm:$0xf]
      %v6594 = vld [vmem:[%s24 + $0x10] sm:$0xf]
      %v6595 = vld [vmem:[%s24 + $0x14] sm:$0xf]
      %v6596 = vld [vmem:[%s24 + $0x18] sm:$0xf]
      %v6597 = vld [vmem:[%s24 + $0x1c] sm:$0xf]
      %v6598 = vld [vmem:[%s24 + $0x20] sm:$0xf]
      %v6599 = vld [vmem:[%s24 + $0x24] sm:$0xf]
      %v6600 = vld [vmem:[%s24 + $0x28] sm:$0xf]
      %v6601 = vld [vmem:[%s24 + $0x2c] sm:$0xf]
      %v6602 = vld [vmem:[%s24 + $0x30] sm:$0xf]
      %v6603 = vld [vmem:[%s24 + $0x34] sm:$0xf]
      %v6604 = vld [vmem:[%s24 + $0x38] sm:$0xf]
      %v6605 = vld [vmem:[%s24 + $0x3c] sm:$0xf]
      %v6606 = vld [vmem:[%s24 + $0x40] sm:$0xf]
      %v6607 = vld [vmem:[%s24 + $0x44] sm:$0xf]
      %v6608 = vld [vmem:[%s24 + $0x48] sm:$0xf]
      %v6609 = vld [vmem:[%s24 + $0x4c] sm:$0xf]
      %v6610 = vld [vmem:[%s24 + $0x50] sm:$0xf]
      %v6611 = vld [vmem:[%s24 + $0x54] sm:$0xf]
      %v6612 = vld [vmem:[%s24 + $0x58] sm:$0xf]
      %v6613 = vld [vmem:[%s24 + $0x5c] sm:$0xf]
      %v6614 = vld [vmem:[%s24 + $0x60] sm:$0xf]
      %v6615 = vld [vmem:[%s24 + $0x64] sm:$0xf]
      %v6616 = vld [vmem:[%s24 + $0x68] sm:$0xf]
      %v6617 = vld [vmem:[%s24 + $0x6c] sm:$0xf]
      %v6618 = vld [vmem:[%s24 + $0x70] sm:$0xf]
      %v6619 = vld [vmem:[%s24 + $0x74] sm:$0xf]
      %v6620 = vld [vmem:[%s24 + $0x78] sm:$0xf]
      %v6621 = vld [vmem:[%s24 + $0x7c] sm:$0xf]
      %v6622 = vld [vmem:[%s24 + $0x80] sm:$0xf]
      %v6623 = vld [vmem:[%s24 + $0x84] sm:$0xf]
      %v6624 = vld [vmem:[%s24 + $0x88] sm:$0xf]
      %v6625 = vld [vmem:[%s24 + $0x8c] sm:$0xf]
      %v6626 = vld [vmem:[%s25] sm:$0x1]
      %v6628 = vlaneseq
      %v6629 = vshrl.u32 %v6628, 7
      %v6630 = vsub.s32 0, %v6629
      %v6631 = vrot.slane %v6626, %v6630
      %v6669 = vunpack.c.l.b16 %v6590
      %v6670 = vunpack.c.l.b16 %v6591
      %v6671 = vunpack.c.l.b16 %v6592
      %v6672 = vunpack.c.l.b16 %v6593
      %v6673 = vunpack.c.l.b16 %v6594
      %v6674 = vunpack.c.l.b16 %v6595
      %v6675 = vunpack.c.l.b16 %v6596
      %v6676 = vunpack.c.l.b16 %v6597
      %v6677 = vunpack.c.l.b16 %v6598
      %v6678 = vunpack.c.l.b16 %v6599
      %v6679 = vunpack.c.l.b16 %v6600
      %v6680 = vunpack.c.l.b16 %v6601
      %v6681 = vunpack.c.l.b16 %v6602
      %v6682 = vunpack.c.l.b16 %v6603
      %v6683 = vunpack.c.l.b16 %v6604
      %v6684 = vunpack.c.l.b16 %v6605
      %v6685 = vunpack.c.l.b16 %v6606
      %v6686 = vunpack.c.l.b16 %v6607
      %v6687 = vunpack.c.l.b16 %v6608
      %v6688 = vunpack.c.l.b16 %v6609
      %v6689 = vunpack.c.l.b16 %v6610
      %v6690 = vunpack.c.l.b16 %v6611
      %v6691 = vunpack.c.l.b16 %v6612
      %v6692 = vunpack.c.l.b16 %v6613
      %v6693 = vunpack.c.l.b16 %v6614
      %v6694 = vunpack.c.l.b16 %v6615
      %v6695 = vunpack.c.l.b16 %v6616
      %v6696 = vunpack.c.l.b16 %v6617
      %v6697 = vunpack.c.l.b16 %v6618
      %v6698 = vunpack.c.l.b16 %v6619
      %v6699 = vunpack.c.l.b16 %v6620
      %v6700 = vunpack.c.l.b16 %v6621
      %v6701 = vunpack.c.l.b16 %v6622
      %v6702 = vunpack.c.l.b16 %v6623
      %v6703 = vunpack.c.l.b16 %v6624
      %v6704 = vunpack.c.l.b16 %v6625
      %v6705 = vpack.c.b16 %v6670, %v6669
      %v6706 = vpack.c.b16 %v6672, %v6671
      %v6707 = vpack.c.b16 %v6674, %v6673
      %v6708 = vpack.c.b16 %v6676, %v6675
      %v6709 = vpack.c.b16 %v6678, %v6677
      %v6710 = vpack.c.b16 %v6680, %v6679
      %v6711 = vpack.c.b16 %v6682, %v6681
      %v6712 = vpack.c.b16 %v6684, %v6683
      %v6713 = vpack.c.b16 %v6686, %v6685
      %v6714 = vpack.c.b16 %v6688, %v6687
      %v6715 = vpack.c.b16 %v6690, %v6689
      %v6716 = vpack.c.b16 %v6692, %v6691
      %v6717 = vpack.c.b16 %v6694, %v6693
      %v6718 = vpack.c.b16 %v6696, %v6695
      %v6719 = vpack.c.b16 %v6698, %v6697
      %v6720 = vpack.c.b16 %v6700, %v6699
      %v6721 = vpack.c.b16 %v6702, %v6701
      %v6722 = vpack.c.b16 %v6704, %v6703
      %v6742 = vsel %vm864, %v6568, 0
      %v6745 = vsel %vm864, %v6571, 0
      %v6748 = vsel %vm864, %v6574, 0
      %v6751 = vsel %vm864, %v6577, 0
      %v6754 = vsel %vm864, %v6580, 0
      %v6757 = vsel %vm864, %v6583, 0
      %v6760 = vsel %vm864, %v6586, 0
      %v6763 = vsel %vm864, %v6589, 0
      %6765 = vmatprep.subr.bf16.mxu0 0
      %6766 = vmatpush1.bf16.msra.mxu0 %v6712
      %6767 = vmatprep.subr.bf16.mxu0 0
      %6768 = vmatpush1.bf16.msra.mxu0 %v6711
      %6769 = vmatprep.subr.bf16.mxu0 0
      %6770 = vmatpush1.bf16.msra.mxu0 %v6710
      %6771 = vmatprep.subr.bf16.mxu0 0
      %6772 = vmatpush1.bf16.msra.mxu0 %v6709
      %6773 = vmatprep.subr.bf16.mxu0 0
      %6774 = vmatpush1.bf16.msra.mxu0 %v6708
      %6775 = vmatprep.subr.bf16.mxu0 0
      %6776 = vmatpush1.bf16.msra.mxu0 %v6707
      %6777 = vmatprep.subr.bf16.mxu0 0
      %6778 = vmatpush1.bf16.msra.mxu0 %v6706
      %6779 = vmatprep.subr.bf16.mxu0 0
      %6780 = vmatpush1.bf16.msra.mxu0 %v6705
      %6781 = vmatprep.subr.bf16.mxu0 0
      %6782 = vmatpush2.bf16.msra.mxu0 %v6720
      %6783 = vmatprep.subr.bf16.mxu0 0
      %6784 = vmatpush2.bf16.msra.mxu0 %v6719
      %6785 = vmatprep.subr.bf16.mxu0 0
      %6786 = vmatpush2.bf16.msra.mxu0 %v6718
      %6787 = vmatprep.subr.bf16.mxu0 0
      %6788 = vmatpush2.bf16.msra.mxu0 %v6717
      %6789 = vmatprep.subr.bf16.mxu0 0
      %6790 = vmatpush2.bf16.msra.mxu0 %v6716
      %6791 = vmatprep.subr.bf16.mxu0 0
      %6792 = vmatpush2.bf16.msra.mxu0 %v6715
      %6793 = vmatprep.subr.bf16.mxu0 0
      %6794 = vmatpush2.bf16.msra.mxu0 %v6714
      %6795 = vmatprep.subr.bf16.mxu0 0
      %6796 = vmatpush2.bf16.msra.mxu0 %v6713
      %6797 = vmatprep.mubr.bf16.mxu0 %v6567
      %6798 = vmatmul.mubr.bf16.gmra.mxu0 %v6566
      %v6799 = vpop.f32.mrf.mxu0
      %v6800 = vadd.f32 %v6631, %v6799
      %v6801 = vpop.f32.mrf.mxu0
      %v6802 = vpop.f32.mrf.mxu0
      %v6803 = vadd.f32 %v6631, %v6802
      %v6804 = vpop.f32.mrf.mxu0
      %6805 = vmatprep.mubr.bf16.mxu0 %v6570
      %6806 = vmatmul.mubr.bf16.gmra.mxu0 %v6569
      %v6807 = vpop.f32.mrf.mxu0
      %v6808 = vadd.f32 %v6631, %v6807
      %v6809 = vpop.f32.mrf.mxu0
      %v6810 = vpop.f32.mrf.mxu0
      %v6811 = vadd.f32 %v6631, %v6810
      %v6812 = vpop.f32.mrf.mxu0
      %6813 = vmatprep.mubr.bf16.mxu0 %v6573
      %6814 = vmatmul.mubr.bf16.gmra.mxu0 %v6572
      %v6815 = vpop.f32.mrf.mxu0
      %v6816 = vadd.f32 %v6631, %v6815
      %v6817 = vpop.f32.mrf.mxu0
      %v6818 = vpop.f32.mrf.mxu0
      %v6819 = vadd.f32 %v6631, %v6818
      %v6820 = vpop.f32.mrf.mxu0
      %6821 = vmatprep.mubr.bf16.mxu0 %v6576
      %6822 = vmatmul.mubr.bf16.gmra.mxu0 %v6575
      %v6823 = vpop.f32.mrf.mxu0
      %v6824 = vadd.f32 %v6631, %v6823
      %v6825 = vpop.f32.mrf.mxu0
      %v6826 = vpop.f32.mrf.mxu0
      %v6827 = vadd.f32 %v6631, %v6826
      %v6828 = vpop.f32.mrf.mxu0
      %6829 = vmatprep.mubr.bf16.mxu0 %v6579
      %6830 = vmatmul.mubr.bf16.gmra.mxu0 %v6578
      %v6831 = vpop.f32.mrf.mxu0
      %v6832 = vadd.f32 %v6631, %v6831
      %v6833 = vpop.f32.mrf.mxu0
      %v6834 = vpop.f32.mrf.mxu0
      %v6835 = vadd.f32 %v6631, %v6834
      %v6836 = vpop.f32.mrf.mxu0
      %6837 = vmatprep.mubr.bf16.mxu0 %v6582
      %6838 = vmatmul.mubr.bf16.gmra.mxu0 %v6581
      %v6839 = vpop.f32.mrf.mxu0
      %v6840 = vadd.f32 %v6631, %v6839
      %v6841 = vpop.f32.mrf.mxu0
      %v6842 = vpop.f32.mrf.mxu0
      %v6843 = vadd.f32 %v6631, %v6842
      %v6844 = vpop.f32.mrf.mxu0
      %6845 = vmatprep.mubr.bf16.mxu0 %v6585
      %6846 = vmatmul.mubr.bf16.gmra.mxu0 %v6584
      %v6847 = vpop.f32.mrf.mxu0
      %v6848 = vadd.f32 %v6631, %v6847
      %v6849 = vpop.f32.mrf.mxu0
      %v6850 = vpop.f32.mrf.mxu0
      %v6851 = vadd.f32 %v6631, %v6850
      %v6852 = vpop.f32.mrf.mxu0
      %6853 = vmatprep.mubr.bf16.mxu0 %v6588
      %6854 = vmatmul.mubr.bf16.gmra.mxu0 %v6587
      %v6855 = vpop.f32.mrf.mxu0
      %v6856 = vadd.f32 %v6631, %v6855
      %v6857 = vpop.f32.mrf.mxu0
      %v6858 = vpop.f32.mrf.mxu0
      %v6859 = vadd.f32 %v6631, %v6858
      %v6860 = vpop.f32.mrf.mxu0
      %6861 = vdwg.mxu0
      %6862 = vmatprep.subr.bf16.mxu0 0
      %6863 = vmatpush1.bf16.msra.mxu0 0
      %6864 = vmatprep.subr.bf16.mxu0 0
      %6865 = vmatpush1.bf16.msra.mxu0 0
      %6866 = vmatprep.subr.bf16.mxu0 0
      %6867 = vmatpush1.bf16.msra.mxu0 0
      %6868 = vmatprep.subr.bf16.mxu0 0
      %6869 = vmatpush1.bf16.msra.mxu0 0
      %6870 = vmatprep.subr.bf16.mxu0 0
      %6871 = vmatpush1.bf16.msra.mxu0 0
      %6872 = vmatprep.subr.bf16.mxu0 0
      %6873 = vmatpush1.bf16.msra.mxu0 0
      %6874 = vmatprep.subr.bf16.mxu0 0
      %6875 = vmatpush1.bf16.msra.mxu0 %v6722
      %6876 = vmatprep.subr.bf16.mxu0 0
      %6877 = vmatpush1.bf16.msra.mxu0 %v6721
      %6878 = vmatprep.subr.bf16.mxu0 0
      %6879 = vmatpush2.bf16.msra.mxu0 0
      %6880 = vmatprep.subr.bf16.mxu0 0
      %6881 = vmatpush2.bf16.msra.mxu0 0
      %6882 = vmatprep.subr.bf16.mxu0 0
      %6883 = vmatpush2.bf16.msra.mxu0 0
      %6884 = vmatprep.subr.bf16.mxu0 0
      %6885 = vmatpush2.bf16.msra.mxu0 0
      %6886 = vmatprep.subr.bf16.mxu0 0
      %6887 = vmatpush2.bf16.msra.mxu0 0
      %6888 = vmatprep.subr.bf16.mxu0 0
      %6889 = vmatpush2.bf16.msra.mxu0 0
      %6890 = vmatprep.subr.bf16.mxu0 0
      %6891 = vmatpush2.bf16.msra.mxu0 0
      %6892 = vmatprep.subr.bf16.mxu0 0
      %6893 = vmatpush2.bf16.msra.mxu0 0
      %6894 = vmatprep.mubr.bf16.mxu0 0
      %6895 = vmatmul.mubr.bf16.gmra.mxu0 %v6742
      %v6896 = vpop.f32.mrf.mxu0
      %v6897 = vadd.f32 %v6800, %v6896
      %v6898 = vpop.f32.mrf.mxu0
      %v6899 = vpop.f32.mrf.mxu0
      %v6900 = vadd.f32 %v6803, %v6899
      %v6901 = vpop.f32.mrf.mxu0
      %6902 = vmatprep.mubr.bf16.mxu0 0
      %6903 = vmatmul.mubr.bf16.gmra.mxu0 %v6745
      %v6904 = vpop.f32.mrf.mxu0
      %v6905 = vadd.f32 %v6808, %v6904
      %v6906 = vpop.f32.mrf.mxu0
      %v6907 = vpop.f32.mrf.mxu0
      %v6908 = vadd.f32 %v6811, %v6907
      %v6909 = vpop.f32.mrf.mxu0
      %6910 = vmatprep.mubr.bf16.mxu0 0
      %6911 = vmatmul.mubr.bf16.gmra.mxu0 %v6748
      %v6912 = vpop.f32.mrf.mxu0
      %v6913 = vadd.f32 %v6816, %v6912
      %v6914 = vpop.f32.mrf.mxu0
      %v6915 = vpop.f32.mrf.mxu0
      %v6916 = vadd.f32 %v6819, %v6915
      %v6917 = vpop.f32.mrf.mxu0
      %6918 = vmatprep.mubr.bf16.mxu0 0
      %6919 = vmatmul.mubr.bf16.gmra.mxu0 %v6751
      %v6920 = vpop.f32.mrf.mxu0
      %v6921 = vadd.f32 %v6824, %v6920
      %v6922 = vpop.f32.mrf.mxu0
      %v6923 = vpop.f32.mrf.mxu0
      %v6924 = vadd.f32 %v6827, %v6923
      %v6925 = vpop.f32.mrf.mxu0
      %6926 = vmatprep.mubr.bf16.mxu0 0
      %6927 = vmatmul.mubr.bf16.gmra.mxu0 %v6754
      %v6928 = vpop.f32.mrf.mxu0
      %v6929 = vadd.f32 %v6832, %v6928
      %v6930 = vpop.f32.mrf.mxu0
      %v6931 = vpop.f32.mrf.mxu0
      %v6932 = vadd.f32 %v6835, %v6931
      %v6933 = vpop.f32.mrf.mxu0
      %6934 = vmatprep.mubr.bf16.mxu0 0
      %6935 = vmatmul.mubr.bf16.gmra.mxu0 %v6757
      %v6936 = vpop.f32.mrf.mxu0
      %v6937 = vadd.f32 %v6840, %v6936
      %v6938 = vpop.f32.mrf.mxu0
      %v6939 = vpop.f32.mrf.mxu0
      %v6940 = vadd.f32 %v6843, %v6939
      %v6941 = vpop.f32.mrf.mxu0
      %6942 = vmatprep.mubr.bf16.mxu0 0
      %6943 = vmatmul.mubr.bf16.gmra.mxu0 %v6760
      %v6944 = vpop.f32.mrf.mxu0
      %v6945 = vadd.f32 %v6848, %v6944
      %v6946 = vpop.f32.mrf.mxu0
      %v6947 = vpop.f32.mrf.mxu0
      %v6948 = vadd.f32 %v6851, %v6947
      %v6949 = vpop.f32.mrf.mxu0
      %6950 = vmatprep.mubr.bf16.mxu0 0
      %6951 = vmatmul.mubr.bf16.gmra.mxu0 %v6763
      %v6952 = vpop.f32.mrf.mxu0
      %v6953 = vadd.f32 %v6856, %v6952
      %v6954 = vpop.f32.mrf.mxu0
      %v6955 = vpop.f32.mrf.mxu0
      %v6956 = vadd.f32 %v6859, %v6955
      %v6957 = vpop.f32.mrf.mxu0
      %6958 = vdwg.mxu0
      %6959 = vst [vmem:[%s862] sm:$0xff] %v6897
      %6960 = vst [vmem:[%s862 + $0x8] sm:$0xff] %v6900
      %6961 = vst [vmem:[%s862 + $0x10] sm:$0xff] %v6905
      %6962 = vst [vmem:[%s862 + $0x18] sm:$0xff] %v6908
      %6963 = vst [vmem:[%s862 + $0x20] sm:$0xff] %v6913
      %6964 = vst [vmem:[%s862 + $0x28] sm:$0xff] %v6916
      %6965 = vst [vmem:[%s862 + $0x30] sm:$0xff] %v6921
      %6966 = vst [vmem:[%s862 + $0x38] sm:$0xff] %v6924
      %6967 = vst [vmem:[%s862 + $0x40] sm:$0xff] %v6929
      %6968 = vst [vmem:[%s862 + $0x48] sm:$0xff] %v6932
      %6969 = vst [vmem:[%s862 + $0x50] sm:$0xff] %v6937
      %6970 = vst [vmem:[%s862 + $0x58] sm:$0xff] %v6940
      %6971 = vst [vmem:[%s862 + $0x60] sm:$0xff] %v6945
      %6972 = vst [vmem:[%s862 + $0x68] sm:$0xff] %v6948
      %6973 = vst [vmem:[%s862 + $0x70] sm:$0xff] %v6953
      %6974 = vst [vmem:[%s862 + $0x78] sm:$0xff] %v6956
      %p6975 = scmp.lt.s32.totalorder %s37, 1
      %s6976 = scalar_select %p6975, %s37, 1
      %s6977 = smul.addr %s6976, 16
      %s6978 = smul.addr %s6977, 8
      %s6979 = scalar_lea.vmem %s26, %s6978
      // Predicated region
      $region125: #{net_forward.1} parent=123 // pred_check
        %p6980 = pneg %p626
      $region126: #{net_forward.1} parent=123 // pred_check_branch
        %6982 = sbr.rel (%p6980) target = $region128
      $region127: #{net_forward.1} parent=123 // pred_region
        _
      $region128: #{net_forward.1} parent=123 // pred_fallthru
        _
    $region124: #{net_forward.1} parent=5 // pred_fallthru
      _
    %p6983 = scmp.le.s32.totalorder 2, %s32
    // Predicated region
    $region129: #{net_forward.1} parent=5 // pred_check
      %p6984 = pneg %p6983
    $region130: #{net_forward.1} parent=5 // pred_check_branch
      %6986 = sbr.rel (%p6984) target = $region132
    $region131: #{net_forward.1} parent=5 // pred_region
      %s6987 = ssub.s32 %s32, 2
      // Predicated region
      $region133: #{net_forward.1} parent=131 // pred_check
        %p6988 = pneg %p632
      $region134: #{net_forward.1} parent=131 // pred_check_branch
        %6990 = sbr.rel (%p6988) target = $region136
      $region135: #{net_forward.1} parent=131 // pred_region
        %p6991 = scmp.lt.s32.totalorder %s38, 1
        %s6992 = scalar_select %p6991, %s38, 1
        %s6993 = smul.addr %s6992, 16
        %s6994 = smul.addr %s6993, 8
        %s6995 = scalar_lea.vmem %s26, %s6994
      $region136: #{net_forward.1} parent=131 // pred_fallthru
        _
    $region132: #{net_forward.1} parent=5 // pred_fallthru
      _
  $region6: #{net_forward.1} parent=0 // loop_footer
    %s36 = sadd.s32 1, %s32
  $region7: #{net_forward.1} parent=0 // loop_footer_branch
    %31 = sbr.rel target = $region3
  $region8: #{net_forward.1} parent=0 // loop_exit
    _

</llo_original>
